<compile_context>
chip_gen: v6e
topology: v6e:2x2x1
jax: 0.10.0
libtpu: 0.0.40
codegen_flags: <defaults>
</compile_context>

<pallas_src>
import functools

import jax
import jax.numpy as jnp
from jax.experimental import pallas as pl
from jax.experimental.pallas import tpu as pltpu

_VMEM_LIMIT = 32 * 1024 * 1024      # safe on v5e/v6e (128 MiB) and v7x (64 MiB)


def _round_up(x, m):
    return -(-x // m) * m


def _pick_tm(M):
    """Largest M-tile that divides M exactly while giving >=4 (else >=2) grid steps."""
    for min_tiles in (4, 2):
        for tm in (1024, 512, 256, 128, 64, 32, 16, 8):
            if M % tm == 0 and M // tm >= min_tiles:
                return tm
    return M


# ---------------------------------------------------------------------------
# Pallas kernel 1: direct 3x3 conv (stride 1, pad 1) from a halo tile.
#   grid = (pair, batch); per step one full image, 9 shifted MXU dots.
#   Optional fused sigmoid and fused per-channel BN statistics output.
# ---------------------------------------------------------------------------
def _conv3x3_kernel(x_ref, w_ref, b_ref, o_ref, *rest, H, W, act):
    # x_ref: (H+2, W+2, Cin) bf16 halo tile
    # w_ref: (9, Cin, Cout)  bf16
    # b_ref: (1, Cout)       f32
    # o_ref: (H*W, Cout)     bf16
    # rest : optionally (stats_ref,) with shape (8, Cout) f32
    cin = x_ref.shape[-1]
    cout = o_ref.shape[-1]
    x = x_ref[...]                                    # one VMEM load of the halo tile
    acc = None
    for t in range(9):
        i, j = t // 3, t % 3
        win = x[i:i + H, j:j + W, :].reshape(H * W, cin)
        d = jnp.dot(win, w_ref[t], preferred_element_type=jnp.float32)
        acc = d if acc is None else acc + d
    acc = acc + b_ref[...]                            # (1, Cout) broadcast

    if act == "sigmoid":
        out = jax.nn.sigmoid(acc)
    else:
        out = acc
    o_ref[...] = out.astype(o_ref.dtype)

    if rest:                                          # fused BN statistics (pre-activation)
        stats_ref = rest[0]
        srow = jnp.sum(acc, axis=0, keepdims=True)            # (1, Cout)
        ssrow = jnp.sum(acc * acc, axis=0, keepdims=True)      # (1, Cout)
        stats_ref[...] = jnp.concatenate(
            [srow, ssrow, jnp.zeros((6, cout), jnp.float32)], axis=0)


def conv3x3_pair(x, w9, b, *, act="none", with_stats=False):
    """x: (G, B, H, W, Cin) -> (G, B, H, W, Cout) bf16 [, stats (G, B, 8, Cout) f32].

    bf16-first: the activation is cast to bf16 BEFORE the spatial pad so no f32
    patch tensor is ever written; the kernel DMAs exactly one halo tile per step.
    """
    G, B, H, W, Cin = x.shape
    Cout = w9.shape[-1]
    xp = jnp.pad(x.astype(jnp.bfloat16),
                 ((0, 0), (0, 0), (1, 1), (1, 1), (0, 0)))      # (G,B,H+2,W+2,Cin)
    wb = w9.astype(jnp.bfloat16)                                 # (G,9,Cin,Cout)
    bb = b.reshape(G, 1, Cout).astype(jnp.float32)

    out_shapes = [jax.ShapeDtypeStruct((G, B, H * W, Cout), jnp.bfloat16)]
    out_specs = [pl.BlockSpec((None, None, H * W, Cout), lambda g, n: (g, n, 0, 0))]
    if with_stats:
        out_shapes.append(jax.ShapeDtypeStruct((G, B, 8, Cout), jnp.float32))
        out_specs.append(pl.BlockSpec((None, None, 8, Cout), lambda g, n: (g, n, 0, 0)))

    res = pl.pallas_call(
        functools.partial(_conv3x3_kernel, H=H, W=W, act=act),
        out_shape=tuple(out_shapes),
        grid_spec=pltpu.PrefetchScalarGridSpec(
            num_scalar_prefetch=0,
            grid=(G, B),                                         # >= 2 steps (v7x)
            in_specs=[
                pl.BlockSpec((None, None, H + 2, W + 2, Cin),
                             lambda g, n: (g, n, 0, 0, 0)),
                pl.BlockSpec((None, 9, Cin, Cout), lambda g, n: (g, 0, 0, 0)),
                pl.BlockSpec((None, 1, Cout), lambda g, n: (g, 0, 0)),
            ],
            out_specs=tuple(out_specs),
        ),
        compiler_params=pltpu.CompilerParams(
            dimension_semantics=("parallel", "parallel"),
            vmem_limit_bytes=_VMEM_LIMIT),
    )(xp, wb, bb)
    # TODO(synk): for large H, tile rows with a halo instead of whole images per step.
    y = res[0].reshape(G, B, H, W, Cout)
    return (y, res[1]) if with_stats else y


# ---------------------------------------------------------------------------
# Pallas kernel 2: fused channel gating  x * sigmoid(W2 @ relu(W1 @ x + b1) + b2)
#   Both tiny 1x1 weights stay VMEM-resident; squeeze intermediate never hits HBM.
# ---------------------------------------------------------------------------
def _channel_gate_kernel(x_ref, w1_ref, b1_ref, w2_ref, b2_ref, o_ref):
    x = x_ref[...]                                                  # (TM, C) bf16
    t = jnp.dot(x, w1_ref[...], preferred_element_type=jnp.float32) + b1_ref[...]
    t = jnp.maximum(t, 0.0)
    g = jnp.dot(t.astype(jnp.bfloat16), w2_ref[...],
                preferred_element_type=jnp.float32) + b2_ref[...]
    g = jax.nn.sigmoid(g)
    o_ref[...] = (x.astype(jnp.float32) * g).astype(o_ref.dtype)


def channel_gate_pair(x, w1, b1, w2, b2):
    """x: (G, M, C) -> (G, M, C) bf16; one pallas_call for squeeze+expand+gate."""
    G, M, C = x.shape
    sq = w1.shape[-1]
    sqp = max(8, _round_up(sq, 8))                 # zero-pad squeeze dim (no effect on math)
    if sqp != sq:
        w1 = jnp.pad(w1, ((0, 0), (0, 0), (0, sqp - sq)))
        b1 = jnp.pad(b1, ((0, 0), (0, sqp - sq)))
        w2 = jnp.pad(w2, ((0, 0), (0, sqp - sq), (0, 0)))
    TM = _pick_tm(M)
    return pl.pallas_call(
        _channel_gate_kernel,
        out_shape=jax.ShapeDtypeStruct((G, M, C), jnp.bfloat16),
        grid_spec=pltpu.PrefetchScalarGridSpec(
            num_scalar_prefetch=0,
            grid=(G, M // TM),
            in_specs=[
                pl.BlockSpec((None, TM, C), lambda g, m: (g, m, 0)),
                pl.BlockSpec((None, C, sqp), lambda g, m: (g, 0, 0)),
                pl.BlockSpec((None, 1, sqp), lambda g, m: (g, 0, 0)),
                pl.BlockSpec((None, sqp, C), lambda g, m: (g, 0, 0)),
                pl.BlockSpec((None, 1, C), lambda g, m: (g, 0, 0)),
            ],
            out_specs=pl.BlockSpec((None, TM, C), lambda g, m: (g, m, 0)),
        ),
        compiler_params=pltpu.CompilerParams(
            dimension_semantics=("parallel", "parallel"),
            vmem_limit_bytes=_VMEM_LIMIT),
    )(x.astype(jnp.bfloat16), w1.astype(jnp.bfloat16),
      b1.reshape(G, 1, sqp).astype(jnp.float32),
      w2.astype(jnp.bfloat16), b2.reshape(G, 1, C).astype(jnp.float32))


# ---------------------------------------------------------------------------
# XLA glue (fuses inside the single jit)
# ---------------------------------------------------------------------------
def _w9(w):
    """PyTorch 3x3 conv weight (Cout, Cin, 3, 3) -> (9, Cin, Cout)."""
    cout, cin, kh, kw = w.shape
    return jnp.transpose(w, (2, 3, 1, 0)).reshape(kh * kw, cin, cout)


def _w1x1(w):
    """PyTorch 1x1 conv weight (Cout, Cin, 1, 1) -> (Cin, Cout)."""
    return jnp.transpose(w[:, :, 0, 0], (1, 0))


def _bn_relu(y, stats, count, gamma, beta, eps=1e-5):
    """BN (train-mode batch stats, fused from kernel sums) + ReLU.

    y: (B, H, W, C) bf16 conv output; stats: (B, 8, C) f32 rows 0/1 = sum / sumsq.
    """
    # TODO(synk): eval-mode BatchNorm would use stored running_mean/var instead.
    s = jnp.sum(stats[:, 0, :], axis=0)
    ss = jnp.sum(stats[:, 1, :], axis=0)
    mean = s / count
    var = ss / count - mean * mean
    scale = gamma * jax.lax.rsqrt(var + eps)
    shift = beta - mean * scale
    return jnp.maximum(y.astype(jnp.float32) * scale + shift, 0.0)


# ---------------------------------------------------------------------------
# MFM_0 forward (NCHW in / NCHW out, matching the PyTorch module)
# ---------------------------------------------------------------------------
@jax.jit
def mfm0_forward(params, rgb_nchw, thermal_nchw):
    rgb = jnp.transpose(rgb_nchw, (0, 2, 3, 1))
    the = jnp.transpose(thermal_nchw, (0, 2, 3, 1))
    B, H, W, _ = rgb.shape
    Cout = params["l10_w"].shape[0]
    count = float(B * H * W)

    # --- layer_10 / layer_20: 3x3 conv + fused sigmoid -> gating weights ------
    x0 = jnp.stack([rgb, the], 0)
    w0 = jnp.stack([_w9(params["l10_w"]), _w9(params["l20_w"])], 0)
    b0 = jnp.stack([params["l10_b"], params["l20_b"]], 0)
    gates = conv3x3_pair(x0, w0, b0, act="sigmoid")          # (2,B,H,W,Cout) bf16
    rgb_w = gates[0].astype(jnp.float32)                      # sigmoid(layer_10(rgb))
    the_w = gates[1].astype(jnp.float32)                      # sigmoid(layer_20(thermal))

    x_rgb_r = rgb * the_w + rgb
    x_the_r = the * rgb_w + the

    # --- layer_11 / layer_21: 3x3 conv (BN stats fused) -> BN -> ReLU ---------
    x1 = jnp.stack([x_rgb_r, x_the_r], 0)
    w1 = jnp.stack([_w9(params["l11_w"]), _w9(params["l21_w"])], 0)
    b1 = jnp.stack([params["l11_b"], params["l21_b"]], 0)
    y1, st1 = conv3x3_pair(x1, w1, b1, act="none", with_stats=True)
    x_rgb_r = _bn_relu(y1[0], st1[0], count, params["bn11_g"], params["bn11_b"])
    x_the_r = _bn_relu(y1[1], st1[1], count, params["bn21_g"], params["bn21_b"])

    # --- channel_mul_conv{1,2}: ONE fused squeeze/ReLU/expand/sigmoid/gate ----
    a = jnp.stack([x_rgb_r.reshape(B * H * W, Cout),
                   x_the_r.reshape(B * H * W, Cout)], 0)
    wsa = jnp.stack([_w1x1(params["cmc1a_w"]), _w1x1(params["cmc2a_w"])], 0)
    bsa = jnp.stack([params["cmc1a_b"], params["cmc2a_b"]], 0)
    wsb = jnp.stack([_w1x1(params["cmc1b_w"]), _w1x1(params["cmc2b_w"])], 0)
    bsb = jnp.stack([params["cmc1b_b"], params["cmc2b_b"]], 0)
    gated = channel_gate_pair(a, wsa, bsa, wsb, bsb)           # (2,M,Cout) bf16
    x_rgb_g = gated[0].reshape(B, H, W, Cout)
    x_the_g = gated[1].reshape(B, H, W, Cout)

    ful_out = jnp.concatenate([x_rgb_g, x_the_g], axis=-1)     # (B,H,W,2*Cout) bf16

    # --- spatial mask: 7x7 conv on [avg, max] over channels — plain XLA -------
    ful_f32 = ful_out.astype(jnp.float32)
    avgout = jnp.mean(ful_f32, axis=-1, keepdims=True)
    maxout = jnp.max(ful_f32, axis=-1, keepdims=True)
    sp_in = jnp.concatenate([avgout, maxout], axis=-1)         # (B,H,W,2)
    sp_w = jnp.transpose(params["sp_w"], (2, 3, 1, 0))         # (7,7,2,1) HWIO
    mask = jax.nn.sigmoid(jax.lax.conv_general_dilated(
        sp_in, sp_w, window_strides=(1, 1), padding="SAME",
        dimension_numbers=("NHWC", "HWIO", "NHWC")))           # (B,H,W,1)

    # --- layer_ful1: 3x3 conv (2C->C, BN stats fused) -> BN -> ReLU, * mask ---
    wf = _w9(params["ful1_w"])[None]
    bf = params["ful1_b"][None]
    yf, stf = conv3x3_pair(ful_out[None], wf, bf, act="none", with_stats=True)
    out1 = _bn_relu(yf[0], stf[0], count, params["bnf_g"], params["bnf_b"]) * mask

    return jnp.transpose(out1, (0, 3, 1, 2))                   # back to NCHW f32


# ---------------------------------------------------------------------------
# Deterministic parameter generation (PyTorch layouts)
# ---------------------------------------------------------------------------
def make_mfm0_params(in_dim, out_dim, seed=0):
    key = jax.random.PRNGKey(seed)
    cnt = [0]

    def nxt(shape, scale):
        cnt[0] += 1
        return jax.random.normal(jax.random.fold_in(key, cnt[0]),
                                 shape, jnp.float32) * scale

    def conv(cout, cin, kh, kw, bias=True):
        scale = 0.5 * (2.0 / (cin * kh * kw)) ** 0.5
        w = nxt((cout, cin, kh, kw), scale)
        b = nxt((cout,), 0.01) if bias else None
        return w, b

    sq = max(out_dim // 16, 1)
    p = {}
    p["l10_w"], p["l10_b"] = conv(out_dim, in_dim, 3, 3)
    p["l20_w"], p["l20_b"] = conv(out_dim, in_dim, 3, 3)
    p["l11_w"], p["l11_b"] = conv(out_dim, out_dim, 3, 3)
    p["l21_w"], p["l21_b"] = conv(out_dim, out_dim, 3, 3)
    p["bn11_g"] = jnp.ones((out_dim,), jnp.float32)
    p["bn11_b"] = jnp.zeros((out_dim,), jnp.float32)
    p["bn21_g"] = jnp.ones((out_dim,), jnp.float32)
    p["bn21_b"] = jnp.zeros((out_dim,), jnp.float32)
    p["ful1_w"], p["ful1_b"] = conv(out_dim, 2 * out_dim, 3, 3)
    p["bnf_g"] = jnp.ones((out_dim,), jnp.float32)
    p["bnf_b"] = jnp.zeros((out_dim,), jnp.float32)
    p["sp_w"], _ = conv(1, 2, 7, 7, bias=False)
    p["cmc1a_w"], p["cmc1a_b"] = conv(sq, out_dim, 1, 1)
    p["cmc1b_w"], p["cmc1b_b"] = conv(out_dim, sq, 1, 1)
    p["cmc2a_w"], p["cmc2a_b"] = conv(sq, out_dim, 1, 1)
    p["cmc2b_w"], p["cmc2b_b"] = conv(out_dim, sq, 1, 1)
    return p


if __name__ == "__main__":
    key = jax.random.PRNGKey(0)
    k1, k2 = jax.random.split(key)
    B, C, Hs, Ws = 2, 32, 16, 16          # in_dim == out_dim required by rgb.mul(the_w)
    rgb = jax.random.normal(k1, (B, C, Hs, Ws), jnp.float32)
    thermal = jax.random.normal(k2, (B, C, Hs, Ws), jnp.float32)

    params = make_mfm0_params(in_dim=C, out_dim=C, seed=0)
    out = mfm0_forward(params, rgb, thermal)
    out = jax.block_until_ready(out)

    assert out.shape == (B, C, Hs, Ws)
    assert bool(jnp.all(jnp.isfinite(out)))
    print("KERNEL_OK")
</pallas_src>

<mosaic_0001>
module attributes {stable_mosaic.version = 11 : i64} {
  func.func @_conv3x3_kernel(%arg0: i32, %arg1: i32, %arg2: memref<1x1x18x18x32xbf16, #tpu.memory_space<vmem>>, %arg3: memref<1x9x32x32xbf16, #tpu.memory_space<vmem>>, %arg4: memref<1x1x32xf32, #tpu.memory_space<vmem>>, %arg5: memref<1x1x256x32xbf16, #tpu.memory_space<vmem>>) attributes {dimension_semantics = [#tpu.dimension_semantics<parallel>, #tpu.dimension_semantics<parallel>], iteration_bounds = array<i64: 2, 2>, scalar_prefetch = 0 : i64, scratch_operands = 0 : i64, tpu.core_type = #tpu.core_type<tc>, window_params = [{transform_indices = @transform_0, window_bounds = array<i64: 1, 1, 18, 18, 32>}, {transform_indices = @transform_1, window_bounds = array<i64: 1, 9, 32, 32>}, {transform_indices = @transform_2, window_bounds = array<i64: 1, 1, 32>}, {transform_indices = @transform_3, window_bounds = array<i64: 1, 1, 256, 32>}]} {
    %c0 = arith.constant 0 : index
    %c0_0 = arith.constant 0 : index
    %c0_1 = arith.constant 0 : index
    %c0_2 = arith.constant 0 : index
    %c0_3 = arith.constant 0 : index
    %0 = vector.load %arg2[%c0, %c0_0, %c0_1, %c0_2, %c0_3] : memref<1x1x18x18x32xbf16, #tpu.memory_space<vmem>>, vector<1x1x18x18x32xbf16>
    %1 = vector.shape_cast %0 : vector<1x1x18x18x32xbf16> to vector<18x18x32xbf16>
    %2 = vector.extract_strided_slice %1 {offsets = [0, 0, 0], sizes = [16, 16, 32], strides = [1, 1, 1]} : vector<18x18x32xbf16> to vector<16x16x32xbf16>
    %3 = vector.shape_cast %2 : vector<16x16x32xbf16> to vector<256x32xbf16>
    %c0_4 = arith.constant 0 : index
    %c0_5 = arith.constant 0 : index
    %c0_6 = arith.constant 0 : index
    %c0_7 = arith.constant 0 : index
    %4 = vector.load %arg3[%c0_4, %c0_5, %c0_6, %c0_7] : memref<1x9x32x32xbf16, #tpu.memory_space<vmem>>, vector<1x1x32x32xbf16>
    %5 = vector.shape_cast %4 : vector<1x1x32x32xbf16> to vector<32x32xbf16>
    %cst = arith.constant dense<0.000000e+00> : vector<256x32xf32>
    %6 = tpu.matmul %3, %5, %cst {dimension_numbers = #tpu.dot_dimension_numbers<[1], [0], [0], [1], [0, 0, 1, 1], [], []>} : vector<256x32xbf16>, vector<32x32xbf16>, vector<256x32xf32> -> vector<256x32xf32>
    %7 = vector.extract_strided_slice %1 {offsets = [0, 1, 0], sizes = [16, 16, 32], strides = [1, 1, 1]} : vector<18x18x32xbf16> to vector<16x16x32xbf16>
    %8 = vector.shape_cast %7 : vector<16x16x32xbf16> to vector<256x32xbf16>
    %c0_8 = arith.constant 0 : index
    %c1 = arith.constant 1 : index
    %c0_9 = arith.constant 0 : index
    %c0_10 = arith.constant 0 : index
    %9 = vector.load %arg3[%c0_8, %c1, %c0_9, %c0_10] : memref<1x9x32x32xbf16, #tpu.memory_space<vmem>>, vector<1x1x32x32xbf16>
    %10 = vector.shape_cast %9 : vector<1x1x32x32xbf16> to vector<32x32xbf16>
    %cst_11 = arith.constant dense<0.000000e+00> : vector<256x32xf32>
    %11 = tpu.matmul %8, %10, %cst_11 {dimension_numbers = #tpu.dot_dimension_numbers<[1], [0], [0], [1], [0, 0, 1, 1], [], []>} : vector<256x32xbf16>, vector<32x32xbf16>, vector<256x32xf32> -> vector<256x32xf32>
    %12 = arith.addf %6, %11 : vector<256x32xf32>
    %13 = vector.extract_strided_slice %1 {offsets = [0, 2, 0], sizes = [16, 16, 32], strides = [1, 1, 1]} : vector<18x18x32xbf16> to vector<16x16x32xbf16>
    %14 = vector.shape_cast %13 : vector<16x16x32xbf16> to vector<256x32xbf16>
    %c0_12 = arith.constant 0 : index
    %c2 = arith.constant 2 : index
    %c0_13 = arith.constant 0 : index
    %c0_14 = arith.constant 0 : index
    %15 = vector.load %arg3[%c0_12, %c2, %c0_13, %c0_14] : memref<1x9x32x32xbf16, #tpu.memory_space<vmem>>, vector<1x1x32x32xbf16>
    %16 = vector.shape_cast %15 : vector<1x1x32x32xbf16> to vector<32x32xbf16>
    %cst_15 = arith.constant dense<0.000000e+00> : vector<256x32xf32>
    %17 = tpu.matmul %14, %16, %cst_15 {dimension_numbers = #tpu.dot_dimension_numbers<[1], [0], [0], [1], [0, 0, 1, 1], [], []>} : vector<256x32xbf16>, vector<32x32xbf16>, vector<256x32xf32> -> vector<256x32xf32>
    %18 = arith.addf %12, %17 : vector<256x32xf32>
    %19 = vector.extract_strided_slice %1 {offsets = [1, 0, 0], sizes = [16, 16, 32], strides = [1, 1, 1]} : vector<18x18x32xbf16> to vector<16x16x32xbf16>
    %20 = vector.shape_cast %19 : vector<16x16x32xbf16> to vector<256x32xbf16>
    %c0_16 = arith.constant 0 : index
    %c3 = arith.constant 3 : index
    %c0_17 = arith.constant 0 : index
    %c0_18 = arith.constant 0 : index
    %21 = vector.load %arg3[%c0_16, %c3, %c0_17, %c0_18] : memref<1x9x32x32xbf16, #tpu.memory_space<vmem>>, vector<1x1x32x32xbf16>
    %22 = vector.shape_cast %21 : vector<1x1x32x32xbf16> to vector<32x32xbf16>
    %cst_19 = arith.constant dense<0.000000e+00> : vector<256x32xf32>
    %23 = tpu.matmul %20, %22, %cst_19 {dimension_numbers = #tpu.dot_dimension_numbers<[1], [0], [0], [1], [0, 0, 1, 1], [], []>} : vector<256x32xbf16>, vector<32x32xbf16>, vector<256x32xf32> -> vector<256x32xf32>
    %24 = arith.addf %18, %23 : vector<256x32xf32>
    %25 = vector.extract_strided_slice %1 {offsets = [1, 1, 0], sizes = [16, 16, 32], strides = [1, 1, 1]} : vector<18x18x32xbf16> to vector<16x16x32xbf16>
    %26 = vector.shape_cast %25 : vector<16x16x32xbf16> to vector<256x32xbf16>
    %c0_20 = arith.constant 0 : index
    %c4 = arith.constant 4 : index
    %c0_21 = arith.constant 0 : index
    %c0_22 = arith.constant 0 : index
    %27 = vector.load %arg3[%c0_20, %c4, %c0_21, %c0_22] : memref<1x9x32x32xbf16, #tpu.memory_space<vmem>>, vector<1x1x32x32xbf16>
    %28 = vector.shape_cast %27 : vector<1x1x32x32xbf16> to vector<32x32xbf16>
    %cst_23 = arith.constant dense<0.000000e+00> : vector<256x32xf32>
    %29 = tpu.matmul %26, %28, %cst_23 {dimension_numbers = #tpu.dot_dimension_numbers<[1], [0], [0], [1], [0, 0, 1, 1], [], []>} : vector<256x32xbf16>, vector<32x32xbf16>, vector<256x32xf32> -> vector<256x32xf32>
    %30 = arith.addf %24, %29 : vector<256x32xf32>
    %31 = vector.extract_strided_slice %1 {offsets = [1, 2, 0], sizes = [16, 16, 32], strides = [1, 1, 1]} : vector<18x18x32xbf16> to vector<16x16x32xbf16>
    %32 = vector.shape_cast %31 : vector<16x16x32xbf16> to vector<256x32xbf16>
    %c0_24 = arith.constant 0 : index
    %c5 = arith.constant 5 : index
    %c0_25 = arith.constant 0 : index
    %c0_26 = arith.constant 0 : index
    %33 = vector.load %arg3[%c0_24, %c5, %c0_25, %c0_26] : memref<1x9x32x32xbf16, #tpu.memory_space<vmem>>, vector<1x1x32x32xbf16>
    %34 = vector.shape_cast %33 : vector<1x1x32x32xbf16> to vector<32x32xbf16>
    %cst_27 = arith.constant dense<0.000000e+00> : vector<256x32xf32>
    %35 = tpu.matmul %32, %34, %cst_27 {dimension_numbers = #tpu.dot_dimension_numbers<[1], [0], [0], [1], [0, 0, 1, 1], [], []>} : vector<256x32xbf16>, vector<32x32xbf16>, vector<256x32xf32> -> vector<256x32xf32>
    %36 = arith.addf %30, %35 : vector<256x32xf32>
    %37 = vector.extract_strided_slice %1 {offsets = [2, 0, 0], sizes = [16, 16, 32], strides = [1, 1, 1]} : vector<18x18x32xbf16> to vector<16x16x32xbf16>
    %38 = vector.shape_cast %37 : vector<16x16x32xbf16> to vector<256x32xbf16>
    %c0_28 = arith.constant 0 : index
    %c6 = arith.constant 6 : index
    %c0_29 = arith.constant 0 : index
    %c0_30 = arith.constant 0 : index
    %39 = vector.load %arg3[%c0_28, %c6, %c0_29, %c0_30] : memref<1x9x32x32xbf16, #tpu.memory_space<vmem>>, vector<1x1x32x32xbf16>
    %40 = vector.shape_cast %39 : vector<1x1x32x32xbf16> to vector<32x32xbf16>
    %cst_31 = arith.constant dense<0.000000e+00> : vector<256x32xf32>
    %41 = tpu.matmul %38, %40, %cst_31 {dimension_numbers = #tpu.dot_dimension_numbers<[1], [0], [0], [1], [0, 0, 1, 1], [], []>} : vector<256x32xbf16>, vector<32x32xbf16>, vector<256x32xf32> -> vector<256x32xf32>
    %42 = arith.addf %36, %41 : vector<256x32xf32>
    %43 = vector.extract_strided_slice %1 {offsets = [2, 1, 0], sizes = [16, 16, 32], strides = [1, 1, 1]} : vector<18x18x32xbf16> to vector<16x16x32xbf16>
    %44 = vector.shape_cast %43 : vector<16x16x32xbf16> to vector<256x32xbf16>
    %c0_32 = arith.constant 0 : index
    %c7 = arith.constant 7 : index
    %c0_33 = arith.constant 0 : index
    %c0_34 = arith.constant 0 : index
    %45 = vector.load %arg3[%c0_32, %c7, %c0_33, %c0_34] : memref<1x9x32x32xbf16, #tpu.memory_space<vmem>>, vector<1x1x32x32xbf16>
    %46 = vector.shape_cast %45 : vector<1x1x32x32xbf16> to vector<32x32xbf16>
    %cst_35 = arith.constant dense<0.000000e+00> : vector<256x32xf32>
    %47 = tpu.matmul %44, %46, %cst_35 {dimension_numbers = #tpu.dot_dimension_numbers<[1], [0], [0], [1], [0, 0, 1, 1], [], []>} : vector<256x32xbf16>, vector<32x32xbf16>, vector<256x32xf32> -> vector<256x32xf32>
    %48 = arith.addf %42, %47 : vector<256x32xf32>
    %49 = vector.extract_strided_slice %1 {offsets = [2, 2, 0], sizes = [16, 16, 32], strides = [1, 1, 1]} : vector<18x18x32xbf16> to vector<16x16x32xbf16>
    %50 = vector.shape_cast %49 : vector<16x16x32xbf16> to vector<256x32xbf16>
    %c0_36 = arith.constant 0 : index
    %c8 = arith.constant 8 : index
    %c0_37 = arith.constant 0 : index
    %c0_38 = arith.constant 0 : index
    %51 = vector.load %arg3[%c0_36, %c8, %c0_37, %c0_38] : memref<1x9x32x32xbf16, #tpu.memory_space<vmem>>, vector<1x1x32x32xbf16>
    %52 = vector.shape_cast %51 : vector<1x1x32x32xbf16> to vector<32x32xbf16>
    %cst_39 = arith.constant dense<0.000000e+00> : vector<256x32xf32>
    %53 = tpu.matmul %50, %52, %cst_39 {dimension_numbers = #tpu.dot_dimension_numbers<[1], [0], [0], [1], [0, 0, 1, 1], [], []>} : vector<256x32xbf16>, vector<32x32xbf16>, vector<256x32xf32> -> vector<256x32xf32>
    %54 = arith.addf %48, %53 : vector<256x32xf32>
    %c0_40 = arith.constant 0 : index
    %c0_41 = arith.constant 0 : index
    %c0_42 = arith.constant 0 : index
    %55 = vector.load %arg4[%c0_40, %c0_41, %c0_42] : memref<1x1x32xf32, #tpu.memory_space<vmem>>, vector<1x1x32xf32>
    %56 = vector.shape_cast %55 : vector<1x1x32xf32> to vector<1x32xf32>
    %57 = vector.broadcast %56 : vector<1x32xf32> to vector<256x32xf32>
    %58 = arith.addf %54, %57 : vector<256x32xf32>
    %59 = arith.negf %58 : vector<256x32xf32>
    %60 = math.exp %59 : vector<256x32xf32>
    %cst_43 = arith.constant 1.000000e+00 : f32
    %61 = vector.broadcast %cst_43 : f32 to vector<256x32xf32>
    %62 = arith.addf %61, %60 : vector<256x32xf32>
    %63 = arith.divf %61, %62 : vector<256x32xf32>
    %64 = arith.truncf %63 : vector<256x32xf32> to vector<256x32xbf16>
    %c0_44 = arith.constant 0 : index
    %c0_45 = arith.constant 0 : index
    %c0_46 = arith.constant 0 : index
    %c0_47 = arith.constant 0 : index
    %65 = vector.load %arg5[%c0_44, %c0_45, %c0_46, %c0_47] : memref<1x1x256x32xbf16, #tpu.memory_space<vmem>>, vector<1x1x256x32xbf16>
    %66 = vector.shape_cast %65 : vector<1x1x256x32xbf16> to vector<256x32xbf16>
    %67 = vector.shape_cast %64 : vector<256x32xbf16> to vector<1x1x256x32xbf16>
    tpu.vector_store %arg5[%c0_44, %c0_45, %c0_46, %c0_47], %67 {strides = array<i32>} : memref<1x1x256x32xbf16, #tpu.memory_space<vmem>>, vector<1x1x256x32xbf16>,
    return
  }
  func.func @transform_0(%arg0: i32, %arg1: i32) -> (i32, i32, i32, i32, i32) {
    %c0_i32 = arith.constant 0 : i32
    %c0_i32_0 = arith.constant 0 : i32
    %c0_i32_1 = arith.constant 0 : i32
    %c0_i32_2 = arith.constant 0 : i32
    return %arg0, %arg1, %c0_i32, %c0_i32_0, %c0_i32_1 : i32, i32, i32, i32, i32
  }
  func.func @transform_1(%arg0: i32, %arg1: i32) -> (i32, i32, i32, i32) {
    %c0_i32 = arith.constant 0 : i32
    %c0_i32_0 = arith.constant 0 : i32
    %c0_i32_1 = arith.constant 0 : i32
    %c0_i32_2 = arith.constant 0 : i32
    return %arg0, %c0_i32, %c0_i32_0, %c0_i32_1 : i32, i32, i32, i32
  }
  func.func @transform_2(%arg0: i32, %arg1: i32) -> (i32, i32, i32) {
    %c0_i32 = arith.constant 0 : i32
    %c0_i32_0 = arith.constant 0 : i32
    %c0_i32_1 = arith.constant 0 : i32
    return %arg0, %c0_i32, %c0_i32_0 : i32, i32, i32
  }
  func.func @transform_3(%arg0: i32, %arg1: i32) -> (i32, i32, i32, i32) {
    %c0_i32 = arith.constant 0 : i32
    %c0_i32_0 = arith.constant 0 : i32
    %c0_i32_1 = arith.constant 0 : i32
    return %arg0, %arg1, %c0_i32, %c0_i32_0 : i32, i32, i32, i32
  }
}

module attributes {stable_mosaic.version = 11 : i64} {
  func.func @_conv3x3_kernel(%arg0: i32, %arg1: i32, %arg2: memref<1x1x18x18x32xbf16, #tpu.memory_space<vmem>>, %arg3: memref<1x9x32x32xbf16, #tpu.memory_space<vmem>>, %arg4: memref<1x1x32xf32, #tpu.memory_space<vmem>>, %arg5: memref<1x1x256x32xbf16, #tpu.memory_space<vmem>>, %arg6: memref<1x1x8x32xf32, #tpu.memory_space<vmem>>) attributes {dimension_semantics = [#tpu.dimension_semantics<parallel>, #tpu.dimension_semantics<parallel>], iteration_bounds = array<i64: 2, 2>, scalar_prefetch = 0 : i64, scratch_operands = 0 : i64, tpu.core_type = #tpu.core_type<tc>, window_params = [{transform_indices = @transform_0, window_bounds = array<i64: 1, 1, 18, 18, 32>}, {transform_indices = @transform_1, window_bounds = array<i64: 1, 9, 32, 32>}, {transform_indices = @transform_2, window_bounds = array<i64: 1, 1, 32>}, {transform_indices = @transform_3, window_bounds = array<i64: 1, 1, 256, 32>}, {transform_indices = @transform_4, window_bounds = array<i64: 1, 1, 8, 32>}]} {
    %c0 = arith.constant 0 : index
    %c0_0 = arith.constant 0 : index
    %c0_1 = arith.constant 0 : index
    %c0_2 = arith.constant 0 : index
    %c0_3 = arith.constant 0 : index
    %0 = vector.load %arg2[%c0, %c0_0, %c0_1, %c0_2, %c0_3] : memref<1x1x18x18x32xbf16, #tpu.memory_space<vmem>>, vector<1x1x18x18x32xbf16>
    %1 = vector.shape_cast %0 : vector<1x1x18x18x32xbf16> to vector<18x18x32xbf16>
    %2 = vector.extract_strided_slice %1 {offsets = [0, 0, 0], sizes = [16, 16, 32], strides = [1, 1, 1]} : vector<18x18x32xbf16> to vector<16x16x32xbf16>
    %3 = vector.shape_cast %2 : vector<16x16x32xbf16> to vector<256x32xbf16>
    %c0_4 = arith.constant 0 : index
    %c0_5 = arith.constant 0 : index
    %c0_6 = arith.constant 0 : index
    %c0_7 = arith.constant 0 : index
    %4 = vector.load %arg3[%c0_4, %c0_5, %c0_6, %c0_7] : memref<1x9x32x32xbf16, #tpu.memory_space<vmem>>, vector<1x1x32x32xbf16>
    %5 = vector.shape_cast %4 : vector<1x1x32x32xbf16> to vector<32x32xbf16>
    %cst = arith.constant dense<0.000000e+00> : vector<256x32xf32>
    %6 = tpu.matmul %3, %5, %cst {dimension_numbers = #tpu.dot_dimension_numbers<[1], [0], [0], [1], [0, 0, 1, 1], [], []>} : vector<256x32xbf16>, vector<32x32xbf16>, vector<256x32xf32> -> vector<256x32xf32>
    %7 = vector.extract_strided_slice %1 {offsets = [0, 1, 0], sizes = [16, 16, 32], strides = [1, 1, 1]} : vector<18x18x32xbf16> to vector<16x16x32xbf16>
    %8 = vector.shape_cast %7 : vector<16x16x32xbf16> to vector<256x32xbf16>
    %c0_8 = arith.constant 0 : index
    %c1 = arith.constant 1 : index
    %c0_9 = arith.constant 0 : index
    %c0_10 = arith.constant 0 : index
    %9 = vector.load %arg3[%c0_8, %c1, %c0_9, %c0_10] : memref<1x9x32x32xbf16, #tpu.memory_space<vmem>>, vector<1x1x32x32xbf16>
    %10 = vector.shape_cast %9 : vector<1x1x32x32xbf16> to vector<32x32xbf16>
    %cst_11 = arith.constant dense<0.000000e+00> : vector<256x32xf32>
    %11 = tpu.matmul %8, %10, %cst_11 {dimension_numbers = #tpu.dot_dimension_numbers<[1], [0], [0], [1], [0, 0, 1, 1], [], []>} : vector<256x32xbf16>, vector<32x32xbf16>, vector<256x32xf32> -> vector<256x32xf32>
    %12 = arith.addf %6, %11 : vector<256x32xf32>
    %13 = vector.extract_strided_slice %1 {offsets = [0, 2, 0], sizes = [16, 16, 32], strides = [1, 1, 1]} : vector<18x18x32xbf16> to vector<16x16x32xbf16>
    %14 = vector.shape_cast %13 : vector<16x16x32xbf16> to vector<256x32xbf16>
    %c0_12 = arith.constant 0 : index
    %c2 = arith.constant 2 : index
    %c0_13 = arith.constant 0 : index
    %c0_14 = arith.constant 0 : index
    %15 = vector.load %arg3[%c0_12, %c2, %c0_13, %c0_14] : memref<1x9x32x32xbf16, #tpu.memory_space<vmem>>, vector<1x1x32x32xbf16>
    %16 = vector.shape_cast %15 : vector<1x1x32x32xbf16> to vector<32x32xbf16>
    %cst_15 = arith.constant dense<0.000000e+00> : vector<256x32xf32>
    %17 = tpu.matmul %14, %16, %cst_15 {dimension_numbers = #tpu.dot_dimension_numbers<[1], [0], [0], [1], [0, 0, 1, 1], [], []>} : vector<256x32xbf16>, vector<32x32xbf16>, vector<256x32xf32> -> vector<256x32xf32>
    %18 = arith.addf %12, %17 : vector<256x32xf32>
    %19 = vector.extract_strided_slice %1 {offsets = [1, 0, 0], sizes = [16, 16, 32], strides = [1, 1, 1]} : vector<18x18x32xbf16> to vector<16x16x32xbf16>
    %20 = vector.shape_cast %19 : vector<16x16x32xbf16> to vector<256x32xbf16>
    %c0_16 = arith.constant 0 : index
    %c3 = arith.constant 3 : index
    %c0_17 = arith.constant 0 : index
    %c0_18 = arith.constant 0 : index
    %21 = vector.load %arg3[%c0_16, %c3, %c0_17, %c0_18] : memref<1x9x32x32xbf16, #tpu.memory_space<vmem>>, vector<1x1x32x32xbf16>
    %22 = vector.shape_cast %21 : vector<1x1x32x32xbf16> to vector<32x32xbf16>
    %cst_19 = arith.constant dense<0.000000e+00> : vector<256x32xf32>
    %23 = tpu.matmul %20, %22, %cst_19 {dimension_numbers = #tpu.dot_dimension_numbers<[1], [0], [0], [1], [0, 0, 1, 1], [], []>} : vector<256x32xbf16>, vector<32x32xbf16>, vector<256x32xf32> -> vector<256x32xf32>
    %24 = arith.addf %18, %23 : vector<256x32xf32>
    %25 = vector.extract_strided_slice %1 {offsets = [1, 1, 0], sizes = [16, 16, 32], strides = [1, 1, 1]} : vector<18x18x32xbf16> to vector<16x16x32xbf16>
    %26 = vector.shape_cast %25 : vector<16x16x32xbf16> to vector<256x32xbf16>
    %c0_20 = arith.constant 0 : index
    %c4 = arith.constant 4 : index
    %c0_21 = arith.constant 0 : index
    %c0_22 = arith.constant 0 : index
    %27 = vector.load %arg3[%c0_20, %c4, %c0_21, %c0_22] : memref<1x9x32x32xbf16, #tpu.memory_space<vmem>>, vector<1x1x32x32xbf16>
    %28 = vector.shape_cast %27 : vector<1x1x32x32xbf16> to vector<32x32xbf16>
    %cst_23 = arith.constant dense<0.000000e+00> : vector<256x32xf32>
    %29 = tpu.matmul %26, %28, %cst_23 {dimension_numbers = #tpu.dot_dimension_numbers<[1], [0], [0], [1], [0, 0, 1, 1], [], []>} : vector<256x32xbf16>, vector<32x32xbf16>, vector<256x32xf32> -> vector<256x32xf32>
    %30 = arith.addf %24, %29 : vector<256x32xf32>
    %31 = vector.extract_strided_slice %1 {offsets = [1, 2, 0], sizes = [16, 16, 32], strides = [1, 1, 1]} : vector<18x18x32xbf16> to vector<16x16x32xbf16>
    %32 = vector.shape_cast %31 : vector<16x16x32xbf16> to vector<256x32xbf16>
    %c0_24 = arith.constant 0 : index
    %c5 = arith.constant 5 : index
    %c0_25 = arith.constant 0 : index
    %c0_26 = arith.constant 0 : index
    %33 = vector.load %arg3[%c0_24, %c5, %c0_25, %c0_26] : memref<1x9x32x32xbf16, #tpu.memory_space<vmem>>, vector<1x1x32x32xbf16>
    %34 = vector.shape_cast %33 : vector<1x1x32x32xbf16> to vector<32x32xbf16>
    %cst_27 = arith.constant dense<0.000000e+00> : vector<256x32xf32>
    %35 = tpu.matmul %32, %34, %cst_27 {dimension_numbers = #tpu.dot_dimension_numbers<[1], [0], [0], [1], [0, 0, 1, 1], [], []>} : vector<256x32xbf16>, vector<32x32xbf16>, vector<256x32xf32> -> vector<256x32xf32>
    %36 = arith.addf %30, %35 : vector<256x32xf32>
    %37 = vector.extract_strided_slice %1 {offsets = [2, 0, 0], sizes = [16, 16, 32], strides = [1, 1, 1]} : vector<18x18x32xbf16> to vector<16x16x32xbf16>
    %38 = vector.shape_cast %37 : vector<16x16x32xbf16> to vector<256x32xbf16>
    %c0_28 = arith.constant 0 : index
    %c6 = arith.constant 6 : index
    %c0_29 = arith.constant 0 : index
    %c0_30 = arith.constant 0 : index
    %39 = vector.load %arg3[%c0_28, %c6, %c0_29, %c0_30] : memref<1x9x32x32xbf16, #tpu.memory_space<vmem>>, vector<1x1x32x32xbf16>
    %40 = vector.shape_cast %39 : vector<1x1x32x32xbf16> to vector<32x32xbf16>
    %cst_31 = arith.constant dense<0.000000e+00> : vector<256x32xf32>
    %41 = tpu.matmul %38, %40, %cst_31 {dimension_numbers = #tpu.dot_dimension_numbers<[1], [0], [0], [1], [0, 0, 1, 1], [], []>} : vector<256x32xbf16>, vector<32x32xbf16>, vector<256x32xf32> -> vector<256x32xf32>
    %42 = arith.addf %36, %41 : vector<256x32xf32>
    %43 = vector.extract_strided_slice %1 {offsets = [2, 1, 0], sizes = [16, 16, 32], strides = [1, 1, 1]} : vector<18x18x32xbf16> to vector<16x16x32xbf16>
    %44 = vector.shape_cast %43 : vector<16x16x32xbf16> to vector<256x32xbf16>
    %c0_32 = arith.constant 0 : index
    %c7 = arith.constant 7 : index
    %c0_33 = arith.constant 0 : index
    %c0_34 = arith.constant 0 : index
    %45 = vector.load %arg3[%c0_32, %c7, %c0_33, %c0_34] : memref<1x9x32x32xbf16, #tpu.memory_space<vmem>>, vector<1x1x32x32xbf16>
    %46 = vector.shape_cast %45 : vector<1x1x32x32xbf16> to vector<32x32xbf16>
    %cst_35 = arith.constant dense<0.000000e+00> : vector<256x32xf32>
    %47 = tpu.matmul %44, %46, %cst_35 {dimension_numbers = #tpu.dot_dimension_numbers<[1], [0], [0], [1], [0, 0, 1, 1], [], []>} : vector<256x32xbf16>, vector<32x32xbf16>, vector<256x32xf32> -> vector<256x32xf32>
    %48 = arith.addf %42, %47 : vector<256x32xf32>
    %49 = vector.extract_strided_slice %1 {offsets = [2, 2, 0], sizes = [16, 16, 32], strides = [1, 1, 1]} : vector<18x18x32xbf16> to vector<16x16x32xbf16>
    %50 = vector.shape_cast %49 : vector<16x16x32xbf16> to vector<256x32xbf16>
    %c0_36 = arith.constant 0 : index
    %c8 = arith.constant 8 : index
    %c0_37 = arith.constant 0 : index
    %c0_38 = arith.constant 0 : index
    %51 = vector.load %arg3[%c0_36, %c8, %c0_37, %c0_38] : memref<1x9x32x32xbf16, #tpu.memory_space<vmem>>, vector<1x1x32x32xbf16>
    %52 = vector.shape_cast %51 : vector<1x1x32x32xbf16> to vector<32x32xbf16>
    %cst_39 = arith.constant dense<0.000000e+00> : vector<256x32xf32>
    %53 = tpu.matmul %50, %52, %cst_39 {dimension_numbers = #tpu.dot_dimension_numbers<[1], [0], [0], [1], [0, 0, 1, 1], [], []>} : vector<256x32xbf16>, vector<32x32xbf16>, vector<256x32xf32> -> vector<256x32xf32>
    %54 = arith.addf %48, %53 : vector<256x32xf32>
    %c0_40 = arith.constant 0 : index
    %c0_41 = arith.constant 0 : index
    %c0_42 = arith.constant 0 : index
    %55 = vector.load %arg4[%c0_40, %c0_41, %c0_42] : memref<1x1x32xf32, #tpu.memory_space<vmem>>, vector<1x1x32xf32>
    %56 = vector.shape_cast %55 : vector<1x1x32xf32> to vector<1x32xf32>
    %57 = vector.broadcast %56 : vector<1x32xf32> to vector<256x32xf32>
    %58 = arith.addf %54, %57 : vector<256x32xf32>
    %59 = arith.truncf %58 : vector<256x32xf32> to vector<256x32xbf16>
    %c0_43 = arith.constant 0 : index
    %c0_44 = arith.constant 0 : index
    %c0_45 = arith.constant 0 : index
    %c0_46 = arith.constant 0 : index
    %60 = vector.load %arg5[%c0_43, %c0_44, %c0_45, %c0_46] : memref<1x1x256x32xbf16, #tpu.memory_space<vmem>>, vector<1x1x256x32xbf16>
    %61 = vector.shape_cast %60 : vector<1x1x256x32xbf16> to vector<256x32xbf16>
    %62 = vector.shape_cast %59 : vector<256x32xbf16> to vector<1x1x256x32xbf16>
    tpu.vector_store %arg5[%c0_43, %c0_44, %c0_45, %c0_46], %62 {strides = array<i32>} : memref<1x1x256x32xbf16, #tpu.memory_space<vmem>>, vector<1x1x256x32xbf16>,
    %cst_47 = arith.constant dense<0.000000e+00> : vector<32xf32>
    %63 = vector.multi_reduction <add>, %58, %cst_47 [0] : vector<256x32xf32> to vector<32xf32>
    %64 = vector.shape_cast %63 : vector<32xf32> to vector<1x32xf32>
    %65 = arith.mulf %58, %58 : vector<256x32xf32>
    %cst_48 = arith.constant dense<0.000000e+00> : vector<32xf32>
    %66 = vector.multi_reduction <add>, %65, %cst_48 [0] : vector<256x32xf32> to vector<32xf32>
    %67 = vector.shape_cast %66 : vector<32xf32> to vector<1x32xf32>
    %cst_49 = arith.constant 0.000000e+00 : f32
    %68 = vector.broadcast %cst_49 : f32 to vector<6x32xf32>
    %69 = tpu.concatenate %64, %67, %68 in 0 : vector<1x32xf32>, vector<1x32xf32>, vector<6x32xf32> -> vector<8x32xf32>
    %c0_50 = arith.constant 0 : index
    %c0_51 = arith.constant 0 : index
    %c0_52 = arith.constant 0 : index
    %c0_53 = arith.constant 0 : index
    %70 = vector.load %arg6[%c0_50, %c0_51, %c0_52, %c0_53] : memref<1x1x8x32xf32, #tpu.memory_space<vmem>>, vector<1x1x8x32xf32>
    %71 = vector.shape_cast %70 : vector<1x1x8x32xf32> to vector<8x32xf32>
    %72 = vector.shape_cast %69 : vector<8x32xf32> to vector<1x1x8x32xf32>
    tpu.vector_store %arg6[%c0_50, %c0_51, %c0_52, %c0_53], %72 {strides = array<i32>} : memref<1x1x8x32xf32, #tpu.memory_space<vmem>>, vector<1x1x8x32xf32>,
    return
  }
  func.func @transform_0(%arg0: i32, %arg1: i32) -> (i32, i32, i32, i32, i32) {
    %c0_i32 = arith.constant 0 : i32
    %c0_i32_0 = arith.constant 0 : i32
    %c0_i32_1 = arith.constant 0 : i32
    %c0_i32_2 = arith.constant 0 : i32
    return %arg0, %arg1, %c0_i32, %c0_i32_0, %c0_i32_1 : i32, i32, i32, i32, i32
  }
  func.func @transform_1(%arg0: i32, %arg1: i32) -> (i32, i32, i32, i32) {
    %c0_i32 = arith.constant 0 : i32
    %c0_i32_0 = arith.constant 0 : i32
    %c0_i32_1 = arith.constant 0 : i32
    %c0_i32_2 = arith.constant 0 : i32
    return %arg0, %c0_i32, %c0_i32_0, %c0_i32_1 : i32, i32, i32, i32
  }
  func.func @transform_2(%arg0: i32, %arg1: i32) -> (i32, i32, i32) {
    %c0_i32 = arith.constant 0 : i32
    %c0_i32_0 = arith.constant 0 : i32
    %c0_i32_1 = arith.constant 0 : i32
    return %arg0, %c0_i32, %c0_i32_0 : i32, i32, i32
  }
  func.func @transform_3(%arg0: i32, %arg1: i32) -> (i32, i32, i32, i32) {
    %c0_i32 = arith.constant 0 : i32
    %c0_i32_0 = arith.constant 0 : i32
    %c0_i32_1 = arith.constant 0 : i32
    return %arg0, %arg1, %c0_i32, %c0_i32_0 : i32, i32, i32, i32
  }
  func.func @transform_4(%arg0: i32, %arg1: i32) -> (i32, i32, i32, i32) {
    %c0_i32 = arith.constant 0 : i32
    %c0_i32_0 = arith.constant 0 : i32
    %c0_i32_1 = arith.constant 0 : i32
    return %arg0, %arg1, %c0_i32, %c0_i32_0 : i32, i32, i32, i32
  }
}

module attributes {stable_mosaic.version = 11 : i64} {
  func.func @_channel_gate_kernel(%arg0: i32, %arg1: i32, %arg2: memref<1x128x32xbf16, #tpu.memory_space<vmem>>, %arg3: memref<1x32x8xbf16, #tpu.memory_space<vmem>>, %arg4: memref<1x1x8xf32, #tpu.memory_space<vmem>>, %arg5: memref<1x8x32xbf16, #tpu.memory_space<vmem>>, %arg6: memref<1x1x32xf32, #tpu.memory_space<vmem>>, %arg7: memref<1x128x32xbf16, #tpu.memory_space<vmem>>) attributes {dimension_semantics = [#tpu.dimension_semantics<parallel>, #tpu.dimension_semantics<parallel>], iteration_bounds = array<i64: 2, 4>, scalar_prefetch = 0 : i64, scratch_operands = 0 : i64, tpu.core_type = #tpu.core_type<tc>, window_params = [{transform_indices = @transform_0, window_bounds = array<i64: 1, 128, 32>}, {transform_indices = @transform_1, window_bounds = array<i64: 1, 32, 8>}, {transform_indices = @transform_2, window_bounds = array<i64: 1, 1, 8>}, {transform_indices = @transform_3, window_bounds = array<i64: 1, 8, 32>}, {transform_indices = @transform_4, window_bounds = array<i64: 1, 1, 32>}, {transform_indices = @transform_5, window_bounds = array<i64: 1, 128, 32>}]} {
    %c0 = arith.constant 0 : index
    %c0_0 = arith.constant 0 : index
    %c0_1 = arith.constant 0 : index
    %0 = vector.load %arg2[%c0, %c0_0, %c0_1] : memref<1x128x32xbf16, #tpu.memory_space<vmem>>, vector<1x128x32xbf16>
    %1 = vector.shape_cast %0 : vector<1x128x32xbf16> to vector<128x32xbf16>
    %c0_2 = arith.constant 0 : index
    %c0_3 = arith.constant 0 : index
    %c0_4 = arith.constant 0 : index
    %2 = vector.load %arg3[%c0_2, %c0_3, %c0_4] : memref<1x32x8xbf16, #tpu.memory_space<vmem>>, vector<1x32x8xbf16>
    %3 = vector.shape_cast %2 : vector<1x32x8xbf16> to vector<32x8xbf16>
    %cst = arith.constant dense<0.000000e+00> : vector<128x8xf32>
    %4 = tpu.matmul %1, %3, %cst {dimension_numbers = #tpu.dot_dimension_numbers<[1], [0], [0], [1], [0, 0, 1, 1], [], []>} : vector<128x32xbf16>, vector<32x8xbf16>, vector<128x8xf32> -> vector<128x8xf32>
    %c0_5 = arith.constant 0 : index
    %c0_6 = arith.constant 0 : index
    %c0_7 = arith.constant 0 : index
    %5 = vector.load %arg4[%c0_5, %c0_6, %c0_7] : memref<1x1x8xf32, #tpu.memory_space<vmem>>, vector<1x1x8xf32>
    %6 = vector.shape_cast %5 : vector<1x1x8xf32> to vector<1x8xf32>
    %7 = vector.broadcast %6 : vector<1x8xf32> to vector<128x8xf32>
    %8 = arith.addf %4, %7 : vector<128x8xf32>
    %cst_8 = arith.constant 0.000000e+00 : f32
    %9 = vector.broadcast %cst_8 : f32 to vector<128x8xf32>
    %10 = arith.maximumf %8, %9 : vector<128x8xf32>
    %11 = arith.truncf %10 : vector<128x8xf32> to vector<128x8xbf16>
    %c0_9 = arith.constant 0 : index
    %c0_10 = arith.constant 0 : index
    %c0_11 = arith.constant 0 : index
    %12 = vector.load %arg5[%c0_9, %c0_10, %c0_11] : memref<1x8x32xbf16, #tpu.memory_space<vmem>>, vector<1x8x32xbf16>
    %13 = vector.shape_cast %12 : vector<1x8x32xbf16> to vector<8x32xbf16>
    %cst_12 = arith.constant dense<0.000000e+00> : vector<128x32xf32>
    %14 = tpu.matmul %11, %13, %cst_12 {dimension_numbers = #tpu.dot_dimension_numbers<[1], [0], [0], [1], [0, 0, 1, 1], [], []>} : vector<128x8xbf16>, vector<8x32xbf16>, vector<128x32xf32> -> vector<128x32xf32>
    %c0_13 = arith.constant 0 : index
    %c0_14 = arith.constant 0 : index
    %c0_15 = arith.constant 0 : index
    %15 = vector.load %arg6[%c0_13, %c0_14, %c0_15] : memref<1x1x32xf32, #tpu.memory_space<vmem>>, vector<1x1x32xf32>
    %16 = vector.shape_cast %15 : vector<1x1x32xf32> to vector<1x32xf32>
    %17 = vector.broadcast %16 : vector<1x32xf32> to vector<128x32xf32>
    %18 = arith.addf %14, %17 : vector<128x32xf32>
    %19 = arith.negf %18 : vector<128x32xf32>
    %20 = math.exp %19 : vector<128x32xf32>
    %cst_16 = arith.constant 1.000000e+00 : f32
    %21 = vector.broadcast %cst_16 : f32 to vector<128x32xf32>
    %22 = arith.addf %21, %20 : vector<128x32xf32>
    %23 = arith.divf %21, %22 : vector<128x32xf32>
    %24 = arith.extf %1 : vector<128x32xbf16> to vector<128x32xf32>
    %25 = arith.mulf %24, %23 : vector<128x32xf32>
    %26 = arith.truncf %25 : vector<128x32xf32> to vector<128x32xbf16>
    %c0_17 = arith.constant 0 : index
    %c0_18 = arith.constant 0 : index
    %c0_19 = arith.constant 0 : index
    %27 = vector.load %arg7[%c0_17, %c0_18, %c0_19] : memref<1x128x32xbf16, #tpu.memory_space<vmem>>, vector<1x128x32xbf16>
    %28 = vector.shape_cast %27 : vector<1x128x32xbf16> to vector<128x32xbf16>
    %29 = vector.shape_cast %26 : vector<128x32xbf16> to vector<1x128x32xbf16>
    tpu.vector_store %arg7[%c0_17, %c0_18, %c0_19], %29 {strides = array<i32>} : memref<1x128x32xbf16, #tpu.memory_space<vmem>>, vector<1x128x32xbf16>,
    return
  }
  func.func @transform_0(%arg0: i32, %arg1: i32) -> (i32, i32, i32) {
    %c0_i32 = arith.constant 0 : i32
    %c0_i32_0 = arith.constant 0 : i32
    return %arg0, %arg1, %c0_i32 : i32, i32, i32
  }
  func.func @transform_1(%arg0: i32, %arg1: i32) -> (i32, i32, i32) {
    %c0_i32 = arith.constant 0 : i32
    %c0_i32_0 = arith.constant 0 : i32
    %c0_i32_1 = arith.constant 0 : i32
    return %arg0, %c0_i32, %c0_i32_0 : i32, i32, i32
  }
  func.func @transform_2(%arg0: i32, %arg1: i32) -> (i32, i32, i32) {
    %c0_i32 = arith.constant 0 : i32
    %c0_i32_0 = arith.constant 0 : i32
    %c0_i32_1 = arith.constant 0 : i32
    return %arg0, %c0_i32, %c0_i32_0 : i32, i32, i32
  }
  func.func @transform_3(%arg0: i32, %arg1: i32) -> (i32, i32, i32) {
    %c0_i32 = arith.constant 0 : i32
    %c0_i32_0 = arith.constant 0 : i32
    %c0_i32_1 = arith.constant 0 : i32
    return %arg0, %c0_i32, %c0_i32_0 : i32, i32, i32
  }
  func.func @transform_4(%arg0: i32, %arg1: i32) -> (i32, i32, i32) {
    %c0_i32 = arith.constant 0 : i32
    %c0_i32_0 = arith.constant 0 : i32
    %c0_i32_1 = arith.constant 0 : i32
    return %arg0, %c0_i32, %c0_i32_0 : i32, i32, i32
  }
  func.func @transform_5(%arg0: i32, %arg1: i32) -> (i32, i32, i32) {
    %c0_i32 = arith.constant 0 : i32
    %c0_i32_0 = arith.constant 0 : i32
    return %arg0, %arg1, %c0_i32 : i32, i32, i32
  }
}

module attributes {stable_mosaic.version = 11 : i64} {
  func.func @_conv3x3_kernel(%arg0: i32, %arg1: i32, %arg2: memref<1x1x18x18x64xbf16, #tpu.memory_space<vmem>>, %arg3: memref<1x9x64x32xbf16, #tpu.memory_space<vmem>>, %arg4: memref<1x1x32xf32, #tpu.memory_space<vmem>>, %arg5: memref<1x1x256x32xbf16, #tpu.memory_space<vmem>>, %arg6: memref<1x1x8x32xf32, #tpu.memory_space<vmem>>) attributes {dimension_semantics = [#tpu.dimension_semantics<parallel>, #tpu.dimension_semantics<parallel>], iteration_bounds = array<i64: 1, 2>, scalar_prefetch = 0 : i64, scratch_operands = 0 : i64, tpu.core_type = #tpu.core_type<tc>, window_params = [{transform_indices = @transform_0, window_bounds = array<i64: 1, 1, 18, 18, 64>}, {transform_indices = @transform_1, window_bounds = array<i64: 1, 9, 64, 32>}, {transform_indices = @transform_2, window_bounds = array<i64: 1, 1, 32>}, {transform_indices = @transform_3, window_bounds = array<i64: 1, 1, 256, 32>}, {transform_indices = @transform_4, window_bounds = array<i64: 1, 1, 8, 32>}]} {
    %c0 = arith.constant 0 : index
    %c0_0 = arith.constant 0 : index
    %c0_1 = arith.constant 0 : index
    %c0_2 = arith.constant 0 : index
    %c0_3 = arith.constant 0 : index
    %0 = vector.load %arg2[%c0, %c0_0, %c0_1, %c0_2, %c0_3] : memref<1x1x18x18x64xbf16, #tpu.memory_space<vmem>>, vector<1x1x18x18x64xbf16>
    %1 = vector.shape_cast %0 : vector<1x1x18x18x64xbf16> to vector<18x18x64xbf16>
    %2 = vector.extract_strided_slice %1 {offsets = [0, 0, 0], sizes = [16, 16, 64], strides = [1, 1, 1]} : vector<18x18x64xbf16> to vector<16x16x64xbf16>
    %3 = vector.shape_cast %2 : vector<16x16x64xbf16> to vector<256x64xbf16>
    %c0_4 = arith.constant 0 : index
    %c0_5 = arith.constant 0 : index
    %c0_6 = arith.constant 0 : index
    %c0_7 = arith.constant 0 : index
    %4 = vector.load %arg3[%c0_4, %c0_5, %c0_6, %c0_7] : memref<1x9x64x32xbf16, #tpu.memory_space<vmem>>, vector<1x1x64x32xbf16>
    %5 = vector.shape_cast %4 : vector<1x1x64x32xbf16> to vector<64x32xbf16>
    %cst = arith.constant dense<0.000000e+00> : vector<256x32xf32>
    %6 = tpu.matmul %3, %5, %cst {dimension_numbers = #tpu.dot_dimension_numbers<[1], [0], [0], [1], [0, 0, 1, 1], [], []>} : vector<256x64xbf16>, vector<64x32xbf16>, vector<256x32xf32> -> vector<256x32xf32>
    %7 = vector.extract_strided_slice %1 {offsets = [0, 1, 0], sizes = [16, 16, 64], strides = [1, 1, 1]} : vector<18x18x64xbf16> to vector<16x16x64xbf16>
    %8 = vector.shape_cast %7 : vector<16x16x64xbf16> to vector<256x64xbf16>
    %c0_8 = arith.constant 0 : index
    %c1 = arith.constant 1 : index
    %c0_9 = arith.constant 0 : index
    %c0_10 = arith.constant 0 : index
    %9 = vector.load %arg3[%c0_8, %c1, %c0_9, %c0_10] : memref<1x9x64x32xbf16, #tpu.memory_space<vmem>>, vector<1x1x64x32xbf16>
    %10 = vector.shape_cast %9 : vector<1x1x64x32xbf16> to vector<64x32xbf16>
    %cst_11 = arith.constant dense<0.000000e+00> : vector<256x32xf32>
    %11 = tpu.matmul %8, %10, %cst_11 {dimension_numbers = #tpu.dot_dimension_numbers<[1], [0], [0], [1], [0, 0, 1, 1], [], []>} : vector<256x64xbf16>, vector<64x32xbf16>, vector<256x32xf32> -> vector<256x32xf32>
    %12 = arith.addf %6, %11 : vector<256x32xf32>
    %13 = vector.extract_strided_slice %1 {offsets = [0, 2, 0], sizes = [16, 16, 64], strides = [1, 1, 1]} : vector<18x18x64xbf16> to vector<16x16x64xbf16>
    %14 = vector.shape_cast %13 : vector<16x16x64xbf16> to vector<256x64xbf16>
    %c0_12 = arith.constant 0 : index
    %c2 = arith.constant 2 : index
    %c0_13 = arith.constant 0 : index
    %c0_14 = arith.constant 0 : index
    %15 = vector.load %arg3[%c0_12, %c2, %c0_13, %c0_14] : memref<1x9x64x32xbf16, #tpu.memory_space<vmem>>, vector<1x1x64x32xbf16>
    %16 = vector.shape_cast %15 : vector<1x1x64x32xbf16> to vector<64x32xbf16>
    %cst_15 = arith.constant dense<0.000000e+00> : vector<256x32xf32>
    %17 = tpu.matmul %14, %16, %cst_15 {dimension_numbers = #tpu.dot_dimension_numbers<[1], [0], [0], [1], [0, 0, 1, 1], [], []>} : vector<256x64xbf16>, vector<64x32xbf16>, vector<256x32xf32> -> vector<256x32xf32>
    %18 = arith.addf %12, %17 : vector<256x32xf32>
    %19 = vector.extract_strided_slice %1 {offsets = [1, 0, 0], sizes = [16, 16, 64], strides = [1, 1, 1]} : vector<18x18x64xbf16> to vector<16x16x64xbf16>
    %20 = vector.shape_cast %19 : vector<16x16x64xbf16> to vector<256x64xbf16>
    %c0_16 = arith.constant 0 : index
    %c3 = arith.constant 3 : index
    %c0_17 = arith.constant 0 : index
    %c0_18 = arith.constant 0 : index
    %21 = vector.load %arg3[%c0_16, %c3, %c0_17, %c0_18] : memref<1x9x64x32xbf16, #tpu.memory_space<vmem>>, vector<1x1x64x32xbf16>
    %22 = vector.shape_cast %21 : vector<1x1x64x32xbf16> to vector<64x32xbf16>
    %cst_19 = arith.constant dense<0.000000e+00> : vector<256x32xf32>
    %23 = tpu.matmul %20, %22, %cst_19 {dimension_numbers = #tpu.dot_dimension_numbers<[1], [0], [0], [1], [0, 0, 1, 1], [], []>} : vector<256x64xbf16>, vector<64x32xbf16>, vector<256x32xf32> -> vector<256x32xf32>
    %24 = arith.addf %18, %23 : vector<256x32xf32>
    %25 = vector.extract_strided_slice %1 {offsets = [1, 1, 0], sizes = [16, 16, 64], strides = [1, 1, 1]} : vector<18x18x64xbf16> to vector<16x16x64xbf16>
    %26 = vector.shape_cast %25 : vector<16x16x64xbf16> to vector<256x64xbf16>
    %c0_20 = arith.constant 0 : index
    %c4 = arith.constant 4 : index
    %c0_21 = arith.constant 0 : index
    %c0_22 = arith.constant 0 : index
    %27 = vector.load %arg3[%c0_20, %c4, %c0_21, %c0_22] : memref<1x9x64x32xbf16, #tpu.memory_space<vmem>>, vector<1x1x64x32xbf16>
    %28 = vector.shape_cast %27 : vector<1x1x64x32xbf16> to vector<64x32xbf16>
    %cst_23 = arith.constant dense<0.000000e+00> : vector<256x32xf32>
    %29 = tpu.matmul %26, %28, %cst_23 {dimension_numbers = #tpu.dot_dimension_numbers<[1], [0], [0], [1], [0, 0, 1, 1], [], []>} : vector<256x64xbf16>, vector<64x32xbf16>, vector<256x32xf32> -> vector<256x32xf32>
    %30 = arith.addf %24, %29 : vector<256x32xf32>
    %31 = vector.extract_strided_slice %1 {offsets = [1, 2, 0], sizes = [16, 16, 64], strides = [1, 1, 1]} : vector<18x18x64xbf16> to vector<16x16x64xbf16>
    %32 = vector.shape_cast %31 : vector<16x16x64xbf16> to vector<256x64xbf16>
    %c0_24 = arith.constant 0 : index
    %c5 = arith.constant 5 : index
    %c0_25 = arith.constant 0 : index
    %c0_26 = arith.constant 0 : index
    %33 = vector.load %arg3[%c0_24, %c5, %c0_25, %c0_26] : memref<1x9x64x32xbf16, #tpu.memory_space<vmem>>, vector<1x1x64x32xbf16>
    %34 = vector.shape_cast %33 : vector<1x1x64x32xbf16> to vector<64x32xbf16>
    %cst_27 = arith.constant dense<0.000000e+00> : vector<256x32xf32>
    %35 = tpu.matmul %32, %34, %cst_27 {dimension_numbers = #tpu.dot_dimension_numbers<[1], [0], [0], [1], [0, 0, 1, 1], [], []>} : vector<256x64xbf16>, vector<64x32xbf16>, vector<256x32xf32> -> vector<256x32xf32>
    %36 = arith.addf %30, %35 : vector<256x32xf32>
    %37 = vector.extract_strided_slice %1 {offsets = [2, 0, 0], sizes = [16, 16, 64], strides = [1, 1, 1]} : vector<18x18x64xbf16> to vector<16x16x64xbf16>
    %38 = vector.shape_cast %37 : vector<16x16x64xbf16> to vector<256x64xbf16>
    %c0_28 = arith.constant 0 : index
    %c6 = arith.constant 6 : index
    %c0_29 = arith.constant 0 : index
    %c0_30 = arith.constant 0 : index
    %39 = vector.load %arg3[%c0_28, %c6, %c0_29, %c0_30] : memref<1x9x64x32xbf16, #tpu.memory_space<vmem>>, vector<1x1x64x32xbf16>
    %40 = vector.shape_cast %39 : vector<1x1x64x32xbf16> to vector<64x32xbf16>
    %cst_31 = arith.constant dense<0.000000e+00> : vector<256x32xf32>
    %41 = tpu.matmul %38, %40, %cst_31 {dimension_numbers = #tpu.dot_dimension_numbers<[1], [0], [0], [1], [0, 0, 1, 1], [], []>} : vector<256x64xbf16>, vector<64x32xbf16>, vector<256x32xf32> -> vector<256x32xf32>
    %42 = arith.addf %36, %41 : vector<256x32xf32>
    %43 = vector.extract_strided_slice %1 {offsets = [2, 1, 0], sizes = [16, 16, 64], strides = [1, 1, 1]} : vector<18x18x64xbf16> to vector<16x16x64xbf16>
    %44 = vector.shape_cast %43 : vector<16x16x64xbf16> to vector<256x64xbf16>
    %c0_32 = arith.constant 0 : index
    %c7 = arith.constant 7 : index
    %c0_33 = arith.constant 0 : index
    %c0_34 = arith.constant 0 : index
    %45 = vector.load %arg3[%c0_32, %c7, %c0_33, %c0_34] : memref<1x9x64x32xbf16, #tpu.memory_space<vmem>>, vector<1x1x64x32xbf16>
    %46 = vector.shape_cast %45 : vector<1x1x64x32xbf16> to vector<64x32xbf16>
    %cst_35 = arith.constant dense<0.000000e+00> : vector<256x32xf32>
    %47 = tpu.matmul %44, %46, %cst_35 {dimension_numbers = #tpu.dot_dimension_numbers<[1], [0], [0], [1], [0, 0, 1, 1], [], []>} : vector<256x64xbf16>, vector<64x32xbf16>, vector<256x32xf32> -> vector<256x32xf32>
    %48 = arith.addf %42, %47 : vector<256x32xf32>
    %49 = vector.extract_strided_slice %1 {offsets = [2, 2, 0], sizes = [16, 16, 64], strides = [1, 1, 1]} : vector<18x18x64xbf16> to vector<16x16x64xbf16>
    %50 = vector.shape_cast %49 : vector<16x16x64xbf16> to vector<256x64xbf16>
    %c0_36 = arith.constant 0 : index
    %c8 = arith.constant 8 : index
    %c0_37 = arith.constant 0 : index
    %c0_38 = arith.constant 0 : index
    %51 = vector.load %arg3[%c0_36, %c8, %c0_37, %c0_38] : memref<1x9x64x32xbf16, #tpu.memory_space<vmem>>, vector<1x1x64x32xbf16>
    %52 = vector.shape_cast %51 : vector<1x1x64x32xbf16> to vector<64x32xbf16>
    %cst_39 = arith.constant dense<0.000000e+00> : vector<256x32xf32>
    %53 = tpu.matmul %50, %52, %cst_39 {dimension_numbers = #tpu.dot_dimension_numbers<[1], [0], [0], [1], [0, 0, 1, 1], [], []>} : vector<256x64xbf16>, vector<64x32xbf16>, vector<256x32xf32> -> vector<256x32xf32>
    %54 = arith.addf %48, %53 : vector<256x32xf32>
    %c0_40 = arith.constant 0 : index
    %c0_41 = arith.constant 0 : index
    %c0_42 = arith.constant 0 : index
    %55 = vector.load %arg4[%c0_40, %c0_41, %c0_42] : memref<1x1x32xf32, #tpu.memory_space<vmem>>, vector<1x1x32xf32>
    %56 = vector.shape_cast %55 : vector<1x1x32xf32> to vector<1x32xf32>
    %57 = vector.broadcast %56 : vector<1x32xf32> to vector<256x32xf32>
    %58 = arith.addf %54, %57 : vector<256x32xf32>
    %59 = arith.truncf %58 : vector<256x32xf32> to vector<256x32xbf16>
    %c0_43 = arith.constant 0 : index
    %c0_44 = arith.constant 0 : index
    %c0_45 = arith.constant 0 : index
    %c0_46 = arith.constant 0 : index
    %60 = vector.load %arg5[%c0_43, %c0_44, %c0_45, %c0_46] : memref<1x1x256x32xbf16, #tpu.memory_space<vmem>>, vector<1x1x256x32xbf16>
    %61 = vector.shape_cast %60 : vector<1x1x256x32xbf16> to vector<256x32xbf16>
    %62 = vector.shape_cast %59 : vector<256x32xbf16> to vector<1x1x256x32xbf16>
    tpu.vector_store %arg5[%c0_43, %c0_44, %c0_45, %c0_46], %62 {strides = array<i32>} : memref<1x1x256x32xbf16, #tpu.memory_space<vmem>>, vector<1x1x256x32xbf16>,
    %cst_47 = arith.constant dense<0.000000e+00> : vector<32xf32>
    %63 = vector.multi_reduction <add>, %58, %cst_47 [0] : vector<256x32xf32> to vector<32xf32>
    %64 = vector.shape_cast %63 : vector<32xf32> to vector<1x32xf32>
    %65 = arith.mulf %58, %58 : vector<256x32xf32>
    %cst_48 = arith.constant dense<0.000000e+00> : vector<32xf32>
    %66 = vector.multi_reduction <add>, %65, %cst_48 [0] : vector<256x32xf32> to vector<32xf32>
    %67 = vector.shape_cast %66 : vector<32xf32> to vector<1x32xf32>
    %cst_49 = arith.constant 0.000000e+00 : f32
    %68 = vector.broadcast %cst_49 : f32 to vector<6x32xf32>
    %69 = tpu.concatenate %64, %67, %68 in 0 : vector<1x32xf32>, vector<1x32xf32>, vector<6x32xf32> -> vector<8x32xf32>
    %c0_50 = arith.constant 0 : index
    %c0_51 = arith.constant 0 : index
    %c0_52 = arith.constant 0 : index
    %c0_53 = arith.constant 0 : index
    %70 = vector.load %arg6[%c0_50, %c0_51, %c0_52, %c0_53] : memref<1x1x8x32xf32, #tpu.memory_space<vmem>>, vector<1x1x8x32xf32>
    %71 = vector.shape_cast %70 : vector<1x1x8x32xf32> to vector<8x32xf32>
    %72 = vector.shape_cast %69 : vector<8x32xf32> to vector<1x1x8x32xf32>
    tpu.vector_store %arg6[%c0_50, %c0_51, %c0_52, %c0_53], %72 {strides = array<i32>} : memref<1x1x8x32xf32, #tpu.memory_space<vmem>>, vector<1x1x8x32xf32>,
    return
  }
  func.func @transform_0(%arg0: i32, %arg1: i32) -> (i32, i32, i32, i32, i32) {
    %c0_i32 = arith.constant 0 : i32
    %c0_i32_0 = arith.constant 0 : i32
    %c0_i32_1 = arith.constant 0 : i32
    %c0_i32_2 = arith.constant 0 : i32
    return %arg0, %arg1, %c0_i32, %c0_i32_0, %c0_i32_1 : i32, i32, i32, i32, i32
  }
  func.func @transform_1(%arg0: i32, %arg1: i32) -> (i32, i32, i32, i32) {
    %c0_i32 = arith.constant 0 : i32
    %c0_i32_0 = arith.constant 0 : i32
    %c0_i32_1 = arith.constant 0 : i32
    %c0_i32_2 = arith.constant 0 : i32
    return %arg0, %c0_i32, %c0_i32_0, %c0_i32_1 : i32, i32, i32, i32
  }
  func.func @transform_2(%arg0: i32, %arg1: i32) -> (i32, i32, i32) {
    %c0_i32 = arith.constant 0 : i32
    %c0_i32_0 = arith.constant 0 : i32
    %c0_i32_1 = arith.constant 0 : i32
    return %arg0, %c0_i32, %c0_i32_0 : i32, i32, i32
  }
  func.func @transform_3(%arg0: i32, %arg1: i32) -> (i32, i32, i32, i32) {
    %c0_i32 = arith.constant 0 : i32
    %c0_i32_0 = arith.constant 0 : i32
    %c0_i32_1 = arith.constant 0 : i32
    return %arg0, %arg1, %c0_i32, %c0_i32_0 : i32, i32, i32, i32
  }
  func.func @transform_4(%arg0: i32, %arg1: i32) -> (i32, i32, i32, i32) {
    %c0_i32 = arith.constant 0 : i32
    %c0_i32_0 = arith.constant 0 : i32
    %c0_i32_1 = arith.constant 0 : i32
    return %arg0, %arg1, %c0_i32, %c0_i32_0 : i32, i32, i32, i32
  }
}

</mosaic_0001>

<llo_original>
// kernel: mfm0_forward.4
$region0: #{mfm0_forward.4}
  #allocation0 [shape = 'u32[]', space=smem, size = 0x4, offset = 0x4, fixed_abs, tag = 'smem constant byte address 0x4 - core index']
  #allocation1 [shape = 'u32[144,128]{1,0:T(1,128)}', space=vmem, size = 0x12000, scoped, tag = 'internal scratch']
  %s0 = inlined_call_operand.vmem [shape: bf16[2,2,18,18,32], index: 0, kind: input, shape index: {}]
  %s1 = inlined_call_operand.vmem [shape: bf16[2,9,32,32], index: 1, kind: input, shape index: {}]
  %s2 = inlined_call_operand.vmem [shape: f32[2,1,32], index: 2, kind: input, shape index: {}]
  %s3 = inlined_call_operand.vmem [shape: bf16[2,2,256,32], index: 3, kind: output, shape index: {}]
  %s4 = sld [smem:[#allocation0]]
  $region45: #{mfm0_forward.4} parent=0
    _
  %s6 = ssub.s32 1, %s4
  %s7 = scalar_select 0, %s6, %s4
  loop: start=0, step=1, limit=6
  $region2: #{mfm0_forward.4} parent=0 // loop_pre_header
    _
  $region3: #{mfm0_forward.4} parent=0 // loop_header
    %s9 = sphi 0, %s13
    %p10 = scmp.ge.s32.totalorder %s9, 6
    %s16 = sphi 0, %s28
    %s17 = sphi 0, %s24
    %s18 = sphi 0, %s16
    %s19 = sphi 0, %s17
    %s20 = sphi 0, %s18
    %s21 = sphi 0, %s19
    %s33 = sphi 0, %s35
    %s36 = sphi 0, %s33
    %s37 = sphi 0, %s36
    %s53 = sphi 0, %s37
    %s59 = sphi 0, %s61
    %s62 = sphi 0, %s59
    %s63 = sphi 0, %s62
    %s79 = sphi 0, %s63
    %s85 = sphi 0, %s87
    %s88 = sphi 0, %s85
    %s89 = sphi 0, %s88
    %s105 = sphi 0, %s89
    %s113 = sphi 0, %s115
    %s116 = sphi 0, %s113
    %s117 = sphi 0, %s116
    %s133 = sphi 0, %s117
  $region4: #{mfm0_forward.4} parent=0 // loop_header_branch
    %12 = sbr.rel (%p10) target = $region8
  $region5: #{mfm0_forward.4} parent=0 // loop_body
    %s14 = ssub.s32 %s9, 1
    %s15 = ssub.s32 %s9, 2
    %s22 = sadd.s32 1, %s17
    %p23 = scmp.ge.s32.totalorder %s22, 2
    %s24 = scalar_select %p23, 0, %s22
    %s25 = sadd.s32 1, %s16
    %s26 = scalar_select %p23, %s25, %s16
    %p27 = scmp.ge.s32.totalorder %s26, 2
    %s28 = scalar_select %p27, 0, %s26
    %s29 = ssub.s32 %s16, %s28
    %s30 = ssub.s32 %s17, %s24
    %s31 = sor.u32 %s29, %s30
    %p32 = scmp.eq.s32.totalorder %s31, 0
    %s34 = sadd.s32 %s33, 1
    %s35 = scalar_select %p32, %s33, %s34
    %p38 = pneg %p32
    %p39 = scmp.eq.s32.totalorder %s9, 3
    %p40 = por %p38, %p39
    %p41 = scmp.ne.s32.totalorder %s33, %s36
    %p42 = scmp.eq.s32.totalorder %s9, 0
    %p43 = por %p41, %p42
    %p44 = scmp.ne.s32.totalorder %s33, %s36
    %p45 = scmp.eq.s32.totalorder %s14, 3
    %p46 = por %p44, %p45
    %p47 = scmp.ne.s32.totalorder %s36, %s37
    %p48 = scmp.eq.s32.totalorder %s14, 0
    %p49 = por %p47, %p48
    %p50 = scmp.ne.s32.totalorder %s36, %s37
    %p51 = scmp.eq.s32.totalorder %s15, 3
    %p52 = por %p50, %p51
    %p54 = scmp.ne.s32.totalorder %s37, %s53
    %p55 = scmp.eq.s32.totalorder %s15, 0
    %p56 = por %p54, %p55
    %s57 = ssub.s32 %s16, %s28
    %p58 = scmp.eq.s32.totalorder %s57, 0
    %s60 = sadd.s32 %s59, 1
    %s61 = scalar_select %p58, %s59, %s60
    %p64 = pneg %p58
    %p65 = scmp.eq.s32.totalorder %s9, 3
    %p66 = por %p64, %p65
    %p67 = scmp.ne.s32.totalorder %s59, %s62
    %p68 = scmp.eq.s32.totalorder %s9, 0
    %p69 = por %p67, %p68
    %p70 = scmp.ne.s32.totalorder %s59, %s62
    %p71 = scmp.eq.s32.totalorder %s14, 3
    %p72 = por %p70, %p71
    %p73 = scmp.ne.s32.totalorder %s62, %s63
    %p74 = scmp.eq.s32.totalorder %s14, 0
    %p75 = por %p73, %p74
    %p76 = scmp.ne.s32.totalorder %s62, %s63
    %p77 = scmp.eq.s32.totalorder %s15, 3
    %p78 = por %p76, %p77
    %p80 = scmp.ne.s32.totalorder %s63, %s79
    %p81 = scmp.eq.s32.totalorder %s15, 0
    %p82 = por %p80, %p81
    %s83 = ssub.s32 %s16, %s28
    %p84 = scmp.eq.s32.totalorder %s83, 0
    %s86 = sadd.s32 %s85, 1
    %s87 = scalar_select %p84, %s85, %s86
    %p90 = pneg %p84
    %p91 = scmp.eq.s32.totalorder %s9, 3
    %p92 = por %p90, %p91
    %p93 = scmp.ne.s32.totalorder %s85, %s88
    %p94 = scmp.eq.s32.totalorder %s9, 0
    %p95 = por %p93, %p94
    %p96 = scmp.ne.s32.totalorder %s85, %s88
    %p97 = scmp.eq.s32.totalorder %s14, 3
    %p98 = por %p96, %p97
    %p99 = scmp.ne.s32.totalorder %s88, %s89
    %p100 = scmp.eq.s32.totalorder %s14, 0
    %p101 = por %p99, %p100
    %p102 = scmp.ne.s32.totalorder %s88, %s89
    %p103 = scmp.eq.s32.totalorder %s15, 3
    %p104 = por %p102, %p103
    %p106 = scmp.ne.s32.totalorder %s89, %s105
    %p107 = scmp.eq.s32.totalorder %s15, 0
    %p108 = por %p106, %p107
    %s109 = ssub.s32 %s16, %s28
    %s110 = ssub.s32 %s17, %s24
    %s111 = sor.u32 %s109, %s110
    %p112 = scmp.eq.s32.totalorder %s111, 0
    %s114 = sadd.s32 %s113, 1
    %s115 = scalar_select %p112, %s113, %s114
    %p118 = pneg %p112
    %p119 = scmp.eq.s32.totalorder %s9, 3
    %p120 = por %p118, %p119
    %p121 = scmp.ne.s32.totalorder %s113, %s116
    %p122 = scmp.eq.s32.totalorder %s9, 0
    %p123 = por %p121, %p122
    %p124 = scmp.ne.s32.totalorder %s113, %s116
    %p125 = scmp.eq.s32.totalorder %s14, 3
    %p126 = por %p124, %p125
    %p127 = scmp.ne.s32.totalorder %s116, %s117
    %p128 = scmp.eq.s32.totalorder %s14, 0
    %p129 = por %p127, %p128
    %p130 = scmp.ne.s32.totalorder %s116, %s117
    %p131 = scmp.eq.s32.totalorder %s15, 3
    %p132 = por %p130, %p131
    %p134 = scmp.ne.s32.totalorder %s117, %s133
    %p135 = scmp.eq.s32.totalorder %s15, 0
    %p136 = por %p134, %p135
    %p137 = scmp.le.s32.totalorder 1, %s9
    %p138 = scmp.lt.s32.totalorder %s9, 5
    %p139 = pnand %p137, %p138
    %p140 = pneg %p139
    // Predicated region
    $region9: #{mfm0_forward.4} parent=5 // pred_check
      _
    $region10: #{mfm0_forward.4} parent=5 // pred_check_branch
      %142 = sbr.rel (%p139) target = $region12
    $region11: #{mfm0_forward.4} parent=5 // pred_region
      %s143 = ssub.s32 %s9, 1
    $region12: #{mfm0_forward.4} parent=5 // pred_fallthru
      _
    %p144 = scmp.lt.s32.totalorder %s9, 4
    // Predicated region
    $region13: #{mfm0_forward.4} parent=5 // pred_check
      %p145 = pneg %p144
    $region14: #{mfm0_forward.4} parent=5 // pred_check_branch
      %147 = sbr.rel (%p145) target = $region16
    $region15: #{mfm0_forward.4} parent=5 // pred_region
      // Predicated region
      $region17: #{mfm0_forward.4} parent=15 // pred_check
        %p148 = pneg %p43
      $region18: #{mfm0_forward.4} parent=15 // pred_check_branch
        %150 = sbr.rel (%p148) target = $region20
      $region19: #{mfm0_forward.4} parent=15 // pred_region
        %p151 = scmp.lt.s32.totalorder %s16, 1
        %s152 = scalar_select %p151, %s16, 1
        %p153 = scmp.lt.s32.totalorder %s17, 1
        %s154 = scalar_select %p153, %s17, 1
        %s155 = smul.addr %s154, 54
        %s156 = smul.addr %s152, 108
        %s157 = sadd.s32 %s155, %s156
        %s158 = smul.addr %s157, 4
        %s159 = scalar_lea.vmem %s0, %s158
      $region20: #{mfm0_forward.4} parent=15 // pred_fallthru
        _
      // Predicated region
      $region21: #{mfm0_forward.4} parent=15 // pred_check
        %p160 = pneg %p69
      $region22: #{mfm0_forward.4} parent=15 // pred_check_branch
        %162 = sbr.rel (%p160) target = $region24
      $region23: #{mfm0_forward.4} parent=15 // pred_region
        %p163 = scmp.lt.s32.totalorder %s16, 1
        %s164 = scalar_select %p163, %s16, 1
        %s165 = smul.addr %s164, 36
        %s166 = smul.addr %s165, 4
        %s167 = scalar_lea.vmem %s1, %s166
      $region24: #{mfm0_forward.4} parent=15 // pred_fallthru
        _
      // Predicated region
      $region25: #{mfm0_forward.4} parent=15 // pred_check
        %p168 = pneg %p95
      $region26: #{mfm0_forward.4} parent=15 // pred_check_branch
        %170 = sbr.rel (%p168) target = $region28
      $region27: #{mfm0_forward.4} parent=15 // pred_region
        %p171 = scmp.lt.s32.totalorder %s16, 1
        %s172 = scalar_select %p171, %s16, 1
        %s173 = scalar_lea.vmem %s2, %s172
      $region28: #{mfm0_forward.4} parent=15 // pred_fallthru
        _
    $region16: #{mfm0_forward.4} parent=5 // pred_fallthru
      _
    %p174 = scmp.le.s32.totalorder 1, %s9
    %p175 = scmp.lt.s32.totalorder %s9, 5
    %p176 = pnand %p174, %p175
    %p177 = pneg %p176
    // Predicated region
    $region29: #{mfm0_forward.4} parent=5 // pred_check
      _
    $region30: #{mfm0_forward.4} parent=5 // pred_check_branch
      %179 = sbr.rel (%p176) target = $region32
    $region31: #{mfm0_forward.4} parent=5 // pred_region
      %s180 = ssub.s32 %s9, 1
      %p181 = scmp.lt.s32.totalorder %s18, 1
      %s182 = scalar_select %p181, %s18, 1
      %p183 = scmp.lt.s32.totalorder %s19, 1
      %s184 = scalar_select %p183, %s19, 1
      %s185 = smul.addr %s184, 54
      %s186 = smul.addr %s182, 108
      %s187 = sadd.s32 %s185, %s186
      %s188 = smul.addr %s187, 4
      %s189 = scalar_lea.vmem %s0, %s188
      %p190 = pneg %p49
      %p191 = pneg %p46
      %p192 = scmp.lt.s32.totalorder %s18, 1
      %s193 = scalar_select %p192, %s18, 1
      %s194 = smul.addr %s193, 36
      %s195 = smul.addr %s194, 4
      %s196 = scalar_lea.vmem %s1, %s195
      %p197 = pneg %p75
      %p198 = pneg %p72
      %p199 = scmp.lt.s32.totalorder %s18, 1
      %s200 = scalar_select %p199, %s18, 1
      %s201 = scalar_lea.vmem %s2, %s200
      %p202 = pneg %p101
      %p203 = pneg %p98
      %p204 = pneg %p129
      %p205 = pneg %p126
      %p206 = scmp.lt.s32.totalorder %s18, 1
      %s207 = scalar_select %p206, %s18, 1
      %p208 = scmp.lt.s32.totalorder %s19, 1
      %s209 = scalar_select %p208, %s19, 1
      %s210 = smul.addr %s209, 32
      %s211 = smul.addr %s207, 64
      %s212 = sadd.s32 %s210, %s211
      %s213 = smul.addr %s212, 4
      %s214 = scalar_lea.vmem %s3, %s213
      %p215 = scmp.lt.s32.totalorder %s18, 1
      %s216 = scalar_select %p215, %s18, 1
      %p217 = scmp.lt.s32.totalorder %s19, 1
      %s218 = scalar_select %p217, %s19, 1
      %s219 = smul.addr %s218, 54
      %s220 = smul.addr %s216, 108
      %s221 = sadd.s32 %s219, %s220
      %s222 = smul.addr %s221, 4
      %s223 = scalar_lea.vmem %s0, %s222
      %p224 = scmp.lt.s32.totalorder %s18, 1
      %s225 = scalar_select %p224, %s18, 1
      %s226 = smul.addr %s225, 36
      %s227 = smul.addr %s226, 4
      %s228 = scalar_lea.vmem %s1, %s227
      %p229 = scmp.lt.s32.totalorder %s18, 1
      %s230 = scalar_select %p229, %s18, 1
      %s231 = scalar_lea.vmem %s2, %s230
      %p232 = scmp.lt.s32.totalorder %s18, 1
      %s233 = scalar_select %p232, %s18, 1
      %p234 = scmp.lt.s32.totalorder %s19, 1
      %s235 = scalar_select %p234, %s19, 1
      %s236 = smul.addr %s235, 32
      %s237 = smul.addr %s233, 64
      %s238 = sadd.s32 %s236, %s237
      %s239 = smul.addr %s238, 4
      %s240 = scalar_lea.vmem %s3, %s239
      %v242 = vld [vmem:[%s223] sm:$0xf]
      %v243 = vld [vmem:[%s223 + $0x4] sm:$0xf]
      %v244 = vld [vmem:[%s223 + $0x8] sm:$0x1]
      %v245 = vld [vmem:[%s223 + $0xc] sm:$0xf]
      %v246 = vld [vmem:[%s223 + $0x10] sm:$0xf]
      %v247 = vld [vmem:[%s223 + $0x14] sm:$0x1]
      %v248 = vld [vmem:[%s223 + $0x18] sm:$0xf]
      %v249 = vld [vmem:[%s223 + $0x1c] sm:$0xf]
      %v250 = vld [vmem:[%s223 + $0x20] sm:$0x1]
      %v251 = vld [vmem:[%s223 + $0x24] sm:$0xf]
      %v252 = vld [vmem:[%s223 + $0x28] sm:$0xf]
      %v253 = vld [vmem:[%s223 + $0x2c] sm:$0x1]
      %v254 = vld [vmem:[%s223 + $0x30] sm:$0xf]
      %v255 = vld [vmem:[%s223 + $0x34] sm:$0xf]
      %v256 = vld [vmem:[%s223 + $0x38] sm:$0x1]
      %v257 = vld [vmem:[%s223 + $0x3c] sm:$0xf]
      %v258 = vld [vmem:[%s223 + $0x40] sm:$0xf]
      %v259 = vld [vmem:[%s223 + $0x44] sm:$0x1]
      %v260 = vld [vmem:[%s223 + $0x48] sm:$0xf]
      %v261 = vld [vmem:[%s223 + $0x4c] sm:$0xf]
      %v262 = vld [vmem:[%s223 + $0x50] sm:$0x1]
      %v263 = vld [vmem:[%s223 + $0x54] sm:$0xf]
      %v264 = vld [vmem:[%s223 + $0x58] sm:$0xf]
      %v265 = vld [vmem:[%s223 + $0x5c] sm:$0x1]
      %v266 = vld [vmem:[%s223 + $0x60] sm:$0xf]
      %v267 = vld [vmem:[%s223 + $0x64] sm:$0xf]
      %v268 = vld [vmem:[%s223 + $0x68] sm:$0x1]
      %v269 = vld [vmem:[%s223 + $0x6c] sm:$0xf]
      %v270 = vld [vmem:[%s223 + $0x70] sm:$0xf]
      %v271 = vld [vmem:[%s223 + $0x74] sm:$0x1]
      %v272 = vld [vmem:[%s223 + $0x78] sm:$0xf]
      %v273 = vld [vmem:[%s223 + $0x7c] sm:$0xf]
      %v274 = vld [vmem:[%s223 + $0x80] sm:$0x1]
      %v275 = vld [vmem:[%s223 + $0x84] sm:$0xf]
      %v276 = vld [vmem:[%s223 + $0x88] sm:$0xf]
      %v277 = vld [vmem:[%s223 + $0x8c] sm:$0x1]
      %v278 = vld [vmem:[%s223 + $0x90] sm:$0xf]
      %v279 = vld [vmem:[%s223 + $0x94] sm:$0xf]
      %v280 = vld [vmem:[%s223 + $0x98] sm:$0x1]
      %v281 = vld [vmem:[%s223 + $0x9c] sm:$0xf]
      %v282 = vld [vmem:[%s223 + $0xa0] sm:$0xf]
      %v283 = vld [vmem:[%s223 + $0xa4] sm:$0x1]
      %v284 = vld [vmem:[%s223 + $0xa8] sm:$0xf]
      %v285 = vld [vmem:[%s223 + $0xac] sm:$0xf]
      %v286 = vld [vmem:[%s223 + $0xb0] sm:$0x1]
      %v287 = vld [vmem:[%s223 + $0xb4] sm:$0xf]
      %v288 = vld [vmem:[%s223 + $0xb8] sm:$0xf]
      %v289 = vld [vmem:[%s223 + $0xbc] sm:$0x1]
      %v290 = vld [vmem:[%s223 + $0xc0] sm:$0xf]
      %v291 = vld [vmem:[%s223 + $0xc4] sm:$0xf]
      %v292 = vld [vmem:[%s223 + $0xc8] sm:$0x1]
      %v293 = vld [vmem:[%s223 + $0xcc] sm:$0xf]
      %v294 = vld [vmem:[%s223 + $0xd0] sm:$0xf]
      %v295 = vld [vmem:[%s223 + $0xd4] sm:$0x1]
      %v296 = vld [vmem:[%s228] sm:$0xf]
      %v297 = vld [vmem:[%s228 + $0x4] sm:$0xf]
      %v298 = vld [vmem:[%s228 + $0x8] sm:$0xf]
      %v299 = vld [vmem:[%s228 + $0xc] sm:$0xf]
      %vm300 = vsmask.f32 3328
      %vm301 = vsmask.f32 7440
      %vm302 = vmor %vm300, %vm301
      %v304 = vshrl.u32 %v242, 16
      %v306 = vrot.slane %v304, 4
      %v307 = vshll.u32 %v242, 16
      %v309 = vrot.slane %v307, 5
      %v310 = vor.u32 %v306, %v309
      %v311 = vrot.slane %v310, 4
      %v313 = vshll.u32 %v243, 16
      %v315 = vrot.slane %v313, 5
      %v316 = vsel %vm302, %v311, %v315
      %v317 = vshrl.u32 %v243, 16
      %v319 = vrot.slane %v317, 4
      %v320 = vor.u32 %v319, %v315
      %v321 = vrot.slane %v320, 4
      %v323 = vshll.u32 %v244, 16
      %v325 = vrot.slane %v323, 5
      %v326 = vsel %vm302, %v321, %v325
      %v328 = vshrl.u32 %v245, 16
      %v330 = vrot.slane %v328, 4
      %v331 = vshll.u32 %v245, 16
      %v333 = vrot.slane %v331, 5
      %v334 = vor.u32 %v330, %v333
      %v335 = vrot.slane %v334, 4
      %v337 = vshll.u32 %v246, 16
      %v339 = vrot.slane %v337, 5
      %v340 = vsel %vm302, %v335, %v339
      %v341 = vshrl.u32 %v246, 16
      %v343 = vrot.slane %v341, 4
      %v344 = vor.u32 %v343, %v339
      %v345 = vrot.slane %v344, 4
      %v347 = vshll.u32 %v247, 16
      %v349 = vrot.slane %v347, 5
      %v350 = vsel %vm302, %v345, %v349
      %v352 = vshrl.u32 %v248, 16
      %v354 = vrot.slane %v352, 4
      %v355 = vshll.u32 %v248, 16
      %v357 = vrot.slane %v355, 5
      %v358 = vor.u32 %v354, %v357
      %v359 = vrot.slane %v358, 4
      %v361 = vshll.u32 %v249, 16
      %v363 = vrot.slane %v361, 5
      %v364 = vsel %vm302, %v359, %v363
      %v365 = vshrl.u32 %v249, 16
      %v367 = vrot.slane %v365, 4
      %v368 = vor.u32 %v367, %v363
      %v369 = vrot.slane %v368, 4
      %v371 = vshll.u32 %v250, 16
      %v373 = vrot.slane %v371, 5
      %v374 = vsel %vm302, %v369, %v373
      %v376 = vshrl.u32 %v251, 16
      %v378 = vrot.slane %v376, 4
      %v379 = vshll.u32 %v251, 16
      %v381 = vrot.slane %v379, 5
      %v382 = vor.u32 %v378, %v381
      %v383 = vrot.slane %v382, 4
      %v385 = vshll.u32 %v252, 16
      %v387 = vrot.slane %v385, 5
      %v388 = vsel %vm302, %v383, %v387
      %v389 = vshrl.u32 %v252, 16
      %v391 = vrot.slane %v389, 4
      %v392 = vor.u32 %v391, %v387
      %v393 = vrot.slane %v392, 4
      %v395 = vshll.u32 %v253, 16
      %v397 = vrot.slane %v395, 5
      %v398 = vsel %vm302, %v393, %v397
      %v400 = vshrl.u32 %v254, 16
      %v402 = vrot.slane %v400, 4
      %v403 = vshll.u32 %v254, 16
      %v405 = vrot.slane %v403, 5
      %v406 = vor.u32 %v402, %v405
      %v407 = vrot.slane %v406, 4
      %v409 = vshll.u32 %v255, 16
      %v411 = vrot.slane %v409, 5
      %v412 = vsel %vm302, %v407, %v411
      %v413 = vshrl.u32 %v255, 16
      %v415 = vrot.slane %v413, 4
      %v416 = vor.u32 %v415, %v411
      %v417 = vrot.slane %v416, 4
      %v419 = vshll.u32 %v256, 16
      %v421 = vrot.slane %v419, 5
      %v422 = vsel %vm302, %v417, %v421
      %v424 = vshrl.u32 %v257, 16
      %v426 = vrot.slane %v424, 4
      %v427 = vshll.u32 %v257, 16
      %v429 = vrot.slane %v427, 5
      %v430 = vor.u32 %v426, %v429
      %v431 = vrot.slane %v430, 4
      %v433 = vshll.u32 %v258, 16
      %v435 = vrot.slane %v433, 5
      %v436 = vsel %vm302, %v431, %v435
      %v437 = vshrl.u32 %v258, 16
      %v439 = vrot.slane %v437, 4
      %v440 = vor.u32 %v439, %v435
      %v441 = vrot.slane %v440, 4
      %v443 = vshll.u32 %v259, 16
      %v445 = vrot.slane %v443, 5
      %v446 = vsel %vm302, %v441, %v445
      %v448 = vshrl.u32 %v260, 16
      %v450 = vrot.slane %v448, 4
      %v451 = vshll.u32 %v260, 16
      %v453 = vrot.slane %v451, 5
      %v454 = vor.u32 %v450, %v453
      %v455 = vrot.slane %v454, 4
      %v457 = vshll.u32 %v261, 16
      %v459 = vrot.slane %v457, 5
      %v460 = vsel %vm302, %v455, %v459
      %v461 = vshrl.u32 %v261, 16
      %v463 = vrot.slane %v461, 4
      %v464 = vor.u32 %v463, %v459
      %v465 = vrot.slane %v464, 4
      %v467 = vshll.u32 %v262, 16
      %v469 = vrot.slane %v467, 5
      %v470 = vsel %vm302, %v465, %v469
      %v472 = vshrl.u32 %v263, 16
      %v474 = vrot.slane %v472, 4
      %v475 = vshll.u32 %v263, 16
      %v477 = vrot.slane %v475, 5
      %v478 = vor.u32 %v474, %v477
      %v479 = vrot.slane %v478, 4
      %v481 = vshll.u32 %v264, 16
      %v483 = vrot.slane %v481, 5
      %v484 = vsel %vm302, %v479, %v483
      %v485 = vshrl.u32 %v264, 16
      %v487 = vrot.slane %v485, 4
      %v488 = vor.u32 %v487, %v483
      %v489 = vrot.slane %v488, 4
      %v491 = vshll.u32 %v265, 16
      %v493 = vrot.slane %v491, 5
      %v494 = vsel %vm302, %v489, %v493
      %v496 = vshrl.u32 %v266, 16
      %v498 = vrot.slane %v496, 4
      %v499 = vshll.u32 %v266, 16
      %v501 = vrot.slane %v499, 5
      %v502 = vor.u32 %v498, %v501
      %v503 = vrot.slane %v502, 4
      %v505 = vshll.u32 %v267, 16
      %v507 = vrot.slane %v505, 5
      %v508 = vsel %vm302, %v503, %v507
      %v509 = vshrl.u32 %v267, 16
      %v511 = vrot.slane %v509, 4
      %v512 = vor.u32 %v511, %v507
      %v513 = vrot.slane %v512, 4
      %v515 = vshll.u32 %v268, 16
      %v517 = vrot.slane %v515, 5
      %v518 = vsel %vm302, %v513, %v517
      %v520 = vshrl.u32 %v269, 16
      %v522 = vrot.slane %v520, 4
      %v523 = vshll.u32 %v269, 16
      %v525 = vrot.slane %v523, 5
      %v526 = vor.u32 %v522, %v525
      %v527 = vrot.slane %v526, 4
      %v529 = vshll.u32 %v270, 16
      %v531 = vrot.slane %v529, 5
      %v532 = vsel %vm302, %v527, %v531
      %v533 = vshrl.u32 %v270, 16
      %v535 = vrot.slane %v533, 4
      %v536 = vor.u32 %v535, %v531
      %v537 = vrot.slane %v536, 4
      %v539 = vshll.u32 %v271, 16
      %v541 = vrot.slane %v539, 5
      %v542 = vsel %vm302, %v537, %v541
      %v544 = vshrl.u32 %v272, 16
      %v546 = vrot.slane %v544, 4
      %v547 = vshll.u32 %v272, 16
      %v549 = vrot.slane %v547, 5
      %v550 = vor.u32 %v546, %v549
      %v551 = vrot.slane %v550, 4
      %v553 = vshll.u32 %v273, 16
      %v555 = vrot.slane %v553, 5
      %v556 = vsel %vm302, %v551, %v555
      %v557 = vshrl.u32 %v273, 16
      %v559 = vrot.slane %v557, 4
      %v560 = vor.u32 %v559, %v555
      %v561 = vrot.slane %v560, 4
      %v563 = vshll.u32 %v274, 16
      %v565 = vrot.slane %v563, 5
      %v566 = vsel %vm302, %v561, %v565
      %v568 = vshrl.u32 %v275, 16
      %v570 = vrot.slane %v568, 4
      %v571 = vshll.u32 %v275, 16
      %v573 = vrot.slane %v571, 5
      %v574 = vor.u32 %v570, %v573
      %v575 = vrot.slane %v574, 4
      %v577 = vshll.u32 %v276, 16
      %v579 = vrot.slane %v577, 5
      %v580 = vsel %vm302, %v575, %v579
      %v581 = vshrl.u32 %v276, 16
      %v583 = vrot.slane %v581, 4
      %v584 = vor.u32 %v583, %v579
      %v585 = vrot.slane %v584, 4
      %v587 = vshll.u32 %v277, 16
      %v589 = vrot.slane %v587, 5
      %v590 = vsel %vm302, %v585, %v589
      %v592 = vshrl.u32 %v278, 16
      %v594 = vrot.slane %v592, 4
      %v595 = vshll.u32 %v278, 16
      %v597 = vrot.slane %v595, 5
      %v598 = vor.u32 %v594, %v597
      %v599 = vrot.slane %v598, 4
      %v601 = vshll.u32 %v279, 16
      %v603 = vrot.slane %v601, 5
      %v604 = vsel %vm302, %v599, %v603
      %v605 = vshrl.u32 %v279, 16
      %v607 = vrot.slane %v605, 4
      %v608 = vor.u32 %v607, %v603
      %v609 = vrot.slane %v608, 4
      %v611 = vshll.u32 %v280, 16
      %v613 = vrot.slane %v611, 5
      %v614 = vsel %vm302, %v609, %v613
      %v616 = vshrl.u32 %v281, 16
      %v618 = vrot.slane %v616, 4
      %v619 = vshll.u32 %v281, 16
      %v621 = vrot.slane %v619, 5
      %v622 = vor.u32 %v618, %v621
      %v623 = vrot.slane %v622, 4
      %v625 = vshll.u32 %v282, 16
      %v627 = vrot.slane %v625, 5
      %v628 = vsel %vm302, %v623, %v627
      %v629 = vshrl.u32 %v282, 16
      %v631 = vrot.slane %v629, 4
      %v632 = vor.u32 %v631, %v627
      %v633 = vrot.slane %v632, 4
      %v635 = vshll.u32 %v283, 16
      %v637 = vrot.slane %v635, 5
      %v638 = vsel %vm302, %v633, %v637
      %v640 = vshrl.u32 %v284, 16
      %v642 = vrot.slane %v640, 4
      %v643 = vshll.u32 %v284, 16
      %v645 = vrot.slane %v643, 5
      %v646 = vor.u32 %v642, %v645
      %v647 = vrot.slane %v646, 4
      %v649 = vshll.u32 %v285, 16
      %v651 = vrot.slane %v649, 5
      %v652 = vsel %vm302, %v647, %v651
      %v653 = vshrl.u32 %v285, 16
      %v655 = vrot.slane %v653, 4
      %v656 = vor.u32 %v655, %v651
      %v657 = vrot.slane %v656, 4
      %v659 = vshll.u32 %v286, 16
      %v661 = vrot.slane %v659, 5
      %v662 = vsel %vm302, %v657, %v661
      %v664 = vshrl.u32 %v287, 16
      %v666 = vrot.slane %v664, 4
      %v667 = vshll.u32 %v287, 16
      %v669 = vrot.slane %v667, 5
      %v670 = vor.u32 %v666, %v669
      %v671 = vrot.slane %v670, 4
      %v673 = vshll.u32 %v288, 16
      %v675 = vrot.slane %v673, 5
      %v676 = vsel %vm302, %v671, %v675
      %v677 = vshrl.u32 %v288, 16
      %v679 = vrot.slane %v677, 4
      %v680 = vor.u32 %v679, %v675
      %v681 = vrot.slane %v680, 4
      %v683 = vshll.u32 %v289, 16
      %v685 = vrot.slane %v683, 5
      %v686 = vsel %vm302, %v681, %v685
      %s687 = scalar_lea.vmem %s228, 16
      %v688 = vld [vmem:[%s687] sm:$0xf]
      %v689 = vld [vmem:[%s687 + $0x4] sm:$0xf]
      %v690 = vld [vmem:[%s687 + $0x8] sm:$0xf]
      %v691 = vld [vmem:[%s687 + $0xc] sm:$0xf]
      %v692 = vunpack.c.l.b16 %v316
      %v693 = vunpack.c.l.b16 %v326
      %v694 = vunpack.c.l.b16 %v340
      %v695 = vunpack.c.l.b16 %v350
      %v696 = vunpack.c.l.b16 %v364
      %v697 = vunpack.c.l.b16 %v374
      %v698 = vunpack.c.l.b16 %v388
      %v699 = vunpack.c.l.b16 %v398
      %v700 = vunpack.c.l.b16 %v412
      %v701 = vunpack.c.l.b16 %v422
      %v702 = vunpack.c.l.b16 %v436
      %v703 = vunpack.c.l.b16 %v446
      %v704 = vunpack.c.l.b16 %v460
      %v705 = vunpack.c.l.b16 %v470
      %v706 = vunpack.c.l.b16 %v484
      %v707 = vunpack.c.l.b16 %v494
      %v708 = vunpack.c.l.b16 %v508
      %v709 = vunpack.c.l.b16 %v518
      %v710 = vunpack.c.l.b16 %v532
      %v711 = vunpack.c.l.b16 %v542
      %v712 = vunpack.c.l.b16 %v556
      %v713 = vunpack.c.l.b16 %v566
      %v714 = vunpack.c.l.b16 %v580
      %v715 = vunpack.c.l.b16 %v590
      %v716 = vunpack.c.l.b16 %v604
      %v717 = vunpack.c.l.b16 %v614
      %v718 = vunpack.c.l.b16 %v628
      %v719 = vunpack.c.l.b16 %v638
      %v720 = vunpack.c.l.b16 %v652
      %v721 = vunpack.c.l.b16 %v662
      %v722 = vunpack.c.l.b16 %v676
      %v723 = vunpack.c.l.b16 %v686
      %v724 = vpack.c.b16 %v693, %v692
      %v725 = vpack.c.b16 %v695, %v694
      %v726 = vpack.c.b16 %v697, %v696
      %v727 = vpack.c.b16 %v699, %v698
      %v728 = vpack.c.b16 %v701, %v700
      %v729 = vpack.c.b16 %v703, %v702
      %v730 = vpack.c.b16 %v705, %v704
      %v731 = vpack.c.b16 %v707, %v706
      %v732 = vpack.c.b16 %v709, %v708
      %v733 = vpack.c.b16 %v711, %v710
      %v734 = vpack.c.b16 %v713, %v712
      %v735 = vpack.c.b16 %v715, %v714
      %v736 = vpack.c.b16 %v717, %v716
      %v737 = vpack.c.b16 %v719, %v718
      %v738 = vpack.c.b16 %v721, %v720
      %v739 = vpack.c.b16 %v723, %v722
      %v744 = vunpack.c.l.b16 %v688
      %v745 = vunpack.c.l.b16 %v689
      %v746 = vunpack.c.l.b16 %v690
      %v747 = vunpack.c.l.b16 %v691
      %v748 = vpack.c.b16 %v745, %v744
      %v749 = vpack.c.b16 %v747, %v746
      %vm752 = vcmask 261120
      %v754 = vsel %vm752, %v724, 0
      %v757 = vsel %vm752, %v725, 0
      %v760 = vsel %vm752, %v726, 0
      %v763 = vsel %vm752, %v727, 0
      %v766 = vsel %vm752, %v728, 0
      %v769 = vsel %vm752, %v729, 0
      %v772 = vsel %vm752, %v730, 0
      %v775 = vsel %vm752, %v731, 0
      %v778 = vsel %vm752, %v732, 0
      %v781 = vsel %vm752, %v733, 0
      %v784 = vsel %vm752, %v734, 0
      %v787 = vsel %vm752, %v735, 0
      %v790 = vsel %vm752, %v736, 0
      %v793 = vsel %vm752, %v737, 0
      %v796 = vsel %vm752, %v738, 0
      %v799 = vsel %vm752, %v739, 0
      %801 = vmatprep.subr.bf16.mxu0 0
      %802 = vmatpush1.bf16.msra.mxu0 0
      %803 = vmatprep.subr.bf16.mxu0 0
      %804 = vmatpush1.bf16.msra.mxu0 0
      %805 = vmatprep.subr.bf16.mxu0 0
      %806 = vmatpush1.bf16.msra.mxu0 0
      %807 = vmatprep.subr.bf16.mxu0 0
      %808 = vmatpush1.bf16.msra.mxu0 0
      %809 = vmatprep.subr.bf16.mxu0 0
      %810 = vmatpush1.bf16.msra.mxu0 0
      %811 = vmatprep.subr.bf16.mxu0 0
      %812 = vmatpush1.bf16.msra.mxu0 0
      %813 = vmatprep.subr.bf16.mxu0 0
      %814 = vmatpush1.bf16.msra.mxu0 %v749
      %815 = vmatprep.subr.bf16.mxu0 0
      %816 = vmatpush1.bf16.msra.mxu0 %v748
      %817 = vmatprep.subr.bf16.mxu0 0
      %818 = vmatpush2.bf16.msra.mxu0 0
      %819 = vmatprep.subr.bf16.mxu0 0
      %820 = vmatpush2.bf16.msra.mxu0 0
      %821 = vmatprep.subr.bf16.mxu0 0
      %822 = vmatpush2.bf16.msra.mxu0 0
      %823 = vmatprep.subr.bf16.mxu0 0
      %824 = vmatpush2.bf16.msra.mxu0 0
      %825 = vmatprep.subr.bf16.mxu0 0
      %826 = vmatpush2.bf16.msra.mxu0 0
      %827 = vmatprep.subr.bf16.mxu0 0
      %828 = vmatpush2.bf16.msra.mxu0 0
      %829 = vmatprep.subr.bf16.mxu0 0
      %830 = vmatpush2.bf16.msra.mxu0 0
      %831 = vmatprep.subr.bf16.mxu0 0
      %832 = vmatpush2.bf16.msra.mxu0 0
      %833 = vmatprep.mubr.bf16.mxu0 0
      %834 = vmatmul.mubr.bf16.gmra.mxu0 %v754
      %v835 = vpop.f32.mrf.mxu0
      %v836 = vadd.f32 0.0, %v835
      %v837 = vpop.f32.mrf.mxu0
      %v838 = vpop.f32.mrf.mxu0
      %v839 = vadd.f32 0.0, %v838
      %v840 = vpop.f32.mrf.mxu0
      %841 = vmatprep.mubr.bf16.mxu0 0
      %842 = vmatmul.mubr.bf16.gmra.mxu0 %v757
      %v843 = vpop.f32.mrf.mxu0
      %v844 = vadd.f32 0.0, %v843
      %v845 = vpop.f32.mrf.mxu0
      %v846 = vpop.f32.mrf.mxu0
      %v847 = vadd.f32 0.0, %v846
      %v848 = vpop.f32.mrf.mxu0
      %849 = vmatprep.mubr.bf16.mxu0 0
      %850 = vmatmul.mubr.bf16.gmra.mxu0 %v760
      %v851 = vpop.f32.mrf.mxu0
      %v852 = vadd.f32 0.0, %v851
      %v853 = vpop.f32.mrf.mxu0
      %v854 = vpop.f32.mrf.mxu0
      %v855 = vadd.f32 0.0, %v854
      %v856 = vpop.f32.mrf.mxu0
      %857 = vmatprep.mubr.bf16.mxu0 0
      %858 = vmatmul.mubr.bf16.gmra.mxu0 %v763
      %v859 = vpop.f32.mrf.mxu0
      %v860 = vadd.f32 0.0, %v859
      %v861 = vpop.f32.mrf.mxu0
      %v862 = vpop.f32.mrf.mxu0
      %v863 = vadd.f32 0.0, %v862
      %v864 = vpop.f32.mrf.mxu0
      %865 = vmatprep.mubr.bf16.mxu0 0
      %866 = vmatmul.mubr.bf16.gmra.mxu0 %v766
      %v867 = vpop.f32.mrf.mxu0
      %v868 = vadd.f32 0.0, %v867
      %v869 = vpop.f32.mrf.mxu0
      %v870 = vpop.f32.mrf.mxu0
      %v871 = vadd.f32 0.0, %v870
      %v872 = vpop.f32.mrf.mxu0
      %873 = vmatprep.mubr.bf16.mxu0 0
      %874 = vmatmul.mubr.bf16.gmra.mxu0 %v769
      %v875 = vpop.f32.mrf.mxu0
      %v876 = vadd.f32 0.0, %v875
      %v877 = vpop.f32.mrf.mxu0
      %v878 = vpop.f32.mrf.mxu0
      %v879 = vadd.f32 0.0, %v878
      %v880 = vpop.f32.mrf.mxu0
      %881 = vmatprep.mubr.bf16.mxu0 0
      %882 = vmatmul.mubr.bf16.gmra.mxu0 %v772
      %v883 = vpop.f32.mrf.mxu0
      %v884 = vadd.f32 0.0, %v883
      %v885 = vpop.f32.mrf.mxu0
      %v886 = vpop.f32.mrf.mxu0
      %v887 = vadd.f32 0.0, %v886
      %v888 = vpop.f32.mrf.mxu0
      %889 = vmatprep.mubr.bf16.mxu0 0
      %890 = vmatmul.mubr.bf16.gmra.mxu0 %v775
      %v891 = vpop.f32.mrf.mxu0
      %v892 = vadd.f32 0.0, %v891
      %v893 = vpop.f32.mrf.mxu0
      %v894 = vpop.f32.mrf.mxu0
      %v895 = vadd.f32 0.0, %v894
      %v896 = vpop.f32.mrf.mxu0
      %897 = vmatprep.mubr.bf16.mxu0 0
      %898 = vmatmul.mubr.bf16.gmra.mxu0 %v778
      %v899 = vpop.f32.mrf.mxu0
      %v900 = vadd.f32 0.0, %v899
      %v901 = vpop.f32.mrf.mxu0
      %v902 = vpop.f32.mrf.mxu0
      %v903 = vadd.f32 0.0, %v902
      %v904 = vpop.f32.mrf.mxu0
      %905 = vmatprep.mubr.bf16.mxu0 0
      %906 = vmatmul.mubr.bf16.gmra.mxu0 %v781
      %v907 = vpop.f32.mrf.mxu0
      %v908 = vadd.f32 0.0, %v907
      %v909 = vpop.f32.mrf.mxu0
      %v910 = vpop.f32.mrf.mxu0
      %v911 = vadd.f32 0.0, %v910
      %v912 = vpop.f32.mrf.mxu0
      %913 = vmatprep.mubr.bf16.mxu0 0
      %914 = vmatmul.mubr.bf16.gmra.mxu0 %v784
      %v915 = vpop.f32.mrf.mxu0
      %v916 = vadd.f32 0.0, %v915
      %v917 = vpop.f32.mrf.mxu0
      %v918 = vpop.f32.mrf.mxu0
      %v919 = vadd.f32 0.0, %v918
      %v920 = vpop.f32.mrf.mxu0
      %921 = vmatprep.mubr.bf16.mxu0 0
      %922 = vmatmul.mubr.bf16.gmra.mxu0 %v787
      %v923 = vpop.f32.mrf.mxu0
      %v924 = vadd.f32 0.0, %v923
      %v925 = vpop.f32.mrf.mxu0
      %v926 = vpop.f32.mrf.mxu0
      %v927 = vadd.f32 0.0, %v926
      %v928 = vpop.f32.mrf.mxu0
      %929 = vmatprep.mubr.bf16.mxu0 0
      %930 = vmatmul.mubr.bf16.gmra.mxu0 %v790
      %v931 = vpop.f32.mrf.mxu0
      %v932 = vadd.f32 0.0, %v931
      %v933 = vpop.f32.mrf.mxu0
      %v934 = vpop.f32.mrf.mxu0
      %v935 = vadd.f32 0.0, %v934
      %v936 = vpop.f32.mrf.mxu0
      %937 = vmatprep.mubr.bf16.mxu0 0
      %938 = vmatmul.mubr.bf16.gmra.mxu0 %v793
      %v939 = vpop.f32.mrf.mxu0
      %v940 = vadd.f32 0.0, %v939
      %v941 = vpop.f32.mrf.mxu0
      %v942 = vpop.f32.mrf.mxu0
      %v943 = vadd.f32 0.0, %v942
      %v944 = vpop.f32.mrf.mxu0
      %945 = vmatprep.mubr.bf16.mxu0 0
      %946 = vmatmul.mubr.bf16.gmra.mxu0 %v796
      %v947 = vpop.f32.mrf.mxu0
      %v948 = vadd.f32 0.0, %v947
      %v949 = vpop.f32.mrf.mxu0
      %v950 = vpop.f32.mrf.mxu0
      %v951 = vadd.f32 0.0, %v950
      %v952 = vpop.f32.mrf.mxu0
      %953 = vmatprep.mubr.bf16.mxu0 0
      %954 = vmatmul.mubr.bf16.gmra.mxu0 %v799
      %v955 = vpop.f32.mrf.mxu0
      %v956 = vadd.f32 0.0, %v955
      %v957 = vpop.f32.mrf.mxu0
      %v958 = vpop.f32.mrf.mxu0
      %v959 = vadd.f32 0.0, %v958
      %v960 = vpop.f32.mrf.mxu0
      %961 = vdwg.mxu0
      %v994 = vunpack.c.l.b16 %v242
      %v995 = vunpack.c.l.b16 %v243
      %v996 = vunpack.c.l.b16 %v245
      %v997 = vunpack.c.l.b16 %v246
      %v998 = vunpack.c.l.b16 %v248
      %v999 = vunpack.c.l.b16 %v249
      %v1000 = vunpack.c.l.b16 %v251
      %v1001 = vunpack.c.l.b16 %v252
      %v1002 = vunpack.c.l.b16 %v254
      %v1003 = vunpack.c.l.b16 %v255
      %v1004 = vunpack.c.l.b16 %v257
      %v1005 = vunpack.c.l.b16 %v258
      %v1006 = vunpack.c.l.b16 %v260
      %v1007 = vunpack.c.l.b16 %v261
      %v1008 = vunpack.c.l.b16 %v263
      %v1009 = vunpack.c.l.b16 %v264
      %v1010 = vunpack.c.l.b16 %v266
      %v1011 = vunpack.c.l.b16 %v267
      %v1012 = vunpack.c.l.b16 %v269
      %v1013 = vunpack.c.l.b16 %v270
      %v1014 = vunpack.c.l.b16 %v272
      %v1015 = vunpack.c.l.b16 %v273
      %v1016 = vunpack.c.l.b16 %v275
      %v1017 = vunpack.c.l.b16 %v276
      %v1018 = vunpack.c.l.b16 %v278
      %v1019 = vunpack.c.l.b16 %v279
      %v1020 = vunpack.c.l.b16 %v281
      %v1021 = vunpack.c.l.b16 %v282
      %v1022 = vunpack.c.l.b16 %v284
      %v1023 = vunpack.c.l.b16 %v285
      %v1024 = vunpack.c.l.b16 %v287
      %v1025 = vunpack.c.l.b16 %v288
      %v1026 = vpack.c.b16 %v995, %v994
      %v1027 = vpack.c.b16 %v997, %v996
      %v1028 = vpack.c.b16 %v999, %v998
      %v1029 = vpack.c.b16 %v1001, %v1000
      %v1030 = vpack.c.b16 %v1003, %v1002
      %v1031 = vpack.c.b16 %v1005, %v1004
      %v1032 = vpack.c.b16 %v1007, %v1006
      %v1033 = vpack.c.b16 %v1009, %v1008
      %v1034 = vpack.c.b16 %v1011, %v1010
      %v1035 = vpack.c.b16 %v1013, %v1012
      %v1036 = vpack.c.b16 %v1015, %v1014
      %v1037 = vpack.c.b16 %v1017, %v1016
      %v1038 = vpack.c.b16 %v1019, %v1018
      %v1039 = vpack.c.b16 %v1021, %v1020
      %v1040 = vpack.c.b16 %v1023, %v1022
      %v1041 = vpack.c.b16 %v1025, %v1024
      %v1046 = vunpack.c.l.b16 %v296
      %v1047 = vunpack.c.l.b16 %v297
      %v1048 = vunpack.c.l.b16 %v298
      %v1049 = vunpack.c.l.b16 %v299
      %v1050 = vpack.c.b16 %v1047, %v1046
      %v1051 = vpack.c.b16 %v1049, %v1048
      %v1055 = vsel %vm752, %v1026, 0
      %v1058 = vsel %vm752, %v1027, 0
      %v1061 = vsel %vm752, %v1028, 0
      %v1064 = vsel %vm752, %v1029, 0
      %v1067 = vsel %vm752, %v1030, 0
      %v1070 = vsel %vm752, %v1031, 0
      %v1073 = vsel %vm752, %v1032, 0
      %v1076 = vsel %vm752, %v1033, 0
      %v1079 = vsel %vm752, %v1034, 0
      %v1082 = vsel %vm752, %v1035, 0
      %v1085 = vsel %vm752, %v1036, 0
      %v1088 = vsel %vm752, %v1037, 0
      %v1091 = vsel %vm752, %v1038, 0
      %v1094 = vsel %vm752, %v1039, 0
      %v1097 = vsel %vm752, %v1040, 0
      %v1100 = vsel %vm752, %v1041, 0
      %1102 = vmatprep.subr.bf16.mxu0 0
      %1103 = vmatpush1.bf16.msra.mxu0 0
      %1104 = vmatprep.subr.bf16.mxu0 0
      %1105 = vmatpush1.bf16.msra.mxu0 0
      %1106 = vmatprep.subr.bf16.mxu0 0
      %1107 = vmatpush1.bf16.msra.mxu0 0
      %1108 = vmatprep.subr.bf16.mxu0 0
      %1109 = vmatpush1.bf16.msra.mxu0 0
      %1110 = vmatprep.subr.bf16.mxu0 0
      %1111 = vmatpush1.bf16.msra.mxu0 0
      %1112 = vmatprep.subr.bf16.mxu0 0
      %1113 = vmatpush1.bf16.msra.mxu0 0
      %1114 = vmatprep.subr.bf16.mxu0 0
      %1115 = vmatpush1.bf16.msra.mxu0 %v1051
      %1116 = vmatprep.subr.bf16.mxu0 0
      %1117 = vmatpush1.bf16.msra.mxu0 %v1050
      %1118 = vmatprep.subr.bf16.mxu0 0
      %1119 = vmatpush2.bf16.msra.mxu0 0
      %1120 = vmatprep.subr.bf16.mxu0 0
      %1121 = vmatpush2.bf16.msra.mxu0 0
      %1122 = vmatprep.subr.bf16.mxu0 0
      %1123 = vmatpush2.bf16.msra.mxu0 0
      %1124 = vmatprep.subr.bf16.mxu0 0
      %1125 = vmatpush2.bf16.msra.mxu0 0
      %1126 = vmatprep.subr.bf16.mxu0 0
      %1127 = vmatpush2.bf16.msra.mxu0 0
      %1128 = vmatprep.subr.bf16.mxu0 0
      %1129 = vmatpush2.bf16.msra.mxu0 0
      %1130 = vmatprep.subr.bf16.mxu0 0
      %1131 = vmatpush2.bf16.msra.mxu0 0
      %1132 = vmatprep.subr.bf16.mxu0 0
      %1133 = vmatpush2.bf16.msra.mxu0 0
      %1134 = vmatprep.mubr.bf16.mxu0 0
      %1135 = vmatmul.mubr.bf16.gmra.mxu0 %v1055
      %v1136 = vpop.f32.mrf.mxu0
      %v1137 = vadd.f32 %v836, %v1136
      %v1138 = vpop.f32.mrf.mxu0
      %v1139 = vpop.f32.mrf.mxu0
      %v1140 = vadd.f32 %v839, %v1139
      %v1141 = vpop.f32.mrf.mxu0
      %1142 = vmatprep.mubr.bf16.mxu0 0
      %1143 = vmatmul.mubr.bf16.gmra.mxu0 %v1058
      %v1144 = vpop.f32.mrf.mxu0
      %v1145 = vadd.f32 %v844, %v1144
      %v1146 = vpop.f32.mrf.mxu0
      %v1147 = vpop.f32.mrf.mxu0
      %v1148 = vadd.f32 %v847, %v1147
      %v1149 = vpop.f32.mrf.mxu0
      %1150 = vmatprep.mubr.bf16.mxu0 0
      %1151 = vmatmul.mubr.bf16.gmra.mxu0 %v1061
      %v1152 = vpop.f32.mrf.mxu0
      %v1153 = vadd.f32 %v852, %v1152
      %v1154 = vpop.f32.mrf.mxu0
      %v1155 = vpop.f32.mrf.mxu0
      %v1156 = vadd.f32 %v855, %v1155
      %v1157 = vpop.f32.mrf.mxu0
      %1158 = vmatprep.mubr.bf16.mxu0 0
      %1159 = vmatmul.mubr.bf16.gmra.mxu0 %v1064
      %v1160 = vpop.f32.mrf.mxu0
      %v1161 = vadd.f32 %v860, %v1160
      %v1162 = vpop.f32.mrf.mxu0
      %v1163 = vpop.f32.mrf.mxu0
      %v1164 = vadd.f32 %v863, %v1163
      %v1165 = vpop.f32.mrf.mxu0
      %1166 = vmatprep.mubr.bf16.mxu0 0
      %1167 = vmatmul.mubr.bf16.gmra.mxu0 %v1067
      %v1168 = vpop.f32.mrf.mxu0
      %v1169 = vadd.f32 %v868, %v1168
      %v1170 = vpop.f32.mrf.mxu0
      %v1171 = vpop.f32.mrf.mxu0
      %v1172 = vadd.f32 %v871, %v1171
      %v1173 = vpop.f32.mrf.mxu0
      %1174 = vmatprep.mubr.bf16.mxu0 0
      %1175 = vmatmul.mubr.bf16.gmra.mxu0 %v1070
      %v1176 = vpop.f32.mrf.mxu0
      %v1177 = vadd.f32 %v876, %v1176
      %v1178 = vpop.f32.mrf.mxu0
      %v1179 = vpop.f32.mrf.mxu0
      %v1180 = vadd.f32 %v879, %v1179
      %v1181 = vpop.f32.mrf.mxu0
      %1182 = vmatprep.mubr.bf16.mxu0 0
      %1183 = vmatmul.mubr.bf16.gmra.mxu0 %v1073
      %v1184 = vpop.f32.mrf.mxu0
      %v1185 = vadd.f32 %v884, %v1184
      %v1186 = vpop.f32.mrf.mxu0
      %v1187 = vpop.f32.mrf.mxu0
      %v1188 = vadd.f32 %v887, %v1187
      %v1189 = vpop.f32.mrf.mxu0
      %1190 = vmatprep.mubr.bf16.mxu0 0
      %1191 = vmatmul.mubr.bf16.gmra.mxu0 %v1076
      %v1192 = vpop.f32.mrf.mxu0
      %v1193 = vadd.f32 %v892, %v1192
      %v1194 = vpop.f32.mrf.mxu0
      %v1195 = vpop.f32.mrf.mxu0
      %v1196 = vadd.f32 %v895, %v1195
      %v1197 = vpop.f32.mrf.mxu0
      %1198 = vmatprep.mubr.bf16.mxu0 0
      %1199 = vmatmul.mubr.bf16.gmra.mxu0 %v1079
      %v1200 = vpop.f32.mrf.mxu0
      %v1201 = vadd.f32 %v900, %v1200
      %v1202 = vpop.f32.mrf.mxu0
      %v1203 = vpop.f32.mrf.mxu0
      %v1204 = vadd.f32 %v903, %v1203
      %v1205 = vpop.f32.mrf.mxu0
      %1206 = vmatprep.mubr.bf16.mxu0 0
      %1207 = vmatmul.mubr.bf16.gmra.mxu0 %v1082
      %v1208 = vpop.f32.mrf.mxu0
      %v1209 = vadd.f32 %v908, %v1208
      %v1210 = vpop.f32.mrf.mxu0
      %v1211 = vpop.f32.mrf.mxu0
      %v1212 = vadd.f32 %v911, %v1211
      %v1213 = vpop.f32.mrf.mxu0
      %1214 = vmatprep.mubr.bf16.mxu0 0
      %1215 = vmatmul.mubr.bf16.gmra.mxu0 %v1085
      %v1216 = vpop.f32.mrf.mxu0
      %v1217 = vadd.f32 %v916, %v1216
      %v1218 = vpop.f32.mrf.mxu0
      %v1219 = vpop.f32.mrf.mxu0
      %v1220 = vadd.f32 %v919, %v1219
      %v1221 = vpop.f32.mrf.mxu0
      %1222 = vmatprep.mubr.bf16.mxu0 0
      %1223 = vmatmul.mubr.bf16.gmra.mxu0 %v1088
      %v1224 = vpop.f32.mrf.mxu0
      %v1225 = vadd.f32 %v924, %v1224
      %v1226 = vpop.f32.mrf.mxu0
      %v1227 = vpop.f32.mrf.mxu0
      %v1228 = vadd.f32 %v927, %v1227
      %v1229 = vpop.f32.mrf.mxu0
      %1230 = vmatprep.mubr.bf16.mxu0 0
      %1231 = vmatmul.mubr.bf16.gmra.mxu0 %v1091
      %v1232 = vpop.f32.mrf.mxu0
      %v1233 = vadd.f32 %v932, %v1232
      %v1234 = vpop.f32.mrf.mxu0
      %v1235 = vpop.f32.mrf.mxu0
      %v1236 = vadd.f32 %v935, %v1235
      %v1237 = vpop.f32.mrf.mxu0
      %1238 = vmatprep.mubr.bf16.mxu0 0
      %1239 = vmatmul.mubr.bf16.gmra.mxu0 %v1094
      %v1240 = vpop.f32.mrf.mxu0
      %v1241 = vadd.f32 %v940, %v1240
      %v1242 = vpop.f32.mrf.mxu0
      %v1243 = vpop.f32.mrf.mxu0
      %v1244 = vadd.f32 %v943, %v1243
      %v1245 = vpop.f32.mrf.mxu0
      %1246 = vmatprep.mubr.bf16.mxu0 0
      %1247 = vmatmul.mubr.bf16.gmra.mxu0 %v1097
      %v1248 = vpop.f32.mrf.mxu0
      %v1249 = vadd.f32 %v948, %v1248
      %v1250 = vpop.f32.mrf.mxu0
      %v1251 = vpop.f32.mrf.mxu0
      %v1252 = vadd.f32 %v951, %v1251
      %v1253 = vpop.f32.mrf.mxu0
      %1254 = vmatprep.mubr.bf16.mxu0 0
      %1255 = vmatmul.mubr.bf16.gmra.mxu0 %v1100
      %v1256 = vpop.f32.mrf.mxu0
      %v1257 = vadd.f32 %v956, %v1256
      %v1258 = vpop.f32.mrf.mxu0
      %v1259 = vpop.f32.mrf.mxu0
      %v1260 = vadd.f32 %v959, %v1259
      %v1261 = vpop.f32.mrf.mxu0
      %1262 = vdwg.mxu0
      %vm1279 = vcmask 1042432
      %vm1280 = vcmask 1046532
      %vm1281 = vmor %vm1279, %vm1280
      %v1282 = vrot.slane %v242, 5
      %v1283 = vrot.slane %v1282, 4
      %v1284 = vrot.slane %v243, 5
      %v1285 = vsel %vm1281, %v1283, %v1284
      %v1286 = vrot.slane %v1284, 4
      %v1287 = vrot.slane %v244, 5
      %v1288 = vsel %vm1281, %v1286, %v1287
      %v1289 = vrot.slane %v245, 5
      %v1290 = vrot.slane %v1289, 4
      %v1291 = vrot.slane %v246, 5
      %v1292 = vsel %vm1281, %v1290, %v1291
      %v1293 = vrot.slane %v1291, 4
      %v1294 = vrot.slane %v247, 5
      %v1295 = vsel %vm1281, %v1293, %v1294
      %v1296 = vrot.slane %v248, 5
      %v1297 = vrot.slane %v1296, 4
      %v1298 = vrot.slane %v249, 5
      %v1299 = vsel %vm1281, %v1297, %v1298
      %v1300 = vrot.slane %v1298, 4
      %v1301 = vrot.slane %v250, 5
      %v1302 = vsel %vm1281, %v1300, %v1301
      %v1303 = vrot.slane %v251, 5
      %v1304 = vrot.slane %v1303, 4
      %v1305 = vrot.slane %v252, 5
      %v1306 = vsel %vm1281, %v1304, %v1305
      %v1307 = vrot.slane %v1305, 4
      %v1308 = vrot.slane %v253, 5
      %v1309 = vsel %vm1281, %v1307, %v1308
      %v1310 = vrot.slane %v254, 5
      %v1311 = vrot.slane %v1310, 4
      %v1312 = vrot.slane %v255, 5
      %v1313 = vsel %vm1281, %v1311, %v1312
      %v1314 = vrot.slane %v1312, 4
      %v1315 = vrot.slane %v256, 5
      %v1316 = vsel %vm1281, %v1314, %v1315
      %v1317 = vrot.slane %v257, 5
      %v1318 = vrot.slane %v1317, 4
      %v1319 = vrot.slane %v258, 5
      %v1320 = vsel %vm1281, %v1318, %v1319
      %v1321 = vrot.slane %v1319, 4
      %v1322 = vrot.slane %v259, 5
      %v1323 = vsel %vm1281, %v1321, %v1322
      %v1324 = vrot.slane %v260, 5
      %v1325 = vrot.slane %v1324, 4
      %v1326 = vrot.slane %v261, 5
      %v1327 = vsel %vm1281, %v1325, %v1326
      %v1328 = vrot.slane %v1326, 4
      %v1329 = vrot.slane %v262, 5
      %v1330 = vsel %vm1281, %v1328, %v1329
      %v1331 = vrot.slane %v263, 5
      %v1332 = vrot.slane %v1331, 4
      %v1333 = vrot.slane %v264, 5
      %v1334 = vsel %vm1281, %v1332, %v1333
      %v1335 = vrot.slane %v1333, 4
      %v1336 = vrot.slane %v265, 5
      %v1337 = vsel %vm1281, %v1335, %v1336
      %v1338 = vrot.slane %v266, 5
      %v1339 = vrot.slane %v1338, 4
      %v1340 = vrot.slane %v267, 5
      %v1341 = vsel %vm1281, %v1339, %v1340
      %v1342 = vrot.slane %v1340, 4
      %v1343 = vrot.slane %v268, 5
      %v1344 = vsel %vm1281, %v1342, %v1343
      %v1345 = vrot.slane %v269, 5
      %v1346 = vrot.slane %v1345, 4
      %v1347 = vrot.slane %v270, 5
      %v1348 = vsel %vm1281, %v1346, %v1347
      %v1349 = vrot.slane %v1347, 4
      %v1350 = vrot.slane %v271, 5
      %v1351 = vsel %vm1281, %v1349, %v1350
      %v1352 = vrot.slane %v272, 5
      %v1353 = vrot.slane %v1352, 4
      %v1354 = vrot.slane %v273, 5
      %v1355 = vsel %vm1281, %v1353, %v1354
      %v1356 = vrot.slane %v1354, 4
      %v1357 = vrot.slane %v274, 5
      %v1358 = vsel %vm1281, %v1356, %v1357
      %v1359 = vrot.slane %v275, 5
      %v1360 = vrot.slane %v1359, 4
      %v1361 = vrot.slane %v276, 5
      %v1362 = vsel %vm1281, %v1360, %v1361
      %v1363 = vrot.slane %v1361, 4
      %v1364 = vrot.slane %v277, 5
      %v1365 = vsel %vm1281, %v1363, %v1364
      %v1366 = vrot.slane %v278, 5
      %v1367 = vrot.slane %v1366, 4
      %v1368 = vrot.slane %v279, 5
      %v1369 = vsel %vm1281, %v1367, %v1368
      %v1370 = vrot.slane %v1368, 4
      %v1371 = vrot.slane %v280, 5
      %v1372 = vsel %vm1281, %v1370, %v1371
      %v1373 = vrot.slane %v281, 5
      %v1374 = vrot.slane %v1373, 4
      %v1375 = vrot.slane %v282, 5
      %v1376 = vsel %vm1281, %v1374, %v1375
      %v1377 = vrot.slane %v1375, 4
      %v1378 = vrot.slane %v283, 5
      %v1379 = vsel %vm1281, %v1377, %v1378
      %v1380 = vrot.slane %v284, 5
      %v1381 = vrot.slane %v1380, 4
      %v1382 = vrot.slane %v285, 5
      %v1383 = vsel %vm1281, %v1381, %v1382
      %v1384 = vrot.slane %v1382, 4
      %v1385 = vrot.slane %v286, 5
      %v1386 = vsel %vm1281, %v1384, %v1385
      %v1387 = vrot.slane %v287, 5
      %v1388 = vrot.slane %v1387, 4
      %v1389 = vrot.slane %v288, 5
      %v1390 = vsel %vm1281, %v1388, %v1389
      %v1391 = vrot.slane %v1389, 4
      %v1392 = vrot.slane %v289, 5
      %v1393 = vsel %vm1281, %v1391, %v1392
      %s1394 = scalar_lea.vmem %s228, 32
      %v1395 = vld [vmem:[%s1394] sm:$0xf]
      %v1396 = vld [vmem:[%s1394 + $0x4] sm:$0xf]
      %v1397 = vld [vmem:[%s1394 + $0x8] sm:$0xf]
      %v1398 = vld [vmem:[%s1394 + $0xc] sm:$0xf]
      %v1399 = vunpack.c.l.b16 %v1285
      %v1400 = vunpack.c.l.b16 %v1288
      %v1401 = vunpack.c.l.b16 %v1292
      %v1402 = vunpack.c.l.b16 %v1295
      %v1403 = vunpack.c.l.b16 %v1299
      %v1404 = vunpack.c.l.b16 %v1302
      %v1405 = vunpack.c.l.b16 %v1306
      %v1406 = vunpack.c.l.b16 %v1309
      %v1407 = vunpack.c.l.b16 %v1313
      %v1408 = vunpack.c.l.b16 %v1316
      %v1409 = vunpack.c.l.b16 %v1320
      %v1410 = vunpack.c.l.b16 %v1323
      %v1411 = vunpack.c.l.b16 %v1327
      %v1412 = vunpack.c.l.b16 %v1330
      %v1413 = vunpack.c.l.b16 %v1334
      %v1414 = vunpack.c.l.b16 %v1337
      %v1415 = vunpack.c.l.b16 %v1341
      %v1416 = vunpack.c.l.b16 %v1344
      %v1417 = vunpack.c.l.b16 %v1348
      %v1418 = vunpack.c.l.b16 %v1351
      %v1419 = vunpack.c.l.b16 %v1355
      %v1420 = vunpack.c.l.b16 %v1358
      %v1421 = vunpack.c.l.b16 %v1362
      %v1422 = vunpack.c.l.b16 %v1365
      %v1423 = vunpack.c.l.b16 %v1369
      %v1424 = vunpack.c.l.b16 %v1372
      %v1425 = vunpack.c.l.b16 %v1376
      %v1426 = vunpack.c.l.b16 %v1379
      %v1427 = vunpack.c.l.b16 %v1383
      %v1428 = vunpack.c.l.b16 %v1386
      %v1429 = vunpack.c.l.b16 %v1390
      %v1430 = vunpack.c.l.b16 %v1393
      %v1431 = vpack.c.b16 %v1400, %v1399
      %v1432 = vpack.c.b16 %v1402, %v1401
      %v1433 = vpack.c.b16 %v1404, %v1403
      %v1434 = vpack.c.b16 %v1406, %v1405
      %v1435 = vpack.c.b16 %v1408, %v1407
      %v1436 = vpack.c.b16 %v1410, %v1409
      %v1437 = vpack.c.b16 %v1412, %v1411
      %v1438 = vpack.c.b16 %v1414, %v1413
      %v1439 = vpack.c.b16 %v1416, %v1415
      %v1440 = vpack.c.b16 %v1418, %v1417
      %v1441 = vpack.c.b16 %v1420, %v1419
      %v1442 = vpack.c.b16 %v1422, %v1421
      %v1443 = vpack.c.b16 %v1424, %v1423
      %v1444 = vpack.c.b16 %v1426, %v1425
      %v1445 = vpack.c.b16 %v1428, %v1427
      %v1446 = vpack.c.b16 %v1430, %v1429
      %v1451 = vunpack.c.l.b16 %v1395
      %v1452 = vunpack.c.l.b16 %v1396
      %v1453 = vunpack.c.l.b16 %v1397
      %v1454 = vunpack.c.l.b16 %v1398
      %v1455 = vpack.c.b16 %v1452, %v1451
      %v1456 = vpack.c.b16 %v1454, %v1453
      %v1460 = vsel %vm752, %v1431, 0
      %v1463 = vsel %vm752, %v1432, 0
      %v1466 = vsel %vm752, %v1433, 0
      %v1469 = vsel %vm752, %v1434, 0
      %v1472 = vsel %vm752, %v1435, 0
      %v1475 = vsel %vm752, %v1436, 0
      %v1478 = vsel %vm752, %v1437, 0
      %v1481 = vsel %vm752, %v1438, 0
      %v1484 = vsel %vm752, %v1439, 0
      %v1487 = vsel %vm752, %v1440, 0
      %v1490 = vsel %vm752, %v1441, 0
      %v1493 = vsel %vm752, %v1442, 0
      %v1496 = vsel %vm752, %v1443, 0
      %v1499 = vsel %vm752, %v1444, 0
      %v1502 = vsel %vm752, %v1445, 0
      %v1505 = vsel %vm752, %v1446, 0
      %1507 = vmatprep.subr.bf16.mxu0 0
      %1508 = vmatpush1.bf16.msra.mxu0 0
      %1509 = vmatprep.subr.bf16.mxu0 0
      %1510 = vmatpush1.bf16.msra.mxu0 0
      %1511 = vmatprep.subr.bf16.mxu0 0
      %1512 = vmatpush1.bf16.msra.mxu0 0
      %1513 = vmatprep.subr.bf16.mxu0 0
      %1514 = vmatpush1.bf16.msra.mxu0 0
      %1515 = vmatprep.subr.bf16.mxu0 0
      %1516 = vmatpush1.bf16.msra.mxu0 0
      %1517 = vmatprep.subr.bf16.mxu0 0
      %1518 = vmatpush1.bf16.msra.mxu0 0
      %1519 = vmatprep.subr.bf16.mxu0 0
      %1520 = vmatpush1.bf16.msra.mxu0 %v1456
      %1521 = vmatprep.subr.bf16.mxu0 0
      %1522 = vmatpush1.bf16.msra.mxu0 %v1455
      %1523 = vmatprep.subr.bf16.mxu0 0
      %1524 = vmatpush2.bf16.msra.mxu0 0
      %1525 = vmatprep.subr.bf16.mxu0 0
      %1526 = vmatpush2.bf16.msra.mxu0 0
      %1527 = vmatprep.subr.bf16.mxu0 0
      %1528 = vmatpush2.bf16.msra.mxu0 0
      %1529 = vmatprep.subr.bf16.mxu0 0
      %1530 = vmatpush2.bf16.msra.mxu0 0
      %1531 = vmatprep.subr.bf16.mxu0 0
      %1532 = vmatpush2.bf16.msra.mxu0 0
      %1533 = vmatprep.subr.bf16.mxu0 0
      %1534 = vmatpush2.bf16.msra.mxu0 0
      %1535 = vmatprep.subr.bf16.mxu0 0
      %1536 = vmatpush2.bf16.msra.mxu0 0
      %1537 = vmatprep.subr.bf16.mxu0 0
      %1538 = vmatpush2.bf16.msra.mxu0 0
      %1539 = vmatprep.mubr.bf16.mxu0 0
      %1540 = vmatmul.mubr.bf16.gmra.mxu0 %v1460
      %v1541 = vpop.f32.mrf.mxu0
      %v1542 = vadd.f32 0.0, %v1541
      %v1543 = vpop.f32.mrf.mxu0
      %v1544 = vpop.f32.mrf.mxu0
      %v1545 = vadd.f32 0.0, %v1544
      %v1546 = vpop.f32.mrf.mxu0
      %1547 = vmatprep.mubr.bf16.mxu0 0
      %1548 = vmatmul.mubr.bf16.gmra.mxu0 %v1463
      %v1549 = vpop.f32.mrf.mxu0
      %v1550 = vadd.f32 0.0, %v1549
      %v1551 = vpop.f32.mrf.mxu0
      %v1552 = vpop.f32.mrf.mxu0
      %v1553 = vadd.f32 0.0, %v1552
      %v1554 = vpop.f32.mrf.mxu0
      %1555 = vmatprep.mubr.bf16.mxu0 0
      %1556 = vmatmul.mubr.bf16.gmra.mxu0 %v1466
      %v1557 = vpop.f32.mrf.mxu0
      %v1558 = vadd.f32 0.0, %v1557
      %v1559 = vpop.f32.mrf.mxu0
      %v1560 = vpop.f32.mrf.mxu0
      %v1561 = vadd.f32 0.0, %v1560
      %v1562 = vpop.f32.mrf.mxu0
      %1563 = vmatprep.mubr.bf16.mxu0 0
      %1564 = vmatmul.mubr.bf16.gmra.mxu0 %v1469
      %v1565 = vpop.f32.mrf.mxu0
      %v1566 = vadd.f32 0.0, %v1565
      %v1567 = vpop.f32.mrf.mxu0
      %v1568 = vpop.f32.mrf.mxu0
      %v1569 = vadd.f32 0.0, %v1568
      %v1570 = vpop.f32.mrf.mxu0
      %1571 = vmatprep.mubr.bf16.mxu0 0
      %1572 = vmatmul.mubr.bf16.gmra.mxu0 %v1472
      %v1573 = vpop.f32.mrf.mxu0
      %v1574 = vadd.f32 0.0, %v1573
      %v1575 = vpop.f32.mrf.mxu0
      %v1576 = vpop.f32.mrf.mxu0
      %v1577 = vadd.f32 0.0, %v1576
      %v1578 = vpop.f32.mrf.mxu0
      %1579 = vmatprep.mubr.bf16.mxu0 0
      %1580 = vmatmul.mubr.bf16.gmra.mxu0 %v1475
      %v1581 = vpop.f32.mrf.mxu0
      %v1582 = vadd.f32 0.0, %v1581
      %v1583 = vpop.f32.mrf.mxu0
      %v1584 = vpop.f32.mrf.mxu0
      %v1585 = vadd.f32 0.0, %v1584
      %v1586 = vpop.f32.mrf.mxu0
      %1587 = vmatprep.mubr.bf16.mxu0 0
      %1588 = vmatmul.mubr.bf16.gmra.mxu0 %v1478
      %v1589 = vpop.f32.mrf.mxu0
      %v1590 = vadd.f32 0.0, %v1589
      %v1591 = vpop.f32.mrf.mxu0
      %v1592 = vpop.f32.mrf.mxu0
      %v1593 = vadd.f32 0.0, %v1592
      %v1594 = vpop.f32.mrf.mxu0
      %1595 = vmatprep.mubr.bf16.mxu0 0
      %1596 = vmatmul.mubr.bf16.gmra.mxu0 %v1481
      %v1597 = vpop.f32.mrf.mxu0
      %v1598 = vadd.f32 0.0, %v1597
      %v1599 = vpop.f32.mrf.mxu0
      %v1600 = vpop.f32.mrf.mxu0
      %v1601 = vadd.f32 0.0, %v1600
      %v1602 = vpop.f32.mrf.mxu0
      %1603 = vmatprep.mubr.bf16.mxu0 0
      %1604 = vmatmul.mubr.bf16.gmra.mxu0 %v1484
      %v1605 = vpop.f32.mrf.mxu0
      %v1606 = vadd.f32 0.0, %v1605
      %v1607 = vpop.f32.mrf.mxu0
      %v1608 = vpop.f32.mrf.mxu0
      %v1609 = vadd.f32 0.0, %v1608
      %v1610 = vpop.f32.mrf.mxu0
      %1611 = vmatprep.mubr.bf16.mxu0 0
      %1612 = vmatmul.mubr.bf16.gmra.mxu0 %v1487
      %v1613 = vpop.f32.mrf.mxu0
      %v1614 = vadd.f32 0.0, %v1613
      %v1615 = vpop.f32.mrf.mxu0
      %v1616 = vpop.f32.mrf.mxu0
      %v1617 = vadd.f32 0.0, %v1616
      %v1618 = vpop.f32.mrf.mxu0
      %1619 = vmatprep.mubr.bf16.mxu0 0
      %1620 = vmatmul.mubr.bf16.gmra.mxu0 %v1490
      %v1621 = vpop.f32.mrf.mxu0
      %v1622 = vadd.f32 0.0, %v1621
      %v1623 = vpop.f32.mrf.mxu0
      %v1624 = vpop.f32.mrf.mxu0
      %v1625 = vadd.f32 0.0, %v1624
      %v1626 = vpop.f32.mrf.mxu0
      %1627 = vmatprep.mubr.bf16.mxu0 0
      %1628 = vmatmul.mubr.bf16.gmra.mxu0 %v1493
      %v1629 = vpop.f32.mrf.mxu0
      %v1630 = vadd.f32 0.0, %v1629
      %v1631 = vpop.f32.mrf.mxu0
      %v1632 = vpop.f32.mrf.mxu0
      %v1633 = vadd.f32 0.0, %v1632
      %v1634 = vpop.f32.mrf.mxu0
      %1635 = vmatprep.mubr.bf16.mxu0 0
      %1636 = vmatmul.mubr.bf16.gmra.mxu0 %v1496
      %v1637 = vpop.f32.mrf.mxu0
      %v1638 = vadd.f32 0.0, %v1637
      %v1639 = vpop.f32.mrf.mxu0
      %v1640 = vpop.f32.mrf.mxu0
      %v1641 = vadd.f32 0.0, %v1640
      %v1642 = vpop.f32.mrf.mxu0
      %1643 = vmatprep.mubr.bf16.mxu0 0
      %1644 = vmatmul.mubr.bf16.gmra.mxu0 %v1499
      %v1645 = vpop.f32.mrf.mxu0
      %v1646 = vadd.f32 0.0, %v1645
      %v1647 = vpop.f32.mrf.mxu0
      %v1648 = vpop.f32.mrf.mxu0
      %v1649 = vadd.f32 0.0, %v1648
      %v1650 = vpop.f32.mrf.mxu0
      %1651 = vmatprep.mubr.bf16.mxu0 0
      %1652 = vmatmul.mubr.bf16.gmra.mxu0 %v1502
      %v1653 = vpop.f32.mrf.mxu0
      %v1654 = vadd.f32 0.0, %v1653
      %v1655 = vpop.f32.mrf.mxu0
      %v1656 = vpop.f32.mrf.mxu0
      %v1657 = vadd.f32 0.0, %v1656
      %v1658 = vpop.f32.mrf.mxu0
      %1659 = vmatprep.mubr.bf16.mxu0 0
      %1660 = vmatmul.mubr.bf16.gmra.mxu0 %v1505
      %v1661 = vpop.f32.mrf.mxu0
      %v1662 = vadd.f32 0.0, %v1661
      %v1663 = vpop.f32.mrf.mxu0
      %v1664 = vpop.f32.mrf.mxu0
      %v1665 = vadd.f32 0.0, %v1664
      %v1666 = vpop.f32.mrf.mxu0
      %1667 = vdwg.mxu0
      %v1668 = vadd.f32 %v1137, %v1542
      %v1669 = vadd.f32 %v1140, %v1545
      %v1670 = vadd.f32 %v1145, %v1550
      %v1671 = vadd.f32 %v1148, %v1553
      %v1672 = vadd.f32 %v1153, %v1558
      %v1673 = vadd.f32 %v1156, %v1561
      %v1674 = vadd.f32 %v1161, %v1566
      %v1675 = vadd.f32 %v1164, %v1569
      %v1676 = vadd.f32 %v1169, %v1574
      %v1677 = vadd.f32 %v1172, %v1577
      %v1678 = vadd.f32 %v1177, %v1582
      %v1679 = vadd.f32 %v1180, %v1585
      %v1680 = vadd.f32 %v1185, %v1590
      %v1681 = vadd.f32 %v1188, %v1593
      %v1682 = vadd.f32 %v1193, %v1598
      %v1683 = vadd.f32 %v1196, %v1601
      %v1684 = vadd.f32 %v1201, %v1606
      %v1685 = vadd.f32 %v1204, %v1609
      %v1686 = vadd.f32 %v1209, %v1614
      %v1687 = vadd.f32 %v1212, %v1617
      %v1688 = vadd.f32 %v1217, %v1622
      %v1689 = vadd.f32 %v1220, %v1625
      %v1690 = vadd.f32 %v1225, %v1630
      %v1691 = vadd.f32 %v1228, %v1633
      %v1692 = vadd.f32 %v1233, %v1638
      %v1693 = vadd.f32 %v1236, %v1641
      %v1694 = vadd.f32 %v1241, %v1646
      %v1695 = vadd.f32 %v1244, %v1649
      %v1696 = vadd.f32 %v1249, %v1654
      %v1697 = vadd.f32 %v1252, %v1657
      %v1698 = vadd.f32 %v1257, %v1662
      %v1699 = vadd.f32 %v1260, %v1665
      %s1700 = scalar_lea.vmem %s228, 48
      %v1701 = vld [vmem:[%s1700] sm:$0xf]
      %v1702 = vld [vmem:[%s1700 + $0x4] sm:$0xf]
      %v1703 = vld [vmem:[%s1700 + $0x8] sm:$0xf]
      %v1704 = vld [vmem:[%s1700 + $0xc] sm:$0xf]
      %v1707 = vunpack.c.l.b16 %v290
      %v1708 = vunpack.c.l.b16 %v291
      %v1709 = vpack.c.b16 %v1708, %v1707
      %v1714 = vunpack.c.l.b16 %v1701
      %v1715 = vunpack.c.l.b16 %v1702
      %v1716 = vunpack.c.l.b16 %v1703
      %v1717 = vunpack.c.l.b16 %v1704
      %v1718 = vpack.c.b16 %v1715, %v1714
      %v1719 = vpack.c.b16 %v1717, %v1716
      %v1723 = vsel %vm752, %v1709, 0
      %1725 = vmatprep.subr.bf16.mxu0 0
      %1726 = vmatpush1.bf16.msra.mxu0 0
      %1727 = vmatprep.subr.bf16.mxu0 0
      %1728 = vmatpush1.bf16.msra.mxu0 0
      %1729 = vmatprep.subr.bf16.mxu0 0
      %1730 = vmatpush1.bf16.msra.mxu0 0
      %1731 = vmatprep.subr.bf16.mxu0 0
      %1732 = vmatpush1.bf16.msra.mxu0 0
      %1733 = vmatprep.subr.bf16.mxu0 0
      %1734 = vmatpush1.bf16.msra.mxu0 0
      %1735 = vmatprep.subr.bf16.mxu0 0
      %1736 = vmatpush1.bf16.msra.mxu0 0
      %1737 = vmatprep.subr.bf16.mxu0 0
      %1738 = vmatpush1.bf16.msra.mxu0 %v1719
      %1739 = vmatprep.subr.bf16.mxu0 0
      %1740 = vmatpush1.bf16.msra.mxu0 %v1718
      %1741 = vmatprep.subr.bf16.mxu0 0
      %1742 = vmatpush2.bf16.msra.mxu0 0
      %1743 = vmatprep.subr.bf16.mxu0 0
      %1744 = vmatpush2.bf16.msra.mxu0 0
      %1745 = vmatprep.subr.bf16.mxu0 0
      %1746 = vmatpush2.bf16.msra.mxu0 0
      %1747 = vmatprep.subr.bf16.mxu0 0
      %1748 = vmatpush2.bf16.msra.mxu0 0
      %1749 = vmatprep.subr.bf16.mxu0 0
      %1750 = vmatpush2.bf16.msra.mxu0 0
      %1751 = vmatprep.subr.bf16.mxu0 0
      %1752 = vmatpush2.bf16.msra.mxu0 0
      %1753 = vmatprep.subr.bf16.mxu0 0
      %1754 = vmatpush2.bf16.msra.mxu0 0
      %1755 = vmatprep.subr.bf16.mxu0 0
      %1756 = vmatpush2.bf16.msra.mxu0 0
      %1757 = vmatprep.mubr.bf16.mxu0 0
      %1758 = vmatmul.mubr.bf16.gmra.mxu0 %v1058
      %v1759 = vpop.f32.mrf.mxu0
      %v1760 = vadd.f32 0.0, %v1759
      %v1761 = vpop.f32.mrf.mxu0
      %v1762 = vpop.f32.mrf.mxu0
      %v1763 = vadd.f32 0.0, %v1762
      %v1764 = vpop.f32.mrf.mxu0
      %1765 = vmatprep.mubr.bf16.mxu0 0
      %1766 = vmatmul.mubr.bf16.gmra.mxu0 %v1061
      %v1767 = vpop.f32.mrf.mxu0
      %v1768 = vadd.f32 0.0, %v1767
      %v1769 = vpop.f32.mrf.mxu0
      %v1770 = vpop.f32.mrf.mxu0
      %v1771 = vadd.f32 0.0, %v1770
      %v1772 = vpop.f32.mrf.mxu0
      %1773 = vmatprep.mubr.bf16.mxu0 0
      %1774 = vmatmul.mubr.bf16.gmra.mxu0 %v1064
      %v1775 = vpop.f32.mrf.mxu0
      %v1776 = vadd.f32 0.0, %v1775
      %v1777 = vpop.f32.mrf.mxu0
      %v1778 = vpop.f32.mrf.mxu0
      %v1779 = vadd.f32 0.0, %v1778
      %v1780 = vpop.f32.mrf.mxu0
      %1781 = vmatprep.mubr.bf16.mxu0 0
      %1782 = vmatmul.mubr.bf16.gmra.mxu0 %v1067
      %v1783 = vpop.f32.mrf.mxu0
      %v1784 = vadd.f32 0.0, %v1783
      %v1785 = vpop.f32.mrf.mxu0
      %v1786 = vpop.f32.mrf.mxu0
      %v1787 = vadd.f32 0.0, %v1786
      %v1788 = vpop.f32.mrf.mxu0
      %1789 = vmatprep.mubr.bf16.mxu0 0
      %1790 = vmatmul.mubr.bf16.gmra.mxu0 %v1070
      %v1791 = vpop.f32.mrf.mxu0
      %v1792 = vadd.f32 0.0, %v1791
      %v1793 = vpop.f32.mrf.mxu0
      %v1794 = vpop.f32.mrf.mxu0
      %v1795 = vadd.f32 0.0, %v1794
      %v1796 = vpop.f32.mrf.mxu0
      %1797 = vmatprep.mubr.bf16.mxu0 0
      %1798 = vmatmul.mubr.bf16.gmra.mxu0 %v1073
      %v1799 = vpop.f32.mrf.mxu0
      %v1800 = vadd.f32 0.0, %v1799
      %v1801 = vpop.f32.mrf.mxu0
      %v1802 = vpop.f32.mrf.mxu0
      %v1803 = vadd.f32 0.0, %v1802
      %v1804 = vpop.f32.mrf.mxu0
      %1805 = vmatprep.mubr.bf16.mxu0 0
      %1806 = vmatmul.mubr.bf16.gmra.mxu0 %v1076
      %v1807 = vpop.f32.mrf.mxu0
      %v1808 = vadd.f32 0.0, %v1807
      %v1809 = vpop.f32.mrf.mxu0
      %v1810 = vpop.f32.mrf.mxu0
      %v1811 = vadd.f32 0.0, %v1810
      %v1812 = vpop.f32.mrf.mxu0
      %1813 = vmatprep.mubr.bf16.mxu0 0
      %1814 = vmatmul.mubr.bf16.gmra.mxu0 %v1079
      %v1815 = vpop.f32.mrf.mxu0
      %v1816 = vadd.f32 0.0, %v1815
      %v1817 = vpop.f32.mrf.mxu0
      %v1818 = vpop.f32.mrf.mxu0
      %v1819 = vadd.f32 0.0, %v1818
      %v1820 = vpop.f32.mrf.mxu0
      %1821 = vmatprep.mubr.bf16.mxu0 0
      %1822 = vmatmul.mubr.bf16.gmra.mxu0 %v1082
      %v1823 = vpop.f32.mrf.mxu0
      %v1824 = vadd.f32 0.0, %v1823
      %v1825 = vpop.f32.mrf.mxu0
      %v1826 = vpop.f32.mrf.mxu0
      %v1827 = vadd.f32 0.0, %v1826
      %v1828 = vpop.f32.mrf.mxu0
      %1829 = vmatprep.mubr.bf16.mxu0 0
      %1830 = vmatmul.mubr.bf16.gmra.mxu0 %v1085
      %v1831 = vpop.f32.mrf.mxu0
      %v1832 = vadd.f32 0.0, %v1831
      %v1833 = vpop.f32.mrf.mxu0
      %v1834 = vpop.f32.mrf.mxu0
      %v1835 = vadd.f32 0.0, %v1834
      %v1836 = vpop.f32.mrf.mxu0
      %1837 = vmatprep.mubr.bf16.mxu0 0
      %1838 = vmatmul.mubr.bf16.gmra.mxu0 %v1088
      %v1839 = vpop.f32.mrf.mxu0
      %v1840 = vadd.f32 0.0, %v1839
      %v1841 = vpop.f32.mrf.mxu0
      %v1842 = vpop.f32.mrf.mxu0
      %v1843 = vadd.f32 0.0, %v1842
      %v1844 = vpop.f32.mrf.mxu0
      %1845 = vmatprep.mubr.bf16.mxu0 0
      %1846 = vmatmul.mubr.bf16.gmra.mxu0 %v1091
      %v1847 = vpop.f32.mrf.mxu0
      %v1848 = vadd.f32 0.0, %v1847
      %v1849 = vpop.f32.mrf.mxu0
      %v1850 = vpop.f32.mrf.mxu0
      %v1851 = vadd.f32 0.0, %v1850
      %v1852 = vpop.f32.mrf.mxu0
      %1853 = vmatprep.mubr.bf16.mxu0 0
      %1854 = vmatmul.mubr.bf16.gmra.mxu0 %v1094
      %v1855 = vpop.f32.mrf.mxu0
      %v1856 = vadd.f32 0.0, %v1855
      %v1857 = vpop.f32.mrf.mxu0
      %v1858 = vpop.f32.mrf.mxu0
      %v1859 = vadd.f32 0.0, %v1858
      %v1860 = vpop.f32.mrf.mxu0
      %1861 = vmatprep.mubr.bf16.mxu0 0
      %1862 = vmatmul.mubr.bf16.gmra.mxu0 %v1097
      %v1863 = vpop.f32.mrf.mxu0
      %v1864 = vadd.f32 0.0, %v1863
      %v1865 = vpop.f32.mrf.mxu0
      %v1866 = vpop.f32.mrf.mxu0
      %v1867 = vadd.f32 0.0, %v1866
      %v1868 = vpop.f32.mrf.mxu0
      %1869 = vmatprep.mubr.bf16.mxu0 0
      %1870 = vmatmul.mubr.bf16.gmra.mxu0 %v1100
      %v1871 = vpop.f32.mrf.mxu0
      %v1872 = vadd.f32 0.0, %v1871
      %v1873 = vpop.f32.mrf.mxu0
      %v1874 = vpop.f32.mrf.mxu0
      %v1875 = vadd.f32 0.0, %v1874
      %v1876 = vpop.f32.mrf.mxu0
      %1877 = vmatprep.mubr.bf16.mxu0 0
      %1878 = vmatmul.mubr.bf16.gmra.mxu0 %v1723
      %v1879 = vpop.f32.mrf.mxu0
      %v1880 = vadd.f32 0.0, %v1879
      %v1881 = vpop.f32.mrf.mxu0
      %v1882 = vpop.f32.mrf.mxu0
      %v1883 = vadd.f32 0.0, %v1882
      %v1884 = vpop.f32.mrf.mxu0
      %1885 = vdwg.mxu0
      %v1886 = vadd.f32 %v1668, %v1760
      %v1887 = vadd.f32 %v1669, %v1763
      %v1888 = vadd.f32 %v1670, %v1768
      %v1889 = vadd.f32 %v1671, %v1771
      %v1890 = vadd.f32 %v1672, %v1776
      %v1891 = vadd.f32 %v1673, %v1779
      %v1892 = vadd.f32 %v1674, %v1784
      %v1893 = vadd.f32 %v1675, %v1787
      %v1894 = vadd.f32 %v1676, %v1792
      %v1895 = vadd.f32 %v1677, %v1795
      %v1896 = vadd.f32 %v1678, %v1800
      %v1897 = vadd.f32 %v1679, %v1803
      %v1898 = vadd.f32 %v1680, %v1808
      %v1899 = vadd.f32 %v1681, %v1811
      %v1900 = vadd.f32 %v1682, %v1816
      %v1901 = vadd.f32 %v1683, %v1819
      %v1902 = vadd.f32 %v1684, %v1824
      %v1903 = vadd.f32 %v1685, %v1827
      %v1904 = vadd.f32 %v1686, %v1832
      %v1905 = vadd.f32 %v1687, %v1835
      %v1906 = vadd.f32 %v1688, %v1840
      %v1907 = vadd.f32 %v1689, %v1843
      %v1908 = vadd.f32 %v1690, %v1848
      %v1909 = vadd.f32 %v1691, %v1851
      %v1910 = vadd.f32 %v1692, %v1856
      %v1911 = vadd.f32 %v1693, %v1859
      %v1912 = vadd.f32 %v1694, %v1864
      %v1913 = vadd.f32 %v1695, %v1867
      %v1914 = vadd.f32 %v1696, %v1872
      %v1915 = vadd.f32 %v1697, %v1875
      %v1916 = vadd.f32 %v1698, %v1880
      %v1917 = vadd.f32 %v1699, %v1883
      %v1919 = vshrl.u32 %v290, 16
      %v1921 = vrot.slane %v1919, 4
      %v1922 = vshll.u32 %v290, 16
      %v1924 = vrot.slane %v1922, 5
      %v1925 = vor.u32 %v1921, %v1924
      %v1926 = vrot.slane %v1925, 4
      %v1928 = vshll.u32 %v291, 16
      %v1930 = vrot.slane %v1928, 5
      %v1931 = vsel %vm302, %v1926, %v1930
      %v1932 = vshrl.u32 %v291, 16
      %v1934 = vrot.slane %v1932, 4
      %v1935 = vor.u32 %v1934, %v1930
      %v1936 = vrot.slane %v1935, 4
      %v1938 = vshll.u32 %v292, 16
      %v1940 = vrot.slane %v1938, 5
      %v1941 = vsel %vm302, %v1936, %v1940
      %s1942 = scalar_lea.vmem %s228, 64
      %v1943 = vld [vmem:[%s1942] sm:$0xf]
      %v1944 = vld [vmem:[%s1942 + $0x4] sm:$0xf]
      %v1945 = vld [vmem:[%s1942 + $0x8] sm:$0xf]
      %v1946 = vld [vmem:[%s1942 + $0xc] sm:$0xf]
      %v1947 = vunpack.c.l.b16 %v1931
      %v1948 = vunpack.c.l.b16 %v1941
      %v1949 = vpack.c.b16 %v1948, %v1947
      %v1954 = vunpack.c.l.b16 %v1943
      %v1955 = vunpack.c.l.b16 %v1944
      %v1956 = vunpack.c.l.b16 %v1945
      %v1957 = vunpack.c.l.b16 %v1946
      %v1958 = vpack.c.b16 %v1955, %v1954
      %v1959 = vpack.c.b16 %v1957, %v1956
      %v1963 = vsel %vm752, %v1949, 0
      %1965 = vmatprep.subr.bf16.mxu0 0
      %1966 = vmatpush1.bf16.msra.mxu0 0
      %1967 = vmatprep.subr.bf16.mxu0 0
      %1968 = vmatpush1.bf16.msra.mxu0 0
      %1969 = vmatprep.subr.bf16.mxu0 0
      %1970 = vmatpush1.bf16.msra.mxu0 0
      %1971 = vmatprep.subr.bf16.mxu0 0
      %1972 = vmatpush1.bf16.msra.mxu0 0
      %1973 = vmatprep.subr.bf16.mxu0 0
      %1974 = vmatpush1.bf16.msra.mxu0 0
      %1975 = vmatprep.subr.bf16.mxu0 0
      %1976 = vmatpush1.bf16.msra.mxu0 0
      %1977 = vmatprep.subr.bf16.mxu0 0
      %1978 = vmatpush1.bf16.msra.mxu0 %v1959
      %1979 = vmatprep.subr.bf16.mxu0 0
      %1980 = vmatpush1.bf16.msra.mxu0 %v1958
      %1981 = vmatprep.subr.bf16.mxu0 0
      %1982 = vmatpush2.bf16.msra.mxu0 0
      %1983 = vmatprep.subr.bf16.mxu0 0
      %1984 = vmatpush2.bf16.msra.mxu0 0
      %1985 = vmatprep.subr.bf16.mxu0 0
      %1986 = vmatpush2.bf16.msra.mxu0 0
      %1987 = vmatprep.subr.bf16.mxu0 0
      %1988 = vmatpush2.bf16.msra.mxu0 0
      %1989 = vmatprep.subr.bf16.mxu0 0
      %1990 = vmatpush2.bf16.msra.mxu0 0
      %1991 = vmatprep.subr.bf16.mxu0 0
      %1992 = vmatpush2.bf16.msra.mxu0 0
      %1993 = vmatprep.subr.bf16.mxu0 0
      %1994 = vmatpush2.bf16.msra.mxu0 0
      %1995 = vmatprep.subr.bf16.mxu0 0
      %1996 = vmatpush2.bf16.msra.mxu0 0
      %1997 = vmatprep.mubr.bf16.mxu0 0
      %1998 = vmatmul.mubr.bf16.gmra.mxu0 %v757
      %v1999 = vpop.f32.mrf.mxu0
      %v2000 = vadd.f32 0.0, %v1999
      %v2001 = vpop.f32.mrf.mxu0
      %v2002 = vpop.f32.mrf.mxu0
      %v2003 = vadd.f32 0.0, %v2002
      %v2004 = vpop.f32.mrf.mxu0
      %2005 = vmatprep.mubr.bf16.mxu0 0
      %2006 = vmatmul.mubr.bf16.gmra.mxu0 %v760
      %v2007 = vpop.f32.mrf.mxu0
      %v2008 = vadd.f32 0.0, %v2007
      %v2009 = vpop.f32.mrf.mxu0
      %v2010 = vpop.f32.mrf.mxu0
      %v2011 = vadd.f32 0.0, %v2010
      %v2012 = vpop.f32.mrf.mxu0
      %2013 = vmatprep.mubr.bf16.mxu0 0
      %2014 = vmatmul.mubr.bf16.gmra.mxu0 %v763
      %v2015 = vpop.f32.mrf.mxu0
      %v2016 = vadd.f32 0.0, %v2015
      %v2017 = vpop.f32.mrf.mxu0
      %v2018 = vpop.f32.mrf.mxu0
      %v2019 = vadd.f32 0.0, %v2018
      %v2020 = vpop.f32.mrf.mxu0
      %2021 = vmatprep.mubr.bf16.mxu0 0
      %2022 = vmatmul.mubr.bf16.gmra.mxu0 %v766
      %v2023 = vpop.f32.mrf.mxu0
      %v2024 = vadd.f32 0.0, %v2023
      %v2025 = vpop.f32.mrf.mxu0
      %v2026 = vpop.f32.mrf.mxu0
      %v2027 = vadd.f32 0.0, %v2026
      %v2028 = vpop.f32.mrf.mxu0
      %2029 = vmatprep.mubr.bf16.mxu0 0
      %2030 = vmatmul.mubr.bf16.gmra.mxu0 %v769
      %v2031 = vpop.f32.mrf.mxu0
      %v2032 = vadd.f32 0.0, %v2031
      %v2033 = vpop.f32.mrf.mxu0
      %v2034 = vpop.f32.mrf.mxu0
      %v2035 = vadd.f32 0.0, %v2034
      %v2036 = vpop.f32.mrf.mxu0
      %2037 = vmatprep.mubr.bf16.mxu0 0
      %2038 = vmatmul.mubr.bf16.gmra.mxu0 %v772
      %v2039 = vpop.f32.mrf.mxu0
      %v2040 = vadd.f32 0.0, %v2039
      %v2041 = vpop.f32.mrf.mxu0
      %v2042 = vpop.f32.mrf.mxu0
      %v2043 = vadd.f32 0.0, %v2042
      %v2044 = vpop.f32.mrf.mxu0
      %2045 = vmatprep.mubr.bf16.mxu0 0
      %2046 = vmatmul.mubr.bf16.gmra.mxu0 %v775
      %v2047 = vpop.f32.mrf.mxu0
      %v2048 = vadd.f32 0.0, %v2047
      %v2049 = vpop.f32.mrf.mxu0
      %v2050 = vpop.f32.mrf.mxu0
      %v2051 = vadd.f32 0.0, %v2050
      %v2052 = vpop.f32.mrf.mxu0
      %2053 = vmatprep.mubr.bf16.mxu0 0
      %2054 = vmatmul.mubr.bf16.gmra.mxu0 %v778
      %v2055 = vpop.f32.mrf.mxu0
      %v2056 = vadd.f32 0.0, %v2055
      %v2057 = vpop.f32.mrf.mxu0
      %v2058 = vpop.f32.mrf.mxu0
      %v2059 = vadd.f32 0.0, %v2058
      %v2060 = vpop.f32.mrf.mxu0
      %2061 = vmatprep.mubr.bf16.mxu0 0
      %2062 = vmatmul.mubr.bf16.gmra.mxu0 %v781
      %v2063 = vpop.f32.mrf.mxu0
      %v2064 = vadd.f32 0.0, %v2063
      %v2065 = vpop.f32.mrf.mxu0
      %v2066 = vpop.f32.mrf.mxu0
      %v2067 = vadd.f32 0.0, %v2066
      %v2068 = vpop.f32.mrf.mxu0
      %2069 = vmatprep.mubr.bf16.mxu0 0
      %2070 = vmatmul.mubr.bf16.gmra.mxu0 %v784
      %v2071 = vpop.f32.mrf.mxu0
      %v2072 = vadd.f32 0.0, %v2071
      %v2073 = vpop.f32.mrf.mxu0
      %v2074 = vpop.f32.mrf.mxu0
      %v2075 = vadd.f32 0.0, %v2074
      %v2076 = vpop.f32.mrf.mxu0
      %2077 = vmatprep.mubr.bf16.mxu0 0
      %2078 = vmatmul.mubr.bf16.gmra.mxu0 %v787
      %v2079 = vpop.f32.mrf.mxu0
      %v2080 = vadd.f32 0.0, %v2079
      %v2081 = vpop.f32.mrf.mxu0
      %v2082 = vpop.f32.mrf.mxu0
      %v2083 = vadd.f32 0.0, %v2082
      %v2084 = vpop.f32.mrf.mxu0
      %2085 = vmatprep.mubr.bf16.mxu0 0
      %2086 = vmatmul.mubr.bf16.gmra.mxu0 %v790
      %v2087 = vpop.f32.mrf.mxu0
      %v2088 = vadd.f32 0.0, %v2087
      %v2089 = vpop.f32.mrf.mxu0
      %v2090 = vpop.f32.mrf.mxu0
      %v2091 = vadd.f32 0.0, %v2090
      %v2092 = vpop.f32.mrf.mxu0
      %2093 = vmatprep.mubr.bf16.mxu0 0
      %2094 = vmatmul.mubr.bf16.gmra.mxu0 %v793
      %v2095 = vpop.f32.mrf.mxu0
      %v2096 = vadd.f32 0.0, %v2095
      %v2097 = vpop.f32.mrf.mxu0
      %v2098 = vpop.f32.mrf.mxu0
      %v2099 = vadd.f32 0.0, %v2098
      %v2100 = vpop.f32.mrf.mxu0
      %2101 = vmatprep.mubr.bf16.mxu0 0
      %2102 = vmatmul.mubr.bf16.gmra.mxu0 %v796
      %v2103 = vpop.f32.mrf.mxu0
      %v2104 = vadd.f32 0.0, %v2103
      %v2105 = vpop.f32.mrf.mxu0
      %v2106 = vpop.f32.mrf.mxu0
      %v2107 = vadd.f32 0.0, %v2106
      %v2108 = vpop.f32.mrf.mxu0
      %2109 = vmatprep.mubr.bf16.mxu0 0
      %2110 = vmatmul.mubr.bf16.gmra.mxu0 %v799
      %v2111 = vpop.f32.mrf.mxu0
      %v2112 = vadd.f32 0.0, %v2111
      %v2113 = vpop.f32.mrf.mxu0
      %v2114 = vpop.f32.mrf.mxu0
      %v2115 = vadd.f32 0.0, %v2114
      %v2116 = vpop.f32.mrf.mxu0
      %2117 = vmatprep.mubr.bf16.mxu0 0
      %2118 = vmatmul.mubr.bf16.gmra.mxu0 %v1963
      %v2119 = vpop.f32.mrf.mxu0
      %v2120 = vadd.f32 0.0, %v2119
      %v2121 = vpop.f32.mrf.mxu0
      %v2122 = vpop.f32.mrf.mxu0
      %v2123 = vadd.f32 0.0, %v2122
      %v2124 = vpop.f32.mrf.mxu0
      %2125 = vdwg.mxu0
      %v2126 = vadd.f32 %v1886, %v2000
      %v2127 = vadd.f32 %v1887, %v2003
      %v2128 = vadd.f32 %v1888, %v2008
      %v2129 = vadd.f32 %v1889, %v2011
      %v2130 = vadd.f32 %v1890, %v2016
      %v2131 = vadd.f32 %v1891, %v2019
      %v2132 = vadd.f32 %v1892, %v2024
      %v2133 = vadd.f32 %v1893, %v2027
      %v2134 = vadd.f32 %v1894, %v2032
      %v2135 = vadd.f32 %v1895, %v2035
      %v2136 = vadd.f32 %v1896, %v2040
      %v2137 = vadd.f32 %v1897, %v2043
      %v2138 = vadd.f32 %v1898, %v2048
      %v2139 = vadd.f32 %v1899, %v2051
      %v2140 = vadd.f32 %v1900, %v2056
      %v2141 = vadd.f32 %v1901, %v2059
      %v2142 = vadd.f32 %v1902, %v2064
      %v2143 = vadd.f32 %v1903, %v2067
      %v2144 = vadd.f32 %v1904, %v2072
      %v2145 = vadd.f32 %v1905, %v2075
      %v2146 = vadd.f32 %v1906, %v2080
      %v2147 = vadd.f32 %v1907, %v2083
      %v2148 = vadd.f32 %v1908, %v2088
      %v2149 = vadd.f32 %v1909, %v2091
      %v2150 = vadd.f32 %v1910, %v2096
      %v2151 = vadd.f32 %v1911, %v2099
      %v2152 = vadd.f32 %v1912, %v2104
      %v2153 = vadd.f32 %v1913, %v2107
      %v2154 = vadd.f32 %v1914, %v2112
      %v2155 = vadd.f32 %v1915, %v2115
      %v2156 = vadd.f32 %v1916, %v2120
      %v2157 = vadd.f32 %v1917, %v2123
      %v2159 = vrot.slane %v290, 5
      %v2160 = vrot.slane %v2159, 4
      %v2161 = vrot.slane %v291, 5
      %v2162 = vsel %vm1281, %v2160, %v2161
      %v2163 = vrot.slane %v2161, 4
      %v2164 = vrot.slane %v292, 5
      %v2165 = vsel %vm1281, %v2163, %v2164
      %s2166 = scalar_lea.vmem %s228, 80
      %v2167 = vld [vmem:[%s2166] sm:$0xf]
      %v2168 = vld [vmem:[%s2166 + $0x4] sm:$0xf]
      %v2169 = vld [vmem:[%s2166 + $0x8] sm:$0xf]
      %v2170 = vld [vmem:[%s2166 + $0xc] sm:$0xf]
      %v2171 = vunpack.c.l.b16 %v2162
      %v2172 = vunpack.c.l.b16 %v2165
      %v2173 = vpack.c.b16 %v2172, %v2171
      %v2178 = vunpack.c.l.b16 %v2167
      %v2179 = vunpack.c.l.b16 %v2168
      %v2180 = vunpack.c.l.b16 %v2169
      %v2181 = vunpack.c.l.b16 %v2170
      %v2182 = vpack.c.b16 %v2179, %v2178
      %v2183 = vpack.c.b16 %v2181, %v2180
      %v2187 = vsel %vm752, %v2173, 0
      %2189 = vmatprep.subr.bf16.mxu0 0
      %2190 = vmatpush1.bf16.msra.mxu0 0
      %2191 = vmatprep.subr.bf16.mxu0 0
      %2192 = vmatpush1.bf16.msra.mxu0 0
      %2193 = vmatprep.subr.bf16.mxu0 0
      %2194 = vmatpush1.bf16.msra.mxu0 0
      %2195 = vmatprep.subr.bf16.mxu0 0
      %2196 = vmatpush1.bf16.msra.mxu0 0
      %2197 = vmatprep.subr.bf16.mxu0 0
      %2198 = vmatpush1.bf16.msra.mxu0 0
      %2199 = vmatprep.subr.bf16.mxu0 0
      %2200 = vmatpush1.bf16.msra.mxu0 0
      %2201 = vmatprep.subr.bf16.mxu0 0
      %2202 = vmatpush1.bf16.msra.mxu0 %v2183
      %2203 = vmatprep.subr.bf16.mxu0 0
      %2204 = vmatpush1.bf16.msra.mxu0 %v2182
      %2205 = vmatprep.subr.bf16.mxu0 0
      %2206 = vmatpush2.bf16.msra.mxu0 0
      %2207 = vmatprep.subr.bf16.mxu0 0
      %2208 = vmatpush2.bf16.msra.mxu0 0
      %2209 = vmatprep.subr.bf16.mxu0 0
      %2210 = vmatpush2.bf16.msra.mxu0 0
      %2211 = vmatprep.subr.bf16.mxu0 0
      %2212 = vmatpush2.bf16.msra.mxu0 0
      %2213 = vmatprep.subr.bf16.mxu0 0
      %2214 = vmatpush2.bf16.msra.mxu0 0
      %2215 = vmatprep.subr.bf16.mxu0 0
      %2216 = vmatpush2.bf16.msra.mxu0 0
      %2217 = vmatprep.subr.bf16.mxu0 0
      %2218 = vmatpush2.bf16.msra.mxu0 0
      %2219 = vmatprep.subr.bf16.mxu0 0
      %2220 = vmatpush2.bf16.msra.mxu0 0
      %2221 = vmatprep.mubr.bf16.mxu0 0
      %2222 = vmatmul.mubr.bf16.gmra.mxu0 %v1463
      %v2223 = vpop.f32.mrf.mxu0
      %v2224 = vadd.f32 0.0, %v2223
      %v2225 = vpop.f32.mrf.mxu0
      %v2226 = vpop.f32.mrf.mxu0
      %v2227 = vadd.f32 0.0, %v2226
      %v2228 = vpop.f32.mrf.mxu0
      %2229 = vmatprep.mubr.bf16.mxu0 0
      %2230 = vmatmul.mubr.bf16.gmra.mxu0 %v1466
      %v2231 = vpop.f32.mrf.mxu0
      %v2232 = vadd.f32 0.0, %v2231
      %v2233 = vpop.f32.mrf.mxu0
      %v2234 = vpop.f32.mrf.mxu0
      %v2235 = vadd.f32 0.0, %v2234
      %v2236 = vpop.f32.mrf.mxu0
      %2237 = vmatprep.mubr.bf16.mxu0 0
      %2238 = vmatmul.mubr.bf16.gmra.mxu0 %v1469
      %v2239 = vpop.f32.mrf.mxu0
      %v2240 = vadd.f32 0.0, %v2239
      %v2241 = vpop.f32.mrf.mxu0
      %v2242 = vpop.f32.mrf.mxu0
      %v2243 = vadd.f32 0.0, %v2242
      %v2244 = vpop.f32.mrf.mxu0
      %2245 = vmatprep.mubr.bf16.mxu0 0
      %2246 = vmatmul.mubr.bf16.gmra.mxu0 %v1472
      %v2247 = vpop.f32.mrf.mxu0
      %v2248 = vadd.f32 0.0, %v2247
      %v2249 = vpop.f32.mrf.mxu0
      %v2250 = vpop.f32.mrf.mxu0
      %v2251 = vadd.f32 0.0, %v2250
      %v2252 = vpop.f32.mrf.mxu0
      %2253 = vmatprep.mubr.bf16.mxu0 0
      %2254 = vmatmul.mubr.bf16.gmra.mxu0 %v1475
      %v2255 = vpop.f32.mrf.mxu0
      %v2256 = vadd.f32 0.0, %v2255
      %v2257 = vpop.f32.mrf.mxu0
      %v2258 = vpop.f32.mrf.mxu0
      %v2259 = vadd.f32 0.0, %v2258
      %v2260 = vpop.f32.mrf.mxu0
      %2261 = vmatprep.mubr.bf16.mxu0 0
      %2262 = vmatmul.mubr.bf16.gmra.mxu0 %v1478
      %v2263 = vpop.f32.mrf.mxu0
      %v2264 = vadd.f32 0.0, %v2263
      %v2265 = vpop.f32.mrf.mxu0
      %v2266 = vpop.f32.mrf.mxu0
      %v2267 = vadd.f32 0.0, %v2266
      %v2268 = vpop.f32.mrf.mxu0
      %2269 = vmatprep.mubr.bf16.mxu0 0
      %2270 = vmatmul.mubr.bf16.gmra.mxu0 %v1481
      %v2271 = vpop.f32.mrf.mxu0
      %v2272 = vadd.f32 0.0, %v2271
      %v2273 = vpop.f32.mrf.mxu0
      %v2274 = vpop.f32.mrf.mxu0
      %v2275 = vadd.f32 0.0, %v2274
      %v2276 = vpop.f32.mrf.mxu0
      %2277 = vmatprep.mubr.bf16.mxu0 0
      %2278 = vmatmul.mubr.bf16.gmra.mxu0 %v1484
      %v2279 = vpop.f32.mrf.mxu0
      %v2280 = vadd.f32 0.0, %v2279
      %v2281 = vpop.f32.mrf.mxu0
      %v2282 = vpop.f32.mrf.mxu0
      %v2283 = vadd.f32 0.0, %v2282
      %v2284 = vpop.f32.mrf.mxu0
      %2285 = vmatprep.mubr.bf16.mxu0 0
      %2286 = vmatmul.mubr.bf16.gmra.mxu0 %v1487
      %v2287 = vpop.f32.mrf.mxu0
      %v2288 = vadd.f32 0.0, %v2287
      %v2289 = vpop.f32.mrf.mxu0
      %v2290 = vpop.f32.mrf.mxu0
      %v2291 = vadd.f32 0.0, %v2290
      %v2292 = vpop.f32.mrf.mxu0
      %2293 = vmatprep.mubr.bf16.mxu0 0
      %2294 = vmatmul.mubr.bf16.gmra.mxu0 %v1490
      %v2295 = vpop.f32.mrf.mxu0
      %v2296 = vadd.f32 0.0, %v2295
      %v2297 = vpop.f32.mrf.mxu0
      %v2298 = vpop.f32.mrf.mxu0
      %v2299 = vadd.f32 0.0, %v2298
      %v2300 = vpop.f32.mrf.mxu0
      %2301 = vmatprep.mubr.bf16.mxu0 0
      %2302 = vmatmul.mubr.bf16.gmra.mxu0 %v1493
      %v2303 = vpop.f32.mrf.mxu0
      %v2304 = vadd.f32 0.0, %v2303
      %v2305 = vpop.f32.mrf.mxu0
      %v2306 = vpop.f32.mrf.mxu0
      %v2307 = vadd.f32 0.0, %v2306
      %v2308 = vpop.f32.mrf.mxu0
      %2309 = vmatprep.mubr.bf16.mxu0 0
      %2310 = vmatmul.mubr.bf16.gmra.mxu0 %v1496
      %v2311 = vpop.f32.mrf.mxu0
      %v2312 = vadd.f32 0.0, %v2311
      %v2313 = vpop.f32.mrf.mxu0
      %v2314 = vpop.f32.mrf.mxu0
      %v2315 = vadd.f32 0.0, %v2314
      %v2316 = vpop.f32.mrf.mxu0
      %2317 = vmatprep.mubr.bf16.mxu0 0
      %2318 = vmatmul.mubr.bf16.gmra.mxu0 %v1499
      %v2319 = vpop.f32.mrf.mxu0
      %v2320 = vadd.f32 0.0, %v2319
      %v2321 = vpop.f32.mrf.mxu0
      %v2322 = vpop.f32.mrf.mxu0
      %v2323 = vadd.f32 0.0, %v2322
      %v2324 = vpop.f32.mrf.mxu0
      %2325 = vmatprep.mubr.bf16.mxu0 0
      %2326 = vmatmul.mubr.bf16.gmra.mxu0 %v1502
      %v2327 = vpop.f32.mrf.mxu0
      %v2328 = vadd.f32 0.0, %v2327
      %v2329 = vpop.f32.mrf.mxu0
      %v2330 = vpop.f32.mrf.mxu0
      %v2331 = vadd.f32 0.0, %v2330
      %v2332 = vpop.f32.mrf.mxu0
      %2333 = vmatprep.mubr.bf16.mxu0 0
      %2334 = vmatmul.mubr.bf16.gmra.mxu0 %v1505
      %v2335 = vpop.f32.mrf.mxu0
      %v2336 = vadd.f32 0.0, %v2335
      %v2337 = vpop.f32.mrf.mxu0
      %v2338 = vpop.f32.mrf.mxu0
      %v2339 = vadd.f32 0.0, %v2338
      %v2340 = vpop.f32.mrf.mxu0
      %2341 = vmatprep.mubr.bf16.mxu0 0
      %2342 = vmatmul.mubr.bf16.gmra.mxu0 %v2187
      %v2343 = vpop.f32.mrf.mxu0
      %v2344 = vadd.f32 0.0, %v2343
      %v2345 = vpop.f32.mrf.mxu0
      %v2346 = vpop.f32.mrf.mxu0
      %v2347 = vadd.f32 0.0, %v2346
      %v2348 = vpop.f32.mrf.mxu0
      %2349 = vdwg.mxu0
      %v2350 = vadd.f32 %v2126, %v2224
      %v2351 = vadd.f32 %v2127, %v2227
      %v2352 = vadd.f32 %v2128, %v2232
      %v2353 = vadd.f32 %v2129, %v2235
      %v2354 = vadd.f32 %v2130, %v2240
      %v2355 = vadd.f32 %v2131, %v2243
      %v2356 = vadd.f32 %v2132, %v2248
      %v2357 = vadd.f32 %v2133, %v2251
      %v2358 = vadd.f32 %v2134, %v2256
      %v2359 = vadd.f32 %v2135, %v2259
      %v2360 = vadd.f32 %v2136, %v2264
      %v2361 = vadd.f32 %v2137, %v2267
      %v2362 = vadd.f32 %v2138, %v2272
      %v2363 = vadd.f32 %v2139, %v2275
      %v2364 = vadd.f32 %v2140, %v2280
      %v2365 = vadd.f32 %v2141, %v2283
      %v2366 = vadd.f32 %v2142, %v2288
      %v2367 = vadd.f32 %v2143, %v2291
      %v2368 = vadd.f32 %v2144, %v2296
      %v2369 = vadd.f32 %v2145, %v2299
      %v2370 = vadd.f32 %v2146, %v2304
      %v2371 = vadd.f32 %v2147, %v2307
      %v2372 = vadd.f32 %v2148, %v2312
      %v2373 = vadd.f32 %v2149, %v2315
      %v2374 = vadd.f32 %v2150, %v2320
      %v2375 = vadd.f32 %v2151, %v2323
      %v2376 = vadd.f32 %v2152, %v2328
      %v2377 = vadd.f32 %v2153, %v2331
      %v2378 = vadd.f32 %v2154, %v2336
      %v2379 = vadd.f32 %v2155, %v2339
      %v2380 = vadd.f32 %v2156, %v2344
      %v2381 = vadd.f32 %v2157, %v2347
      %s2382 = scalar_lea.vmem %s228, 96
      %v2383 = vld [vmem:[%s2382] sm:$0xf]
      %v2384 = vld [vmem:[%s2382 + $0x4] sm:$0xf]
      %v2385 = vld [vmem:[%s2382 + $0x8] sm:$0xf]
      %v2386 = vld [vmem:[%s2382 + $0xc] sm:$0xf]
      %v2389 = vunpack.c.l.b16 %v293
      %v2390 = vunpack.c.l.b16 %v294
      %v2391 = vpack.c.b16 %v2390, %v2389
      %v2396 = vunpack.c.l.b16 %v2383
      %v2397 = vunpack.c.l.b16 %v2384
      %v2398 = vunpack.c.l.b16 %v2385
      %v2399 = vunpack.c.l.b16 %v2386
      %v2400 = vpack.c.b16 %v2397, %v2396
      %v2401 = vpack.c.b16 %v2399, %v2398
      %v2405 = vsel %vm752, %v2391, 0
      %2407 = vmatprep.subr.bf16.mxu0 0
      %2408 = vmatpush1.bf16.msra.mxu0 0
      %2409 = vmatprep.subr.bf16.mxu0 0
      %2410 = vmatpush1.bf16.msra.mxu0 0
      %2411 = vmatprep.subr.bf16.mxu0 0
      %2412 = vmatpush1.bf16.msra.mxu0 0
      %2413 = vmatprep.subr.bf16.mxu0 0
      %2414 = vmatpush1.bf16.msra.mxu0 0
      %2415 = vmatprep.subr.bf16.mxu0 0
      %2416 = vmatpush1.bf16.msra.mxu0 0
      %2417 = vmatprep.subr.bf16.mxu0 0
      %2418 = vmatpush1.bf16.msra.mxu0 0
      %2419 = vmatprep.subr.bf16.mxu0 0
      %2420 = vmatpush1.bf16.msra.mxu0 %v2401
      %2421 = vmatprep.subr.bf16.mxu0 0
      %2422 = vmatpush1.bf16.msra.mxu0 %v2400
      %2423 = vmatprep.subr.bf16.mxu0 0
      %2424 = vmatpush2.bf16.msra.mxu0 0
      %2425 = vmatprep.subr.bf16.mxu0 0
      %2426 = vmatpush2.bf16.msra.mxu0 0
      %2427 = vmatprep.subr.bf16.mxu0 0
      %2428 = vmatpush2.bf16.msra.mxu0 0
      %2429 = vmatprep.subr.bf16.mxu0 0
      %2430 = vmatpush2.bf16.msra.mxu0 0
      %2431 = vmatprep.subr.bf16.mxu0 0
      %2432 = vmatpush2.bf16.msra.mxu0 0
      %2433 = vmatprep.subr.bf16.mxu0 0
      %2434 = vmatpush2.bf16.msra.mxu0 0
      %2435 = vmatprep.subr.bf16.mxu0 0
      %2436 = vmatpush2.bf16.msra.mxu0 0
      %2437 = vmatprep.subr.bf16.mxu0 0
      %2438 = vmatpush2.bf16.msra.mxu0 0
      %2439 = vmatprep.mubr.bf16.mxu0 0
      %2440 = vmatmul.mubr.bf16.gmra.mxu0 %v1061
      %v2441 = vpop.f32.mrf.mxu0
      %v2442 = vadd.f32 0.0, %v2441
      %v2443 = vpop.f32.mrf.mxu0
      %v2444 = vpop.f32.mrf.mxu0
      %v2445 = vadd.f32 0.0, %v2444
      %v2446 = vpop.f32.mrf.mxu0
      %2447 = vmatprep.mubr.bf16.mxu0 0
      %2448 = vmatmul.mubr.bf16.gmra.mxu0 %v1064
      %v2449 = vpop.f32.mrf.mxu0
      %v2450 = vadd.f32 0.0, %v2449
      %v2451 = vpop.f32.mrf.mxu0
      %v2452 = vpop.f32.mrf.mxu0
      %v2453 = vadd.f32 0.0, %v2452
      %v2454 = vpop.f32.mrf.mxu0
      %2455 = vmatprep.mubr.bf16.mxu0 0
      %2456 = vmatmul.mubr.bf16.gmra.mxu0 %v1067
      %v2457 = vpop.f32.mrf.mxu0
      %v2458 = vadd.f32 0.0, %v2457
      %v2459 = vpop.f32.mrf.mxu0
      %v2460 = vpop.f32.mrf.mxu0
      %v2461 = vadd.f32 0.0, %v2460
      %v2462 = vpop.f32.mrf.mxu0
      %2463 = vmatprep.mubr.bf16.mxu0 0
      %2464 = vmatmul.mubr.bf16.gmra.mxu0 %v1070
      %v2465 = vpop.f32.mrf.mxu0
      %v2466 = vadd.f32 0.0, %v2465
      %v2467 = vpop.f32.mrf.mxu0
      %v2468 = vpop.f32.mrf.mxu0
      %v2469 = vadd.f32 0.0, %v2468
      %v2470 = vpop.f32.mrf.mxu0
      %2471 = vmatprep.mubr.bf16.mxu0 0
      %2472 = vmatmul.mubr.bf16.gmra.mxu0 %v1073
      %v2473 = vpop.f32.mrf.mxu0
      %v2474 = vadd.f32 0.0, %v2473
      %v2475 = vpop.f32.mrf.mxu0
      %v2476 = vpop.f32.mrf.mxu0
      %v2477 = vadd.f32 0.0, %v2476
      %v2478 = vpop.f32.mrf.mxu0
      %2479 = vmatprep.mubr.bf16.mxu0 0
      %2480 = vmatmul.mubr.bf16.gmra.mxu0 %v1076
      %v2481 = vpop.f32.mrf.mxu0
      %v2482 = vadd.f32 0.0, %v2481
      %v2483 = vpop.f32.mrf.mxu0
      %v2484 = vpop.f32.mrf.mxu0
      %v2485 = vadd.f32 0.0, %v2484
      %v2486 = vpop.f32.mrf.mxu0
      %2487 = vmatprep.mubr.bf16.mxu0 0
      %2488 = vmatmul.mubr.bf16.gmra.mxu0 %v1079
      %v2489 = vpop.f32.mrf.mxu0
      %v2490 = vadd.f32 0.0, %v2489
      %v2491 = vpop.f32.mrf.mxu0
      %v2492 = vpop.f32.mrf.mxu0
      %v2493 = vadd.f32 0.0, %v2492
      %v2494 = vpop.f32.mrf.mxu0
      %2495 = vmatprep.mubr.bf16.mxu0 0
      %2496 = vmatmul.mubr.bf16.gmra.mxu0 %v1082
      %v2497 = vpop.f32.mrf.mxu0
      %v2498 = vadd.f32 0.0, %v2497
      %v2499 = vpop.f32.mrf.mxu0
      %v2500 = vpop.f32.mrf.mxu0
      %v2501 = vadd.f32 0.0, %v2500
      %v2502 = vpop.f32.mrf.mxu0
      %2503 = vmatprep.mubr.bf16.mxu0 0
      %2504 = vmatmul.mubr.bf16.gmra.mxu0 %v1085
      %v2505 = vpop.f32.mrf.mxu0
      %v2506 = vadd.f32 0.0, %v2505
      %v2507 = vpop.f32.mrf.mxu0
      %v2508 = vpop.f32.mrf.mxu0
      %v2509 = vadd.f32 0.0, %v2508
      %v2510 = vpop.f32.mrf.mxu0
      %2511 = vmatprep.mubr.bf16.mxu0 0
      %2512 = vmatmul.mubr.bf16.gmra.mxu0 %v1088
      %v2513 = vpop.f32.mrf.mxu0
      %v2514 = vadd.f32 0.0, %v2513
      %v2515 = vpop.f32.mrf.mxu0
      %v2516 = vpop.f32.mrf.mxu0
      %v2517 = vadd.f32 0.0, %v2516
      %v2518 = vpop.f32.mrf.mxu0
      %2519 = vmatprep.mubr.bf16.mxu0 0
      %2520 = vmatmul.mubr.bf16.gmra.mxu0 %v1091
      %v2521 = vpop.f32.mrf.mxu0
      %v2522 = vadd.f32 0.0, %v2521
      %v2523 = vpop.f32.mrf.mxu0
      %v2524 = vpop.f32.mrf.mxu0
      %v2525 = vadd.f32 0.0, %v2524
      %v2526 = vpop.f32.mrf.mxu0
      %2527 = vmatprep.mubr.bf16.mxu0 0
      %2528 = vmatmul.mubr.bf16.gmra.mxu0 %v1094
      %v2529 = vpop.f32.mrf.mxu0
      %v2530 = vadd.f32 0.0, %v2529
      %v2531 = vpop.f32.mrf.mxu0
      %v2532 = vpop.f32.mrf.mxu0
      %v2533 = vadd.f32 0.0, %v2532
      %v2534 = vpop.f32.mrf.mxu0
      %2535 = vmatprep.mubr.bf16.mxu0 0
      %2536 = vmatmul.mubr.bf16.gmra.mxu0 %v1097
      %v2537 = vpop.f32.mrf.mxu0
      %v2538 = vadd.f32 0.0, %v2537
      %v2539 = vpop.f32.mrf.mxu0
      %v2540 = vpop.f32.mrf.mxu0
      %v2541 = vadd.f32 0.0, %v2540
      %v2542 = vpop.f32.mrf.mxu0
      %2543 = vmatprep.mubr.bf16.mxu0 0
      %2544 = vmatmul.mubr.bf16.gmra.mxu0 %v1100
      %v2545 = vpop.f32.mrf.mxu0
      %v2546 = vadd.f32 0.0, %v2545
      %v2547 = vpop.f32.mrf.mxu0
      %v2548 = vpop.f32.mrf.mxu0
      %v2549 = vadd.f32 0.0, %v2548
      %v2550 = vpop.f32.mrf.mxu0
      %2551 = vmatprep.mubr.bf16.mxu0 0
      %2552 = vmatmul.mubr.bf16.gmra.mxu0 %v1723
      %v2553 = vpop.f32.mrf.mxu0
      %v2554 = vadd.f32 0.0, %v2553
      %v2555 = vpop.f32.mrf.mxu0
      %v2556 = vpop.f32.mrf.mxu0
      %v2557 = vadd.f32 0.0, %v2556
      %v2558 = vpop.f32.mrf.mxu0
      %2559 = vmatprep.mubr.bf16.mxu0 0
      %2560 = vmatmul.mubr.bf16.gmra.mxu0 %v2405
      %v2561 = vpop.f32.mrf.mxu0
      %v2562 = vadd.f32 0.0, %v2561
      %v2563 = vpop.f32.mrf.mxu0
      %v2564 = vpop.f32.mrf.mxu0
      %v2565 = vadd.f32 0.0, %v2564
      %v2566 = vpop.f32.mrf.mxu0
      %2567 = vdwg.mxu0
      %v2568 = vadd.f32 %v2350, %v2442
      %v2569 = vadd.f32 %v2351, %v2445
      %v2570 = vadd.f32 %v2352, %v2450
      %v2571 = vadd.f32 %v2353, %v2453
      %v2572 = vadd.f32 %v2354, %v2458
      %v2573 = vadd.f32 %v2355, %v2461
      %v2574 = vadd.f32 %v2356, %v2466
      %v2575 = vadd.f32 %v2357, %v2469
      %v2576 = vadd.f32 %v2358, %v2474
      %v2577 = vadd.f32 %v2359, %v2477
      %v2578 = vadd.f32 %v2360, %v2482
      %v2579 = vadd.f32 %v2361, %v2485
      %v2580 = vadd.f32 %v2362, %v2490
      %v2581 = vadd.f32 %v2363, %v2493
      %v2582 = vadd.f32 %v2364, %v2498
      %v2583 = vadd.f32 %v2365, %v2501
      %v2584 = vadd.f32 %v2366, %v2506
      %v2585 = vadd.f32 %v2367, %v2509
      %v2586 = vadd.f32 %v2368, %v2514
      %v2587 = vadd.f32 %v2369, %v2517
      %v2588 = vadd.f32 %v2370, %v2522
      %v2589 = vadd.f32 %v2371, %v2525
      %v2590 = vadd.f32 %v2372, %v2530
      %v2591 = vadd.f32 %v2373, %v2533
      %v2592 = vadd.f32 %v2374, %v2538
      %v2593 = vadd.f32 %v2375, %v2541
      %v2594 = vadd.f32 %v2376, %v2546
      %v2595 = vadd.f32 %v2377, %v2549
      %v2596 = vadd.f32 %v2378, %v2554
      %v2597 = vadd.f32 %v2379, %v2557
      %v2598 = vadd.f32 %v2380, %v2562
      %v2599 = vadd.f32 %v2381, %v2565
      %v2601 = vshrl.u32 %v293, 16
      %v2603 = vrot.slane %v2601, 4
      %v2604 = vshll.u32 %v293, 16
      %v2606 = vrot.slane %v2604, 5
      %v2607 = vor.u32 %v2603, %v2606
      %v2608 = vrot.slane %v2607, 4
      %v2610 = vshll.u32 %v294, 16
      %v2612 = vrot.slane %v2610, 5
      %v2613 = vsel %vm302, %v2608, %v2612
      %v2614 = vshrl.u32 %v294, 16
      %v2616 = vrot.slane %v2614, 4
      %v2617 = vor.u32 %v2616, %v2612
      %v2618 = vrot.slane %v2617, 4
      %v2620 = vshll.u32 %v295, 16
      %v2622 = vrot.slane %v2620, 5
      %v2623 = vsel %vm302, %v2618, %v2622
      %s2624 = scalar_lea.vmem %s228, 112
      %v2625 = vld [vmem:[%s2624] sm:$0xf]
      %v2626 = vld [vmem:[%s2624 + $0x4] sm:$0xf]
      %v2627 = vld [vmem:[%s2624 + $0x8] sm:$0xf]
      %v2628 = vld [vmem:[%s2624 + $0xc] sm:$0xf]
      %v2629 = vunpack.c.l.b16 %v2613
      %v2630 = vunpack.c.l.b16 %v2623
      %v2631 = vpack.c.b16 %v2630, %v2629
      %v2636 = vunpack.c.l.b16 %v2625
      %v2637 = vunpack.c.l.b16 %v2626
      %v2638 = vunpack.c.l.b16 %v2627
      %v2639 = vunpack.c.l.b16 %v2628
      %v2640 = vpack.c.b16 %v2637, %v2636
      %v2641 = vpack.c.b16 %v2639, %v2638
      %v2645 = vsel %vm752, %v2631, 0
      %2647 = vmatprep.subr.bf16.mxu0 0
      %2648 = vmatpush1.bf16.msra.mxu0 0
      %2649 = vmatprep.subr.bf16.mxu0 0
      %2650 = vmatpush1.bf16.msra.mxu0 0
      %2651 = vmatprep.subr.bf16.mxu0 0
      %2652 = vmatpush1.bf16.msra.mxu0 0
      %2653 = vmatprep.subr.bf16.mxu0 0
      %2654 = vmatpush1.bf16.msra.mxu0 0
      %2655 = vmatprep.subr.bf16.mxu0 0
      %2656 = vmatpush1.bf16.msra.mxu0 0
      %2657 = vmatprep.subr.bf16.mxu0 0
      %2658 = vmatpush1.bf16.msra.mxu0 0
      %2659 = vmatprep.subr.bf16.mxu0 0
      %2660 = vmatpush1.bf16.msra.mxu0 %v2641
      %2661 = vmatprep.subr.bf16.mxu0 0
      %2662 = vmatpush1.bf16.msra.mxu0 %v2640
      %2663 = vmatprep.subr.bf16.mxu0 0
      %2664 = vmatpush2.bf16.msra.mxu0 0
      %2665 = vmatprep.subr.bf16.mxu0 0
      %2666 = vmatpush2.bf16.msra.mxu0 0
      %2667 = vmatprep.subr.bf16.mxu0 0
      %2668 = vmatpush2.bf16.msra.mxu0 0
      %2669 = vmatprep.subr.bf16.mxu0 0
      %2670 = vmatpush2.bf16.msra.mxu0 0
      %2671 = vmatprep.subr.bf16.mxu0 0
      %2672 = vmatpush2.bf16.msra.mxu0 0
      %2673 = vmatprep.subr.bf16.mxu0 0
      %2674 = vmatpush2.bf16.msra.mxu0 0
      %2675 = vmatprep.subr.bf16.mxu0 0
      %2676 = vmatpush2.bf16.msra.mxu0 0
      %2677 = vmatprep.subr.bf16.mxu0 0
      %2678 = vmatpush2.bf16.msra.mxu0 0
      %2679 = vmatprep.mubr.bf16.mxu0 0
      %2680 = vmatmul.mubr.bf16.gmra.mxu0 %v760
      %v2681 = vpop.f32.mrf.mxu0
      %v2682 = vadd.f32 0.0, %v2681
      %v2683 = vpop.f32.mrf.mxu0
      %v2684 = vpop.f32.mrf.mxu0
      %v2685 = vadd.f32 0.0, %v2684
      %v2686 = vpop.f32.mrf.mxu0
      %2687 = vmatprep.mubr.bf16.mxu0 0
      %2688 = vmatmul.mubr.bf16.gmra.mxu0 %v763
      %v2689 = vpop.f32.mrf.mxu0
      %v2690 = vadd.f32 0.0, %v2689
      %v2691 = vpop.f32.mrf.mxu0
      %v2692 = vpop.f32.mrf.mxu0
      %v2693 = vadd.f32 0.0, %v2692
      %v2694 = vpop.f32.mrf.mxu0
      %2695 = vmatprep.mubr.bf16.mxu0 0
      %2696 = vmatmul.mubr.bf16.gmra.mxu0 %v766
      %v2697 = vpop.f32.mrf.mxu0
      %v2698 = vadd.f32 0.0, %v2697
      %v2699 = vpop.f32.mrf.mxu0
      %v2700 = vpop.f32.mrf.mxu0
      %v2701 = vadd.f32 0.0, %v2700
      %v2702 = vpop.f32.mrf.mxu0
      %2703 = vmatprep.mubr.bf16.mxu0 0
      %2704 = vmatmul.mubr.bf16.gmra.mxu0 %v769
      %v2705 = vpop.f32.mrf.mxu0
      %v2706 = vadd.f32 0.0, %v2705
      %v2707 = vpop.f32.mrf.mxu0
      %v2708 = vpop.f32.mrf.mxu0
      %v2709 = vadd.f32 0.0, %v2708
      %v2710 = vpop.f32.mrf.mxu0
      %2711 = vmatprep.mubr.bf16.mxu0 0
      %2712 = vmatmul.mubr.bf16.gmra.mxu0 %v772
      %v2713 = vpop.f32.mrf.mxu0
      %v2714 = vadd.f32 0.0, %v2713
      %v2715 = vpop.f32.mrf.mxu0
      %v2716 = vpop.f32.mrf.mxu0
      %v2717 = vadd.f32 0.0, %v2716
      %v2718 = vpop.f32.mrf.mxu0
      %2719 = vmatprep.mubr.bf16.mxu0 0
      %2720 = vmatmul.mubr.bf16.gmra.mxu0 %v775
      %v2721 = vpop.f32.mrf.mxu0
      %v2722 = vadd.f32 0.0, %v2721
      %v2723 = vpop.f32.mrf.mxu0
      %v2724 = vpop.f32.mrf.mxu0
      %v2725 = vadd.f32 0.0, %v2724
      %v2726 = vpop.f32.mrf.mxu0
      %2727 = vmatprep.mubr.bf16.mxu0 0
      %2728 = vmatmul.mubr.bf16.gmra.mxu0 %v778
      %v2729 = vpop.f32.mrf.mxu0
      %v2730 = vadd.f32 0.0, %v2729
      %v2731 = vpop.f32.mrf.mxu0
      %v2732 = vpop.f32.mrf.mxu0
      %v2733 = vadd.f32 0.0, %v2732
      %v2734 = vpop.f32.mrf.mxu0
      %2735 = vmatprep.mubr.bf16.mxu0 0
      %2736 = vmatmul.mubr.bf16.gmra.mxu0 %v781
      %v2737 = vpop.f32.mrf.mxu0
      %v2738 = vadd.f32 0.0, %v2737
      %v2739 = vpop.f32.mrf.mxu0
      %v2740 = vpop.f32.mrf.mxu0
      %v2741 = vadd.f32 0.0, %v2740
      %v2742 = vpop.f32.mrf.mxu0
      %2743 = vmatprep.mubr.bf16.mxu0 0
      %2744 = vmatmul.mubr.bf16.gmra.mxu0 %v784
      %v2745 = vpop.f32.mrf.mxu0
      %v2746 = vadd.f32 0.0, %v2745
      %v2747 = vpop.f32.mrf.mxu0
      %v2748 = vpop.f32.mrf.mxu0
      %v2749 = vadd.f32 0.0, %v2748
      %v2750 = vpop.f32.mrf.mxu0
      %2751 = vmatprep.mubr.bf16.mxu0 0
      %2752 = vmatmul.mubr.bf16.gmra.mxu0 %v787
      %v2753 = vpop.f32.mrf.mxu0
      %v2754 = vadd.f32 0.0, %v2753
      %v2755 = vpop.f32.mrf.mxu0
      %v2756 = vpop.f32.mrf.mxu0
      %v2757 = vadd.f32 0.0, %v2756
      %v2758 = vpop.f32.mrf.mxu0
      %2759 = vmatprep.mubr.bf16.mxu0 0
      %2760 = vmatmul.mubr.bf16.gmra.mxu0 %v790
      %v2761 = vpop.f32.mrf.mxu0
      %v2762 = vadd.f32 0.0, %v2761
      %v2763 = vpop.f32.mrf.mxu0
      %v2764 = vpop.f32.mrf.mxu0
      %v2765 = vadd.f32 0.0, %v2764
      %v2766 = vpop.f32.mrf.mxu0
      %2767 = vmatprep.mubr.bf16.mxu0 0
      %2768 = vmatmul.mubr.bf16.gmra.mxu0 %v793
      %v2769 = vpop.f32.mrf.mxu0
      %v2770 = vadd.f32 0.0, %v2769
      %v2771 = vpop.f32.mrf.mxu0
      %v2772 = vpop.f32.mrf.mxu0
      %v2773 = vadd.f32 0.0, %v2772
      %v2774 = vpop.f32.mrf.mxu0
      %2775 = vmatprep.mubr.bf16.mxu0 0
      %2776 = vmatmul.mubr.bf16.gmra.mxu0 %v796
      %v2777 = vpop.f32.mrf.mxu0
      %v2778 = vadd.f32 0.0, %v2777
      %v2779 = vpop.f32.mrf.mxu0
      %v2780 = vpop.f32.mrf.mxu0
      %v2781 = vadd.f32 0.0, %v2780
      %v2782 = vpop.f32.mrf.mxu0
      %2783 = vmatprep.mubr.bf16.mxu0 0
      %2784 = vmatmul.mubr.bf16.gmra.mxu0 %v799
      %v2785 = vpop.f32.mrf.mxu0
      %v2786 = vadd.f32 0.0, %v2785
      %v2787 = vpop.f32.mrf.mxu0
      %v2788 = vpop.f32.mrf.mxu0
      %v2789 = vadd.f32 0.0, %v2788
      %v2790 = vpop.f32.mrf.mxu0
      %2791 = vmatprep.mubr.bf16.mxu0 0
      %2792 = vmatmul.mubr.bf16.gmra.mxu0 %v1963
      %v2793 = vpop.f32.mrf.mxu0
      %v2794 = vadd.f32 0.0, %v2793
      %v2795 = vpop.f32.mrf.mxu0
      %v2796 = vpop.f32.mrf.mxu0
      %v2797 = vadd.f32 0.0, %v2796
      %v2798 = vpop.f32.mrf.mxu0
      %2799 = vmatprep.mubr.bf16.mxu0 0
      %2800 = vmatmul.mubr.bf16.gmra.mxu0 %v2645
      %v2801 = vpop.f32.mrf.mxu0
      %v2802 = vadd.f32 0.0, %v2801
      %v2803 = vpop.f32.mrf.mxu0
      %v2804 = vpop.f32.mrf.mxu0
      %v2805 = vadd.f32 0.0, %v2804
      %v2806 = vpop.f32.mrf.mxu0
      %2807 = vdwg.mxu0
      %v2808 = vadd.f32 %v2568, %v2682
      %v2809 = vadd.f32 %v2569, %v2685
      %v2810 = vadd.f32 %v2570, %v2690
      %v2811 = vadd.f32 %v2571, %v2693
      %v2812 = vadd.f32 %v2572, %v2698
      %v2813 = vadd.f32 %v2573, %v2701
      %v2814 = vadd.f32 %v2574, %v2706
      %v2815 = vadd.f32 %v2575, %v2709
      %v2816 = vadd.f32 %v2576, %v2714
      %v2817 = vadd.f32 %v2577, %v2717
      %v2818 = vadd.f32 %v2578, %v2722
      %v2819 = vadd.f32 %v2579, %v2725
      %v2820 = vadd.f32 %v2580, %v2730
      %v2821 = vadd.f32 %v2581, %v2733
      %v2822 = vadd.f32 %v2582, %v2738
      %v2823 = vadd.f32 %v2583, %v2741
      %v2824 = vadd.f32 %v2584, %v2746
      %v2825 = vadd.f32 %v2585, %v2749
      %v2826 = vadd.f32 %v2586, %v2754
      %v2827 = vadd.f32 %v2587, %v2757
      %v2828 = vadd.f32 %v2588, %v2762
      %v2829 = vadd.f32 %v2589, %v2765
      %v2830 = vadd.f32 %v2590, %v2770
      %v2831 = vadd.f32 %v2591, %v2773
      %v2832 = vadd.f32 %v2592, %v2778
      %v2833 = vadd.f32 %v2593, %v2781
      %v2834 = vadd.f32 %v2594, %v2786
      %v2835 = vadd.f32 %v2595, %v2789
      %v2836 = vadd.f32 %v2596, %v2794
      %v2837 = vadd.f32 %v2597, %v2797
      %v2838 = vadd.f32 %v2598, %v2802
      %v2839 = vadd.f32 %v2599, %v2805
      %v2841 = vrot.slane %v293, 5
      %v2842 = vrot.slane %v2841, 4
      %v2843 = vrot.slane %v294, 5
      %v2844 = vsel %vm1281, %v2842, %v2843
      %v2845 = vrot.slane %v2843, 4
      %v2846 = vrot.slane %v295, 5
      %v2847 = vsel %vm1281, %v2845, %v2846
      %s2848 = scalar_lea.vmem %s228, 128
      %v2849 = vld [vmem:[%s2848] sm:$0xf]
      %v2850 = vld [vmem:[%s2848 + $0x4] sm:$0xf]
      %v2851 = vld [vmem:[%s2848 + $0x8] sm:$0xf]
      %v2852 = vld [vmem:[%s2848 + $0xc] sm:$0xf]
      %v2853 = vunpack.c.l.b16 %v2844
      %v2854 = vunpack.c.l.b16 %v2847
      %v2855 = vpack.c.b16 %v2854, %v2853
      %v2860 = vunpack.c.l.b16 %v2849
      %v2861 = vunpack.c.l.b16 %v2850
      %v2862 = vunpack.c.l.b16 %v2851
      %v2863 = vunpack.c.l.b16 %v2852
      %v2864 = vpack.c.b16 %v2861, %v2860
      %v2865 = vpack.c.b16 %v2863, %v2862
      %v2869 = vsel %vm752, %v2855, 0
      %2871 = vmatprep.subr.bf16.mxu0 0
      %2872 = vmatpush1.bf16.msra.mxu0 0
      %2873 = vmatprep.subr.bf16.mxu0 0
      %2874 = vmatpush1.bf16.msra.mxu0 0
      %2875 = vmatprep.subr.bf16.mxu0 0
      %2876 = vmatpush1.bf16.msra.mxu0 0
      %2877 = vmatprep.subr.bf16.mxu0 0
      %2878 = vmatpush1.bf16.msra.mxu0 0
      %2879 = vmatprep.subr.bf16.mxu0 0
      %2880 = vmatpush1.bf16.msra.mxu0 0
      %2881 = vmatprep.subr.bf16.mxu0 0
      %2882 = vmatpush1.bf16.msra.mxu0 0
      %2883 = vmatprep.subr.bf16.mxu0 0
      %2884 = vmatpush1.bf16.msra.mxu0 %v2865
      %2885 = vmatprep.subr.bf16.mxu0 0
      %2886 = vmatpush1.bf16.msra.mxu0 %v2864
      %2887 = vmatprep.subr.bf16.mxu0 0
      %2888 = vmatpush2.bf16.msra.mxu0 0
      %2889 = vmatprep.subr.bf16.mxu0 0
      %2890 = vmatpush2.bf16.msra.mxu0 0
      %2891 = vmatprep.subr.bf16.mxu0 0
      %2892 = vmatpush2.bf16.msra.mxu0 0
      %2893 = vmatprep.subr.bf16.mxu0 0
      %2894 = vmatpush2.bf16.msra.mxu0 0
      %2895 = vmatprep.subr.bf16.mxu0 0
      %2896 = vmatpush2.bf16.msra.mxu0 0
      %2897 = vmatprep.subr.bf16.mxu0 0
      %2898 = vmatpush2.bf16.msra.mxu0 0
      %2899 = vmatprep.subr.bf16.mxu0 0
      %2900 = vmatpush2.bf16.msra.mxu0 0
      %2901 = vmatprep.subr.bf16.mxu0 0
      %2902 = vmatpush2.bf16.msra.mxu0 0
      %2903 = vmatprep.mubr.bf16.mxu0 0
      %2904 = vmatmul.mubr.bf16.gmra.mxu0 %v1466
      %v2905 = vpop.f32.mrf.mxu0
      %v2906 = vadd.f32 0.0, %v2905
      %v2907 = vpop.f32.mrf.mxu0
      %v2908 = vpop.f32.mrf.mxu0
      %v2909 = vadd.f32 0.0, %v2908
      %v2910 = vpop.f32.mrf.mxu0
      %2911 = vmatprep.mubr.bf16.mxu0 0
      %2912 = vmatmul.mubr.bf16.gmra.mxu0 %v1469
      %v2913 = vpop.f32.mrf.mxu0
      %v2914 = vadd.f32 0.0, %v2913
      %v2915 = vpop.f32.mrf.mxu0
      %v2916 = vpop.f32.mrf.mxu0
      %v2917 = vadd.f32 0.0, %v2916
      %v2918 = vpop.f32.mrf.mxu0
      %2919 = vmatprep.mubr.bf16.mxu0 0
      %2920 = vmatmul.mubr.bf16.gmra.mxu0 %v1472
      %v2921 = vpop.f32.mrf.mxu0
      %v2922 = vadd.f32 0.0, %v2921
      %v2923 = vpop.f32.mrf.mxu0
      %v2924 = vpop.f32.mrf.mxu0
      %v2925 = vadd.f32 0.0, %v2924
      %v2926 = vpop.f32.mrf.mxu0
      %2927 = vmatprep.mubr.bf16.mxu0 0
      %2928 = vmatmul.mubr.bf16.gmra.mxu0 %v1475
      %v2929 = vpop.f32.mrf.mxu0
      %v2930 = vadd.f32 0.0, %v2929
      %v2931 = vpop.f32.mrf.mxu0
      %v2932 = vpop.f32.mrf.mxu0
      %v2933 = vadd.f32 0.0, %v2932
      %v2934 = vpop.f32.mrf.mxu0
      %2935 = vmatprep.mubr.bf16.mxu0 0
      %2936 = vmatmul.mubr.bf16.gmra.mxu0 %v1478
      %v2937 = vpop.f32.mrf.mxu0
      %v2938 = vadd.f32 0.0, %v2937
      %v2939 = vpop.f32.mrf.mxu0
      %v2940 = vpop.f32.mrf.mxu0
      %v2941 = vadd.f32 0.0, %v2940
      %v2942 = vpop.f32.mrf.mxu0
      %2943 = vmatprep.mubr.bf16.mxu0 0
      %2944 = vmatmul.mubr.bf16.gmra.mxu0 %v1481
      %v2945 = vpop.f32.mrf.mxu0
      %v2946 = vadd.f32 0.0, %v2945
      %v2947 = vpop.f32.mrf.mxu0
      %v2948 = vpop.f32.mrf.mxu0
      %v2949 = vadd.f32 0.0, %v2948
      %v2950 = vpop.f32.mrf.mxu0
      %2951 = vmatprep.mubr.bf16.mxu0 0
      %2952 = vmatmul.mubr.bf16.gmra.mxu0 %v1484
      %v2953 = vpop.f32.mrf.mxu0
      %v2954 = vadd.f32 0.0, %v2953
      %v2955 = vpop.f32.mrf.mxu0
      %v2956 = vpop.f32.mrf.mxu0
      %v2957 = vadd.f32 0.0, %v2956
      %v2958 = vpop.f32.mrf.mxu0
      %2959 = vmatprep.mubr.bf16.mxu0 0
      %2960 = vmatmul.mubr.bf16.gmra.mxu0 %v1487
      %v2961 = vpop.f32.mrf.mxu0
      %v2962 = vadd.f32 0.0, %v2961
      %v2963 = vpop.f32.mrf.mxu0
      %v2964 = vpop.f32.mrf.mxu0
      %v2965 = vadd.f32 0.0, %v2964
      %v2966 = vpop.f32.mrf.mxu0
      %2967 = vmatprep.mubr.bf16.mxu0 0
      %2968 = vmatmul.mubr.bf16.gmra.mxu0 %v1490
      %v2969 = vpop.f32.mrf.mxu0
      %v2970 = vadd.f32 0.0, %v2969
      %v2971 = vpop.f32.mrf.mxu0
      %v2972 = vpop.f32.mrf.mxu0
      %v2973 = vadd.f32 0.0, %v2972
      %v2974 = vpop.f32.mrf.mxu0
      %2975 = vmatprep.mubr.bf16.mxu0 0
      %2976 = vmatmul.mubr.bf16.gmra.mxu0 %v1493
      %v2977 = vpop.f32.mrf.mxu0
      %v2978 = vadd.f32 0.0, %v2977
      %v2979 = vpop.f32.mrf.mxu0
      %v2980 = vpop.f32.mrf.mxu0
      %v2981 = vadd.f32 0.0, %v2980
      %v2982 = vpop.f32.mrf.mxu0
      %2983 = vmatprep.mubr.bf16.mxu0 0
      %2984 = vmatmul.mubr.bf16.gmra.mxu0 %v1496
      %v2985 = vpop.f32.mrf.mxu0
      %v2986 = vadd.f32 0.0, %v2985
      %v2987 = vpop.f32.mrf.mxu0
      %v2988 = vpop.f32.mrf.mxu0
      %v2989 = vadd.f32 0.0, %v2988
      %v2990 = vpop.f32.mrf.mxu0
      %2991 = vmatprep.mubr.bf16.mxu0 0
      %2992 = vmatmul.mubr.bf16.gmra.mxu0 %v1499
      %v2993 = vpop.f32.mrf.mxu0
      %v2994 = vadd.f32 0.0, %v2993
      %v2995 = vpop.f32.mrf.mxu0
      %v2996 = vpop.f32.mrf.mxu0
      %v2997 = vadd.f32 0.0, %v2996
      %v2998 = vpop.f32.mrf.mxu0
      %2999 = vmatprep.mubr.bf16.mxu0 0
      %3000 = vmatmul.mubr.bf16.gmra.mxu0 %v1502
      %v3001 = vpop.f32.mrf.mxu0
      %v3002 = vadd.f32 0.0, %v3001
      %v3003 = vpop.f32.mrf.mxu0
      %v3004 = vpop.f32.mrf.mxu0
      %v3005 = vadd.f32 0.0, %v3004
      %v3006 = vpop.f32.mrf.mxu0
      %3007 = vmatprep.mubr.bf16.mxu0 0
      %3008 = vmatmul.mubr.bf16.gmra.mxu0 %v1505
      %v3009 = vpop.f32.mrf.mxu0
      %v3010 = vadd.f32 0.0, %v3009
      %v3011 = vpop.f32.mrf.mxu0
      %v3012 = vpop.f32.mrf.mxu0
      %v3013 = vadd.f32 0.0, %v3012
      %v3014 = vpop.f32.mrf.mxu0
      %3015 = vmatprep.mubr.bf16.mxu0 0
      %3016 = vmatmul.mubr.bf16.gmra.mxu0 %v2187
      %v3017 = vpop.f32.mrf.mxu0
      %v3018 = vadd.f32 0.0, %v3017
      %v3019 = vpop.f32.mrf.mxu0
      %v3020 = vpop.f32.mrf.mxu0
      %v3021 = vadd.f32 0.0, %v3020
      %v3022 = vpop.f32.mrf.mxu0
      %3023 = vmatprep.mubr.bf16.mxu0 0
      %3024 = vmatmul.mubr.bf16.gmra.mxu0 %v2869
      %v3025 = vpop.f32.mrf.mxu0
      %v3026 = vadd.f32 0.0, %v3025
      %v3027 = vpop.f32.mrf.mxu0
      %v3028 = vpop.f32.mrf.mxu0
      %v3029 = vadd.f32 0.0, %v3028
      %v3030 = vpop.f32.mrf.mxu0
      %3031 = vdwg.mxu0
      %v3032 = vadd.f32 %v2808, %v2906
      %v3033 = vadd.f32 %v2809, %v2909
      %v3034 = vadd.f32 %v2810, %v2914
      %v3035 = vadd.f32 %v2811, %v2917
      %v3036 = vadd.f32 %v2812, %v2922
      %v3037 = vadd.f32 %v2813, %v2925
      %v3038 = vadd.f32 %v2814, %v2930
      %v3039 = vadd.f32 %v2815, %v2933
      %v3040 = vadd.f32 %v2816, %v2938
      %v3041 = vadd.f32 %v2817, %v2941
      %v3042 = vadd.f32 %v2818, %v2946
      %v3043 = vadd.f32 %v2819, %v2949
      %v3044 = vadd.f32 %v2820, %v2954
      %v3045 = vadd.f32 %v2821, %v2957
      %v3046 = vadd.f32 %v2822, %v2962
      %v3047 = vadd.f32 %v2823, %v2965
      %v3048 = vadd.f32 %v2824, %v2970
      %v3049 = vadd.f32 %v2825, %v2973
      %v3050 = vadd.f32 %v2826, %v2978
      %v3051 = vadd.f32 %v2827, %v2981
      %v3052 = vadd.f32 %v2828, %v2986
      %v3053 = vadd.f32 %v2829, %v2989
      %v3054 = vadd.f32 %v2830, %v2994
      %v3055 = vadd.f32 %v2831, %v2997
      %v3056 = vadd.f32 %v2832, %v3002
      %v3057 = vadd.f32 %v2833, %v3005
      %v3058 = vadd.f32 %v2834, %v3010
      %v3059 = vadd.f32 %v2835, %v3013
      %v3060 = vadd.f32 %v2836, %v3018
      %v3061 = vadd.f32 %v2837, %v3021
      %v3062 = vadd.f32 %v2838, %v3026
      %v3063 = vadd.f32 %v2839, %v3029
      %v3064 = vld [vmem:[%s231] sm:$0x1]
      %v3066 = vlaneseq
      %v3067 = vshrl.u32 %v3066, 7
      %v3068 = vsub.s32 0, %v3067
      %v3069 = vrot.slane %v3064, %v3068
      %v3071 = vadd.f32 %v3032, %v3069
      %v3072 = vadd.f32 %v3033, %v3069
      %v3073 = vadd.f32 %v3034, %v3069
      %v3074 = vadd.f32 %v3035, %v3069
      %v3075 = vadd.f32 %v3036, %v3069
      %v3076 = vadd.f32 %v3037, %v3069
      %v3077 = vadd.f32 %v3038, %v3069
      %v3078 = vadd.f32 %v3039, %v3069
      %v3079 = vadd.f32 %v3040, %v3069
      %v3080 = vadd.f32 %v3041, %v3069
      %v3081 = vadd.f32 %v3042, %v3069
      %v3082 = vadd.f32 %v3043, %v3069
      %v3083 = vadd.f32 %v3044, %v3069
      %v3084 = vadd.f32 %v3045, %v3069
      %v3085 = vadd.f32 %v3046, %v3069
      %v3086 = vadd.f32 %v3047, %v3069
      %v3087 = vadd.f32 %v3048, %v3069
      %v3088 = vadd.f32 %v3049, %v3069
      %v3089 = vadd.f32 %v3050, %v3069
      %v3090 = vadd.f32 %v3051, %v3069
      %v3091 = vadd.f32 %v3052, %v3069
      %v3092 = vadd.f32 %v3053, %v3069
      %v3093 = vadd.f32 %v3054, %v3069
      %v3094 = vadd.f32 %v3055, %v3069
      %v3095 = vadd.f32 %v3056, %v3069
      %v3096 = vadd.f32 %v3057, %v3069
      %v3097 = vadd.f32 %v3058, %v3069
      %v3098 = vadd.f32 %v3059, %v3069
      %v3099 = vadd.f32 %v3060, %v3069
      %v3100 = vadd.f32 %v3061, %v3069
      %v3101 = vadd.f32 %v3062, %v3069
      %v3102 = vadd.f32 %v3063, %v3069
      %v3103 = vxor.u32 %v3071, 2147483648
      %v3104 = vxor.u32 %v3072, 2147483648
      %v3105 = vxor.u32 %v3073, 2147483648
      %v3106 = vxor.u32 %v3074, 2147483648
      %v3107 = vxor.u32 %v3075, 2147483648
      %v3108 = vxor.u32 %v3076, 2147483648
      %v3109 = vxor.u32 %v3077, 2147483648
      %v3110 = vxor.u32 %v3078, 2147483648
      %v3111 = vxor.u32 %v3079, 2147483648
      %v3112 = vxor.u32 %v3080, 2147483648
      %v3113 = vxor.u32 %v3081, 2147483648
      %v3114 = vxor.u32 %v3082, 2147483648
      %v3115 = vxor.u32 %v3083, 2147483648
      %v3116 = vxor.u32 %v3084, 2147483648
      %v3117 = vxor.u32 %v3085, 2147483648
      %v3118 = vxor.u32 %v3086, 2147483648
      %v3119 = vxor.u32 %v3087, 2147483648
      %v3120 = vxor.u32 %v3088, 2147483648
      %v3121 = vxor.u32 %v3089, 2147483648
      %v3122 = vxor.u32 %v3090, 2147483648
      %v3123 = vxor.u32 %v3091, 2147483648
      %v3124 = vxor.u32 %v3092, 2147483648
      %v3125 = vxor.u32 %v3093, 2147483648
      %v3126 = vxor.u32 %v3094, 2147483648
      %v3127 = vxor.u32 %v3095, 2147483648
      %v3128 = vxor.u32 %v3096, 2147483648
      %v3129 = vxor.u32 %v3097, 2147483648
      %v3130 = vxor.u32 %v3098, 2147483648
      %v3131 = vxor.u32 %v3099, 2147483648
      %v3132 = vxor.u32 %v3100, 2147483648
      %v3133 = vxor.u32 %v3101, 2147483648
      %v3134 = vxor.u32 %v3102, 2147483648
      %v3135 = vmul.f32 %v3103, 1.442695
      %v3136 = vpow.pop %v3135
      %v3137 = vmul.f32 %v3104, 1.442695
      %v3138 = vpow.pop %v3137
      %v3139 = vmul.f32 %v3105, 1.442695
      %v3140 = vpow.pop %v3139
      %v3141 = vmul.f32 %v3106, 1.442695
      %v3142 = vpow.pop %v3141
      %v3143 = vmul.f32 %v3107, 1.442695
      %v3144 = vpow.pop %v3143
      %v3145 = vmul.f32 %v3108, 1.442695
      %v3146 = vpow.pop %v3145
      %v3147 = vmul.f32 %v3109, 1.442695
      %v3148 = vpow.pop %v3147
      %v3149 = vmul.f32 %v3110, 1.442695
      %v3150 = vpow.pop %v3149
      %v3151 = vmul.f32 %v3111, 1.442695
      %v3152 = vpow.pop %v3151
      %v3153 = vmul.f32 %v3112, 1.442695
      %v3154 = vpow.pop %v3153
      %v3155 = vmul.f32 %v3113, 1.442695
      %v3156 = vpow.pop %v3155
      %v3157 = vmul.f32 %v3114, 1.442695
      %v3158 = vpow.pop %v3157
      %v3159 = vmul.f32 %v3115, 1.442695
      %v3160 = vpow.pop %v3159
      %v3161 = vmul.f32 %v3116, 1.442695
      %v3162 = vpow.pop %v3161
      %v3163 = vmul.f32 %v3117, 1.442695
      %v3164 = vpow.pop %v3163
      %v3165 = vmul.f32 %v3118, 1.442695
      %v3166 = vpow.pop %v3165
      %v3167 = vmul.f32 %v3119, 1.442695
      %v3168 = vpow.pop %v3167
      %v3169 = vmul.f32 %v3120, 1.442695
      %v3170 = vpow.pop %v3169
      %v3171 = vmul.f32 %v3121, 1.442695
      %v3172 = vpow.pop %v3171
      %v3173 = vmul.f32 %v3122, 1.442695
      %v3174 = vpow.pop %v3173
      %v3175 = vmul.f32 %v3123, 1.442695
      %v3176 = vpow.pop %v3175
      %v3177 = vmul.f32 %v3124, 1.442695
      %v3178 = vpow.pop %v3177
      %v3179 = vmul.f32 %v3125, 1.442695
      %v3180 = vpow.pop %v3179
      %v3181 = vmul.f32 %v3126, 1.442695
      %v3182 = vpow.pop %v3181
      %v3183 = vmul.f32 %v3127, 1.442695
      %v3184 = vpow.pop %v3183
      %v3185 = vmul.f32 %v3128, 1.442695
      %v3186 = vpow.pop %v3185
      %v3187 = vmul.f32 %v3129, 1.442695
      %v3188 = vpow.pop %v3187
      %v3189 = vmul.f32 %v3130, 1.442695
      %v3190 = vpow.pop %v3189
      %v3191 = vmul.f32 %v3131, 1.442695
      %v3192 = vpow.pop %v3191
      %v3193 = vmul.f32 %v3132, 1.442695
      %v3194 = vpow.pop %v3193
      %v3195 = vmul.f32 %v3133, 1.442695
      %v3196 = vpow.pop %v3195
      %v3197 = vmul.f32 %v3134, 1.442695
      %v3198 = vpow.pop %v3197
      %v3199 = vadd.f32 %v3136, 1.0
      %v3200 = vadd.f32 %v3138, 1.0
      %v3201 = vadd.f32 %v3140, 1.0
      %v3202 = vadd.f32 %v3142, 1.0
      %v3203 = vadd.f32 %v3144, 1.0
      %v3204 = vadd.f32 %v3146, 1.0
      %v3205 = vadd.f32 %v3148, 1.0
      %v3206 = vadd.f32 %v3150, 1.0
      %v3207 = vadd.f32 %v3152, 1.0
      %v3208 = vadd.f32 %v3154, 1.0
      %v3209 = vadd.f32 %v3156, 1.0
      %v3210 = vadd.f32 %v3158, 1.0
      %v3211 = vadd.f32 %v3160, 1.0
      %v3212 = vadd.f32 %v3162, 1.0
      %v3213 = vadd.f32 %v3164, 1.0
      %v3214 = vadd.f32 %v3166, 1.0
      %v3215 = vadd.f32 %v3168, 1.0
      %v3216 = vadd.f32 %v3170, 1.0
      %v3217 = vadd.f32 %v3172, 1.0
      %v3218 = vadd.f32 %v3174, 1.0
      %v3219 = vadd.f32 %v3176, 1.0
      %v3220 = vadd.f32 %v3178, 1.0
      %v3221 = vadd.f32 %v3180, 1.0
      %v3222 = vadd.f32 %v3182, 1.0
      %v3223 = vadd.f32 %v3184, 1.0
      %v3224 = vadd.f32 %v3186, 1.0
      %v3225 = vadd.f32 %v3188, 1.0
      %v3226 = vadd.f32 %v3190, 1.0
      %v3227 = vadd.f32 %v3192, 1.0
      %v3228 = vadd.f32 %v3194, 1.0
      %v3229 = vadd.f32 %v3196, 1.0
      %v3230 = vadd.f32 %v3198, 1.0
      %v3231 = vrcp.pop %v3199
      %v3232 = vmul.f32 1.0, %v3231
      %v3233 = vrcp.pop %v3200
      %v3234 = vmul.f32 1.0, %v3233
      %v3235 = vrcp.pop %v3201
      %v3236 = vmul.f32 1.0, %v3235
      %v3237 = vrcp.pop %v3202
      %v3238 = vmul.f32 1.0, %v3237
      %v3239 = vrcp.pop %v3203
      %v3240 = vmul.f32 1.0, %v3239
      %v3241 = vrcp.pop %v3204
      %v3242 = vmul.f32 1.0, %v3241
      %v3243 = vrcp.pop %v3205
      %v3244 = vmul.f32 1.0, %v3243
      %v3245 = vrcp.pop %v3206
      %v3246 = vmul.f32 1.0, %v3245
      %v3247 = vrcp.pop %v3207
      %v3248 = vmul.f32 1.0, %v3247
      %v3249 = vrcp.pop %v3208
      %v3250 = vmul.f32 1.0, %v3249
      %v3251 = vrcp.pop %v3209
      %v3252 = vmul.f32 1.0, %v3251
      %v3253 = vrcp.pop %v3210
      %v3254 = vmul.f32 1.0, %v3253
      %v3255 = vrcp.pop %v3211
      %v3256 = vmul.f32 1.0, %v3255
      %v3257 = vrcp.pop %v3212
      %v3258 = vmul.f32 1.0, %v3257
      %v3259 = vrcp.pop %v3213
      %v3260 = vmul.f32 1.0, %v3259
      %v3261 = vrcp.pop %v3214
      %v3262 = vmul.f32 1.0, %v3261
      %v3263 = vrcp.pop %v3215
      %v3264 = vmul.f32 1.0, %v3263
      %v3265 = vrcp.pop %v3216
      %v3266 = vmul.f32 1.0, %v3265
      %v3267 = vrcp.pop %v3217
      %v3268 = vmul.f32 1.0, %v3267
      %v3269 = vrcp.pop %v3218
      %v3270 = vmul.f32 1.0, %v3269
      %v3271 = vrcp.pop %v3219
      %v3272 = vmul.f32 1.0, %v3271
      %v3273 = vrcp.pop %v3220
      %v3274 = vmul.f32 1.0, %v3273
      %v3275 = vrcp.pop %v3221
      %v3276 = vmul.f32 1.0, %v3275
      %v3277 = vrcp.pop %v3222
      %v3278 = vmul.f32 1.0, %v3277
      %v3279 = vrcp.pop %v3223
      %v3280 = vmul.f32 1.0, %v3279
      %v3281 = vrcp.pop %v3224
      %v3282 = vmul.f32 1.0, %v3281
      %v3283 = vrcp.pop %v3225
      %v3284 = vmul.f32 1.0, %v3283
      %v3285 = vrcp.pop %v3226
      %v3286 = vmul.f32 1.0, %v3285
      %v3287 = vrcp.pop %v3227
      %v3288 = vmul.f32 1.0, %v3287
      %v3289 = vrcp.pop %v3228
      %v3290 = vmul.f32 1.0, %v3289
      %v3291 = vrcp.pop %v3229
      %v3292 = vmul.f32 1.0, %v3291
      %v3293 = vrcp.pop %v3230
      %v3294 = vmul.f32 1.0, %v3293
      %v3295 = vpack.c.bf16 %v3234, %v3232
      %v3296 = vpack.c.bf16 %v3238, %v3236
      %v3297 = vpack.c.bf16 %v3242, %v3240
      %v3298 = vpack.c.bf16 %v3246, %v3244
      %v3299 = vpack.c.bf16 %v3250, %v3248
      %v3300 = vpack.c.bf16 %v3254, %v3252
      %v3301 = vpack.c.bf16 %v3258, %v3256
      %v3302 = vpack.c.bf16 %v3262, %v3260
      %v3303 = vpack.c.bf16 %v3266, %v3264
      %v3304 = vpack.c.bf16 %v3270, %v3268
      %v3305 = vpack.c.bf16 %v3274, %v3272
      %v3306 = vpack.c.bf16 %v3278, %v3276
      %v3307 = vpack.c.bf16 %v3282, %v3280
      %v3308 = vpack.c.bf16 %v3286, %v3284
      %v3309 = vpack.c.bf16 %v3290, %v3288
      %v3310 = vpack.c.bf16 %v3294, %v3292
      %v3327 = vunpack.c.l.b16 %v3295
      %v3328 = vunpack.c.h.b16 %v3295
      %v3329 = vunpack.c.l.b16 %v3296
      %v3330 = vunpack.c.h.b16 %v3296
      %v3331 = vunpack.c.l.b16 %v3297
      %v3332 = vunpack.c.h.b16 %v3297
      %v3333 = vunpack.c.l.b16 %v3298
      %v3334 = vunpack.c.h.b16 %v3298
      %v3335 = vunpack.c.l.b16 %v3299
      %v3336 = vunpack.c.h.b16 %v3299
      %v3337 = vunpack.c.l.b16 %v3300
      %v3338 = vunpack.c.h.b16 %v3300
      %v3339 = vunpack.c.l.b16 %v3301
      %v3340 = vunpack.c.h.b16 %v3301
      %v3341 = vunpack.c.l.b16 %v3302
      %v3342 = vunpack.c.h.b16 %v3302
      %v3343 = vunpack.c.l.b16 %v3303
      %v3344 = vunpack.c.h.b16 %v3303
      %v3345 = vunpack.c.l.b16 %v3304
      %v3346 = vunpack.c.h.b16 %v3304
      %v3347 = vunpack.c.l.b16 %v3305
      %v3348 = vunpack.c.h.b16 %v3305
      %v3349 = vunpack.c.l.b16 %v3306
      %v3350 = vunpack.c.h.b16 %v3306
      %v3351 = vunpack.c.l.b16 %v3307
      %v3352 = vunpack.c.h.b16 %v3307
      %v3353 = vunpack.c.l.b16 %v3308
      %v3354 = vunpack.c.h.b16 %v3308
      %v3355 = vunpack.c.l.b16 %v3309
      %v3356 = vunpack.c.h.b16 %v3309
      %v3357 = vunpack.c.l.b16 %v3310
      %v3358 = vunpack.c.h.b16 %v3310
      %v3359 = vpack.c.b16 %v3327, %v3327
      %v3360 = vpack.c.b16 %v3328, %v3328
      %v3361 = vpack.c.b16 %v3329, %v3329
      %v3362 = vpack.c.b16 %v3330, %v3330
      %v3363 = vpack.c.b16 %v3331, %v3331
      %v3364 = vpack.c.b16 %v3332, %v3332
      %v3365 = vpack.c.b16 %v3333, %v3333
      %v3366 = vpack.c.b16 %v3334, %v3334
      %v3367 = vpack.c.b16 %v3335, %v3335
      %v3368 = vpack.c.b16 %v3336, %v3336
      %v3369 = vpack.c.b16 %v3337, %v3337
      %v3370 = vpack.c.b16 %v3338, %v3338
      %v3371 = vpack.c.b16 %v3339, %v3339
      %v3372 = vpack.c.b16 %v3340, %v3340
      %v3373 = vpack.c.b16 %v3341, %v3341
      %v3374 = vpack.c.b16 %v3342, %v3342
      %v3375 = vpack.c.b16 %v3343, %v3343
      %v3376 = vpack.c.b16 %v3344, %v3344
      %v3377 = vpack.c.b16 %v3345, %v3345
      %v3378 = vpack.c.b16 %v3346, %v3346
      %v3379 = vpack.c.b16 %v3347, %v3347
      %v3380 = vpack.c.b16 %v3348, %v3348
      %v3381 = vpack.c.b16 %v3349, %v3349
      %v3382 = vpack.c.b16 %v3350, %v3350
      %v3383 = vpack.c.b16 %v3351, %v3351
      %v3384 = vpack.c.b16 %v3352, %v3352
      %v3385 = vpack.c.b16 %v3353, %v3353
      %v3386 = vpack.c.b16 %v3354, %v3354
      %v3387 = vpack.c.b16 %v3355, %v3355
      %v3388 = vpack.c.b16 %v3356, %v3356
      %v3389 = vpack.c.b16 %v3357, %v3357
      %v3390 = vpack.c.b16 %v3358, %v3358
      %vm3423 = vcmask 257024
      %3424 = vst.msk [vmem:[%s240] sm:$0xf] %vm3423, %v3359
      %3425 = vst.msk [vmem:[%s240 + $0x4] sm:$0xf] %vm3423, %v3360
      %3426 = vst.msk [vmem:[%s240 + $0x8] sm:$0xf] %vm3423, %v3361
      %3427 = vst.msk [vmem:[%s240 + $0xc] sm:$0xf] %vm3423, %v3362
      %3428 = vst.msk [vmem:[%s240 + $0x10] sm:$0xf] %vm3423, %v3363
      %3429 = vst.msk [vmem:[%s240 + $0x14] sm:$0xf] %vm3423, %v3364
      %3430 = vst.msk [vmem:[%s240 + $0x18] sm:$0xf] %vm3423, %v3365
      %3431 = vst.msk [vmem:[%s240 + $0x1c] sm:$0xf] %vm3423, %v3366
      %3432 = vst.msk [vmem:[%s240 + $0x20] sm:$0xf] %vm3423, %v3367
      %3433 = vst.msk [vmem:[%s240 + $0x24] sm:$0xf] %vm3423, %v3368
      %3434 = vst.msk [vmem:[%s240 + $0x28] sm:$0xf] %vm3423, %v3369
      %3435 = vst.msk [vmem:[%s240 + $0x2c] sm:$0xf] %vm3423, %v3370
      %3436 = vst.msk [vmem:[%s240 + $0x30] sm:$0xf] %vm3423, %v3371
      %3437 = vst.msk [vmem:[%s240 + $0x34] sm:$0xf] %vm3423, %v3372
      %3438 = vst.msk [vmem:[%s240 + $0x38] sm:$0xf] %vm3423, %v3373
      %3439 = vst.msk [vmem:[%s240 + $0x3c] sm:$0xf] %vm3423, %v3374
      %3440 = vst.msk [vmem:[%s240 + $0x40] sm:$0xf] %vm3423, %v3375
      %3441 = vst.msk [vmem:[%s240 + $0x44] sm:$0xf] %vm3423, %v3376
      %3442 = vst.msk [vmem:[%s240 + $0x48] sm:$0xf] %vm3423, %v3377
      %3443 = vst.msk [vmem:[%s240 + $0x4c] sm:$0xf] %vm3423, %v3378
      %3444 = vst.msk [vmem:[%s240 + $0x50] sm:$0xf] %vm3423, %v3379
      %3445 = vst.msk [vmem:[%s240 + $0x54] sm:$0xf] %vm3423, %v3380
      %3446 = vst.msk [vmem:[%s240 + $0x58] sm:$0xf] %vm3423, %v3381
      %3447 = vst.msk [vmem:[%s240 + $0x5c] sm:$0xf] %vm3423, %v3382
      %3448 = vst.msk [vmem:[%s240 + $0x60] sm:$0xf] %vm3423, %v3383
      %3449 = vst.msk [vmem:[%s240 + $0x64] sm:$0xf] %vm3423, %v3384
      %3450 = vst.msk [vmem:[%s240 + $0x68] sm:$0xf] %vm3423, %v3385
      %3451 = vst.msk [vmem:[%s240 + $0x6c] sm:$0xf] %vm3423, %v3386
      %3452 = vst.msk [vmem:[%s240 + $0x70] sm:$0xf] %vm3423, %v3387
      %3453 = vst.msk [vmem:[%s240 + $0x74] sm:$0xf] %vm3423, %v3388
      %3454 = vst.msk [vmem:[%s240 + $0x78] sm:$0xf] %vm3423, %v3389
      %3455 = vst.msk [vmem:[%s240 + $0x7c] sm:$0xf] %vm3423, %v3390
      %p3456 = scmp.lt.s32.totalorder %s18, 1
      %s3457 = scalar_select %p3456, %s18, 1
      %p3458 = scmp.lt.s32.totalorder %s19, 1
      %s3459 = scalar_select %p3458, %s19, 1
      %s3460 = smul.addr %s3459, 32
      %s3461 = smul.addr %s3457, 64
      %s3462 = sadd.s32 %s3460, %s3461
      %s3463 = smul.addr %s3462, 4
      %s3464 = scalar_lea.vmem %s3, %s3463
      // Predicated region
      $region33: #{mfm0_forward.4} parent=31 // pred_check
        %p3465 = pneg %p126
      $region34: #{mfm0_forward.4} parent=31 // pred_check_branch
        %3467 = sbr.rel (%p3465) target = $region36
      $region35: #{mfm0_forward.4} parent=31 // pred_region
        _
      $region36: #{mfm0_forward.4} parent=31 // pred_fallthru
        _
    $region32: #{mfm0_forward.4} parent=5 // pred_fallthru
      _
    %p3468 = scmp.le.s32.totalorder 2, %s9
    // Predicated region
    $region37: #{mfm0_forward.4} parent=5 // pred_check
      %p3469 = pneg %p3468
    $region38: #{mfm0_forward.4} parent=5 // pred_check_branch
      %3471 = sbr.rel (%p3469) target = $region40
    $region39: #{mfm0_forward.4} parent=5 // pred_region
      %s3472 = ssub.s32 %s9, 2
      // Predicated region
      $region41: #{mfm0_forward.4} parent=39 // pred_check
        %p3473 = pneg %p132
      $region42: #{mfm0_forward.4} parent=39 // pred_check_branch
        %3475 = sbr.rel (%p3473) target = $region44
      $region43: #{mfm0_forward.4} parent=39 // pred_region
        %p3476 = scmp.lt.s32.totalorder %s20, 1
        %s3477 = scalar_select %p3476, %s20, 1
        %p3478 = scmp.lt.s32.totalorder %s21, 1
        %s3479 = scalar_select %p3478, %s21, 1
        %s3480 = smul.addr %s3479, 32
        %s3481 = smul.addr %s3477, 64
        %s3482 = sadd.s32 %s3480, %s3481
        %s3483 = smul.addr %s3482, 4
        %s3484 = scalar_lea.vmem %s3, %s3483
      $region44: #{mfm0_forward.4} parent=39 // pred_fallthru
        _
    $region40: #{mfm0_forward.4} parent=5 // pred_fallthru
      _
  $region6: #{mfm0_forward.4} parent=0 // loop_footer
    %s13 = sadd.s32 1, %s9
  $region7: #{mfm0_forward.4} parent=0 // loop_footer_branch
    %8 = sbr.rel target = $region3
  $region8: #{mfm0_forward.4} parent=0 // loop_exit
    _

// kernel: mfm0_forward.6
$region0: #{mfm0_forward.6}
  #allocation0 [shape = 'u32[]', space=smem, size = 0x4, offset = 0x4, fixed_abs, tag = 'smem constant byte address 0x4 - core index']
  #allocation1 [shape = 'u32[144,128]{1,0:T(1,128)}', space=vmem, size = 0x12000, scoped, tag = 'internal scratch']
  %s0 = inlined_call_operand.vmem [shape: bf16[2,512,32], index: 0, kind: input, shape index: {}]
  %s1 = inlined_call_operand.vmem [shape: bf16[2,32,8], index: 1, kind: input, shape index: {}]
  %s2 = inlined_call_operand.vmem [shape: f32[2,1,8], index: 2, kind: input, shape index: {}]
  %s3 = inlined_call_operand.vmem [shape: bf16[2,8,32], index: 3, kind: input, shape index: {}]
  %s4 = inlined_call_operand.vmem [shape: f32[2,1,32], index: 4, kind: input, shape index: {}]
  %s5 = inlined_call_operand.vmem [shape: bf16[2,512,32], index: 5, kind: output, shape index: {}]
  %s6 = sld [smem:[#allocation0]]
  $region53: #{mfm0_forward.6} parent=0
    _
  %s8 = ssub.s32 1, %s6
  %s9 = scalar_select 0, %s8, %s6
  loop: start=0, step=1, limit=10
  $region2: #{mfm0_forward.6} parent=0 // loop_pre_header
    _
  $region3: #{mfm0_forward.6} parent=0 // loop_header
    %s11 = sphi 0, %s15
    %p12 = scmp.ge.s32.totalorder %s11, 10
    %s18 = sphi 0, %s30
    %s19 = sphi 0, %s26
    %s20 = sphi 0, %s18
    %s21 = sphi 0, %s19
    %s22 = sphi 0, %s20
    %s23 = sphi 0, %s21
    %s35 = sphi 0, %s37
    %s38 = sphi 0, %s35
    %s39 = sphi 0, %s38
    %s55 = sphi 0, %s39
    %s61 = sphi 0, %s63
    %s64 = sphi 0, %s61
    %s65 = sphi 0, %s64
    %s81 = sphi 0, %s65
    %s87 = sphi 0, %s89
    %s90 = sphi 0, %s87
    %s91 = sphi 0, %s90
    %s107 = sphi 0, %s91
    %s113 = sphi 0, %s115
    %s116 = sphi 0, %s113
    %s117 = sphi 0, %s116
    %s133 = sphi 0, %s117
    %s139 = sphi 0, %s141
    %s142 = sphi 0, %s139
    %s143 = sphi 0, %s142
    %s159 = sphi 0, %s143
    %s167 = sphi 0, %s169
    %s170 = sphi 0, %s167
    %s171 = sphi 0, %s170
    %s187 = sphi 0, %s171
  $region4: #{mfm0_forward.6} parent=0 // loop_header_branch
    %14 = sbr.rel (%p12) target = $region8
  $region5: #{mfm0_forward.6} parent=0 // loop_body
    %s16 = ssub.s32 %s11, 1
    %s17 = ssub.s32 %s11, 2
    %s24 = sadd.s32 1, %s19
    %p25 = scmp.ge.s32.totalorder %s24, 4
    %s26 = scalar_select %p25, 0, %s24
    %s27 = sadd.s32 1, %s18
    %s28 = scalar_select %p25, %s27, %s18
    %p29 = scmp.ge.s32.totalorder %s28, 2
    %s30 = scalar_select %p29, 0, %s28
    %s31 = ssub.s32 %s18, %s30
    %s32 = ssub.s32 %s19, %s26
    %s33 = sor.u32 %s31, %s32
    %p34 = scmp.eq.s32.totalorder %s33, 0
    %s36 = sadd.s32 %s35, 1
    %s37 = scalar_select %p34, %s35, %s36
    %p40 = pneg %p34
    %p41 = scmp.eq.s32.totalorder %s11, 7
    %p42 = por %p40, %p41
    %p43 = scmp.ne.s32.totalorder %s35, %s38
    %p44 = scmp.eq.s32.totalorder %s11, 0
    %p45 = por %p43, %p44
    %p46 = scmp.ne.s32.totalorder %s35, %s38
    %p47 = scmp.eq.s32.totalorder %s16, 7
    %p48 = por %p46, %p47
    %p49 = scmp.ne.s32.totalorder %s38, %s39
    %p50 = scmp.eq.s32.totalorder %s16, 0
    %p51 = por %p49, %p50
    %p52 = scmp.ne.s32.totalorder %s38, %s39
    %p53 = scmp.eq.s32.totalorder %s17, 7
    %p54 = por %p52, %p53
    %p56 = scmp.ne.s32.totalorder %s39, %s55
    %p57 = scmp.eq.s32.totalorder %s17, 0
    %p58 = por %p56, %p57
    %s59 = ssub.s32 %s18, %s30
    %p60 = scmp.eq.s32.totalorder %s59, 0
    %s62 = sadd.s32 %s61, 1
    %s63 = scalar_select %p60, %s61, %s62
    %p66 = pneg %p60
    %p67 = scmp.eq.s32.totalorder %s11, 7
    %p68 = por %p66, %p67
    %p69 = scmp.ne.s32.totalorder %s61, %s64
    %p70 = scmp.eq.s32.totalorder %s11, 0
    %p71 = por %p69, %p70
    %p72 = scmp.ne.s32.totalorder %s61, %s64
    %p73 = scmp.eq.s32.totalorder %s16, 7
    %p74 = por %p72, %p73
    %p75 = scmp.ne.s32.totalorder %s64, %s65
    %p76 = scmp.eq.s32.totalorder %s16, 0
    %p77 = por %p75, %p76
    %p78 = scmp.ne.s32.totalorder %s64, %s65
    %p79 = scmp.eq.s32.totalorder %s17, 7
    %p80 = por %p78, %p79
    %p82 = scmp.ne.s32.totalorder %s65, %s81
    %p83 = scmp.eq.s32.totalorder %s17, 0
    %p84 = por %p82, %p83
    %s85 = ssub.s32 %s18, %s30
    %p86 = scmp.eq.s32.totalorder %s85, 0
    %s88 = sadd.s32 %s87, 1
    %s89 = scalar_select %p86, %s87, %s88
    %p92 = pneg %p86
    %p93 = scmp.eq.s32.totalorder %s11, 7
    %p94 = por %p92, %p93
    %p95 = scmp.ne.s32.totalorder %s87, %s90
    %p96 = scmp.eq.s32.totalorder %s11, 0
    %p97 = por %p95, %p96
    %p98 = scmp.ne.s32.totalorder %s87, %s90
    %p99 = scmp.eq.s32.totalorder %s16, 7
    %p100 = por %p98, %p99
    %p101 = scmp.ne.s32.totalorder %s90, %s91
    %p102 = scmp.eq.s32.totalorder %s16, 0
    %p103 = por %p101, %p102
    %p104 = scmp.ne.s32.totalorder %s90, %s91
    %p105 = scmp.eq.s32.totalorder %s17, 7
    %p106 = por %p104, %p105
    %p108 = scmp.ne.s32.totalorder %s91, %s107
    %p109 = scmp.eq.s32.totalorder %s17, 0
    %p110 = por %p108, %p109
    %s111 = ssub.s32 %s18, %s30
    %p112 = scmp.eq.s32.totalorder %s111, 0
    %s114 = sadd.s32 %s113, 1
    %s115 = scalar_select %p112, %s113, %s114
    %p118 = pneg %p112
    %p119 = scmp.eq.s32.totalorder %s11, 7
    %p120 = por %p118, %p119
    %p121 = scmp.ne.s32.totalorder %s113, %s116
    %p122 = scmp.eq.s32.totalorder %s11, 0
    %p123 = por %p121, %p122
    %p124 = scmp.ne.s32.totalorder %s113, %s116
    %p125 = scmp.eq.s32.totalorder %s16, 7
    %p126 = por %p124, %p125
    %p127 = scmp.ne.s32.totalorder %s116, %s117
    %p128 = scmp.eq.s32.totalorder %s16, 0
    %p129 = por %p127, %p128
    %p130 = scmp.ne.s32.totalorder %s116, %s117
    %p131 = scmp.eq.s32.totalorder %s17, 7
    %p132 = por %p130, %p131
    %p134 = scmp.ne.s32.totalorder %s117, %s133
    %p135 = scmp.eq.s32.totalorder %s17, 0
    %p136 = por %p134, %p135
    %s137 = ssub.s32 %s18, %s30
    %p138 = scmp.eq.s32.totalorder %s137, 0
    %s140 = sadd.s32 %s139, 1
    %s141 = scalar_select %p138, %s139, %s140
    %p144 = pneg %p138
    %p145 = scmp.eq.s32.totalorder %s11, 7
    %p146 = por %p144, %p145
    %p147 = scmp.ne.s32.totalorder %s139, %s142
    %p148 = scmp.eq.s32.totalorder %s11, 0
    %p149 = por %p147, %p148
    %p150 = scmp.ne.s32.totalorder %s139, %s142
    %p151 = scmp.eq.s32.totalorder %s16, 7
    %p152 = por %p150, %p151
    %p153 = scmp.ne.s32.totalorder %s142, %s143
    %p154 = scmp.eq.s32.totalorder %s16, 0
    %p155 = por %p153, %p154
    %p156 = scmp.ne.s32.totalorder %s142, %s143
    %p157 = scmp.eq.s32.totalorder %s17, 7
    %p158 = por %p156, %p157
    %p160 = scmp.ne.s32.totalorder %s143, %s159
    %p161 = scmp.eq.s32.totalorder %s17, 0
    %p162 = por %p160, %p161
    %s163 = ssub.s32 %s18, %s30
    %s164 = ssub.s32 %s19, %s26
    %s165 = sor.u32 %s163, %s164
    %p166 = scmp.eq.s32.totalorder %s165, 0
    %s168 = sadd.s32 %s167, 1
    %s169 = scalar_select %p166, %s167, %s168
    %p172 = pneg %p166
    %p173 = scmp.eq.s32.totalorder %s11, 7
    %p174 = por %p172, %p173
    %p175 = scmp.ne.s32.totalorder %s167, %s170
    %p176 = scmp.eq.s32.totalorder %s11, 0
    %p177 = por %p175, %p176
    %p178 = scmp.ne.s32.totalorder %s167, %s170
    %p179 = scmp.eq.s32.totalorder %s16, 7
    %p180 = por %p178, %p179
    %p181 = scmp.ne.s32.totalorder %s170, %s171
    %p182 = scmp.eq.s32.totalorder %s16, 0
    %p183 = por %p181, %p182
    %p184 = scmp.ne.s32.totalorder %s170, %s171
    %p185 = scmp.eq.s32.totalorder %s17, 7
    %p186 = por %p184, %p185
    %p188 = scmp.ne.s32.totalorder %s171, %s187
    %p189 = scmp.eq.s32.totalorder %s17, 0
    %p190 = por %p188, %p189
    %p191 = scmp.le.s32.totalorder 1, %s11
    %p192 = scmp.lt.s32.totalorder %s11, 9
    %p193 = pnand %p191, %p192
    %p194 = pneg %p193
    // Predicated region
    $region9: #{mfm0_forward.6} parent=5 // pred_check
      _
    $region10: #{mfm0_forward.6} parent=5 // pred_check_branch
      %196 = sbr.rel (%p193) target = $region12
    $region11: #{mfm0_forward.6} parent=5 // pred_region
      %s197 = ssub.s32 %s11, 1
    $region12: #{mfm0_forward.6} parent=5 // pred_fallthru
      _
    %p198 = scmp.lt.s32.totalorder %s11, 8
    // Predicated region
    $region13: #{mfm0_forward.6} parent=5 // pred_check
      %p199 = pneg %p198
    $region14: #{mfm0_forward.6} parent=5 // pred_check_branch
      %201 = sbr.rel (%p199) target = $region16
    $region15: #{mfm0_forward.6} parent=5 // pred_region
      // Predicated region
      $region17: #{mfm0_forward.6} parent=15 // pred_check
        %p202 = pneg %p45
      $region18: #{mfm0_forward.6} parent=15 // pred_check_branch
        %204 = sbr.rel (%p202) target = $region20
      $region19: #{mfm0_forward.6} parent=15 // pred_region
        %s205 = smul.u32 16, %s19
        %p206 = scmp.lt.s32.totalorder %s18, 1
        %s207 = scalar_select %p206, %s18, 1
        %p208 = scmp.lt.s32.totalorder %s205, 63
        %s209 = scalar_select %p208, %s205, 63
        %s210 = smul.addr %s207, 64
        %s211 = sadd.s32 %s209, %s210
        %s212 = smul.addr %s211, 4
        %s213 = scalar_lea.vmem %s0, %s212
        %s214 = smul.u32 16, %s19
      $region20: #{mfm0_forward.6} parent=15 // pred_fallthru
        _
      // Predicated region
      $region21: #{mfm0_forward.6} parent=15 // pred_check
        %p215 = pneg %p71
      $region22: #{mfm0_forward.6} parent=15 // pred_check_branch
        %217 = sbr.rel (%p215) target = $region24
      $region23: #{mfm0_forward.6} parent=15 // pred_region
        %p218 = scmp.lt.s32.totalorder %s18, 1
        %s219 = scalar_select %p218, %s18, 1
        %s220 = smul.addr %s219, 4
        %s221 = smul.addr %s220, 4
        %s222 = scalar_lea.vmem %s1, %s221
      $region24: #{mfm0_forward.6} parent=15 // pred_fallthru
        _
      // Predicated region
      $region25: #{mfm0_forward.6} parent=15 // pred_check
        %p223 = pneg %p97
      $region26: #{mfm0_forward.6} parent=15 // pred_check_branch
        %225 = sbr.rel (%p223) target = $region28
      $region27: #{mfm0_forward.6} parent=15 // pred_region
        %p226 = scmp.lt.s32.totalorder %s18, 1
        %s227 = scalar_select %p226, %s18, 1
        %s228 = scalar_lea.vmem %s2, %s227
      $region28: #{mfm0_forward.6} parent=15 // pred_fallthru
        _
      // Predicated region
      $region29: #{mfm0_forward.6} parent=15 // pred_check
        %p229 = pneg %p123
      $region30: #{mfm0_forward.6} parent=15 // pred_check_branch
        %231 = sbr.rel (%p229) target = $region32
      $region31: #{mfm0_forward.6} parent=15 // pred_region
        %p232 = scmp.lt.s32.totalorder %s18, 1
        %s233 = scalar_select %p232, %s18, 1
        %s234 = smul.addr %s233, 4
        %s235 = scalar_lea.vmem %s3, %s234
      $region32: #{mfm0_forward.6} parent=15 // pred_fallthru
        _
      // Predicated region
      $region33: #{mfm0_forward.6} parent=15 // pred_check
        %p236 = pneg %p149
      $region34: #{mfm0_forward.6} parent=15 // pred_check_branch
        %238 = sbr.rel (%p236) target = $region36
      $region35: #{mfm0_forward.6} parent=15 // pred_region
        %p239 = scmp.lt.s32.totalorder %s18, 1
        %s240 = scalar_select %p239, %s18, 1
        %s241 = scalar_lea.vmem %s4, %s240
      $region36: #{mfm0_forward.6} parent=15 // pred_fallthru
        _
    $region16: #{mfm0_forward.6} parent=5 // pred_fallthru
      _
    %p242 = scmp.le.s32.totalorder 1, %s11
    %p243 = scmp.lt.s32.totalorder %s11, 9
    %p244 = pnand %p242, %p243
    %p245 = pneg %p244
    // Predicated region
    $region37: #{mfm0_forward.6} parent=5 // pred_check
      _
    $region38: #{mfm0_forward.6} parent=5 // pred_check_branch
      %247 = sbr.rel (%p244) target = $region40
    $region39: #{mfm0_forward.6} parent=5 // pred_region
      %s248 = ssub.s32 %s11, 1
      %s249 = smul.u32 16, %s21
      %p250 = scmp.lt.s32.totalorder %s20, 1
      %s251 = scalar_select %p250, %s20, 1
      %p252 = scmp.lt.s32.totalorder %s249, 63
      %s253 = scalar_select %p252, %s249, 63
      %s254 = smul.addr %s251, 64
      %s255 = sadd.s32 %s253, %s254
      %s256 = smul.addr %s255, 4
      %s257 = scalar_lea.vmem %s0, %s256
      %p258 = pneg %p51
      %p259 = pneg %p48
      %p260 = scmp.lt.s32.totalorder %s20, 1
      %s261 = scalar_select %p260, %s20, 1
      %s262 = smul.addr %s261, 4
      %s263 = smul.addr %s262, 4
      %s264 = scalar_lea.vmem %s1, %s263
      %p265 = pneg %p77
      %p266 = pneg %p74
      %p267 = scmp.lt.s32.totalorder %s20, 1
      %s268 = scalar_select %p267, %s20, 1
      %s269 = scalar_lea.vmem %s2, %s268
      %p270 = pneg %p103
      %p271 = pneg %p100
      %p272 = scmp.lt.s32.totalorder %s20, 1
      %s273 = scalar_select %p272, %s20, 1
      %s274 = smul.addr %s273, 4
      %s275 = scalar_lea.vmem %s3, %s274
      %p276 = pneg %p129
      %p277 = pneg %p126
      %p278 = scmp.lt.s32.totalorder %s20, 1
      %s279 = scalar_select %p278, %s20, 1
      %s280 = scalar_lea.vmem %s4, %s279
      %p281 = pneg %p155
      %p282 = pneg %p152
      %p283 = pneg %p183
      %p284 = pneg %p180
      %s285 = smul.u32 16, %s21
      %p286 = scmp.lt.s32.totalorder %s20, 1
      %s287 = scalar_select %p286, %s20, 1
      %p288 = scmp.lt.s32.totalorder %s285, 63
      %s289 = scalar_select %p288, %s285, 63
      %s290 = smul.addr %s287, 64
      %s291 = sadd.s32 %s289, %s290
      %s292 = smul.addr %s291, 4
      %s293 = scalar_lea.vmem %s5, %s292
      %s294 = smul.u32 16, %s21
      %p295 = scmp.lt.s32.totalorder %s20, 1
      %s296 = scalar_select %p295, %s20, 1
      %p297 = scmp.lt.s32.totalorder %s294, 63
      %s298 = scalar_select %p297, %s294, 63
      %s299 = smul.addr %s296, 64
      %s300 = sadd.s32 %s298, %s299
      %s301 = smul.addr %s300, 4
      %s302 = scalar_lea.vmem %s0, %s301
      %s303 = smul.u32 16, %s21
      %p304 = scmp.lt.s32.totalorder %s20, 1
      %s305 = scalar_select %p304, %s20, 1
      %s306 = smul.addr %s305, 4
      %s307 = smul.addr %s306, 4
      %s308 = scalar_lea.vmem %s1, %s307
      %p309 = scmp.lt.s32.totalorder %s20, 1
      %s310 = scalar_select %p309, %s20, 1
      %s311 = scalar_lea.vmem %s2, %s310
      %p312 = scmp.lt.s32.totalorder %s20, 1
      %s313 = scalar_select %p312, %s20, 1
      %s314 = smul.addr %s313, 4
      %s315 = scalar_lea.vmem %s3, %s314
      %p316 = scmp.lt.s32.totalorder %s20, 1
      %s317 = scalar_select %p316, %s20, 1
      %s318 = scalar_lea.vmem %s4, %s317
      %s319 = smul.u32 16, %s21
      %p320 = scmp.lt.s32.totalorder %s20, 1
      %s321 = scalar_select %p320, %s20, 1
      %p322 = scmp.lt.s32.totalorder %s319, 63
      %s323 = scalar_select %p322, %s319, 63
      %s324 = smul.addr %s321, 64
      %s325 = sadd.s32 %s323, %s324
      %s326 = smul.addr %s325, 4
      %s327 = scalar_lea.vmem %s5, %s326
      %s328 = smul.u32 16, %s21
      %v330 = vld [vmem:[%s302] sm:$0xf]
      %v331 = vld [vmem:[%s302 + $0x4] sm:$0xf]
      %v332 = vld [vmem:[%s302 + $0x8] sm:$0xf]
      %v333 = vld [vmem:[%s302 + $0xc] sm:$0xf]
      %v334 = vld [vmem:[%s302 + $0x10] sm:$0xf]
      %v335 = vld [vmem:[%s302 + $0x14] sm:$0xf]
      %v336 = vld [vmem:[%s302 + $0x18] sm:$0xf]
      %v337 = vld [vmem:[%s302 + $0x1c] sm:$0xf]
      %v338 = vld [vmem:[%s302 + $0x20] sm:$0xf]
      %v339 = vld [vmem:[%s302 + $0x24] sm:$0xf]
      %v340 = vld [vmem:[%s302 + $0x28] sm:$0xf]
      %v341 = vld [vmem:[%s302 + $0x2c] sm:$0xf]
      %v342 = vld [vmem:[%s302 + $0x30] sm:$0xf]
      %v343 = vld [vmem:[%s302 + $0x34] sm:$0xf]
      %v344 = vld [vmem:[%s302 + $0x38] sm:$0xf]
      %v345 = vld [vmem:[%s302 + $0x3c] sm:$0xf]
      %v346 = vld [vmem:[%s308] sm:$0xf]
      %v347 = vld [vmem:[%s308 + $0x4] sm:$0xf]
      %v348 = vld [vmem:[%s308 + $0x8] sm:$0xf]
      %v349 = vld [vmem:[%s308 + $0xc] sm:$0xf]
      %v350 = vld [vmem:[%s311] sm:$0x1]
      %v352 = vlaneseq
      %v353 = vshrl.u32 %v352, 7
      %v354 = vsub.s32 0, %v353
      %v355 = vrot.slane %v350, %v354
      %v373 = vunpack.c.l.b16 %v330
      %v374 = vunpack.c.l.b16 %v331
      %v375 = vunpack.c.l.b16 %v332
      %v376 = vunpack.c.l.b16 %v333
      %v377 = vunpack.c.l.b16 %v334
      %v378 = vunpack.c.l.b16 %v335
      %v379 = vunpack.c.l.b16 %v336
      %v380 = vunpack.c.l.b16 %v337
      %v381 = vunpack.c.l.b16 %v338
      %v382 = vunpack.c.l.b16 %v339
      %v383 = vunpack.c.l.b16 %v340
      %v384 = vunpack.c.l.b16 %v341
      %v385 = vunpack.c.l.b16 %v342
      %v386 = vunpack.c.l.b16 %v343
      %v387 = vunpack.c.l.b16 %v344
      %v388 = vunpack.c.l.b16 %v345
      %v389 = vpack.c.b16 %v374, %v373
      %v390 = vpack.c.b16 %v376, %v375
      %v391 = vpack.c.b16 %v378, %v377
      %v392 = vpack.c.b16 %v380, %v379
      %v393 = vpack.c.b16 %v382, %v381
      %v394 = vpack.c.b16 %v384, %v383
      %v395 = vpack.c.b16 %v386, %v385
      %v396 = vpack.c.b16 %v388, %v387
      %v401 = vunpack.c.l.b16 %v346
      %v402 = vunpack.c.l.b16 %v347
      %v403 = vunpack.c.l.b16 %v348
      %v404 = vunpack.c.l.b16 %v349
      %v405 = vpack.c.b16 %v402, %v401
      %v406 = vpack.c.b16 %v404, %v403
      %vm409 = vcmask 261120
      %v411 = vsel %vm409, %v389, 0
      %v414 = vsel %vm409, %v390, 0
      %v417 = vsel %vm409, %v391, 0
      %v420 = vsel %vm409, %v392, 0
      %v423 = vsel %vm409, %v393, 0
      %v426 = vsel %vm409, %v394, 0
      %v429 = vsel %vm409, %v395, 0
      %v432 = vsel %vm409, %v396, 0
      %434 = vmatprep.subr.bf16.mxu0 0
      %435 = vmatpush1.bf16.msra.mxu0 0
      %436 = vmatprep.subr.bf16.mxu0 0
      %437 = vmatpush1.bf16.msra.mxu0 0
      %438 = vmatprep.subr.bf16.mxu0 0
      %439 = vmatpush1.bf16.msra.mxu0 0
      %440 = vmatprep.subr.bf16.mxu0 0
      %441 = vmatpush1.bf16.msra.mxu0 0
      %442 = vmatprep.subr.bf16.mxu0 0
      %443 = vmatpush1.bf16.msra.mxu0 0
      %444 = vmatprep.subr.bf16.mxu0 0
      %445 = vmatpush1.bf16.msra.mxu0 0
      %446 = vmatprep.subr.bf16.mxu0 0
      %447 = vmatpush1.bf16.msra.mxu0 %v406
      %448 = vmatprep.subr.bf16.mxu0 0
      %449 = vmatpush1.bf16.msra.mxu0 %v405
      %450 = vmatprep.subr.bf16.mxu0 0
      %451 = vmatpush2.bf16.msra.mxu0 0
      %452 = vmatprep.subr.bf16.mxu0 0
      %453 = vmatpush2.bf16.msra.mxu0 0
      %454 = vmatprep.subr.bf16.mxu0 0
      %455 = vmatpush2.bf16.msra.mxu0 0
      %456 = vmatprep.subr.bf16.mxu0 0
      %457 = vmatpush2.bf16.msra.mxu0 0
      %458 = vmatprep.subr.bf16.mxu0 0
      %459 = vmatpush2.bf16.msra.mxu0 0
      %460 = vmatprep.subr.bf16.mxu0 0
      %461 = vmatpush2.bf16.msra.mxu0 0
      %462 = vmatprep.subr.bf16.mxu0 0
      %463 = vmatpush2.bf16.msra.mxu0 0
      %464 = vmatprep.subr.bf16.mxu0 0
      %465 = vmatpush2.bf16.msra.mxu0 0
      %466 = vmatprep.mubr.bf16.mxu0 0
      %467 = vmatmul.mubr.bf16.gmra.mxu0 %v411
      %v468 = vpop.f32.mrf.mxu0
      %v469 = vadd.f32 %v355, %v468
      %v470 = vpop.f32.mrf.mxu0
      %v471 = vpop.f32.mrf.mxu0
      %v472 = vadd.f32 %v355, %v471
      %v473 = vpop.f32.mrf.mxu0
      %474 = vmatprep.mubr.bf16.mxu0 0
      %475 = vmatmul.mubr.bf16.gmra.mxu0 %v414
      %v476 = vpop.f32.mrf.mxu0
      %v477 = vadd.f32 %v355, %v476
      %v478 = vpop.f32.mrf.mxu0
      %v479 = vpop.f32.mrf.mxu0
      %v480 = vadd.f32 %v355, %v479
      %v481 = vpop.f32.mrf.mxu0
      %482 = vmatprep.mubr.bf16.mxu0 0
      %483 = vmatmul.mubr.bf16.gmra.mxu0 %v417
      %v484 = vpop.f32.mrf.mxu0
      %v485 = vadd.f32 %v355, %v484
      %v486 = vpop.f32.mrf.mxu0
      %v487 = vpop.f32.mrf.mxu0
      %v488 = vadd.f32 %v355, %v487
      %v489 = vpop.f32.mrf.mxu0
      %490 = vmatprep.mubr.bf16.mxu0 0
      %491 = vmatmul.mubr.bf16.gmra.mxu0 %v420
      %v492 = vpop.f32.mrf.mxu0
      %v493 = vadd.f32 %v355, %v492
      %v494 = vpop.f32.mrf.mxu0
      %v495 = vpop.f32.mrf.mxu0
      %v496 = vadd.f32 %v355, %v495
      %v497 = vpop.f32.mrf.mxu0
      %498 = vmatprep.mubr.bf16.mxu0 0
      %499 = vmatmul.mubr.bf16.gmra.mxu0 %v423
      %v500 = vpop.f32.mrf.mxu0
      %v501 = vadd.f32 %v355, %v500
      %v502 = vpop.f32.mrf.mxu0
      %v503 = vpop.f32.mrf.mxu0
      %v504 = vadd.f32 %v355, %v503
      %v505 = vpop.f32.mrf.mxu0
      %506 = vmatprep.mubr.bf16.mxu0 0
      %507 = vmatmul.mubr.bf16.gmra.mxu0 %v426
      %v508 = vpop.f32.mrf.mxu0
      %v509 = vadd.f32 %v355, %v508
      %v510 = vpop.f32.mrf.mxu0
      %v511 = vpop.f32.mrf.mxu0
      %v512 = vadd.f32 %v355, %v511
      %v513 = vpop.f32.mrf.mxu0
      %514 = vmatprep.mubr.bf16.mxu0 0
      %515 = vmatmul.mubr.bf16.gmra.mxu0 %v429
      %v516 = vpop.f32.mrf.mxu0
      %v517 = vadd.f32 %v355, %v516
      %v518 = vpop.f32.mrf.mxu0
      %v519 = vpop.f32.mrf.mxu0
      %v520 = vadd.f32 %v355, %v519
      %v521 = vpop.f32.mrf.mxu0
      %522 = vmatprep.mubr.bf16.mxu0 0
      %523 = vmatmul.mubr.bf16.gmra.mxu0 %v432
      %v524 = vpop.f32.mrf.mxu0
      %v525 = vadd.f32 %v355, %v524
      %v526 = vpop.f32.mrf.mxu0
      %v527 = vpop.f32.mrf.mxu0
      %v528 = vadd.f32 %v355, %v527
      %v529 = vpop.f32.mrf.mxu0
      %530 = vdwg.mxu0
      %v531 = vmax.f32 %v469, 0.0
      %v532 = vmax.f32 %v472, 0.0
      %v533 = vmax.f32 %v477, 0.0
      %v534 = vmax.f32 %v480, 0.0
      %v535 = vmax.f32 %v485, 0.0
      %v536 = vmax.f32 %v488, 0.0
      %v537 = vmax.f32 %v493, 0.0
      %v538 = vmax.f32 %v496, 0.0
      %v539 = vmax.f32 %v501, 0.0
      %v540 = vmax.f32 %v504, 0.0
      %v541 = vmax.f32 %v509, 0.0
      %v542 = vmax.f32 %v512, 0.0
      %v543 = vmax.f32 %v517, 0.0
      %v544 = vmax.f32 %v520, 0.0
      %v545 = vmax.f32 %v525, 0.0
      %v546 = vmax.f32 %v528, 0.0
      %v547 = vpack.c.bf16 %v532, %v531
      %v548 = vpack.c.bf16 %v534, %v533
      %v549 = vpack.c.bf16 %v536, %v535
      %v550 = vpack.c.bf16 %v538, %v537
      %v551 = vpack.c.bf16 %v540, %v539
      %v552 = vpack.c.bf16 %v542, %v541
      %v553 = vpack.c.bf16 %v544, %v543
      %v554 = vpack.c.bf16 %v546, %v545
      %v555 = vld [vmem:[%s315] sm:$0xf]
      %v556 = vld [vmem:[%s318] sm:$0x1]
      %v558 = vlaneseq
      %v559 = vshrl.u32 %v558, 7
      %v560 = vsub.s32 0, %v559
      %v561 = vrot.slane %v556, %v560
      %vm563 = vcmask 64512
      %v565 = vsel %vm563, %v547, 0
      %v568 = vsel %vm563, %v548, 0
      %v571 = vsel %vm563, %v549, 0
      %v574 = vsel %vm563, %v550, 0
      %v577 = vsel %vm563, %v551, 0
      %v580 = vsel %vm563, %v552, 0
      %v583 = vsel %vm563, %v553, 0
      %v586 = vsel %vm563, %v554, 0
      %vm588 = vcmask 1043456
      %v590 = vsel %vm588, %v555, 0
      %592 = vmatprep.subr.bf16.mxu0 0
      %593 = vmatpush1.bf16.msra.mxu0 0
      %594 = vmatprep.subr.bf16.mxu0 0
      %595 = vmatpush1.bf16.msra.mxu0 0
      %596 = vmatprep.subr.bf16.mxu0 0
      %597 = vmatpush1.bf16.msra.mxu0 0
      %598 = vmatprep.subr.bf16.mxu0 0
      %599 = vmatpush1.bf16.msra.mxu0 0
      %600 = vmatprep.subr.bf16.mxu0 0
      %601 = vmatpush1.bf16.msra.mxu0 0
      %602 = vmatprep.subr.bf16.mxu0 0
      %603 = vmatpush1.bf16.msra.mxu0 0
      %604 = vmatprep.subr.bf16.mxu0 0
      %605 = vmatpush1.bf16.msra.mxu0 0
      %606 = vmatprep.subr.bf16.mxu0 0
      %607 = vmatpush1.bf16.msra.mxu0 %v590
      %608 = vmatprep.subr.bf16.mxu0 0
      %609 = vmatpush2.bf16.msra.mxu0 0
      %610 = vmatprep.subr.bf16.mxu0 0
      %611 = vmatpush2.bf16.msra.mxu0 0
      %612 = vmatprep.subr.bf16.mxu0 0
      %613 = vmatpush2.bf16.msra.mxu0 0
      %614 = vmatprep.subr.bf16.mxu0 0
      %615 = vmatpush2.bf16.msra.mxu0 0
      %616 = vmatprep.subr.bf16.mxu0 0
      %617 = vmatpush2.bf16.msra.mxu0 0
      %618 = vmatprep.subr.bf16.mxu0 0
      %619 = vmatpush2.bf16.msra.mxu0 0
      %620 = vmatprep.subr.bf16.mxu0 0
      %621 = vmatpush2.bf16.msra.mxu0 0
      %622 = vmatprep.subr.bf16.mxu0 0
      %623 = vmatpush2.bf16.msra.mxu0 0
      %624 = vmatprep.mubr.bf16.mxu0 0
      %625 = vmatmul.mubr.bf16.gmra.mxu0 %v565
      %v626 = vpop.f32.mrf.mxu0
      %v627 = vadd.f32 %v561, %v626
      %v628 = vpop.f32.mrf.mxu0
      %v629 = vpop.f32.mrf.mxu0
      %v630 = vadd.f32 %v561, %v629
      %v631 = vpop.f32.mrf.mxu0
      %632 = vmatprep.mubr.bf16.mxu0 0
      %633 = vmatmul.mubr.bf16.gmra.mxu0 %v568
      %v634 = vpop.f32.mrf.mxu0
      %v635 = vadd.f32 %v561, %v634
      %v636 = vpop.f32.mrf.mxu0
      %v637 = vpop.f32.mrf.mxu0
      %v638 = vadd.f32 %v561, %v637
      %v639 = vpop.f32.mrf.mxu0
      %640 = vmatprep.mubr.bf16.mxu0 0
      %641 = vmatmul.mubr.bf16.gmra.mxu0 %v571
      %v642 = vpop.f32.mrf.mxu0
      %v643 = vadd.f32 %v561, %v642
      %v644 = vpop.f32.mrf.mxu0
      %v645 = vpop.f32.mrf.mxu0
      %v646 = vadd.f32 %v561, %v645
      %v647 = vpop.f32.mrf.mxu0
      %648 = vmatprep.mubr.bf16.mxu0 0
      %649 = vmatmul.mubr.bf16.gmra.mxu0 %v574
      %v650 = vpop.f32.mrf.mxu0
      %v651 = vadd.f32 %v561, %v650
      %v652 = vpop.f32.mrf.mxu0
      %v653 = vpop.f32.mrf.mxu0
      %v654 = vadd.f32 %v561, %v653
      %v655 = vpop.f32.mrf.mxu0
      %656 = vmatprep.mubr.bf16.mxu0 0
      %657 = vmatmul.mubr.bf16.gmra.mxu0 %v577
      %v658 = vpop.f32.mrf.mxu0
      %v659 = vadd.f32 %v561, %v658
      %v660 = vpop.f32.mrf.mxu0
      %v661 = vpop.f32.mrf.mxu0
      %v662 = vadd.f32 %v561, %v661
      %v663 = vpop.f32.mrf.mxu0
      %664 = vmatprep.mubr.bf16.mxu0 0
      %665 = vmatmul.mubr.bf16.gmra.mxu0 %v580
      %v666 = vpop.f32.mrf.mxu0
      %v667 = vadd.f32 %v561, %v666
      %v668 = vpop.f32.mrf.mxu0
      %v669 = vpop.f32.mrf.mxu0
      %v670 = vadd.f32 %v561, %v669
      %v671 = vpop.f32.mrf.mxu0
      %672 = vmatprep.mubr.bf16.mxu0 0
      %673 = vmatmul.mubr.bf16.gmra.mxu0 %v583
      %v674 = vpop.f32.mrf.mxu0
      %v675 = vadd.f32 %v561, %v674
      %v676 = vpop.f32.mrf.mxu0
      %v677 = vpop.f32.mrf.mxu0
      %v678 = vadd.f32 %v561, %v677
      %v679 = vpop.f32.mrf.mxu0
      %680 = vmatprep.mubr.bf16.mxu0 0
      %681 = vmatmul.mubr.bf16.gmra.mxu0 %v586
      %v682 = vpop.f32.mrf.mxu0
      %v683 = vadd.f32 %v561, %v682
      %v684 = vpop.f32.mrf.mxu0
      %v685 = vpop.f32.mrf.mxu0
      %v686 = vadd.f32 %v561, %v685
      %v687 = vpop.f32.mrf.mxu0
      %688 = vdwg.mxu0
      %v689 = vxor.u32 %v627, 2147483648
      %v690 = vxor.u32 %v630, 2147483648
      %v691 = vxor.u32 %v635, 2147483648
      %v692 = vxor.u32 %v638, 2147483648
      %v693 = vxor.u32 %v643, 2147483648
      %v694 = vxor.u32 %v646, 2147483648
      %v695 = vxor.u32 %v651, 2147483648
      %v696 = vxor.u32 %v654, 2147483648
      %v697 = vxor.u32 %v659, 2147483648
      %v698 = vxor.u32 %v662, 2147483648
      %v699 = vxor.u32 %v667, 2147483648
      %v700 = vxor.u32 %v670, 2147483648
      %v701 = vxor.u32 %v675, 2147483648
      %v702 = vxor.u32 %v678, 2147483648
      %v703 = vxor.u32 %v683, 2147483648
      %v704 = vxor.u32 %v686, 2147483648
      %v705 = vmul.f32 %v689, 1.442695
      %v706 = vpow.pop %v705
      %v707 = vmul.f32 %v690, 1.442695
      %v708 = vpow.pop %v707
      %v709 = vmul.f32 %v691, 1.442695
      %v710 = vpow.pop %v709
      %v711 = vmul.f32 %v692, 1.442695
      %v712 = vpow.pop %v711
      %v713 = vmul.f32 %v693, 1.442695
      %v714 = vpow.pop %v713
      %v715 = vmul.f32 %v694, 1.442695
      %v716 = vpow.pop %v715
      %v717 = vmul.f32 %v695, 1.442695
      %v718 = vpow.pop %v717
      %v719 = vmul.f32 %v696, 1.442695
      %v720 = vpow.pop %v719
      %v721 = vmul.f32 %v697, 1.442695
      %v722 = vpow.pop %v721
      %v723 = vmul.f32 %v698, 1.442695
      %v724 = vpow.pop %v723
      %v725 = vmul.f32 %v699, 1.442695
      %v726 = vpow.pop %v725
      %v727 = vmul.f32 %v700, 1.442695
      %v728 = vpow.pop %v727
      %v729 = vmul.f32 %v701, 1.442695
      %v730 = vpow.pop %v729
      %v731 = vmul.f32 %v702, 1.442695
      %v732 = vpow.pop %v731
      %v733 = vmul.f32 %v703, 1.442695
      %v734 = vpow.pop %v733
      %v735 = vmul.f32 %v704, 1.442695
      %v736 = vpow.pop %v735
      %v737 = vadd.f32 %v706, 1.0
      %v738 = vadd.f32 %v708, 1.0
      %v739 = vadd.f32 %v710, 1.0
      %v740 = vadd.f32 %v712, 1.0
      %v741 = vadd.f32 %v714, 1.0
      %v742 = vadd.f32 %v716, 1.0
      %v743 = vadd.f32 %v718, 1.0
      %v744 = vadd.f32 %v720, 1.0
      %v745 = vadd.f32 %v722, 1.0
      %v746 = vadd.f32 %v724, 1.0
      %v747 = vadd.f32 %v726, 1.0
      %v748 = vadd.f32 %v728, 1.0
      %v749 = vadd.f32 %v730, 1.0
      %v750 = vadd.f32 %v732, 1.0
      %v751 = vadd.f32 %v734, 1.0
      %v752 = vadd.f32 %v736, 1.0
      %v753 = vrcp.pop %v737
      %v754 = vmul.f32 1.0, %v753
      %v755 = vrcp.pop %v738
      %v756 = vmul.f32 1.0, %v755
      %v757 = vrcp.pop %v739
      %v758 = vmul.f32 1.0, %v757
      %v759 = vrcp.pop %v740
      %v760 = vmul.f32 1.0, %v759
      %v761 = vrcp.pop %v741
      %v762 = vmul.f32 1.0, %v761
      %v763 = vrcp.pop %v742
      %v764 = vmul.f32 1.0, %v763
      %v765 = vrcp.pop %v743
      %v766 = vmul.f32 1.0, %v765
      %v767 = vrcp.pop %v744
      %v768 = vmul.f32 1.0, %v767
      %v769 = vrcp.pop %v745
      %v770 = vmul.f32 1.0, %v769
      %v771 = vrcp.pop %v746
      %v772 = vmul.f32 1.0, %v771
      %v773 = vrcp.pop %v747
      %v774 = vmul.f32 1.0, %v773
      %v775 = vrcp.pop %v748
      %v776 = vmul.f32 1.0, %v775
      %v777 = vrcp.pop %v749
      %v778 = vmul.f32 1.0, %v777
      %v779 = vrcp.pop %v750
      %v780 = vmul.f32 1.0, %v779
      %v781 = vrcp.pop %v751
      %v782 = vmul.f32 1.0, %v781
      %v783 = vrcp.pop %v752
      %v784 = vmul.f32 1.0, %v783
      %v785 = vunpack.c.l.bf16 %v330
      %v786 = vunpack.c.l.bf16 %v331
      %v787 = vunpack.c.l.bf16 %v332
      %v788 = vunpack.c.l.bf16 %v333
      %v789 = vunpack.c.l.bf16 %v334
      %v790 = vunpack.c.l.bf16 %v335
      %v791 = vunpack.c.l.bf16 %v336
      %v792 = vunpack.c.l.bf16 %v337
      %v793 = vunpack.c.l.bf16 %v338
      %v794 = vunpack.c.l.bf16 %v339
      %v795 = vunpack.c.l.bf16 %v340
      %v796 = vunpack.c.l.bf16 %v341
      %v797 = vunpack.c.l.bf16 %v342
      %v798 = vunpack.c.l.bf16 %v343
      %v799 = vunpack.c.l.bf16 %v344
      %v800 = vunpack.c.l.bf16 %v345
      %v801 = vmul.f32 %v785, %v754
      %v802 = vmul.f32 %v786, %v756
      %v803 = vmul.f32 %v787, %v758
      %v804 = vmul.f32 %v788, %v760
      %v805 = vmul.f32 %v789, %v762
      %v806 = vmul.f32 %v790, %v764
      %v807 = vmul.f32 %v791, %v766
      %v808 = vmul.f32 %v792, %v768
      %v809 = vmul.f32 %v793, %v770
      %v810 = vmul.f32 %v794, %v772
      %v811 = vmul.f32 %v795, %v774
      %v812 = vmul.f32 %v796, %v776
      %v813 = vmul.f32 %v797, %v778
      %v814 = vmul.f32 %v798, %v780
      %v815 = vmul.f32 %v799, %v782
      %v816 = vmul.f32 %v800, %v784
      %v817 = vpack.c.bf16 %v802, %v801
      %v818 = vpack.c.bf16 %v804, %v803
      %v819 = vpack.c.bf16 %v806, %v805
      %v820 = vpack.c.bf16 %v808, %v807
      %v821 = vpack.c.bf16 %v810, %v809
      %v822 = vpack.c.bf16 %v812, %v811
      %v823 = vpack.c.bf16 %v814, %v813
      %v824 = vpack.c.bf16 %v816, %v815
      %v833 = vunpack.c.l.b16 %v817
      %v834 = vunpack.c.h.b16 %v817
      %v835 = vunpack.c.l.b16 %v818
      %v836 = vunpack.c.h.b16 %v818
      %v837 = vunpack.c.l.b16 %v819
      %v838 = vunpack.c.h.b16 %v819
      %v839 = vunpack.c.l.b16 %v820
      %v840 = vunpack.c.h.b16 %v820
      %v841 = vunpack.c.l.b16 %v821
      %v842 = vunpack.c.h.b16 %v821
      %v843 = vunpack.c.l.b16 %v822
      %v844 = vunpack.c.h.b16 %v822
      %v845 = vunpack.c.l.b16 %v823
      %v846 = vunpack.c.h.b16 %v823
      %v847 = vunpack.c.l.b16 %v824
      %v848 = vunpack.c.h.b16 %v824
      %v849 = vpack.c.b16 %v833, %v833
      %v850 = vpack.c.b16 %v834, %v834
      %v851 = vpack.c.b16 %v835, %v835
      %v852 = vpack.c.b16 %v836, %v836
      %v853 = vpack.c.b16 %v837, %v837
      %v854 = vpack.c.b16 %v838, %v838
      %v855 = vpack.c.b16 %v839, %v839
      %v856 = vpack.c.b16 %v840, %v840
      %v857 = vpack.c.b16 %v841, %v841
      %v858 = vpack.c.b16 %v842, %v842
      %v859 = vpack.c.b16 %v843, %v843
      %v860 = vpack.c.b16 %v844, %v844
      %v861 = vpack.c.b16 %v845, %v845
      %v862 = vpack.c.b16 %v846, %v846
      %v863 = vpack.c.b16 %v847, %v847
      %v864 = vpack.c.b16 %v848, %v848
      %vm881 = vcmask 257024
      %882 = vst.msk [vmem:[%s327] sm:$0xf] %vm881, %v849
      %883 = vst.msk [vmem:[%s327 + $0x4] sm:$0xf] %vm881, %v850
      %884 = vst.msk [vmem:[%s327 + $0x8] sm:$0xf] %vm881, %v851
      %885 = vst.msk [vmem:[%s327 + $0xc] sm:$0xf] %vm881, %v852
      %886 = vst.msk [vmem:[%s327 + $0x10] sm:$0xf] %vm881, %v853
      %887 = vst.msk [vmem:[%s327 + $0x14] sm:$0xf] %vm881, %v854
      %888 = vst.msk [vmem:[%s327 + $0x18] sm:$0xf] %vm881, %v855
      %889 = vst.msk [vmem:[%s327 + $0x1c] sm:$0xf] %vm881, %v856
      %890 = vst.msk [vmem:[%s327 + $0x20] sm:$0xf] %vm881, %v857
      %891 = vst.msk [vmem:[%s327 + $0x24] sm:$0xf] %vm881, %v858
      %892 = vst.msk [vmem:[%s327 + $0x28] sm:$0xf] %vm881, %v859
      %893 = vst.msk [vmem:[%s327 + $0x2c] sm:$0xf] %vm881, %v860
      %894 = vst.msk [vmem:[%s327 + $0x30] sm:$0xf] %vm881, %v861
      %895 = vst.msk [vmem:[%s327 + $0x34] sm:$0xf] %vm881, %v862
      %896 = vst.msk [vmem:[%s327 + $0x38] sm:$0xf] %vm881, %v863
      %897 = vst.msk [vmem:[%s327 + $0x3c] sm:$0xf] %vm881, %v864
      %s898 = smul.u32 16, %s21
      %p899 = scmp.lt.s32.totalorder %s20, 1
      %s900 = scalar_select %p899, %s20, 1
      %p901 = scmp.lt.s32.totalorder %s898, 63
      %s902 = scalar_select %p901, %s898, 63
      %s903 = smul.addr %s900, 64
      %s904 = sadd.s32 %s902, %s903
      %s905 = smul.addr %s904, 4
      %s906 = scalar_lea.vmem %s5, %s905
      // Predicated region
      $region41: #{mfm0_forward.6} parent=39 // pred_check
        %p907 = pneg %p180
      $region42: #{mfm0_forward.6} parent=39 // pred_check_branch
        %909 = sbr.rel (%p907) target = $region44
      $region43: #{mfm0_forward.6} parent=39 // pred_region
        %s910 = smul.u32 16, %s21
      $region44: #{mfm0_forward.6} parent=39 // pred_fallthru
        _
    $region40: #{mfm0_forward.6} parent=5 // pred_fallthru
      _
    %p911 = scmp.le.s32.totalorder 2, %s11
    // Predicated region
    $region45: #{mfm0_forward.6} parent=5 // pred_check
      %p912 = pneg %p911
    $region46: #{mfm0_forward.6} parent=5 // pred_check_branch
      %914 = sbr.rel (%p912) target = $region48
    $region47: #{mfm0_forward.6} parent=5 // pred_region
      %s915 = ssub.s32 %s11, 2
      // Predicated region
      $region49: #{mfm0_forward.6} parent=47 // pred_check
        %p916 = pneg %p186
      $region50: #{mfm0_forward.6} parent=47 // pred_check_branch
        %918 = sbr.rel (%p916) target = $region52
      $region51: #{mfm0_forward.6} parent=47 // pred_region
        %s919 = smul.u32 16, %s23
        %p920 = scmp.lt.s32.totalorder %s22, 1
        %s921 = scalar_select %p920, %s22, 1
        %p922 = scmp.lt.s32.totalorder %s919, 63
        %s923 = scalar_select %p922, %s919, 63
        %s924 = smul.addr %s921, 64
        %s925 = sadd.s32 %s923, %s924
        %s926 = smul.addr %s925, 4
        %s927 = scalar_lea.vmem %s5, %s926
      $region52: #{mfm0_forward.6} parent=47 // pred_fallthru
        _
    $region48: #{mfm0_forward.6} parent=5 // pred_fallthru
      _
  $region6: #{mfm0_forward.6} parent=0 // loop_footer
    %s15 = sadd.s32 1, %s11
  $region7: #{mfm0_forward.6} parent=0 // loop_footer_branch
    %10 = sbr.rel target = $region3
  $region8: #{mfm0_forward.6} parent=0 // loop_exit
    _

// kernel: mfm0_forward.5
$region0: #{mfm0_forward.5}
  #allocation0 [shape = 'u32[]', space=smem, size = 0x4, offset = 0x4, fixed_abs, tag = 'smem constant byte address 0x4 - core index']
  #allocation1 [shape = 'u32[144,128]{1,0:T(1,128)}', space=vmem, size = 0x12000, scoped, tag = 'internal scratch']
  %s0 = inlined_call_operand.vmem [shape: bf16[2,2,18,18,32], index: 0, kind: input, shape index: {}]
  %s1 = inlined_call_operand.vmem [shape: bf16[2,9,32,32], index: 1, kind: input, shape index: {}]
  %s2 = inlined_call_operand.vmem [shape: f32[2,1,32], index: 2, kind: input, shape index: {}]
  %s3 = inlined_call_operand.vmem [shape: bf16[2,2,256,32], index: 3, kind: output, shape index: {0}]
  %s4 = inlined_call_operand.vmem [shape: f32[2,2,8,32], index: 4, kind: output, shape index: {1}]
  %5 = xla_tuple %s3, %s4
  %s6 = sld [smem:[#allocation0]]
  $region53: #{mfm0_forward.5} parent=0
    _
  %s8 = ssub.s32 1, %s6
  %s9 = scalar_select 0, %s8, %s6
  loop: start=0, step=1, limit=6
  $region2: #{mfm0_forward.5} parent=0 // loop_pre_header
    _
  $region3: #{mfm0_forward.5} parent=0 // loop_header
    %s11 = sphi 0, %s15
    %p12 = scmp.ge.s32.totalorder %s11, 6
    %s18 = sphi 0, %s30
    %s19 = sphi 0, %s26
    %s20 = sphi 0, %s18
    %s21 = sphi 0, %s19
    %s22 = sphi 0, %s20
    %s23 = sphi 0, %s21
    %s35 = sphi 0, %s37
    %s38 = sphi 0, %s35
    %s39 = sphi 0, %s38
    %s55 = sphi 0, %s39
    %s61 = sphi 0, %s63
    %s64 = sphi 0, %s61
    %s65 = sphi 0, %s64
    %s81 = sphi 0, %s65
    %s87 = sphi 0, %s89
    %s90 = sphi 0, %s87
    %s91 = sphi 0, %s90
    %s107 = sphi 0, %s91
    %s115 = sphi 0, %s117
    %s118 = sphi 0, %s115
    %s119 = sphi 0, %s118
    %s135 = sphi 0, %s119
    %s143 = sphi 0, %s145
    %s146 = sphi 0, %s143
    %s147 = sphi 0, %s146
    %s163 = sphi 0, %s147
  $region4: #{mfm0_forward.5} parent=0 // loop_header_branch
    %14 = sbr.rel (%p12) target = $region8
  $region5: #{mfm0_forward.5} parent=0 // loop_body
    %s16 = ssub.s32 %s11, 1
    %s17 = ssub.s32 %s11, 2
    %s24 = sadd.s32 1, %s19
    %p25 = scmp.ge.s32.totalorder %s24, 2
    %s26 = scalar_select %p25, 0, %s24
    %s27 = sadd.s32 1, %s18
    %s28 = scalar_select %p25, %s27, %s18
    %p29 = scmp.ge.s32.totalorder %s28, 2
    %s30 = scalar_select %p29, 0, %s28
    %s31 = ssub.s32 %s18, %s30
    %s32 = ssub.s32 %s19, %s26
    %s33 = sor.u32 %s31, %s32
    %p34 = scmp.eq.s32.totalorder %s33, 0
    %s36 = sadd.s32 %s35, 1
    %s37 = scalar_select %p34, %s35, %s36
    %p40 = pneg %p34
    %p41 = scmp.eq.s32.totalorder %s11, 3
    %p42 = por %p40, %p41
    %p43 = scmp.ne.s32.totalorder %s35, %s38
    %p44 = scmp.eq.s32.totalorder %s11, 0
    %p45 = por %p43, %p44
    %p46 = scmp.ne.s32.totalorder %s35, %s38
    %p47 = scmp.eq.s32.totalorder %s16, 3
    %p48 = por %p46, %p47
    %p49 = scmp.ne.s32.totalorder %s38, %s39
    %p50 = scmp.eq.s32.totalorder %s16, 0
    %p51 = por %p49, %p50
    %p52 = scmp.ne.s32.totalorder %s38, %s39
    %p53 = scmp.eq.s32.totalorder %s17, 3
    %p54 = por %p52, %p53
    %p56 = scmp.ne.s32.totalorder %s39, %s55
    %p57 = scmp.eq.s32.totalorder %s17, 0
    %p58 = por %p56, %p57
    %s59 = ssub.s32 %s18, %s30
    %p60 = scmp.eq.s32.totalorder %s59, 0
    %s62 = sadd.s32 %s61, 1
    %s63 = scalar_select %p60, %s61, %s62
    %p66 = pneg %p60
    %p67 = scmp.eq.s32.totalorder %s11, 3
    %p68 = por %p66, %p67
    %p69 = scmp.ne.s32.totalorder %s61, %s64
    %p70 = scmp.eq.s32.totalorder %s11, 0
    %p71 = por %p69, %p70
    %p72 = scmp.ne.s32.totalorder %s61, %s64
    %p73 = scmp.eq.s32.totalorder %s16, 3
    %p74 = por %p72, %p73
    %p75 = scmp.ne.s32.totalorder %s64, %s65
    %p76 = scmp.eq.s32.totalorder %s16, 0
    %p77 = por %p75, %p76
    %p78 = scmp.ne.s32.totalorder %s64, %s65
    %p79 = scmp.eq.s32.totalorder %s17, 3
    %p80 = por %p78, %p79
    %p82 = scmp.ne.s32.totalorder %s65, %s81
    %p83 = scmp.eq.s32.totalorder %s17, 0
    %p84 = por %p82, %p83
    %s85 = ssub.s32 %s18, %s30
    %p86 = scmp.eq.s32.totalorder %s85, 0
    %s88 = sadd.s32 %s87, 1
    %s89 = scalar_select %p86, %s87, %s88
    %p92 = pneg %p86
    %p93 = scmp.eq.s32.totalorder %s11, 3
    %p94 = por %p92, %p93
    %p95 = scmp.ne.s32.totalorder %s87, %s90
    %p96 = scmp.eq.s32.totalorder %s11, 0
    %p97 = por %p95, %p96
    %p98 = scmp.ne.s32.totalorder %s87, %s90
    %p99 = scmp.eq.s32.totalorder %s16, 3
    %p100 = por %p98, %p99
    %p101 = scmp.ne.s32.totalorder %s90, %s91
    %p102 = scmp.eq.s32.totalorder %s16, 0
    %p103 = por %p101, %p102
    %p104 = scmp.ne.s32.totalorder %s90, %s91
    %p105 = scmp.eq.s32.totalorder %s17, 3
    %p106 = por %p104, %p105
    %p108 = scmp.ne.s32.totalorder %s91, %s107
    %p109 = scmp.eq.s32.totalorder %s17, 0
    %p110 = por %p108, %p109
    %s111 = ssub.s32 %s18, %s30
    %s112 = ssub.s32 %s19, %s26
    %s113 = sor.u32 %s111, %s112
    %p114 = scmp.eq.s32.totalorder %s113, 0
    %s116 = sadd.s32 %s115, 1
    %s117 = scalar_select %p114, %s115, %s116
    %p120 = pneg %p114
    %p121 = scmp.eq.s32.totalorder %s11, 3
    %p122 = por %p120, %p121
    %p123 = scmp.ne.s32.totalorder %s115, %s118
    %p124 = scmp.eq.s32.totalorder %s11, 0
    %p125 = por %p123, %p124
    %p126 = scmp.ne.s32.totalorder %s115, %s118
    %p127 = scmp.eq.s32.totalorder %s16, 3
    %p128 = por %p126, %p127
    %p129 = scmp.ne.s32.totalorder %s118, %s119
    %p130 = scmp.eq.s32.totalorder %s16, 0
    %p131 = por %p129, %p130
    %p132 = scmp.ne.s32.totalorder %s118, %s119
    %p133 = scmp.eq.s32.totalorder %s17, 3
    %p134 = por %p132, %p133
    %p136 = scmp.ne.s32.totalorder %s119, %s135
    %p137 = scmp.eq.s32.totalorder %s17, 0
    %p138 = por %p136, %p137
    %s139 = ssub.s32 %s18, %s30
    %s140 = ssub.s32 %s19, %s26
    %s141 = sor.u32 %s139, %s140
    %p142 = scmp.eq.s32.totalorder %s141, 0
    %s144 = sadd.s32 %s143, 1
    %s145 = scalar_select %p142, %s143, %s144
    %p148 = pneg %p142
    %p149 = scmp.eq.s32.totalorder %s11, 3
    %p150 = por %p148, %p149
    %p151 = scmp.ne.s32.totalorder %s143, %s146
    %p152 = scmp.eq.s32.totalorder %s11, 0
    %p153 = por %p151, %p152
    %p154 = scmp.ne.s32.totalorder %s143, %s146
    %p155 = scmp.eq.s32.totalorder %s16, 3
    %p156 = por %p154, %p155
    %p157 = scmp.ne.s32.totalorder %s146, %s147
    %p158 = scmp.eq.s32.totalorder %s16, 0
    %p159 = por %p157, %p158
    %p160 = scmp.ne.s32.totalorder %s146, %s147
    %p161 = scmp.eq.s32.totalorder %s17, 3
    %p162 = por %p160, %p161
    %p164 = scmp.ne.s32.totalorder %s147, %s163
    %p165 = scmp.eq.s32.totalorder %s17, 0
    %p166 = por %p164, %p165
    %p167 = scmp.le.s32.totalorder 1, %s11
    %p168 = scmp.lt.s32.totalorder %s11, 5
    %p169 = pnand %p167, %p168
    %p170 = pneg %p169
    // Predicated region
    $region9: #{mfm0_forward.5} parent=5 // pred_check
      _
    $region10: #{mfm0_forward.5} parent=5 // pred_check_branch
      %172 = sbr.rel (%p169) target = $region12
    $region11: #{mfm0_forward.5} parent=5 // pred_region
      %s173 = ssub.s32 %s11, 1
    $region12: #{mfm0_forward.5} parent=5 // pred_fallthru
      _
    %p174 = scmp.lt.s32.totalorder %s11, 4
    // Predicated region
    $region13: #{mfm0_forward.5} parent=5 // pred_check
      %p175 = pneg %p174
    $region14: #{mfm0_forward.5} parent=5 // pred_check_branch
      %177 = sbr.rel (%p175) target = $region16
    $region15: #{mfm0_forward.5} parent=5 // pred_region
      // Predicated region
      $region17: #{mfm0_forward.5} parent=15 // pred_check
        %p178 = pneg %p45
      $region18: #{mfm0_forward.5} parent=15 // pred_check_branch
        %180 = sbr.rel (%p178) target = $region20
      $region19: #{mfm0_forward.5} parent=15 // pred_region
        %p181 = scmp.lt.s32.totalorder %s18, 1
        %s182 = scalar_select %p181, %s18, 1
        %p183 = scmp.lt.s32.totalorder %s19, 1
        %s184 = scalar_select %p183, %s19, 1
        %s185 = smul.addr %s184, 54
        %s186 = smul.addr %s182, 108
        %s187 = sadd.s32 %s185, %s186
        %s188 = smul.addr %s187, 4
        %s189 = scalar_lea.vmem %s0, %s188
      $region20: #{mfm0_forward.5} parent=15 // pred_fallthru
        _
      // Predicated region
      $region21: #{mfm0_forward.5} parent=15 // pred_check
        %p190 = pneg %p71
      $region22: #{mfm0_forward.5} parent=15 // pred_check_branch
        %192 = sbr.rel (%p190) target = $region24
      $region23: #{mfm0_forward.5} parent=15 // pred_region
        %p193 = scmp.lt.s32.totalorder %s18, 1
        %s194 = scalar_select %p193, %s18, 1
        %s195 = smul.addr %s194, 36
        %s196 = smul.addr %s195, 4
        %s197 = scalar_lea.vmem %s1, %s196
      $region24: #{mfm0_forward.5} parent=15 // pred_fallthru
        _
      // Predicated region
      $region25: #{mfm0_forward.5} parent=15 // pred_check
        %p198 = pneg %p97
      $region26: #{mfm0_forward.5} parent=15 // pred_check_branch
        %200 = sbr.rel (%p198) target = $region28
      $region27: #{mfm0_forward.5} parent=15 // pred_region
        %p201 = scmp.lt.s32.totalorder %s18, 1
        %s202 = scalar_select %p201, %s18, 1
        %s203 = scalar_lea.vmem %s2, %s202
      $region28: #{mfm0_forward.5} parent=15 // pred_fallthru
        _
    $region16: #{mfm0_forward.5} parent=5 // pred_fallthru
      _
    %p204 = scmp.le.s32.totalorder 1, %s11
    %p205 = scmp.lt.s32.totalorder %s11, 5
    %p206 = pnand %p204, %p205
    %p207 = pneg %p206
    // Predicated region
    $region29: #{mfm0_forward.5} parent=5 // pred_check
      _
    $region30: #{mfm0_forward.5} parent=5 // pred_check_branch
      %209 = sbr.rel (%p206) target = $region32
    $region31: #{mfm0_forward.5} parent=5 // pred_region
      %s210 = ssub.s32 %s11, 1
      %p211 = scmp.lt.s32.totalorder %s20, 1
      %s212 = scalar_select %p211, %s20, 1
      %p213 = scmp.lt.s32.totalorder %s21, 1
      %s214 = scalar_select %p213, %s21, 1
      %s215 = smul.addr %s214, 54
      %s216 = smul.addr %s212, 108
      %s217 = sadd.s32 %s215, %s216
      %s218 = smul.addr %s217, 4
      %s219 = scalar_lea.vmem %s0, %s218
      %p220 = pneg %p51
      %p221 = pneg %p48
      %p222 = scmp.lt.s32.totalorder %s20, 1
      %s223 = scalar_select %p222, %s20, 1
      %s224 = smul.addr %s223, 36
      %s225 = smul.addr %s224, 4
      %s226 = scalar_lea.vmem %s1, %s225
      %p227 = pneg %p77
      %p228 = pneg %p74
      %p229 = scmp.lt.s32.totalorder %s20, 1
      %s230 = scalar_select %p229, %s20, 1
      %s231 = scalar_lea.vmem %s2, %s230
      %p232 = pneg %p103
      %p233 = pneg %p100
      %p234 = pneg %p131
      %p235 = pneg %p128
      %p236 = scmp.lt.s32.totalorder %s20, 1
      %s237 = scalar_select %p236, %s20, 1
      %p238 = scmp.lt.s32.totalorder %s21, 1
      %s239 = scalar_select %p238, %s21, 1
      %s240 = smul.addr %s239, 32
      %s241 = smul.addr %s237, 64
      %s242 = sadd.s32 %s240, %s241
      %s243 = smul.addr %s242, 4
      %s244 = scalar_lea.vmem %s3, %s243
      %p245 = pneg %p159
      %p246 = pneg %p156
      %p247 = scmp.lt.s32.totalorder %s20, 1
      %s248 = scalar_select %p247, %s20, 1
      %p249 = scmp.lt.s32.totalorder %s21, 1
      %s250 = scalar_select %p249, %s21, 1
      %s251 = smul.addr %s248, 2
      %s252 = sadd.s32 %s250, %s251
      %s253 = smul.addr %s252, 8
      %s254 = scalar_lea.vmem %s4, %s253
      %p255 = scmp.lt.s32.totalorder %s20, 1
      %s256 = scalar_select %p255, %s20, 1
      %p257 = scmp.lt.s32.totalorder %s21, 1
      %s258 = scalar_select %p257, %s21, 1
      %s259 = smul.addr %s258, 54
      %s260 = smul.addr %s256, 108
      %s261 = sadd.s32 %s259, %s260
      %s262 = smul.addr %s261, 4
      %s263 = scalar_lea.vmem %s0, %s262
      %p264 = scmp.lt.s32.totalorder %s20, 1
      %s265 = scalar_select %p264, %s20, 1
      %s266 = smul.addr %s265, 36
      %s267 = smul.addr %s266, 4
      %s268 = scalar_lea.vmem %s1, %s267
      %p269 = scmp.lt.s32.totalorder %s20, 1
      %s270 = scalar_select %p269, %s20, 1
      %s271 = scalar_lea.vmem %s2, %s270
      %p272 = scmp.lt.s32.totalorder %s20, 1
      %s273 = scalar_select %p272, %s20, 1
      %p274 = scmp.lt.s32.totalorder %s21, 1
      %s275 = scalar_select %p274, %s21, 1
      %s276 = smul.addr %s275, 32
      %s277 = smul.addr %s273, 64
      %s278 = sadd.s32 %s276, %s277
      %s279 = smul.addr %s278, 4
      %s280 = scalar_lea.vmem %s3, %s279
      %p281 = scmp.lt.s32.totalorder %s20, 1
      %s282 = scalar_select %p281, %s20, 1
      %p283 = scmp.lt.s32.totalorder %s21, 1
      %s284 = scalar_select %p283, %s21, 1
      %s285 = smul.addr %s282, 2
      %s286 = sadd.s32 %s284, %s285
      %s287 = smul.addr %s286, 8
      %s288 = scalar_lea.vmem %s4, %s287
      %v290 = vld [vmem:[%s263] sm:$0xf]
      %v291 = vld [vmem:[%s263 + $0x4] sm:$0xf]
      %v292 = vld [vmem:[%s263 + $0x8] sm:$0x1]
      %v293 = vld [vmem:[%s263 + $0xc] sm:$0xf]
      %v294 = vld [vmem:[%s263 + $0x10] sm:$0xf]
      %v295 = vld [vmem:[%s263 + $0x14] sm:$0x1]
      %v296 = vld [vmem:[%s263 + $0x18] sm:$0xf]
      %v297 = vld [vmem:[%s263 + $0x1c] sm:$0xf]
      %v298 = vld [vmem:[%s263 + $0x20] sm:$0x1]
      %v299 = vld [vmem:[%s263 + $0x24] sm:$0xf]
      %v300 = vld [vmem:[%s263 + $0x28] sm:$0xf]
      %v301 = vld [vmem:[%s263 + $0x2c] sm:$0x1]
      %v302 = vld [vmem:[%s263 + $0x30] sm:$0xf]
      %v303 = vld [vmem:[%s263 + $0x34] sm:$0xf]
      %v304 = vld [vmem:[%s263 + $0x38] sm:$0x1]
      %v305 = vld [vmem:[%s263 + $0x3c] sm:$0xf]
      %v306 = vld [vmem:[%s263 + $0x40] sm:$0xf]
      %v307 = vld [vmem:[%s263 + $0x44] sm:$0x1]
      %v308 = vld [vmem:[%s263 + $0x48] sm:$0xf]
      %v309 = vld [vmem:[%s263 + $0x4c] sm:$0xf]
      %v310 = vld [vmem:[%s263 + $0x50] sm:$0x1]
      %v311 = vld [vmem:[%s263 + $0x54] sm:$0xf]
      %v312 = vld [vmem:[%s263 + $0x58] sm:$0xf]
      %v313 = vld [vmem:[%s263 + $0x5c] sm:$0x1]
      %v314 = vld [vmem:[%s263 + $0x60] sm:$0xf]
      %v315 = vld [vmem:[%s263 + $0x64] sm:$0xf]
      %v316 = vld [vmem:[%s263 + $0x68] sm:$0x1]
      %v317 = vld [vmem:[%s263 + $0x6c] sm:$0xf]
      %v318 = vld [vmem:[%s263 + $0x70] sm:$0xf]
      %v319 = vld [vmem:[%s263 + $0x74] sm:$0x1]
      %v320 = vld [vmem:[%s263 + $0x78] sm:$0xf]
      %v321 = vld [vmem:[%s263 + $0x7c] sm:$0xf]
      %v322 = vld [vmem:[%s263 + $0x80] sm:$0x1]
      %v323 = vld [vmem:[%s263 + $0x84] sm:$0xf]
      %v324 = vld [vmem:[%s263 + $0x88] sm:$0xf]
      %v325 = vld [vmem:[%s263 + $0x8c] sm:$0x1]
      %v326 = vld [vmem:[%s263 + $0x90] sm:$0xf]
      %v327 = vld [vmem:[%s263 + $0x94] sm:$0xf]
      %v328 = vld [vmem:[%s263 + $0x98] sm:$0x1]
      %v329 = vld [vmem:[%s263 + $0x9c] sm:$0xf]
      %v330 = vld [vmem:[%s263 + $0xa0] sm:$0xf]
      %v331 = vld [vmem:[%s263 + $0xa4] sm:$0x1]
      %v332 = vld [vmem:[%s263 + $0xa8] sm:$0xf]
      %v333 = vld [vmem:[%s263 + $0xac] sm:$0xf]
      %v334 = vld [vmem:[%s263 + $0xb0] sm:$0x1]
      %v335 = vld [vmem:[%s263 + $0xb4] sm:$0xf]
      %v336 = vld [vmem:[%s263 + $0xb8] sm:$0xf]
      %v337 = vld [vmem:[%s263 + $0xbc] sm:$0x1]
      %v338 = vld [vmem:[%s263 + $0xc0] sm:$0xf]
      %v339 = vld [vmem:[%s263 + $0xc4] sm:$0xf]
      %v340 = vld [vmem:[%s263 + $0xc8] sm:$0x1]
      %v341 = vld [vmem:[%s263 + $0xcc] sm:$0xf]
      %v342 = vld [vmem:[%s263 + $0xd0] sm:$0xf]
      %v343 = vld [vmem:[%s263 + $0xd4] sm:$0x1]
      %v344 = vld [vmem:[%s268] sm:$0xf]
      %v345 = vld [vmem:[%s268 + $0x4] sm:$0xf]
      %v346 = vld [vmem:[%s268 + $0x8] sm:$0xf]
      %v347 = vld [vmem:[%s268 + $0xc] sm:$0xf]
      %vm348 = vsmask.f32 3328
      %vm349 = vsmask.f32 7440
      %vm350 = vmor %vm348, %vm349
      %v352 = vshrl.u32 %v290, 16
      %v354 = vrot.slane %v352, 4
      %v355 = vshll.u32 %v290, 16
      %v357 = vrot.slane %v355, 5
      %v358 = vor.u32 %v354, %v357
      %v359 = vrot.slane %v358, 4
      %v361 = vshll.u32 %v291, 16
      %v363 = vrot.slane %v361, 5
      %v364 = vsel %vm350, %v359, %v363
      %v365 = vshrl.u32 %v291, 16
      %v367 = vrot.slane %v365, 4
      %v368 = vor.u32 %v367, %v363
      %v369 = vrot.slane %v368, 4
      %v371 = vshll.u32 %v292, 16
      %v373 = vrot.slane %v371, 5
      %v374 = vsel %vm350, %v369, %v373
      %v376 = vshrl.u32 %v293, 16
      %v378 = vrot.slane %v376, 4
      %v379 = vshll.u32 %v293, 16
      %v381 = vrot.slane %v379, 5
      %v382 = vor.u32 %v378, %v381
      %v383 = vrot.slane %v382, 4
      %v385 = vshll.u32 %v294, 16
      %v387 = vrot.slane %v385, 5
      %v388 = vsel %vm350, %v383, %v387
      %v389 = vshrl.u32 %v294, 16
      %v391 = vrot.slane %v389, 4
      %v392 = vor.u32 %v391, %v387
      %v393 = vrot.slane %v392, 4
      %v395 = vshll.u32 %v295, 16
      %v397 = vrot.slane %v395, 5
      %v398 = vsel %vm350, %v393, %v397
      %v400 = vshrl.u32 %v296, 16
      %v402 = vrot.slane %v400, 4
      %v403 = vshll.u32 %v296, 16
      %v405 = vrot.slane %v403, 5
      %v406 = vor.u32 %v402, %v405
      %v407 = vrot.slane %v406, 4
      %v409 = vshll.u32 %v297, 16
      %v411 = vrot.slane %v409, 5
      %v412 = vsel %vm350, %v407, %v411
      %v413 = vshrl.u32 %v297, 16
      %v415 = vrot.slane %v413, 4
      %v416 = vor.u32 %v415, %v411
      %v417 = vrot.slane %v416, 4
      %v419 = vshll.u32 %v298, 16
      %v421 = vrot.slane %v419, 5
      %v422 = vsel %vm350, %v417, %v421
      %v424 = vshrl.u32 %v299, 16
      %v426 = vrot.slane %v424, 4
      %v427 = vshll.u32 %v299, 16
      %v429 = vrot.slane %v427, 5
      %v430 = vor.u32 %v426, %v429
      %v431 = vrot.slane %v430, 4
      %v433 = vshll.u32 %v300, 16
      %v435 = vrot.slane %v433, 5
      %v436 = vsel %vm350, %v431, %v435
      %v437 = vshrl.u32 %v300, 16
      %v439 = vrot.slane %v437, 4
      %v440 = vor.u32 %v439, %v435
      %v441 = vrot.slane %v440, 4
      %v443 = vshll.u32 %v301, 16
      %v445 = vrot.slane %v443, 5
      %v446 = vsel %vm350, %v441, %v445
      %v448 = vshrl.u32 %v302, 16
      %v450 = vrot.slane %v448, 4
      %v451 = vshll.u32 %v302, 16
      %v453 = vrot.slane %v451, 5
      %v454 = vor.u32 %v450, %v453
      %v455 = vrot.slane %v454, 4
      %v457 = vshll.u32 %v303, 16
      %v459 = vrot.slane %v457, 5
      %v460 = vsel %vm350, %v455, %v459
      %v461 = vshrl.u32 %v303, 16
      %v463 = vrot.slane %v461, 4
      %v464 = vor.u32 %v463, %v459
      %v465 = vrot.slane %v464, 4
      %v467 = vshll.u32 %v304, 16
      %v469 = vrot.slane %v467, 5
      %v470 = vsel %vm350, %v465, %v469
      %v472 = vshrl.u32 %v305, 16
      %v474 = vrot.slane %v472, 4
      %v475 = vshll.u32 %v305, 16
      %v477 = vrot.slane %v475, 5
      %v478 = vor.u32 %v474, %v477
      %v479 = vrot.slane %v478, 4
      %v481 = vshll.u32 %v306, 16
      %v483 = vrot.slane %v481, 5
      %v484 = vsel %vm350, %v479, %v483
      %v485 = vshrl.u32 %v306, 16
      %v487 = vrot.slane %v485, 4
      %v488 = vor.u32 %v487, %v483
      %v489 = vrot.slane %v488, 4
      %v491 = vshll.u32 %v307, 16
      %v493 = vrot.slane %v491, 5
      %v494 = vsel %vm350, %v489, %v493
      %v496 = vshrl.u32 %v308, 16
      %v498 = vrot.slane %v496, 4
      %v499 = vshll.u32 %v308, 16
      %v501 = vrot.slane %v499, 5
      %v502 = vor.u32 %v498, %v501
      %v503 = vrot.slane %v502, 4
      %v505 = vshll.u32 %v309, 16
      %v507 = vrot.slane %v505, 5
      %v508 = vsel %vm350, %v503, %v507
      %v509 = vshrl.u32 %v309, 16
      %v511 = vrot.slane %v509, 4
      %v512 = vor.u32 %v511, %v507
      %v513 = vrot.slane %v512, 4
      %v515 = vshll.u32 %v310, 16
      %v517 = vrot.slane %v515, 5
      %v518 = vsel %vm350, %v513, %v517
      %v520 = vshrl.u32 %v311, 16
      %v522 = vrot.slane %v520, 4
      %v523 = vshll.u32 %v311, 16
      %v525 = vrot.slane %v523, 5
      %v526 = vor.u32 %v522, %v525
      %v527 = vrot.slane %v526, 4
      %v529 = vshll.u32 %v312, 16
      %v531 = vrot.slane %v529, 5
      %v532 = vsel %vm350, %v527, %v531
      %v533 = vshrl.u32 %v312, 16
      %v535 = vrot.slane %v533, 4
      %v536 = vor.u32 %v535, %v531
      %v537 = vrot.slane %v536, 4
      %v539 = vshll.u32 %v313, 16
      %v541 = vrot.slane %v539, 5
      %v542 = vsel %vm350, %v537, %v541
      %v544 = vshrl.u32 %v314, 16
      %v546 = vrot.slane %v544, 4
      %v547 = vshll.u32 %v314, 16
      %v549 = vrot.slane %v547, 5
      %v550 = vor.u32 %v546, %v549
      %v551 = vrot.slane %v550, 4
      %v553 = vshll.u32 %v315, 16
      %v555 = vrot.slane %v553, 5
      %v556 = vsel %vm350, %v551, %v555
      %v557 = vshrl.u32 %v315, 16
      %v559 = vrot.slane %v557, 4
      %v560 = vor.u32 %v559, %v555
      %v561 = vrot.slane %v560, 4
      %v563 = vshll.u32 %v316, 16
      %v565 = vrot.slane %v563, 5
      %v566 = vsel %vm350, %v561, %v565
      %v568 = vshrl.u32 %v317, 16
      %v570 = vrot.slane %v568, 4
      %v571 = vshll.u32 %v317, 16
      %v573 = vrot.slane %v571, 5
      %v574 = vor.u32 %v570, %v573
      %v575 = vrot.slane %v574, 4
      %v577 = vshll.u32 %v318, 16
      %v579 = vrot.slane %v577, 5
      %v580 = vsel %vm350, %v575, %v579
      %v581 = vshrl.u32 %v318, 16
      %v583 = vrot.slane %v581, 4
      %v584 = vor.u32 %v583, %v579
      %v585 = vrot.slane %v584, 4
      %v587 = vshll.u32 %v319, 16
      %v589 = vrot.slane %v587, 5
      %v590 = vsel %vm350, %v585, %v589
      %v592 = vshrl.u32 %v320, 16
      %v594 = vrot.slane %v592, 4
      %v595 = vshll.u32 %v320, 16
      %v597 = vrot.slane %v595, 5
      %v598 = vor.u32 %v594, %v597
      %v599 = vrot.slane %v598, 4
      %v601 = vshll.u32 %v321, 16
      %v603 = vrot.slane %v601, 5
      %v604 = vsel %vm350, %v599, %v603
      %v605 = vshrl.u32 %v321, 16
      %v607 = vrot.slane %v605, 4
      %v608 = vor.u32 %v607, %v603
      %v609 = vrot.slane %v608, 4
      %v611 = vshll.u32 %v322, 16
      %v613 = vrot.slane %v611, 5
      %v614 = vsel %vm350, %v609, %v613
      %v616 = vshrl.u32 %v323, 16
      %v618 = vrot.slane %v616, 4
      %v619 = vshll.u32 %v323, 16
      %v621 = vrot.slane %v619, 5
      %v622 = vor.u32 %v618, %v621
      %v623 = vrot.slane %v622, 4
      %v625 = vshll.u32 %v324, 16
      %v627 = vrot.slane %v625, 5
      %v628 = vsel %vm350, %v623, %v627
      %v629 = vshrl.u32 %v324, 16
      %v631 = vrot.slane %v629, 4
      %v632 = vor.u32 %v631, %v627
      %v633 = vrot.slane %v632, 4
      %v635 = vshll.u32 %v325, 16
      %v637 = vrot.slane %v635, 5
      %v638 = vsel %vm350, %v633, %v637
      %v640 = vshrl.u32 %v326, 16
      %v642 = vrot.slane %v640, 4
      %v643 = vshll.u32 %v326, 16
      %v645 = vrot.slane %v643, 5
      %v646 = vor.u32 %v642, %v645
      %v647 = vrot.slane %v646, 4
      %v649 = vshll.u32 %v327, 16
      %v651 = vrot.slane %v649, 5
      %v652 = vsel %vm350, %v647, %v651
      %v653 = vshrl.u32 %v327, 16
      %v655 = vrot.slane %v653, 4
      %v656 = vor.u32 %v655, %v651
      %v657 = vrot.slane %v656, 4
      %v659 = vshll.u32 %v328, 16
      %v661 = vrot.slane %v659, 5
      %v662 = vsel %vm350, %v657, %v661
      %v664 = vshrl.u32 %v329, 16
      %v666 = vrot.slane %v664, 4
      %v667 = vshll.u32 %v329, 16
      %v669 = vrot.slane %v667, 5
      %v670 = vor.u32 %v666, %v669
      %v671 = vrot.slane %v670, 4
      %v673 = vshll.u32 %v330, 16
      %v675 = vrot.slane %v673, 5
      %v676 = vsel %vm350, %v671, %v675
      %v677 = vshrl.u32 %v330, 16
      %v679 = vrot.slane %v677, 4
      %v680 = vor.u32 %v679, %v675
      %v681 = vrot.slane %v680, 4
      %v683 = vshll.u32 %v331, 16
      %v685 = vrot.slane %v683, 5
      %v686 = vsel %vm350, %v681, %v685
      %v688 = vshrl.u32 %v332, 16
      %v690 = vrot.slane %v688, 4
      %v691 = vshll.u32 %v332, 16
      %v693 = vrot.slane %v691, 5
      %v694 = vor.u32 %v690, %v693
      %v695 = vrot.slane %v694, 4
      %v697 = vshll.u32 %v333, 16
      %v699 = vrot.slane %v697, 5
      %v700 = vsel %vm350, %v695, %v699
      %v701 = vshrl.u32 %v333, 16
      %v703 = vrot.slane %v701, 4
      %v704 = vor.u32 %v703, %v699
      %v705 = vrot.slane %v704, 4
      %v707 = vshll.u32 %v334, 16
      %v709 = vrot.slane %v707, 5
      %v710 = vsel %vm350, %v705, %v709
      %v712 = vshrl.u32 %v335, 16
      %v714 = vrot.slane %v712, 4
      %v715 = vshll.u32 %v335, 16
      %v717 = vrot.slane %v715, 5
      %v718 = vor.u32 %v714, %v717
      %v719 = vrot.slane %v718, 4
      %v721 = vshll.u32 %v336, 16
      %v723 = vrot.slane %v721, 5
      %v724 = vsel %vm350, %v719, %v723
      %v725 = vshrl.u32 %v336, 16
      %v727 = vrot.slane %v725, 4
      %v728 = vor.u32 %v727, %v723
      %v729 = vrot.slane %v728, 4
      %v731 = vshll.u32 %v337, 16
      %v733 = vrot.slane %v731, 5
      %v734 = vsel %vm350, %v729, %v733
      %s735 = scalar_lea.vmem %s268, 16
      %v736 = vld [vmem:[%s735] sm:$0xf]
      %v737 = vld [vmem:[%s735 + $0x4] sm:$0xf]
      %v738 = vld [vmem:[%s735 + $0x8] sm:$0xf]
      %v739 = vld [vmem:[%s735 + $0xc] sm:$0xf]
      %v740 = vunpack.c.l.b16 %v364
      %v741 = vunpack.c.l.b16 %v374
      %v742 = vunpack.c.l.b16 %v388
      %v743 = vunpack.c.l.b16 %v398
      %v744 = vunpack.c.l.b16 %v412
      %v745 = vunpack.c.l.b16 %v422
      %v746 = vunpack.c.l.b16 %v436
      %v747 = vunpack.c.l.b16 %v446
      %v748 = vunpack.c.l.b16 %v460
      %v749 = vunpack.c.l.b16 %v470
      %v750 = vunpack.c.l.b16 %v484
      %v751 = vunpack.c.l.b16 %v494
      %v752 = vunpack.c.l.b16 %v508
      %v753 = vunpack.c.l.b16 %v518
      %v754 = vunpack.c.l.b16 %v532
      %v755 = vunpack.c.l.b16 %v542
      %v756 = vunpack.c.l.b16 %v556
      %v757 = vunpack.c.l.b16 %v566
      %v758 = vunpack.c.l.b16 %v580
      %v759 = vunpack.c.l.b16 %v590
      %v760 = vunpack.c.l.b16 %v604
      %v761 = vunpack.c.l.b16 %v614
      %v762 = vunpack.c.l.b16 %v628
      %v763 = vunpack.c.l.b16 %v638
      %v764 = vunpack.c.l.b16 %v652
      %v765 = vunpack.c.l.b16 %v662
      %v766 = vunpack.c.l.b16 %v676
      %v767 = vunpack.c.l.b16 %v686
      %v768 = vunpack.c.l.b16 %v700
      %v769 = vunpack.c.l.b16 %v710
      %v770 = vunpack.c.l.b16 %v724
      %v771 = vunpack.c.l.b16 %v734
      %v772 = vpack.c.b16 %v741, %v740
      %v773 = vpack.c.b16 %v743, %v742
      %v774 = vpack.c.b16 %v745, %v744
      %v775 = vpack.c.b16 %v747, %v746
      %v776 = vpack.c.b16 %v749, %v748
      %v777 = vpack.c.b16 %v751, %v750
      %v778 = vpack.c.b16 %v753, %v752
      %v779 = vpack.c.b16 %v755, %v754
      %v780 = vpack.c.b16 %v757, %v756
      %v781 = vpack.c.b16 %v759, %v758
      %v782 = vpack.c.b16 %v761, %v760
      %v783 = vpack.c.b16 %v763, %v762
      %v784 = vpack.c.b16 %v765, %v764
      %v785 = vpack.c.b16 %v767, %v766
      %v786 = vpack.c.b16 %v769, %v768
      %v787 = vpack.c.b16 %v771, %v770
      %v792 = vunpack.c.l.b16 %v736
      %v793 = vunpack.c.l.b16 %v737
      %v794 = vunpack.c.l.b16 %v738
      %v795 = vunpack.c.l.b16 %v739
      %v796 = vpack.c.b16 %v793, %v792
      %v797 = vpack.c.b16 %v795, %v794
      %vm800 = vcmask 261120
      %v802 = vsel %vm800, %v772, 0
      %v805 = vsel %vm800, %v773, 0
      %v808 = vsel %vm800, %v774, 0
      %v811 = vsel %vm800, %v775, 0
      %v814 = vsel %vm800, %v776, 0
      %v817 = vsel %vm800, %v777, 0
      %v820 = vsel %vm800, %v778, 0
      %v823 = vsel %vm800, %v779, 0
      %v826 = vsel %vm800, %v780, 0
      %v829 = vsel %vm800, %v781, 0
      %v832 = vsel %vm800, %v782, 0
      %v835 = vsel %vm800, %v783, 0
      %v838 = vsel %vm800, %v784, 0
      %v841 = vsel %vm800, %v785, 0
      %v844 = vsel %vm800, %v786, 0
      %v847 = vsel %vm800, %v787, 0
      %849 = vmatprep.subr.bf16.mxu0 0
      %850 = vmatpush1.bf16.msra.mxu0 0
      %851 = vmatprep.subr.bf16.mxu0 0
      %852 = vmatpush1.bf16.msra.mxu0 0
      %853 = vmatprep.subr.bf16.mxu0 0
      %854 = vmatpush1.bf16.msra.mxu0 0
      %855 = vmatprep.subr.bf16.mxu0 0
      %856 = vmatpush1.bf16.msra.mxu0 0
      %857 = vmatprep.subr.bf16.mxu0 0
      %858 = vmatpush1.bf16.msra.mxu0 0
      %859 = vmatprep.subr.bf16.mxu0 0
      %860 = vmatpush1.bf16.msra.mxu0 0
      %861 = vmatprep.subr.bf16.mxu0 0
      %862 = vmatpush1.bf16.msra.mxu0 %v797
      %863 = vmatprep.subr.bf16.mxu0 0
      %864 = vmatpush1.bf16.msra.mxu0 %v796
      %865 = vmatprep.subr.bf16.mxu0 0
      %866 = vmatpush2.bf16.msra.mxu0 0
      %867 = vmatprep.subr.bf16.mxu0 0
      %868 = vmatpush2.bf16.msra.mxu0 0
      %869 = vmatprep.subr.bf16.mxu0 0
      %870 = vmatpush2.bf16.msra.mxu0 0
      %871 = vmatprep.subr.bf16.mxu0 0
      %872 = vmatpush2.bf16.msra.mxu0 0
      %873 = vmatprep.subr.bf16.mxu0 0
      %874 = vmatpush2.bf16.msra.mxu0 0
      %875 = vmatprep.subr.bf16.mxu0 0
      %876 = vmatpush2.bf16.msra.mxu0 0
      %877 = vmatprep.subr.bf16.mxu0 0
      %878 = vmatpush2.bf16.msra.mxu0 0
      %879 = vmatprep.subr.bf16.mxu0 0
      %880 = vmatpush2.bf16.msra.mxu0 0
      %881 = vmatprep.mubr.bf16.mxu0 0
      %882 = vmatmul.mubr.bf16.gmra.mxu0 %v802
      %v883 = vpop.f32.mrf.mxu0
      %v884 = vadd.f32 0.0, %v883
      %v885 = vpop.f32.mrf.mxu0
      %v886 = vpop.f32.mrf.mxu0
      %v887 = vadd.f32 0.0, %v886
      %v888 = vpop.f32.mrf.mxu0
      %889 = vmatprep.mubr.bf16.mxu0 0
      %890 = vmatmul.mubr.bf16.gmra.mxu0 %v805
      %v891 = vpop.f32.mrf.mxu0
      %v892 = vadd.f32 0.0, %v891
      %v893 = vpop.f32.mrf.mxu0
      %v894 = vpop.f32.mrf.mxu0
      %v895 = vadd.f32 0.0, %v894
      %v896 = vpop.f32.mrf.mxu0
      %897 = vmatprep.mubr.bf16.mxu0 0
      %898 = vmatmul.mubr.bf16.gmra.mxu0 %v808
      %v899 = vpop.f32.mrf.mxu0
      %v900 = vadd.f32 0.0, %v899
      %v901 = vpop.f32.mrf.mxu0
      %v902 = vpop.f32.mrf.mxu0
      %v903 = vadd.f32 0.0, %v902
      %v904 = vpop.f32.mrf.mxu0
      %905 = vmatprep.mubr.bf16.mxu0 0
      %906 = vmatmul.mubr.bf16.gmra.mxu0 %v811
      %v907 = vpop.f32.mrf.mxu0
      %v908 = vadd.f32 0.0, %v907
      %v909 = vpop.f32.mrf.mxu0
      %v910 = vpop.f32.mrf.mxu0
      %v911 = vadd.f32 0.0, %v910
      %v912 = vpop.f32.mrf.mxu0
      %913 = vmatprep.mubr.bf16.mxu0 0
      %914 = vmatmul.mubr.bf16.gmra.mxu0 %v814
      %v915 = vpop.f32.mrf.mxu0
      %v916 = vadd.f32 0.0, %v915
      %v917 = vpop.f32.mrf.mxu0
      %v918 = vpop.f32.mrf.mxu0
      %v919 = vadd.f32 0.0, %v918
      %v920 = vpop.f32.mrf.mxu0
      %921 = vmatprep.mubr.bf16.mxu0 0
      %922 = vmatmul.mubr.bf16.gmra.mxu0 %v817
      %v923 = vpop.f32.mrf.mxu0
      %v924 = vadd.f32 0.0, %v923
      %v925 = vpop.f32.mrf.mxu0
      %v926 = vpop.f32.mrf.mxu0
      %v927 = vadd.f32 0.0, %v926
      %v928 = vpop.f32.mrf.mxu0
      %929 = vmatprep.mubr.bf16.mxu0 0
      %930 = vmatmul.mubr.bf16.gmra.mxu0 %v820
      %v931 = vpop.f32.mrf.mxu0
      %v932 = vadd.f32 0.0, %v931
      %v933 = vpop.f32.mrf.mxu0
      %v934 = vpop.f32.mrf.mxu0
      %v935 = vadd.f32 0.0, %v934
      %v936 = vpop.f32.mrf.mxu0
      %937 = vmatprep.mubr.bf16.mxu0 0
      %938 = vmatmul.mubr.bf16.gmra.mxu0 %v823
      %v939 = vpop.f32.mrf.mxu0
      %v940 = vadd.f32 0.0, %v939
      %v941 = vpop.f32.mrf.mxu0
      %v942 = vpop.f32.mrf.mxu0
      %v943 = vadd.f32 0.0, %v942
      %v944 = vpop.f32.mrf.mxu0
      %945 = vmatprep.mubr.bf16.mxu0 0
      %946 = vmatmul.mubr.bf16.gmra.mxu0 %v826
      %v947 = vpop.f32.mrf.mxu0
      %v948 = vadd.f32 0.0, %v947
      %v949 = vpop.f32.mrf.mxu0
      %v950 = vpop.f32.mrf.mxu0
      %v951 = vadd.f32 0.0, %v950
      %v952 = vpop.f32.mrf.mxu0
      %953 = vmatprep.mubr.bf16.mxu0 0
      %954 = vmatmul.mubr.bf16.gmra.mxu0 %v829
      %v955 = vpop.f32.mrf.mxu0
      %v956 = vadd.f32 0.0, %v955
      %v957 = vpop.f32.mrf.mxu0
      %v958 = vpop.f32.mrf.mxu0
      %v959 = vadd.f32 0.0, %v958
      %v960 = vpop.f32.mrf.mxu0
      %961 = vmatprep.mubr.bf16.mxu0 0
      %962 = vmatmul.mubr.bf16.gmra.mxu0 %v832
      %v963 = vpop.f32.mrf.mxu0
      %v964 = vadd.f32 0.0, %v963
      %v965 = vpop.f32.mrf.mxu0
      %v966 = vpop.f32.mrf.mxu0
      %v967 = vadd.f32 0.0, %v966
      %v968 = vpop.f32.mrf.mxu0
      %969 = vmatprep.mubr.bf16.mxu0 0
      %970 = vmatmul.mubr.bf16.gmra.mxu0 %v835
      %v971 = vpop.f32.mrf.mxu0
      %v972 = vadd.f32 0.0, %v971
      %v973 = vpop.f32.mrf.mxu0
      %v974 = vpop.f32.mrf.mxu0
      %v975 = vadd.f32 0.0, %v974
      %v976 = vpop.f32.mrf.mxu0
      %977 = vmatprep.mubr.bf16.mxu0 0
      %978 = vmatmul.mubr.bf16.gmra.mxu0 %v838
      %v979 = vpop.f32.mrf.mxu0
      %v980 = vadd.f32 0.0, %v979
      %v981 = vpop.f32.mrf.mxu0
      %v982 = vpop.f32.mrf.mxu0
      %v983 = vadd.f32 0.0, %v982
      %v984 = vpop.f32.mrf.mxu0
      %985 = vmatprep.mubr.bf16.mxu0 0
      %986 = vmatmul.mubr.bf16.gmra.mxu0 %v841
      %v987 = vpop.f32.mrf.mxu0
      %v988 = vadd.f32 0.0, %v987
      %v989 = vpop.f32.mrf.mxu0
      %v990 = vpop.f32.mrf.mxu0
      %v991 = vadd.f32 0.0, %v990
      %v992 = vpop.f32.mrf.mxu0
      %993 = vmatprep.mubr.bf16.mxu0 0
      %994 = vmatmul.mubr.bf16.gmra.mxu0 %v844
      %v995 = vpop.f32.mrf.mxu0
      %v996 = vadd.f32 0.0, %v995
      %v997 = vpop.f32.mrf.mxu0
      %v998 = vpop.f32.mrf.mxu0
      %v999 = vadd.f32 0.0, %v998
      %v1000 = vpop.f32.mrf.mxu0
      %1001 = vmatprep.mubr.bf16.mxu0 0
      %1002 = vmatmul.mubr.bf16.gmra.mxu0 %v847
      %v1003 = vpop.f32.mrf.mxu0
      %v1004 = vadd.f32 0.0, %v1003
      %v1005 = vpop.f32.mrf.mxu0
      %v1006 = vpop.f32.mrf.mxu0
      %v1007 = vadd.f32 0.0, %v1006
      %v1008 = vpop.f32.mrf.mxu0
      %1009 = vdwg.mxu0
      %v1042 = vunpack.c.l.b16 %v290
      %v1043 = vunpack.c.l.b16 %v291
      %v1044 = vunpack.c.l.b16 %v293
      %v1045 = vunpack.c.l.b16 %v294
      %v1046 = vunpack.c.l.b16 %v296
      %v1047 = vunpack.c.l.b16 %v297
      %v1048 = vunpack.c.l.b16 %v299
      %v1049 = vunpack.c.l.b16 %v300
      %v1050 = vunpack.c.l.b16 %v302
      %v1051 = vunpack.c.l.b16 %v303
      %v1052 = vunpack.c.l.b16 %v305
      %v1053 = vunpack.c.l.b16 %v306
      %v1054 = vunpack.c.l.b16 %v308
      %v1055 = vunpack.c.l.b16 %v309
      %v1056 = vunpack.c.l.b16 %v311
      %v1057 = vunpack.c.l.b16 %v312
      %v1058 = vunpack.c.l.b16 %v314
      %v1059 = vunpack.c.l.b16 %v315
      %v1060 = vunpack.c.l.b16 %v317
      %v1061 = vunpack.c.l.b16 %v318
      %v1062 = vunpack.c.l.b16 %v320
      %v1063 = vunpack.c.l.b16 %v321
      %v1064 = vunpack.c.l.b16 %v323
      %v1065 = vunpack.c.l.b16 %v324
      %v1066 = vunpack.c.l.b16 %v326
      %v1067 = vunpack.c.l.b16 %v327
      %v1068 = vunpack.c.l.b16 %v329
      %v1069 = vunpack.c.l.b16 %v330
      %v1070 = vunpack.c.l.b16 %v332
      %v1071 = vunpack.c.l.b16 %v333
      %v1072 = vunpack.c.l.b16 %v335
      %v1073 = vunpack.c.l.b16 %v336
      %v1074 = vpack.c.b16 %v1043, %v1042
      %v1075 = vpack.c.b16 %v1045, %v1044
      %v1076 = vpack.c.b16 %v1047, %v1046
      %v1077 = vpack.c.b16 %v1049, %v1048
      %v1078 = vpack.c.b16 %v1051, %v1050
      %v1079 = vpack.c.b16 %v1053, %v1052
      %v1080 = vpack.c.b16 %v1055, %v1054
      %v1081 = vpack.c.b16 %v1057, %v1056
      %v1082 = vpack.c.b16 %v1059, %v1058
      %v1083 = vpack.c.b16 %v1061, %v1060
      %v1084 = vpack.c.b16 %v1063, %v1062
      %v1085 = vpack.c.b16 %v1065, %v1064
      %v1086 = vpack.c.b16 %v1067, %v1066
      %v1087 = vpack.c.b16 %v1069, %v1068
      %v1088 = vpack.c.b16 %v1071, %v1070
      %v1089 = vpack.c.b16 %v1073, %v1072
      %v1094 = vunpack.c.l.b16 %v344
      %v1095 = vunpack.c.l.b16 %v345
      %v1096 = vunpack.c.l.b16 %v346
      %v1097 = vunpack.c.l.b16 %v347
      %v1098 = vpack.c.b16 %v1095, %v1094
      %v1099 = vpack.c.b16 %v1097, %v1096
      %v1103 = vsel %vm800, %v1074, 0
      %v1106 = vsel %vm800, %v1075, 0
      %v1109 = vsel %vm800, %v1076, 0
      %v1112 = vsel %vm800, %v1077, 0
      %v1115 = vsel %vm800, %v1078, 0
      %v1118 = vsel %vm800, %v1079, 0
      %v1121 = vsel %vm800, %v1080, 0
      %v1124 = vsel %vm800, %v1081, 0
      %v1127 = vsel %vm800, %v1082, 0
      %v1130 = vsel %vm800, %v1083, 0
      %v1133 = vsel %vm800, %v1084, 0
      %v1136 = vsel %vm800, %v1085, 0
      %v1139 = vsel %vm800, %v1086, 0
      %v1142 = vsel %vm800, %v1087, 0
      %v1145 = vsel %vm800, %v1088, 0
      %v1148 = vsel %vm800, %v1089, 0
      %1150 = vmatprep.subr.bf16.mxu0 0
      %1151 = vmatpush1.bf16.msra.mxu0 0
      %1152 = vmatprep.subr.bf16.mxu0 0
      %1153 = vmatpush1.bf16.msra.mxu0 0
      %1154 = vmatprep.subr.bf16.mxu0 0
      %1155 = vmatpush1.bf16.msra.mxu0 0
      %1156 = vmatprep.subr.bf16.mxu0 0
      %1157 = vmatpush1.bf16.msra.mxu0 0
      %1158 = vmatprep.subr.bf16.mxu0 0
      %1159 = vmatpush1.bf16.msra.mxu0 0
      %1160 = vmatprep.subr.bf16.mxu0 0
      %1161 = vmatpush1.bf16.msra.mxu0 0
      %1162 = vmatprep.subr.bf16.mxu0 0
      %1163 = vmatpush1.bf16.msra.mxu0 %v1099
      %1164 = vmatprep.subr.bf16.mxu0 0
      %1165 = vmatpush1.bf16.msra.mxu0 %v1098
      %1166 = vmatprep.subr.bf16.mxu0 0
      %1167 = vmatpush2.bf16.msra.mxu0 0
      %1168 = vmatprep.subr.bf16.mxu0 0
      %1169 = vmatpush2.bf16.msra.mxu0 0
      %1170 = vmatprep.subr.bf16.mxu0 0
      %1171 = vmatpush2.bf16.msra.mxu0 0
      %1172 = vmatprep.subr.bf16.mxu0 0
      %1173 = vmatpush2.bf16.msra.mxu0 0
      %1174 = vmatprep.subr.bf16.mxu0 0
      %1175 = vmatpush2.bf16.msra.mxu0 0
      %1176 = vmatprep.subr.bf16.mxu0 0
      %1177 = vmatpush2.bf16.msra.mxu0 0
      %1178 = vmatprep.subr.bf16.mxu0 0
      %1179 = vmatpush2.bf16.msra.mxu0 0
      %1180 = vmatprep.subr.bf16.mxu0 0
      %1181 = vmatpush2.bf16.msra.mxu0 0
      %1182 = vmatprep.mubr.bf16.mxu0 0
      %1183 = vmatmul.mubr.bf16.gmra.mxu0 %v1103
      %v1184 = vpop.f32.mrf.mxu0
      %v1185 = vadd.f32 %v884, %v1184
      %v1186 = vpop.f32.mrf.mxu0
      %v1187 = vpop.f32.mrf.mxu0
      %v1188 = vadd.f32 %v887, %v1187
      %v1189 = vpop.f32.mrf.mxu0
      %1190 = vmatprep.mubr.bf16.mxu0 0
      %1191 = vmatmul.mubr.bf16.gmra.mxu0 %v1106
      %v1192 = vpop.f32.mrf.mxu0
      %v1193 = vadd.f32 %v892, %v1192
      %v1194 = vpop.f32.mrf.mxu0
      %v1195 = vpop.f32.mrf.mxu0
      %v1196 = vadd.f32 %v895, %v1195
      %v1197 = vpop.f32.mrf.mxu0
      %1198 = vmatprep.mubr.bf16.mxu0 0
      %1199 = vmatmul.mubr.bf16.gmra.mxu0 %v1109
      %v1200 = vpop.f32.mrf.mxu0
      %v1201 = vadd.f32 %v900, %v1200
      %v1202 = vpop.f32.mrf.mxu0
      %v1203 = vpop.f32.mrf.mxu0
      %v1204 = vadd.f32 %v903, %v1203
      %v1205 = vpop.f32.mrf.mxu0
      %1206 = vmatprep.mubr.bf16.mxu0 0
      %1207 = vmatmul.mubr.bf16.gmra.mxu0 %v1112
      %v1208 = vpop.f32.mrf.mxu0
      %v1209 = vadd.f32 %v908, %v1208
      %v1210 = vpop.f32.mrf.mxu0
      %v1211 = vpop.f32.mrf.mxu0
      %v1212 = vadd.f32 %v911, %v1211
      %v1213 = vpop.f32.mrf.mxu0
      %1214 = vmatprep.mubr.bf16.mxu0 0
      %1215 = vmatmul.mubr.bf16.gmra.mxu0 %v1115
      %v1216 = vpop.f32.mrf.mxu0
      %v1217 = vadd.f32 %v916, %v1216
      %v1218 = vpop.f32.mrf.mxu0
      %v1219 = vpop.f32.mrf.mxu0
      %v1220 = vadd.f32 %v919, %v1219
      %v1221 = vpop.f32.mrf.mxu0
      %1222 = vmatprep.mubr.bf16.mxu0 0
      %1223 = vmatmul.mubr.bf16.gmra.mxu0 %v1118
      %v1224 = vpop.f32.mrf.mxu0
      %v1225 = vadd.f32 %v924, %v1224
      %v1226 = vpop.f32.mrf.mxu0
      %v1227 = vpop.f32.mrf.mxu0
      %v1228 = vadd.f32 %v927, %v1227
      %v1229 = vpop.f32.mrf.mxu0
      %1230 = vmatprep.mubr.bf16.mxu0 0
      %1231 = vmatmul.mubr.bf16.gmra.mxu0 %v1121
      %v1232 = vpop.f32.mrf.mxu0
      %v1233 = vadd.f32 %v932, %v1232
      %v1234 = vpop.f32.mrf.mxu0
      %v1235 = vpop.f32.mrf.mxu0
      %v1236 = vadd.f32 %v935, %v1235
      %v1237 = vpop.f32.mrf.mxu0
      %1238 = vmatprep.mubr.bf16.mxu0 0
      %1239 = vmatmul.mubr.bf16.gmra.mxu0 %v1124
      %v1240 = vpop.f32.mrf.mxu0
      %v1241 = vadd.f32 %v940, %v1240
      %v1242 = vpop.f32.mrf.mxu0
      %v1243 = vpop.f32.mrf.mxu0
      %v1244 = vadd.f32 %v943, %v1243
      %v1245 = vpop.f32.mrf.mxu0
      %1246 = vmatprep.mubr.bf16.mxu0 0
      %1247 = vmatmul.mubr.bf16.gmra.mxu0 %v1127
      %v1248 = vpop.f32.mrf.mxu0
      %v1249 = vadd.f32 %v948, %v1248
      %v1250 = vpop.f32.mrf.mxu0
      %v1251 = vpop.f32.mrf.mxu0
      %v1252 = vadd.f32 %v951, %v1251
      %v1253 = vpop.f32.mrf.mxu0
      %1254 = vmatprep.mubr.bf16.mxu0 0
      %1255 = vmatmul.mubr.bf16.gmra.mxu0 %v1130
      %v1256 = vpop.f32.mrf.mxu0
      %v1257 = vadd.f32 %v956, %v1256
      %v1258 = vpop.f32.mrf.mxu0
      %v1259 = vpop.f32.mrf.mxu0
      %v1260 = vadd.f32 %v959, %v1259
      %v1261 = vpop.f32.mrf.mxu0
      %1262 = vmatprep.mubr.bf16.mxu0 0
      %1263 = vmatmul.mubr.bf16.gmra.mxu0 %v1133
      %v1264 = vpop.f32.mrf.mxu0
      %v1265 = vadd.f32 %v964, %v1264
      %v1266 = vpop.f32.mrf.mxu0
      %v1267 = vpop.f32.mrf.mxu0
      %v1268 = vadd.f32 %v967, %v1267
      %v1269 = vpop.f32.mrf.mxu0
      %1270 = vmatprep.mubr.bf16.mxu0 0
      %1271 = vmatmul.mubr.bf16.gmra.mxu0 %v1136
      %v1272 = vpop.f32.mrf.mxu0
      %v1273 = vadd.f32 %v972, %v1272
      %v1274 = vpop.f32.mrf.mxu0
      %v1275 = vpop.f32.mrf.mxu0
      %v1276 = vadd.f32 %v975, %v1275
      %v1277 = vpop.f32.mrf.mxu0
      %1278 = vmatprep.mubr.bf16.mxu0 0
      %1279 = vmatmul.mubr.bf16.gmra.mxu0 %v1139
      %v1280 = vpop.f32.mrf.mxu0
      %v1281 = vadd.f32 %v980, %v1280
      %v1282 = vpop.f32.mrf.mxu0
      %v1283 = vpop.f32.mrf.mxu0
      %v1284 = vadd.f32 %v983, %v1283
      %v1285 = vpop.f32.mrf.mxu0
      %1286 = vmatprep.mubr.bf16.mxu0 0
      %1287 = vmatmul.mubr.bf16.gmra.mxu0 %v1142
      %v1288 = vpop.f32.mrf.mxu0
      %v1289 = vadd.f32 %v988, %v1288
      %v1290 = vpop.f32.mrf.mxu0
      %v1291 = vpop.f32.mrf.mxu0
      %v1292 = vadd.f32 %v991, %v1291
      %v1293 = vpop.f32.mrf.mxu0
      %1294 = vmatprep.mubr.bf16.mxu0 0
      %1295 = vmatmul.mubr.bf16.gmra.mxu0 %v1145
      %v1296 = vpop.f32.mrf.mxu0
      %v1297 = vadd.f32 %v996, %v1296
      %v1298 = vpop.f32.mrf.mxu0
      %v1299 = vpop.f32.mrf.mxu0
      %v1300 = vadd.f32 %v999, %v1299
      %v1301 = vpop.f32.mrf.mxu0
      %1302 = vmatprep.mubr.bf16.mxu0 0
      %1303 = vmatmul.mubr.bf16.gmra.mxu0 %v1148
      %v1304 = vpop.f32.mrf.mxu0
      %v1305 = vadd.f32 %v1004, %v1304
      %v1306 = vpop.f32.mrf.mxu0
      %v1307 = vpop.f32.mrf.mxu0
      %v1308 = vadd.f32 %v1007, %v1307
      %v1309 = vpop.f32.mrf.mxu0
      %1310 = vdwg.mxu0
      %vm1327 = vcmask 1042432
      %vm1328 = vcmask 1046532
      %vm1329 = vmor %vm1327, %vm1328
      %v1330 = vrot.slane %v290, 5
      %v1331 = vrot.slane %v1330, 4
      %v1332 = vrot.slane %v291, 5
      %v1333 = vsel %vm1329, %v1331, %v1332
      %v1334 = vrot.slane %v1332, 4
      %v1335 = vrot.slane %v292, 5
      %v1336 = vsel %vm1329, %v1334, %v1335
      %v1337 = vrot.slane %v293, 5
      %v1338 = vrot.slane %v1337, 4
      %v1339 = vrot.slane %v294, 5
      %v1340 = vsel %vm1329, %v1338, %v1339
      %v1341 = vrot.slane %v1339, 4
      %v1342 = vrot.slane %v295, 5
      %v1343 = vsel %vm1329, %v1341, %v1342
      %v1344 = vrot.slane %v296, 5
      %v1345 = vrot.slane %v1344, 4
      %v1346 = vrot.slane %v297, 5
      %v1347 = vsel %vm1329, %v1345, %v1346
      %v1348 = vrot.slane %v1346, 4
      %v1349 = vrot.slane %v298, 5
      %v1350 = vsel %vm1329, %v1348, %v1349
      %v1351 = vrot.slane %v299, 5
      %v1352 = vrot.slane %v1351, 4
      %v1353 = vrot.slane %v300, 5
      %v1354 = vsel %vm1329, %v1352, %v1353
      %v1355 = vrot.slane %v1353, 4
      %v1356 = vrot.slane %v301, 5
      %v1357 = vsel %vm1329, %v1355, %v1356
      %v1358 = vrot.slane %v302, 5
      %v1359 = vrot.slane %v1358, 4
      %v1360 = vrot.slane %v303, 5
      %v1361 = vsel %vm1329, %v1359, %v1360
      %v1362 = vrot.slane %v1360, 4
      %v1363 = vrot.slane %v304, 5
      %v1364 = vsel %vm1329, %v1362, %v1363
      %v1365 = vrot.slane %v305, 5
      %v1366 = vrot.slane %v1365, 4
      %v1367 = vrot.slane %v306, 5
      %v1368 = vsel %vm1329, %v1366, %v1367
      %v1369 = vrot.slane %v1367, 4
      %v1370 = vrot.slane %v307, 5
      %v1371 = vsel %vm1329, %v1369, %v1370
      %v1372 = vrot.slane %v308, 5
      %v1373 = vrot.slane %v1372, 4
      %v1374 = vrot.slane %v309, 5
      %v1375 = vsel %vm1329, %v1373, %v1374
      %v1376 = vrot.slane %v1374, 4
      %v1377 = vrot.slane %v310, 5
      %v1378 = vsel %vm1329, %v1376, %v1377
      %v1379 = vrot.slane %v311, 5
      %v1380 = vrot.slane %v1379, 4
      %v1381 = vrot.slane %v312, 5
      %v1382 = vsel %vm1329, %v1380, %v1381
      %v1383 = vrot.slane %v1381, 4
      %v1384 = vrot.slane %v313, 5
      %v1385 = vsel %vm1329, %v1383, %v1384
      %v1386 = vrot.slane %v314, 5
      %v1387 = vrot.slane %v1386, 4
      %v1388 = vrot.slane %v315, 5
      %v1389 = vsel %vm1329, %v1387, %v1388
      %v1390 = vrot.slane %v1388, 4
      %v1391 = vrot.slane %v316, 5
      %v1392 = vsel %vm1329, %v1390, %v1391
      %v1393 = vrot.slane %v317, 5
      %v1394 = vrot.slane %v1393, 4
      %v1395 = vrot.slane %v318, 5
      %v1396 = vsel %vm1329, %v1394, %v1395
      %v1397 = vrot.slane %v1395, 4
      %v1398 = vrot.slane %v319, 5
      %v1399 = vsel %vm1329, %v1397, %v1398
      %v1400 = vrot.slane %v320, 5
      %v1401 = vrot.slane %v1400, 4
      %v1402 = vrot.slane %v321, 5
      %v1403 = vsel %vm1329, %v1401, %v1402
      %v1404 = vrot.slane %v1402, 4
      %v1405 = vrot.slane %v322, 5
      %v1406 = vsel %vm1329, %v1404, %v1405
      %v1407 = vrot.slane %v323, 5
      %v1408 = vrot.slane %v1407, 4
      %v1409 = vrot.slane %v324, 5
      %v1410 = vsel %vm1329, %v1408, %v1409
      %v1411 = vrot.slane %v1409, 4
      %v1412 = vrot.slane %v325, 5
      %v1413 = vsel %vm1329, %v1411, %v1412
      %v1414 = vrot.slane %v326, 5
      %v1415 = vrot.slane %v1414, 4
      %v1416 = vrot.slane %v327, 5
      %v1417 = vsel %vm1329, %v1415, %v1416
      %v1418 = vrot.slane %v1416, 4
      %v1419 = vrot.slane %v328, 5
      %v1420 = vsel %vm1329, %v1418, %v1419
      %v1421 = vrot.slane %v329, 5
      %v1422 = vrot.slane %v1421, 4
      %v1423 = vrot.slane %v330, 5
      %v1424 = vsel %vm1329, %v1422, %v1423
      %v1425 = vrot.slane %v1423, 4
      %v1426 = vrot.slane %v331, 5
      %v1427 = vsel %vm1329, %v1425, %v1426
      %v1428 = vrot.slane %v332, 5
      %v1429 = vrot.slane %v1428, 4
      %v1430 = vrot.slane %v333, 5
      %v1431 = vsel %vm1329, %v1429, %v1430
      %v1432 = vrot.slane %v1430, 4
      %v1433 = vrot.slane %v334, 5
      %v1434 = vsel %vm1329, %v1432, %v1433
      %v1435 = vrot.slane %v335, 5
      %v1436 = vrot.slane %v1435, 4
      %v1437 = vrot.slane %v336, 5
      %v1438 = vsel %vm1329, %v1436, %v1437
      %v1439 = vrot.slane %v1437, 4
      %v1440 = vrot.slane %v337, 5
      %v1441 = vsel %vm1329, %v1439, %v1440
      %s1442 = scalar_lea.vmem %s268, 32
      %v1443 = vld [vmem:[%s1442] sm:$0xf]
      %v1444 = vld [vmem:[%s1442 + $0x4] sm:$0xf]
      %v1445 = vld [vmem:[%s1442 + $0x8] sm:$0xf]
      %v1446 = vld [vmem:[%s1442 + $0xc] sm:$0xf]
      %v1447 = vunpack.c.l.b16 %v1333
      %v1448 = vunpack.c.l.b16 %v1336
      %v1449 = vunpack.c.l.b16 %v1340
      %v1450 = vunpack.c.l.b16 %v1343
      %v1451 = vunpack.c.l.b16 %v1347
      %v1452 = vunpack.c.l.b16 %v1350
      %v1453 = vunpack.c.l.b16 %v1354
      %v1454 = vunpack.c.l.b16 %v1357
      %v1455 = vunpack.c.l.b16 %v1361
      %v1456 = vunpack.c.l.b16 %v1364
      %v1457 = vunpack.c.l.b16 %v1368
      %v1458 = vunpack.c.l.b16 %v1371
      %v1459 = vunpack.c.l.b16 %v1375
      %v1460 = vunpack.c.l.b16 %v1378
      %v1461 = vunpack.c.l.b16 %v1382
      %v1462 = vunpack.c.l.b16 %v1385
      %v1463 = vunpack.c.l.b16 %v1389
      %v1464 = vunpack.c.l.b16 %v1392
      %v1465 = vunpack.c.l.b16 %v1396
      %v1466 = vunpack.c.l.b16 %v1399
      %v1467 = vunpack.c.l.b16 %v1403
      %v1468 = vunpack.c.l.b16 %v1406
      %v1469 = vunpack.c.l.b16 %v1410
      %v1470 = vunpack.c.l.b16 %v1413
      %v1471 = vunpack.c.l.b16 %v1417
      %v1472 = vunpack.c.l.b16 %v1420
      %v1473 = vunpack.c.l.b16 %v1424
      %v1474 = vunpack.c.l.b16 %v1427
      %v1475 = vunpack.c.l.b16 %v1431
      %v1476 = vunpack.c.l.b16 %v1434
      %v1477 = vunpack.c.l.b16 %v1438
      %v1478 = vunpack.c.l.b16 %v1441
      %v1479 = vpack.c.b16 %v1448, %v1447
      %v1480 = vpack.c.b16 %v1450, %v1449
      %v1481 = vpack.c.b16 %v1452, %v1451
      %v1482 = vpack.c.b16 %v1454, %v1453
      %v1483 = vpack.c.b16 %v1456, %v1455
      %v1484 = vpack.c.b16 %v1458, %v1457
      %v1485 = vpack.c.b16 %v1460, %v1459
      %v1486 = vpack.c.b16 %v1462, %v1461
      %v1487 = vpack.c.b16 %v1464, %v1463
      %v1488 = vpack.c.b16 %v1466, %v1465
      %v1489 = vpack.c.b16 %v1468, %v1467
      %v1490 = vpack.c.b16 %v1470, %v1469
      %v1491 = vpack.c.b16 %v1472, %v1471
      %v1492 = vpack.c.b16 %v1474, %v1473
      %v1493 = vpack.c.b16 %v1476, %v1475
      %v1494 = vpack.c.b16 %v1478, %v1477
      %v1499 = vunpack.c.l.b16 %v1443
      %v1500 = vunpack.c.l.b16 %v1444
      %v1501 = vunpack.c.l.b16 %v1445
      %v1502 = vunpack.c.l.b16 %v1446
      %v1503 = vpack.c.b16 %v1500, %v1499
      %v1504 = vpack.c.b16 %v1502, %v1501
      %v1508 = vsel %vm800, %v1479, 0
      %v1511 = vsel %vm800, %v1480, 0
      %v1514 = vsel %vm800, %v1481, 0
      %v1517 = vsel %vm800, %v1482, 0
      %v1520 = vsel %vm800, %v1483, 0
      %v1523 = vsel %vm800, %v1484, 0
      %v1526 = vsel %vm800, %v1485, 0
      %v1529 = vsel %vm800, %v1486, 0
      %v1532 = vsel %vm800, %v1487, 0
      %v1535 = vsel %vm800, %v1488, 0
      %v1538 = vsel %vm800, %v1489, 0
      %v1541 = vsel %vm800, %v1490, 0
      %v1544 = vsel %vm800, %v1491, 0
      %v1547 = vsel %vm800, %v1492, 0
      %v1550 = vsel %vm800, %v1493, 0
      %v1553 = vsel %vm800, %v1494, 0
      %1555 = vmatprep.subr.bf16.mxu0 0
      %1556 = vmatpush1.bf16.msra.mxu0 0
      %1557 = vmatprep.subr.bf16.mxu0 0
      %1558 = vmatpush1.bf16.msra.mxu0 0
      %1559 = vmatprep.subr.bf16.mxu0 0
      %1560 = vmatpush1.bf16.msra.mxu0 0
      %1561 = vmatprep.subr.bf16.mxu0 0
      %1562 = vmatpush1.bf16.msra.mxu0 0
      %1563 = vmatprep.subr.bf16.mxu0 0
      %1564 = vmatpush1.bf16.msra.mxu0 0
      %1565 = vmatprep.subr.bf16.mxu0 0
      %1566 = vmatpush1.bf16.msra.mxu0 0
      %1567 = vmatprep.subr.bf16.mxu0 0
      %1568 = vmatpush1.bf16.msra.mxu0 %v1504
      %1569 = vmatprep.subr.bf16.mxu0 0
      %1570 = vmatpush1.bf16.msra.mxu0 %v1503
      %1571 = vmatprep.subr.bf16.mxu0 0
      %1572 = vmatpush2.bf16.msra.mxu0 0
      %1573 = vmatprep.subr.bf16.mxu0 0
      %1574 = vmatpush2.bf16.msra.mxu0 0
      %1575 = vmatprep.subr.bf16.mxu0 0
      %1576 = vmatpush2.bf16.msra.mxu0 0
      %1577 = vmatprep.subr.bf16.mxu0 0
      %1578 = vmatpush2.bf16.msra.mxu0 0
      %1579 = vmatprep.subr.bf16.mxu0 0
      %1580 = vmatpush2.bf16.msra.mxu0 0
      %1581 = vmatprep.subr.bf16.mxu0 0
      %1582 = vmatpush2.bf16.msra.mxu0 0
      %1583 = vmatprep.subr.bf16.mxu0 0
      %1584 = vmatpush2.bf16.msra.mxu0 0
      %1585 = vmatprep.subr.bf16.mxu0 0
      %1586 = vmatpush2.bf16.msra.mxu0 0
      %1587 = vmatprep.mubr.bf16.mxu0 0
      %1588 = vmatmul.mubr.bf16.gmra.mxu0 %v1508
      %v1589 = vpop.f32.mrf.mxu0
      %v1590 = vadd.f32 0.0, %v1589
      %v1591 = vpop.f32.mrf.mxu0
      %v1592 = vpop.f32.mrf.mxu0
      %v1593 = vadd.f32 0.0, %v1592
      %v1594 = vpop.f32.mrf.mxu0
      %1595 = vmatprep.mubr.bf16.mxu0 0
      %1596 = vmatmul.mubr.bf16.gmra.mxu0 %v1511
      %v1597 = vpop.f32.mrf.mxu0
      %v1598 = vadd.f32 0.0, %v1597
      %v1599 = vpop.f32.mrf.mxu0
      %v1600 = vpop.f32.mrf.mxu0
      %v1601 = vadd.f32 0.0, %v1600
      %v1602 = vpop.f32.mrf.mxu0
      %1603 = vmatprep.mubr.bf16.mxu0 0
      %1604 = vmatmul.mubr.bf16.gmra.mxu0 %v1514
      %v1605 = vpop.f32.mrf.mxu0
      %v1606 = vadd.f32 0.0, %v1605
      %v1607 = vpop.f32.mrf.mxu0
      %v1608 = vpop.f32.mrf.mxu0
      %v1609 = vadd.f32 0.0, %v1608
      %v1610 = vpop.f32.mrf.mxu0
      %1611 = vmatprep.mubr.bf16.mxu0 0
      %1612 = vmatmul.mubr.bf16.gmra.mxu0 %v1517
      %v1613 = vpop.f32.mrf.mxu0
      %v1614 = vadd.f32 0.0, %v1613
      %v1615 = vpop.f32.mrf.mxu0
      %v1616 = vpop.f32.mrf.mxu0
      %v1617 = vadd.f32 0.0, %v1616
      %v1618 = vpop.f32.mrf.mxu0
      %1619 = vmatprep.mubr.bf16.mxu0 0
      %1620 = vmatmul.mubr.bf16.gmra.mxu0 %v1520
      %v1621 = vpop.f32.mrf.mxu0
      %v1622 = vadd.f32 0.0, %v1621
      %v1623 = vpop.f32.mrf.mxu0
      %v1624 = vpop.f32.mrf.mxu0
      %v1625 = vadd.f32 0.0, %v1624
      %v1626 = vpop.f32.mrf.mxu0
      %1627 = vmatprep.mubr.bf16.mxu0 0
      %1628 = vmatmul.mubr.bf16.gmra.mxu0 %v1523
      %v1629 = vpop.f32.mrf.mxu0
      %v1630 = vadd.f32 0.0, %v1629
      %v1631 = vpop.f32.mrf.mxu0
      %v1632 = vpop.f32.mrf.mxu0
      %v1633 = vadd.f32 0.0, %v1632
      %v1634 = vpop.f32.mrf.mxu0
      %1635 = vmatprep.mubr.bf16.mxu0 0
      %1636 = vmatmul.mubr.bf16.gmra.mxu0 %v1526
      %v1637 = vpop.f32.mrf.mxu0
      %v1638 = vadd.f32 0.0, %v1637
      %v1639 = vpop.f32.mrf.mxu0
      %v1640 = vpop.f32.mrf.mxu0
      %v1641 = vadd.f32 0.0, %v1640
      %v1642 = vpop.f32.mrf.mxu0
      %1643 = vmatprep.mubr.bf16.mxu0 0
      %1644 = vmatmul.mubr.bf16.gmra.mxu0 %v1529
      %v1645 = vpop.f32.mrf.mxu0
      %v1646 = vadd.f32 0.0, %v1645
      %v1647 = vpop.f32.mrf.mxu0
      %v1648 = vpop.f32.mrf.mxu0
      %v1649 = vadd.f32 0.0, %v1648
      %v1650 = vpop.f32.mrf.mxu0
      %1651 = vmatprep.mubr.bf16.mxu0 0
      %1652 = vmatmul.mubr.bf16.gmra.mxu0 %v1532
      %v1653 = vpop.f32.mrf.mxu0
      %v1654 = vadd.f32 0.0, %v1653
      %v1655 = vpop.f32.mrf.mxu0
      %v1656 = vpop.f32.mrf.mxu0
      %v1657 = vadd.f32 0.0, %v1656
      %v1658 = vpop.f32.mrf.mxu0
      %1659 = vmatprep.mubr.bf16.mxu0 0
      %1660 = vmatmul.mubr.bf16.gmra.mxu0 %v1535
      %v1661 = vpop.f32.mrf.mxu0
      %v1662 = vadd.f32 0.0, %v1661
      %v1663 = vpop.f32.mrf.mxu0
      %v1664 = vpop.f32.mrf.mxu0
      %v1665 = vadd.f32 0.0, %v1664
      %v1666 = vpop.f32.mrf.mxu0
      %1667 = vmatprep.mubr.bf16.mxu0 0
      %1668 = vmatmul.mubr.bf16.gmra.mxu0 %v1538
      %v1669 = vpop.f32.mrf.mxu0
      %v1670 = vadd.f32 0.0, %v1669
      %v1671 = vpop.f32.mrf.mxu0
      %v1672 = vpop.f32.mrf.mxu0
      %v1673 = vadd.f32 0.0, %v1672
      %v1674 = vpop.f32.mrf.mxu0
      %1675 = vmatprep.mubr.bf16.mxu0 0
      %1676 = vmatmul.mubr.bf16.gmra.mxu0 %v1541
      %v1677 = vpop.f32.mrf.mxu0
      %v1678 = vadd.f32 0.0, %v1677
      %v1679 = vpop.f32.mrf.mxu0
      %v1680 = vpop.f32.mrf.mxu0
      %v1681 = vadd.f32 0.0, %v1680
      %v1682 = vpop.f32.mrf.mxu0
      %1683 = vmatprep.mubr.bf16.mxu0 0
      %1684 = vmatmul.mubr.bf16.gmra.mxu0 %v1544
      %v1685 = vpop.f32.mrf.mxu0
      %v1686 = vadd.f32 0.0, %v1685
      %v1687 = vpop.f32.mrf.mxu0
      %v1688 = vpop.f32.mrf.mxu0
      %v1689 = vadd.f32 0.0, %v1688
      %v1690 = vpop.f32.mrf.mxu0
      %1691 = vmatprep.mubr.bf16.mxu0 0
      %1692 = vmatmul.mubr.bf16.gmra.mxu0 %v1547
      %v1693 = vpop.f32.mrf.mxu0
      %v1694 = vadd.f32 0.0, %v1693
      %v1695 = vpop.f32.mrf.mxu0
      %v1696 = vpop.f32.mrf.mxu0
      %v1697 = vadd.f32 0.0, %v1696
      %v1698 = vpop.f32.mrf.mxu0
      %1699 = vmatprep.mubr.bf16.mxu0 0
      %1700 = vmatmul.mubr.bf16.gmra.mxu0 %v1550
      %v1701 = vpop.f32.mrf.mxu0
      %v1702 = vadd.f32 0.0, %v1701
      %v1703 = vpop.f32.mrf.mxu0
      %v1704 = vpop.f32.mrf.mxu0
      %v1705 = vadd.f32 0.0, %v1704
      %v1706 = vpop.f32.mrf.mxu0
      %1707 = vmatprep.mubr.bf16.mxu0 0
      %1708 = vmatmul.mubr.bf16.gmra.mxu0 %v1553
      %v1709 = vpop.f32.mrf.mxu0
      %v1710 = vadd.f32 0.0, %v1709
      %v1711 = vpop.f32.mrf.mxu0
      %v1712 = vpop.f32.mrf.mxu0
      %v1713 = vadd.f32 0.0, %v1712
      %v1714 = vpop.f32.mrf.mxu0
      %1715 = vdwg.mxu0
      %v1716 = vadd.f32 %v1185, %v1590
      %v1717 = vadd.f32 %v1188, %v1593
      %v1718 = vadd.f32 %v1193, %v1598
      %v1719 = vadd.f32 %v1196, %v1601
      %v1720 = vadd.f32 %v1201, %v1606
      %v1721 = vadd.f32 %v1204, %v1609
      %v1722 = vadd.f32 %v1209, %v1614
      %v1723 = vadd.f32 %v1212, %v1617
      %v1724 = vadd.f32 %v1217, %v1622
      %v1725 = vadd.f32 %v1220, %v1625
      %v1726 = vadd.f32 %v1225, %v1630
      %v1727 = vadd.f32 %v1228, %v1633
      %v1728 = vadd.f32 %v1233, %v1638
      %v1729 = vadd.f32 %v1236, %v1641
      %v1730 = vadd.f32 %v1241, %v1646
      %v1731 = vadd.f32 %v1244, %v1649
      %v1732 = vadd.f32 %v1249, %v1654
      %v1733 = vadd.f32 %v1252, %v1657
      %v1734 = vadd.f32 %v1257, %v1662
      %v1735 = vadd.f32 %v1260, %v1665
      %v1736 = vadd.f32 %v1265, %v1670
      %v1737 = vadd.f32 %v1268, %v1673
      %v1738 = vadd.f32 %v1273, %v1678
      %v1739 = vadd.f32 %v1276, %v1681
      %v1740 = vadd.f32 %v1281, %v1686
      %v1741 = vadd.f32 %v1284, %v1689
      %v1742 = vadd.f32 %v1289, %v1694
      %v1743 = vadd.f32 %v1292, %v1697
      %v1744 = vadd.f32 %v1297, %v1702
      %v1745 = vadd.f32 %v1300, %v1705
      %v1746 = vadd.f32 %v1305, %v1710
      %v1747 = vadd.f32 %v1308, %v1713
      %s1748 = scalar_lea.vmem %s268, 48
      %v1749 = vld [vmem:[%s1748] sm:$0xf]
      %v1750 = vld [vmem:[%s1748 + $0x4] sm:$0xf]
      %v1751 = vld [vmem:[%s1748 + $0x8] sm:$0xf]
      %v1752 = vld [vmem:[%s1748 + $0xc] sm:$0xf]
      %v1755 = vunpack.c.l.b16 %v338
      %v1756 = vunpack.c.l.b16 %v339
      %v1757 = vpack.c.b16 %v1756, %v1755
      %v1762 = vunpack.c.l.b16 %v1749
      %v1763 = vunpack.c.l.b16 %v1750
      %v1764 = vunpack.c.l.b16 %v1751
      %v1765 = vunpack.c.l.b16 %v1752
      %v1766 = vpack.c.b16 %v1763, %v1762
      %v1767 = vpack.c.b16 %v1765, %v1764
      %v1771 = vsel %vm800, %v1757, 0
      %1773 = vmatprep.subr.bf16.mxu0 0
      %1774 = vmatpush1.bf16.msra.mxu0 0
      %1775 = vmatprep.subr.bf16.mxu0 0
      %1776 = vmatpush1.bf16.msra.mxu0 0
      %1777 = vmatprep.subr.bf16.mxu0 0
      %1778 = vmatpush1.bf16.msra.mxu0 0
      %1779 = vmatprep.subr.bf16.mxu0 0
      %1780 = vmatpush1.bf16.msra.mxu0 0
      %1781 = vmatprep.subr.bf16.mxu0 0
      %1782 = vmatpush1.bf16.msra.mxu0 0
      %1783 = vmatprep.subr.bf16.mxu0 0
      %1784 = vmatpush1.bf16.msra.mxu0 0
      %1785 = vmatprep.subr.bf16.mxu0 0
      %1786 = vmatpush1.bf16.msra.mxu0 %v1767
      %1787 = vmatprep.subr.bf16.mxu0 0
      %1788 = vmatpush1.bf16.msra.mxu0 %v1766
      %1789 = vmatprep.subr.bf16.mxu0 0
      %1790 = vmatpush2.bf16.msra.mxu0 0
      %1791 = vmatprep.subr.bf16.mxu0 0
      %1792 = vmatpush2.bf16.msra.mxu0 0
      %1793 = vmatprep.subr.bf16.mxu0 0
      %1794 = vmatpush2.bf16.msra.mxu0 0
      %1795 = vmatprep.subr.bf16.mxu0 0
      %1796 = vmatpush2.bf16.msra.mxu0 0
      %1797 = vmatprep.subr.bf16.mxu0 0
      %1798 = vmatpush2.bf16.msra.mxu0 0
      %1799 = vmatprep.subr.bf16.mxu0 0
      %1800 = vmatpush2.bf16.msra.mxu0 0
      %1801 = vmatprep.subr.bf16.mxu0 0
      %1802 = vmatpush2.bf16.msra.mxu0 0
      %1803 = vmatprep.subr.bf16.mxu0 0
      %1804 = vmatpush2.bf16.msra.mxu0 0
      %1805 = vmatprep.mubr.bf16.mxu0 0
      %1806 = vmatmul.mubr.bf16.gmra.mxu0 %v1106
      %v1807 = vpop.f32.mrf.mxu0
      %v1808 = vadd.f32 0.0, %v1807
      %v1809 = vpop.f32.mrf.mxu0
      %v1810 = vpop.f32.mrf.mxu0
      %v1811 = vadd.f32 0.0, %v1810
      %v1812 = vpop.f32.mrf.mxu0
      %1813 = vmatprep.mubr.bf16.mxu0 0
      %1814 = vmatmul.mubr.bf16.gmra.mxu0 %v1109
      %v1815 = vpop.f32.mrf.mxu0
      %v1816 = vadd.f32 0.0, %v1815
      %v1817 = vpop.f32.mrf.mxu0
      %v1818 = vpop.f32.mrf.mxu0
      %v1819 = vadd.f32 0.0, %v1818
      %v1820 = vpop.f32.mrf.mxu0
      %1821 = vmatprep.mubr.bf16.mxu0 0
      %1822 = vmatmul.mubr.bf16.gmra.mxu0 %v1112
      %v1823 = vpop.f32.mrf.mxu0
      %v1824 = vadd.f32 0.0, %v1823
      %v1825 = vpop.f32.mrf.mxu0
      %v1826 = vpop.f32.mrf.mxu0
      %v1827 = vadd.f32 0.0, %v1826
      %v1828 = vpop.f32.mrf.mxu0
      %1829 = vmatprep.mubr.bf16.mxu0 0
      %1830 = vmatmul.mubr.bf16.gmra.mxu0 %v1115
      %v1831 = vpop.f32.mrf.mxu0
      %v1832 = vadd.f32 0.0, %v1831
      %v1833 = vpop.f32.mrf.mxu0
      %v1834 = vpop.f32.mrf.mxu0
      %v1835 = vadd.f32 0.0, %v1834
      %v1836 = vpop.f32.mrf.mxu0
      %1837 = vmatprep.mubr.bf16.mxu0 0
      %1838 = vmatmul.mubr.bf16.gmra.mxu0 %v1118
      %v1839 = vpop.f32.mrf.mxu0
      %v1840 = vadd.f32 0.0, %v1839
      %v1841 = vpop.f32.mrf.mxu0
      %v1842 = vpop.f32.mrf.mxu0
      %v1843 = vadd.f32 0.0, %v1842
      %v1844 = vpop.f32.mrf.mxu0
      %1845 = vmatprep.mubr.bf16.mxu0 0
      %1846 = vmatmul.mubr.bf16.gmra.mxu0 %v1121
      %v1847 = vpop.f32.mrf.mxu0
      %v1848 = vadd.f32 0.0, %v1847
      %v1849 = vpop.f32.mrf.mxu0
      %v1850 = vpop.f32.mrf.mxu0
      %v1851 = vadd.f32 0.0, %v1850
      %v1852 = vpop.f32.mrf.mxu0
      %1853 = vmatprep.mubr.bf16.mxu0 0
      %1854 = vmatmul.mubr.bf16.gmra.mxu0 %v1124
      %v1855 = vpop.f32.mrf.mxu0
      %v1856 = vadd.f32 0.0, %v1855
      %v1857 = vpop.f32.mrf.mxu0
      %v1858 = vpop.f32.mrf.mxu0
      %v1859 = vadd.f32 0.0, %v1858
      %v1860 = vpop.f32.mrf.mxu0
      %1861 = vmatprep.mubr.bf16.mxu0 0
      %1862 = vmatmul.mubr.bf16.gmra.mxu0 %v1127
      %v1863 = vpop.f32.mrf.mxu0
      %v1864 = vadd.f32 0.0, %v1863
      %v1865 = vpop.f32.mrf.mxu0
      %v1866 = vpop.f32.mrf.mxu0
      %v1867 = vadd.f32 0.0, %v1866
      %v1868 = vpop.f32.mrf.mxu0
      %1869 = vmatprep.mubr.bf16.mxu0 0
      %1870 = vmatmul.mubr.bf16.gmra.mxu0 %v1130
      %v1871 = vpop.f32.mrf.mxu0
      %v1872 = vadd.f32 0.0, %v1871
      %v1873 = vpop.f32.mrf.mxu0
      %v1874 = vpop.f32.mrf.mxu0
      %v1875 = vadd.f32 0.0, %v1874
      %v1876 = vpop.f32.mrf.mxu0
      %1877 = vmatprep.mubr.bf16.mxu0 0
      %1878 = vmatmul.mubr.bf16.gmra.mxu0 %v1133
      %v1879 = vpop.f32.mrf.mxu0
      %v1880 = vadd.f32 0.0, %v1879
      %v1881 = vpop.f32.mrf.mxu0
      %v1882 = vpop.f32.mrf.mxu0
      %v1883 = vadd.f32 0.0, %v1882
      %v1884 = vpop.f32.mrf.mxu0
      %1885 = vmatprep.mubr.bf16.mxu0 0
      %1886 = vmatmul.mubr.bf16.gmra.mxu0 %v1136
      %v1887 = vpop.f32.mrf.mxu0
      %v1888 = vadd.f32 0.0, %v1887
      %v1889 = vpop.f32.mrf.mxu0
      %v1890 = vpop.f32.mrf.mxu0
      %v1891 = vadd.f32 0.0, %v1890
      %v1892 = vpop.f32.mrf.mxu0
      %1893 = vmatprep.mubr.bf16.mxu0 0
      %1894 = vmatmul.mubr.bf16.gmra.mxu0 %v1139
      %v1895 = vpop.f32.mrf.mxu0
      %v1896 = vadd.f32 0.0, %v1895
      %v1897 = vpop.f32.mrf.mxu0
      %v1898 = vpop.f32.mrf.mxu0
      %v1899 = vadd.f32 0.0, %v1898
      %v1900 = vpop.f32.mrf.mxu0
      %1901 = vmatprep.mubr.bf16.mxu0 0
      %1902 = vmatmul.mubr.bf16.gmra.mxu0 %v1142
      %v1903 = vpop.f32.mrf.mxu0
      %v1904 = vadd.f32 0.0, %v1903
      %v1905 = vpop.f32.mrf.mxu0
      %v1906 = vpop.f32.mrf.mxu0
      %v1907 = vadd.f32 0.0, %v1906
      %v1908 = vpop.f32.mrf.mxu0
      %1909 = vmatprep.mubr.bf16.mxu0 0
      %1910 = vmatmul.mubr.bf16.gmra.mxu0 %v1145
      %v1911 = vpop.f32.mrf.mxu0
      %v1912 = vadd.f32 0.0, %v1911
      %v1913 = vpop.f32.mrf.mxu0
      %v1914 = vpop.f32.mrf.mxu0
      %v1915 = vadd.f32 0.0, %v1914
      %v1916 = vpop.f32.mrf.mxu0
      %1917 = vmatprep.mubr.bf16.mxu0 0
      %1918 = vmatmul.mubr.bf16.gmra.mxu0 %v1148
      %v1919 = vpop.f32.mrf.mxu0
      %v1920 = vadd.f32 0.0, %v1919
      %v1921 = vpop.f32.mrf.mxu0
      %v1922 = vpop.f32.mrf.mxu0
      %v1923 = vadd.f32 0.0, %v1922
      %v1924 = vpop.f32.mrf.mxu0
      %1925 = vmatprep.mubr.bf16.mxu0 0
      %1926 = vmatmul.mubr.bf16.gmra.mxu0 %v1771
      %v1927 = vpop.f32.mrf.mxu0
      %v1928 = vadd.f32 0.0, %v1927
      %v1929 = vpop.f32.mrf.mxu0
      %v1930 = vpop.f32.mrf.mxu0
      %v1931 = vadd.f32 0.0, %v1930
      %v1932 = vpop.f32.mrf.mxu0
      %1933 = vdwg.mxu0
      %v1934 = vadd.f32 %v1716, %v1808
      %v1935 = vadd.f32 %v1717, %v1811
      %v1936 = vadd.f32 %v1718, %v1816
      %v1937 = vadd.f32 %v1719, %v1819
      %v1938 = vadd.f32 %v1720, %v1824
      %v1939 = vadd.f32 %v1721, %v1827
      %v1940 = vadd.f32 %v1722, %v1832
      %v1941 = vadd.f32 %v1723, %v1835
      %v1942 = vadd.f32 %v1724, %v1840
      %v1943 = vadd.f32 %v1725, %v1843
      %v1944 = vadd.f32 %v1726, %v1848
      %v1945 = vadd.f32 %v1727, %v1851
      %v1946 = vadd.f32 %v1728, %v1856
      %v1947 = vadd.f32 %v1729, %v1859
      %v1948 = vadd.f32 %v1730, %v1864
      %v1949 = vadd.f32 %v1731, %v1867
      %v1950 = vadd.f32 %v1732, %v1872
      %v1951 = vadd.f32 %v1733, %v1875
      %v1952 = vadd.f32 %v1734, %v1880
      %v1953 = vadd.f32 %v1735, %v1883
      %v1954 = vadd.f32 %v1736, %v1888
      %v1955 = vadd.f32 %v1737, %v1891
      %v1956 = vadd.f32 %v1738, %v1896
      %v1957 = vadd.f32 %v1739, %v1899
      %v1958 = vadd.f32 %v1740, %v1904
      %v1959 = vadd.f32 %v1741, %v1907
      %v1960 = vadd.f32 %v1742, %v1912
      %v1961 = vadd.f32 %v1743, %v1915
      %v1962 = vadd.f32 %v1744, %v1920
      %v1963 = vadd.f32 %v1745, %v1923
      %v1964 = vadd.f32 %v1746, %v1928
      %v1965 = vadd.f32 %v1747, %v1931
      %v1967 = vshrl.u32 %v338, 16
      %v1969 = vrot.slane %v1967, 4
      %v1970 = vshll.u32 %v338, 16
      %v1972 = vrot.slane %v1970, 5
      %v1973 = vor.u32 %v1969, %v1972
      %v1974 = vrot.slane %v1973, 4
      %v1976 = vshll.u32 %v339, 16
      %v1978 = vrot.slane %v1976, 5
      %v1979 = vsel %vm350, %v1974, %v1978
      %v1980 = vshrl.u32 %v339, 16
      %v1982 = vrot.slane %v1980, 4
      %v1983 = vor.u32 %v1982, %v1978
      %v1984 = vrot.slane %v1983, 4
      %v1986 = vshll.u32 %v340, 16
      %v1988 = vrot.slane %v1986, 5
      %v1989 = vsel %vm350, %v1984, %v1988
      %s1990 = scalar_lea.vmem %s268, 64
      %v1991 = vld [vmem:[%s1990] sm:$0xf]
      %v1992 = vld [vmem:[%s1990 + $0x4] sm:$0xf]
      %v1993 = vld [vmem:[%s1990 + $0x8] sm:$0xf]
      %v1994 = vld [vmem:[%s1990 + $0xc] sm:$0xf]
      %v1995 = vunpack.c.l.b16 %v1979
      %v1996 = vunpack.c.l.b16 %v1989
      %v1997 = vpack.c.b16 %v1996, %v1995
      %v2002 = vunpack.c.l.b16 %v1991
      %v2003 = vunpack.c.l.b16 %v1992
      %v2004 = vunpack.c.l.b16 %v1993
      %v2005 = vunpack.c.l.b16 %v1994
      %v2006 = vpack.c.b16 %v2003, %v2002
      %v2007 = vpack.c.b16 %v2005, %v2004
      %v2011 = vsel %vm800, %v1997, 0
      %2013 = vmatprep.subr.bf16.mxu0 0
      %2014 = vmatpush1.bf16.msra.mxu0 0
      %2015 = vmatprep.subr.bf16.mxu0 0
      %2016 = vmatpush1.bf16.msra.mxu0 0
      %2017 = vmatprep.subr.bf16.mxu0 0
      %2018 = vmatpush1.bf16.msra.mxu0 0
      %2019 = vmatprep.subr.bf16.mxu0 0
      %2020 = vmatpush1.bf16.msra.mxu0 0
      %2021 = vmatprep.subr.bf16.mxu0 0
      %2022 = vmatpush1.bf16.msra.mxu0 0
      %2023 = vmatprep.subr.bf16.mxu0 0
      %2024 = vmatpush1.bf16.msra.mxu0 0
      %2025 = vmatprep.subr.bf16.mxu0 0
      %2026 = vmatpush1.bf16.msra.mxu0 %v2007
      %2027 = vmatprep.subr.bf16.mxu0 0
      %2028 = vmatpush1.bf16.msra.mxu0 %v2006
      %2029 = vmatprep.subr.bf16.mxu0 0
      %2030 = vmatpush2.bf16.msra.mxu0 0
      %2031 = vmatprep.subr.bf16.mxu0 0
      %2032 = vmatpush2.bf16.msra.mxu0 0
      %2033 = vmatprep.subr.bf16.mxu0 0
      %2034 = vmatpush2.bf16.msra.mxu0 0
      %2035 = vmatprep.subr.bf16.mxu0 0
      %2036 = vmatpush2.bf16.msra.mxu0 0
      %2037 = vmatprep.subr.bf16.mxu0 0
      %2038 = vmatpush2.bf16.msra.mxu0 0
      %2039 = vmatprep.subr.bf16.mxu0 0
      %2040 = vmatpush2.bf16.msra.mxu0 0
      %2041 = vmatprep.subr.bf16.mxu0 0
      %2042 = vmatpush2.bf16.msra.mxu0 0
      %2043 = vmatprep.subr.bf16.mxu0 0
      %2044 = vmatpush2.bf16.msra.mxu0 0
      %2045 = vmatprep.mubr.bf16.mxu0 0
      %2046 = vmatmul.mubr.bf16.gmra.mxu0 %v805
      %v2047 = vpop.f32.mrf.mxu0
      %v2048 = vadd.f32 0.0, %v2047
      %v2049 = vpop.f32.mrf.mxu0
      %v2050 = vpop.f32.mrf.mxu0
      %v2051 = vadd.f32 0.0, %v2050
      %v2052 = vpop.f32.mrf.mxu0
      %2053 = vmatprep.mubr.bf16.mxu0 0
      %2054 = vmatmul.mubr.bf16.gmra.mxu0 %v808
      %v2055 = vpop.f32.mrf.mxu0
      %v2056 = vadd.f32 0.0, %v2055
      %v2057 = vpop.f32.mrf.mxu0
      %v2058 = vpop.f32.mrf.mxu0
      %v2059 = vadd.f32 0.0, %v2058
      %v2060 = vpop.f32.mrf.mxu0
      %2061 = vmatprep.mubr.bf16.mxu0 0
      %2062 = vmatmul.mubr.bf16.gmra.mxu0 %v811
      %v2063 = vpop.f32.mrf.mxu0
      %v2064 = vadd.f32 0.0, %v2063
      %v2065 = vpop.f32.mrf.mxu0
      %v2066 = vpop.f32.mrf.mxu0
      %v2067 = vadd.f32 0.0, %v2066
      %v2068 = vpop.f32.mrf.mxu0
      %2069 = vmatprep.mubr.bf16.mxu0 0
      %2070 = vmatmul.mubr.bf16.gmra.mxu0 %v814
      %v2071 = vpop.f32.mrf.mxu0
      %v2072 = vadd.f32 0.0, %v2071
      %v2073 = vpop.f32.mrf.mxu0
      %v2074 = vpop.f32.mrf.mxu0
      %v2075 = vadd.f32 0.0, %v2074
      %v2076 = vpop.f32.mrf.mxu0
      %2077 = vmatprep.mubr.bf16.mxu0 0
      %2078 = vmatmul.mubr.bf16.gmra.mxu0 %v817
      %v2079 = vpop.f32.mrf.mxu0
      %v2080 = vadd.f32 0.0, %v2079
      %v2081 = vpop.f32.mrf.mxu0
      %v2082 = vpop.f32.mrf.mxu0
      %v2083 = vadd.f32 0.0, %v2082
      %v2084 = vpop.f32.mrf.mxu0
      %2085 = vmatprep.mubr.bf16.mxu0 0
      %2086 = vmatmul.mubr.bf16.gmra.mxu0 %v820
      %v2087 = vpop.f32.mrf.mxu0
      %v2088 = vadd.f32 0.0, %v2087
      %v2089 = vpop.f32.mrf.mxu0
      %v2090 = vpop.f32.mrf.mxu0
      %v2091 = vadd.f32 0.0, %v2090
      %v2092 = vpop.f32.mrf.mxu0
      %2093 = vmatprep.mubr.bf16.mxu0 0
      %2094 = vmatmul.mubr.bf16.gmra.mxu0 %v823
      %v2095 = vpop.f32.mrf.mxu0
      %v2096 = vadd.f32 0.0, %v2095
      %v2097 = vpop.f32.mrf.mxu0
      %v2098 = vpop.f32.mrf.mxu0
      %v2099 = vadd.f32 0.0, %v2098
      %v2100 = vpop.f32.mrf.mxu0
      %2101 = vmatprep.mubr.bf16.mxu0 0
      %2102 = vmatmul.mubr.bf16.gmra.mxu0 %v826
      %v2103 = vpop.f32.mrf.mxu0
      %v2104 = vadd.f32 0.0, %v2103
      %v2105 = vpop.f32.mrf.mxu0
      %v2106 = vpop.f32.mrf.mxu0
      %v2107 = vadd.f32 0.0, %v2106
      %v2108 = vpop.f32.mrf.mxu0
      %2109 = vmatprep.mubr.bf16.mxu0 0
      %2110 = vmatmul.mubr.bf16.gmra.mxu0 %v829
      %v2111 = vpop.f32.mrf.mxu0
      %v2112 = vadd.f32 0.0, %v2111
      %v2113 = vpop.f32.mrf.mxu0
      %v2114 = vpop.f32.mrf.mxu0
      %v2115 = vadd.f32 0.0, %v2114
      %v2116 = vpop.f32.mrf.mxu0
      %2117 = vmatprep.mubr.bf16.mxu0 0
      %2118 = vmatmul.mubr.bf16.gmra.mxu0 %v832
      %v2119 = vpop.f32.mrf.mxu0
      %v2120 = vadd.f32 0.0, %v2119
      %v2121 = vpop.f32.mrf.mxu0
      %v2122 = vpop.f32.mrf.mxu0
      %v2123 = vadd.f32 0.0, %v2122
      %v2124 = vpop.f32.mrf.mxu0
      %2125 = vmatprep.mubr.bf16.mxu0 0
      %2126 = vmatmul.mubr.bf16.gmra.mxu0 %v835
      %v2127 = vpop.f32.mrf.mxu0
      %v2128 = vadd.f32 0.0, %v2127
      %v2129 = vpop.f32.mrf.mxu0
      %v2130 = vpop.f32.mrf.mxu0
      %v2131 = vadd.f32 0.0, %v2130
      %v2132 = vpop.f32.mrf.mxu0
      %2133 = vmatprep.mubr.bf16.mxu0 0
      %2134 = vmatmul.mubr.bf16.gmra.mxu0 %v838
      %v2135 = vpop.f32.mrf.mxu0
      %v2136 = vadd.f32 0.0, %v2135
      %v2137 = vpop.f32.mrf.mxu0
      %v2138 = vpop.f32.mrf.mxu0
      %v2139 = vadd.f32 0.0, %v2138
      %v2140 = vpop.f32.mrf.mxu0
      %2141 = vmatprep.mubr.bf16.mxu0 0
      %2142 = vmatmul.mubr.bf16.gmra.mxu0 %v841
      %v2143 = vpop.f32.mrf.mxu0
      %v2144 = vadd.f32 0.0, %v2143
      %v2145 = vpop.f32.mrf.mxu0
      %v2146 = vpop.f32.mrf.mxu0
      %v2147 = vadd.f32 0.0, %v2146
      %v2148 = vpop.f32.mrf.mxu0
      %2149 = vmatprep.mubr.bf16.mxu0 0
      %2150 = vmatmul.mubr.bf16.gmra.mxu0 %v844
      %v2151 = vpop.f32.mrf.mxu0
      %v2152 = vadd.f32 0.0, %v2151
      %v2153 = vpop.f32.mrf.mxu0
      %v2154 = vpop.f32.mrf.mxu0
      %v2155 = vadd.f32 0.0, %v2154
      %v2156 = vpop.f32.mrf.mxu0
      %2157 = vmatprep.mubr.bf16.mxu0 0
      %2158 = vmatmul.mubr.bf16.gmra.mxu0 %v847
      %v2159 = vpop.f32.mrf.mxu0
      %v2160 = vadd.f32 0.0, %v2159
      %v2161 = vpop.f32.mrf.mxu0
      %v2162 = vpop.f32.mrf.mxu0
      %v2163 = vadd.f32 0.0, %v2162
      %v2164 = vpop.f32.mrf.mxu0
      %2165 = vmatprep.mubr.bf16.mxu0 0
      %2166 = vmatmul.mubr.bf16.gmra.mxu0 %v2011
      %v2167 = vpop.f32.mrf.mxu0
      %v2168 = vadd.f32 0.0, %v2167
      %v2169 = vpop.f32.mrf.mxu0
      %v2170 = vpop.f32.mrf.mxu0
      %v2171 = vadd.f32 0.0, %v2170
      %v2172 = vpop.f32.mrf.mxu0
      %2173 = vdwg.mxu0
      %v2174 = vadd.f32 %v1934, %v2048
      %v2175 = vadd.f32 %v1935, %v2051
      %v2176 = vadd.f32 %v1936, %v2056
      %v2177 = vadd.f32 %v1937, %v2059
      %v2178 = vadd.f32 %v1938, %v2064
      %v2179 = vadd.f32 %v1939, %v2067
      %v2180 = vadd.f32 %v1940, %v2072
      %v2181 = vadd.f32 %v1941, %v2075
      %v2182 = vadd.f32 %v1942, %v2080
      %v2183 = vadd.f32 %v1943, %v2083
      %v2184 = vadd.f32 %v1944, %v2088
      %v2185 = vadd.f32 %v1945, %v2091
      %v2186 = vadd.f32 %v1946, %v2096
      %v2187 = vadd.f32 %v1947, %v2099
      %v2188 = vadd.f32 %v1948, %v2104
      %v2189 = vadd.f32 %v1949, %v2107
      %v2190 = vadd.f32 %v1950, %v2112
      %v2191 = vadd.f32 %v1951, %v2115
      %v2192 = vadd.f32 %v1952, %v2120
      %v2193 = vadd.f32 %v1953, %v2123
      %v2194 = vadd.f32 %v1954, %v2128
      %v2195 = vadd.f32 %v1955, %v2131
      %v2196 = vadd.f32 %v1956, %v2136
      %v2197 = vadd.f32 %v1957, %v2139
      %v2198 = vadd.f32 %v1958, %v2144
      %v2199 = vadd.f32 %v1959, %v2147
      %v2200 = vadd.f32 %v1960, %v2152
      %v2201 = vadd.f32 %v1961, %v2155
      %v2202 = vadd.f32 %v1962, %v2160
      %v2203 = vadd.f32 %v1963, %v2163
      %v2204 = vadd.f32 %v1964, %v2168
      %v2205 = vadd.f32 %v1965, %v2171
      %v2207 = vrot.slane %v338, 5
      %v2208 = vrot.slane %v2207, 4
      %v2209 = vrot.slane %v339, 5
      %v2210 = vsel %vm1329, %v2208, %v2209
      %v2211 = vrot.slane %v2209, 4
      %v2212 = vrot.slane %v340, 5
      %v2213 = vsel %vm1329, %v2211, %v2212
      %s2214 = scalar_lea.vmem %s268, 80
      %v2215 = vld [vmem:[%s2214] sm:$0xf]
      %v2216 = vld [vmem:[%s2214 + $0x4] sm:$0xf]
      %v2217 = vld [vmem:[%s2214 + $0x8] sm:$0xf]
      %v2218 = vld [vmem:[%s2214 + $0xc] sm:$0xf]
      %v2219 = vunpack.c.l.b16 %v2210
      %v2220 = vunpack.c.l.b16 %v2213
      %v2221 = vpack.c.b16 %v2220, %v2219
      %v2226 = vunpack.c.l.b16 %v2215
      %v2227 = vunpack.c.l.b16 %v2216
      %v2228 = vunpack.c.l.b16 %v2217
      %v2229 = vunpack.c.l.b16 %v2218
      %v2230 = vpack.c.b16 %v2227, %v2226
      %v2231 = vpack.c.b16 %v2229, %v2228
      %v2235 = vsel %vm800, %v2221, 0
      %2237 = vmatprep.subr.bf16.mxu0 0
      %2238 = vmatpush1.bf16.msra.mxu0 0
      %2239 = vmatprep.subr.bf16.mxu0 0
      %2240 = vmatpush1.bf16.msra.mxu0 0
      %2241 = vmatprep.subr.bf16.mxu0 0
      %2242 = vmatpush1.bf16.msra.mxu0 0
      %2243 = vmatprep.subr.bf16.mxu0 0
      %2244 = vmatpush1.bf16.msra.mxu0 0
      %2245 = vmatprep.subr.bf16.mxu0 0
      %2246 = vmatpush1.bf16.msra.mxu0 0
      %2247 = vmatprep.subr.bf16.mxu0 0
      %2248 = vmatpush1.bf16.msra.mxu0 0
      %2249 = vmatprep.subr.bf16.mxu0 0
      %2250 = vmatpush1.bf16.msra.mxu0 %v2231
      %2251 = vmatprep.subr.bf16.mxu0 0
      %2252 = vmatpush1.bf16.msra.mxu0 %v2230
      %2253 = vmatprep.subr.bf16.mxu0 0
      %2254 = vmatpush2.bf16.msra.mxu0 0
      %2255 = vmatprep.subr.bf16.mxu0 0
      %2256 = vmatpush2.bf16.msra.mxu0 0
      %2257 = vmatprep.subr.bf16.mxu0 0
      %2258 = vmatpush2.bf16.msra.mxu0 0
      %2259 = vmatprep.subr.bf16.mxu0 0
      %2260 = vmatpush2.bf16.msra.mxu0 0
      %2261 = vmatprep.subr.bf16.mxu0 0
      %2262 = vmatpush2.bf16.msra.mxu0 0
      %2263 = vmatprep.subr.bf16.mxu0 0
      %2264 = vmatpush2.bf16.msra.mxu0 0
      %2265 = vmatprep.subr.bf16.mxu0 0
      %2266 = vmatpush2.bf16.msra.mxu0 0
      %2267 = vmatprep.subr.bf16.mxu0 0
      %2268 = vmatpush2.bf16.msra.mxu0 0
      %2269 = vmatprep.mubr.bf16.mxu0 0
      %2270 = vmatmul.mubr.bf16.gmra.mxu0 %v1511
      %v2271 = vpop.f32.mrf.mxu0
      %v2272 = vadd.f32 0.0, %v2271
      %v2273 = vpop.f32.mrf.mxu0
      %v2274 = vpop.f32.mrf.mxu0
      %v2275 = vadd.f32 0.0, %v2274
      %v2276 = vpop.f32.mrf.mxu0
      %2277 = vmatprep.mubr.bf16.mxu0 0
      %2278 = vmatmul.mubr.bf16.gmra.mxu0 %v1514
      %v2279 = vpop.f32.mrf.mxu0
      %v2280 = vadd.f32 0.0, %v2279
      %v2281 = vpop.f32.mrf.mxu0
      %v2282 = vpop.f32.mrf.mxu0
      %v2283 = vadd.f32 0.0, %v2282
      %v2284 = vpop.f32.mrf.mxu0
      %2285 = vmatprep.mubr.bf16.mxu0 0
      %2286 = vmatmul.mubr.bf16.gmra.mxu0 %v1517
      %v2287 = vpop.f32.mrf.mxu0
      %v2288 = vadd.f32 0.0, %v2287
      %v2289 = vpop.f32.mrf.mxu0
      %v2290 = vpop.f32.mrf.mxu0
      %v2291 = vadd.f32 0.0, %v2290
      %v2292 = vpop.f32.mrf.mxu0
      %2293 = vmatprep.mubr.bf16.mxu0 0
      %2294 = vmatmul.mubr.bf16.gmra.mxu0 %v1520
      %v2295 = vpop.f32.mrf.mxu0
      %v2296 = vadd.f32 0.0, %v2295
      %v2297 = vpop.f32.mrf.mxu0
      %v2298 = vpop.f32.mrf.mxu0
      %v2299 = vadd.f32 0.0, %v2298
      %v2300 = vpop.f32.mrf.mxu0
      %2301 = vmatprep.mubr.bf16.mxu0 0
      %2302 = vmatmul.mubr.bf16.gmra.mxu0 %v1523
      %v2303 = vpop.f32.mrf.mxu0
      %v2304 = vadd.f32 0.0, %v2303
      %v2305 = vpop.f32.mrf.mxu0
      %v2306 = vpop.f32.mrf.mxu0
      %v2307 = vadd.f32 0.0, %v2306
      %v2308 = vpop.f32.mrf.mxu0
      %2309 = vmatprep.mubr.bf16.mxu0 0
      %2310 = vmatmul.mubr.bf16.gmra.mxu0 %v1526
      %v2311 = vpop.f32.mrf.mxu0
      %v2312 = vadd.f32 0.0, %v2311
      %v2313 = vpop.f32.mrf.mxu0
      %v2314 = vpop.f32.mrf.mxu0
      %v2315 = vadd.f32 0.0, %v2314
      %v2316 = vpop.f32.mrf.mxu0
      %2317 = vmatprep.mubr.bf16.mxu0 0
      %2318 = vmatmul.mubr.bf16.gmra.mxu0 %v1529
      %v2319 = vpop.f32.mrf.mxu0
      %v2320 = vadd.f32 0.0, %v2319
      %v2321 = vpop.f32.mrf.mxu0
      %v2322 = vpop.f32.mrf.mxu0
      %v2323 = vadd.f32 0.0, %v2322
      %v2324 = vpop.f32.mrf.mxu0
      %2325 = vmatprep.mubr.bf16.mxu0 0
      %2326 = vmatmul.mubr.bf16.gmra.mxu0 %v1532
      %v2327 = vpop.f32.mrf.mxu0
      %v2328 = vadd.f32 0.0, %v2327
      %v2329 = vpop.f32.mrf.mxu0
      %v2330 = vpop.f32.mrf.mxu0
      %v2331 = vadd.f32 0.0, %v2330
      %v2332 = vpop.f32.mrf.mxu0
      %2333 = vmatprep.mubr.bf16.mxu0 0
      %2334 = vmatmul.mubr.bf16.gmra.mxu0 %v1535
      %v2335 = vpop.f32.mrf.mxu0
      %v2336 = vadd.f32 0.0, %v2335
      %v2337 = vpop.f32.mrf.mxu0
      %v2338 = vpop.f32.mrf.mxu0
      %v2339 = vadd.f32 0.0, %v2338
      %v2340 = vpop.f32.mrf.mxu0
      %2341 = vmatprep.mubr.bf16.mxu0 0
      %2342 = vmatmul.mubr.bf16.gmra.mxu0 %v1538
      %v2343 = vpop.f32.mrf.mxu0
      %v2344 = vadd.f32 0.0, %v2343
      %v2345 = vpop.f32.mrf.mxu0
      %v2346 = vpop.f32.mrf.mxu0
      %v2347 = vadd.f32 0.0, %v2346
      %v2348 = vpop.f32.mrf.mxu0
      %2349 = vmatprep.mubr.bf16.mxu0 0
      %2350 = vmatmul.mubr.bf16.gmra.mxu0 %v1541
      %v2351 = vpop.f32.mrf.mxu0
      %v2352 = vadd.f32 0.0, %v2351
      %v2353 = vpop.f32.mrf.mxu0
      %v2354 = vpop.f32.mrf.mxu0
      %v2355 = vadd.f32 0.0, %v2354
      %v2356 = vpop.f32.mrf.mxu0
      %2357 = vmatprep.mubr.bf16.mxu0 0
      %2358 = vmatmul.mubr.bf16.gmra.mxu0 %v1544
      %v2359 = vpop.f32.mrf.mxu0
      %v2360 = vadd.f32 0.0, %v2359
      %v2361 = vpop.f32.mrf.mxu0
      %v2362 = vpop.f32.mrf.mxu0
      %v2363 = vadd.f32 0.0, %v2362
      %v2364 = vpop.f32.mrf.mxu0
      %2365 = vmatprep.mubr.bf16.mxu0 0
      %2366 = vmatmul.mubr.bf16.gmra.mxu0 %v1547
      %v2367 = vpop.f32.mrf.mxu0
      %v2368 = vadd.f32 0.0, %v2367
      %v2369 = vpop.f32.mrf.mxu0
      %v2370 = vpop.f32.mrf.mxu0
      %v2371 = vadd.f32 0.0, %v2370
      %v2372 = vpop.f32.mrf.mxu0
      %2373 = vmatprep.mubr.bf16.mxu0 0
      %2374 = vmatmul.mubr.bf16.gmra.mxu0 %v1550
      %v2375 = vpop.f32.mrf.mxu0
      %v2376 = vadd.f32 0.0, %v2375
      %v2377 = vpop.f32.mrf.mxu0
      %v2378 = vpop.f32.mrf.mxu0
      %v2379 = vadd.f32 0.0, %v2378
      %v2380 = vpop.f32.mrf.mxu0
      %2381 = vmatprep.mubr.bf16.mxu0 0
      %2382 = vmatmul.mubr.bf16.gmra.mxu0 %v1553
      %v2383 = vpop.f32.mrf.mxu0
      %v2384 = vadd.f32 0.0, %v2383
      %v2385 = vpop.f32.mrf.mxu0
      %v2386 = vpop.f32.mrf.mxu0
      %v2387 = vadd.f32 0.0, %v2386
      %v2388 = vpop.f32.mrf.mxu0
      %2389 = vmatprep.mubr.bf16.mxu0 0
      %2390 = vmatmul.mubr.bf16.gmra.mxu0 %v2235
      %v2391 = vpop.f32.mrf.mxu0
      %v2392 = vadd.f32 0.0, %v2391
      %v2393 = vpop.f32.mrf.mxu0
      %v2394 = vpop.f32.mrf.mxu0
      %v2395 = vadd.f32 0.0, %v2394
      %v2396 = vpop.f32.mrf.mxu0
      %2397 = vdwg.mxu0
      %v2398 = vadd.f32 %v2174, %v2272
      %v2399 = vadd.f32 %v2175, %v2275
      %v2400 = vadd.f32 %v2176, %v2280
      %v2401 = vadd.f32 %v2177, %v2283
      %v2402 = vadd.f32 %v2178, %v2288
      %v2403 = vadd.f32 %v2179, %v2291
      %v2404 = vadd.f32 %v2180, %v2296
      %v2405 = vadd.f32 %v2181, %v2299
      %v2406 = vadd.f32 %v2182, %v2304
      %v2407 = vadd.f32 %v2183, %v2307
      %v2408 = vadd.f32 %v2184, %v2312
      %v2409 = vadd.f32 %v2185, %v2315
      %v2410 = vadd.f32 %v2186, %v2320
      %v2411 = vadd.f32 %v2187, %v2323
      %v2412 = vadd.f32 %v2188, %v2328
      %v2413 = vadd.f32 %v2189, %v2331
      %v2414 = vadd.f32 %v2190, %v2336
      %v2415 = vadd.f32 %v2191, %v2339
      %v2416 = vadd.f32 %v2192, %v2344
      %v2417 = vadd.f32 %v2193, %v2347
      %v2418 = vadd.f32 %v2194, %v2352
      %v2419 = vadd.f32 %v2195, %v2355
      %v2420 = vadd.f32 %v2196, %v2360
      %v2421 = vadd.f32 %v2197, %v2363
      %v2422 = vadd.f32 %v2198, %v2368
      %v2423 = vadd.f32 %v2199, %v2371
      %v2424 = vadd.f32 %v2200, %v2376
      %v2425 = vadd.f32 %v2201, %v2379
      %v2426 = vadd.f32 %v2202, %v2384
      %v2427 = vadd.f32 %v2203, %v2387
      %v2428 = vadd.f32 %v2204, %v2392
      %v2429 = vadd.f32 %v2205, %v2395
      %s2430 = scalar_lea.vmem %s268, 96
      %v2431 = vld [vmem:[%s2430] sm:$0xf]
      %v2432 = vld [vmem:[%s2430 + $0x4] sm:$0xf]
      %v2433 = vld [vmem:[%s2430 + $0x8] sm:$0xf]
      %v2434 = vld [vmem:[%s2430 + $0xc] sm:$0xf]
      %v2437 = vunpack.c.l.b16 %v341
      %v2438 = vunpack.c.l.b16 %v342
      %v2439 = vpack.c.b16 %v2438, %v2437
      %v2444 = vunpack.c.l.b16 %v2431
      %v2445 = vunpack.c.l.b16 %v2432
      %v2446 = vunpack.c.l.b16 %v2433
      %v2447 = vunpack.c.l.b16 %v2434
      %v2448 = vpack.c.b16 %v2445, %v2444
      %v2449 = vpack.c.b16 %v2447, %v2446
      %v2453 = vsel %vm800, %v2439, 0
      %2455 = vmatprep.subr.bf16.mxu0 0
      %2456 = vmatpush1.bf16.msra.mxu0 0
      %2457 = vmatprep.subr.bf16.mxu0 0
      %2458 = vmatpush1.bf16.msra.mxu0 0
      %2459 = vmatprep.subr.bf16.mxu0 0
      %2460 = vmatpush1.bf16.msra.mxu0 0
      %2461 = vmatprep.subr.bf16.mxu0 0
      %2462 = vmatpush1.bf16.msra.mxu0 0
      %2463 = vmatprep.subr.bf16.mxu0 0
      %2464 = vmatpush1.bf16.msra.mxu0 0
      %2465 = vmatprep.subr.bf16.mxu0 0
      %2466 = vmatpush1.bf16.msra.mxu0 0
      %2467 = vmatprep.subr.bf16.mxu0 0
      %2468 = vmatpush1.bf16.msra.mxu0 %v2449
      %2469 = vmatprep.subr.bf16.mxu0 0
      %2470 = vmatpush1.bf16.msra.mxu0 %v2448
      %2471 = vmatprep.subr.bf16.mxu0 0
      %2472 = vmatpush2.bf16.msra.mxu0 0
      %2473 = vmatprep.subr.bf16.mxu0 0
      %2474 = vmatpush2.bf16.msra.mxu0 0
      %2475 = vmatprep.subr.bf16.mxu0 0
      %2476 = vmatpush2.bf16.msra.mxu0 0
      %2477 = vmatprep.subr.bf16.mxu0 0
      %2478 = vmatpush2.bf16.msra.mxu0 0
      %2479 = vmatprep.subr.bf16.mxu0 0
      %2480 = vmatpush2.bf16.msra.mxu0 0
      %2481 = vmatprep.subr.bf16.mxu0 0
      %2482 = vmatpush2.bf16.msra.mxu0 0
      %2483 = vmatprep.subr.bf16.mxu0 0
      %2484 = vmatpush2.bf16.msra.mxu0 0
      %2485 = vmatprep.subr.bf16.mxu0 0
      %2486 = vmatpush2.bf16.msra.mxu0 0
      %2487 = vmatprep.mubr.bf16.mxu0 0
      %2488 = vmatmul.mubr.bf16.gmra.mxu0 %v1109
      %v2489 = vpop.f32.mrf.mxu0
      %v2490 = vadd.f32 0.0, %v2489
      %v2491 = vpop.f32.mrf.mxu0
      %v2492 = vpop.f32.mrf.mxu0
      %v2493 = vadd.f32 0.0, %v2492
      %v2494 = vpop.f32.mrf.mxu0
      %2495 = vmatprep.mubr.bf16.mxu0 0
      %2496 = vmatmul.mubr.bf16.gmra.mxu0 %v1112
      %v2497 = vpop.f32.mrf.mxu0
      %v2498 = vadd.f32 0.0, %v2497
      %v2499 = vpop.f32.mrf.mxu0
      %v2500 = vpop.f32.mrf.mxu0
      %v2501 = vadd.f32 0.0, %v2500
      %v2502 = vpop.f32.mrf.mxu0
      %2503 = vmatprep.mubr.bf16.mxu0 0
      %2504 = vmatmul.mubr.bf16.gmra.mxu0 %v1115
      %v2505 = vpop.f32.mrf.mxu0
      %v2506 = vadd.f32 0.0, %v2505
      %v2507 = vpop.f32.mrf.mxu0
      %v2508 = vpop.f32.mrf.mxu0
      %v2509 = vadd.f32 0.0, %v2508
      %v2510 = vpop.f32.mrf.mxu0
      %2511 = vmatprep.mubr.bf16.mxu0 0
      %2512 = vmatmul.mubr.bf16.gmra.mxu0 %v1118
      %v2513 = vpop.f32.mrf.mxu0
      %v2514 = vadd.f32 0.0, %v2513
      %v2515 = vpop.f32.mrf.mxu0
      %v2516 = vpop.f32.mrf.mxu0
      %v2517 = vadd.f32 0.0, %v2516
      %v2518 = vpop.f32.mrf.mxu0
      %2519 = vmatprep.mubr.bf16.mxu0 0
      %2520 = vmatmul.mubr.bf16.gmra.mxu0 %v1121
      %v2521 = vpop.f32.mrf.mxu0
      %v2522 = vadd.f32 0.0, %v2521
      %v2523 = vpop.f32.mrf.mxu0
      %v2524 = vpop.f32.mrf.mxu0
      %v2525 = vadd.f32 0.0, %v2524
      %v2526 = vpop.f32.mrf.mxu0
      %2527 = vmatprep.mubr.bf16.mxu0 0
      %2528 = vmatmul.mubr.bf16.gmra.mxu0 %v1124
      %v2529 = vpop.f32.mrf.mxu0
      %v2530 = vadd.f32 0.0, %v2529
      %v2531 = vpop.f32.mrf.mxu0
      %v2532 = vpop.f32.mrf.mxu0
      %v2533 = vadd.f32 0.0, %v2532
      %v2534 = vpop.f32.mrf.mxu0
      %2535 = vmatprep.mubr.bf16.mxu0 0
      %2536 = vmatmul.mubr.bf16.gmra.mxu0 %v1127
      %v2537 = vpop.f32.mrf.mxu0
      %v2538 = vadd.f32 0.0, %v2537
      %v2539 = vpop.f32.mrf.mxu0
      %v2540 = vpop.f32.mrf.mxu0
      %v2541 = vadd.f32 0.0, %v2540
      %v2542 = vpop.f32.mrf.mxu0
      %2543 = vmatprep.mubr.bf16.mxu0 0
      %2544 = vmatmul.mubr.bf16.gmra.mxu0 %v1130
      %v2545 = vpop.f32.mrf.mxu0
      %v2546 = vadd.f32 0.0, %v2545
      %v2547 = vpop.f32.mrf.mxu0
      %v2548 = vpop.f32.mrf.mxu0
      %v2549 = vadd.f32 0.0, %v2548
      %v2550 = vpop.f32.mrf.mxu0
      %2551 = vmatprep.mubr.bf16.mxu0 0
      %2552 = vmatmul.mubr.bf16.gmra.mxu0 %v1133
      %v2553 = vpop.f32.mrf.mxu0
      %v2554 = vadd.f32 0.0, %v2553
      %v2555 = vpop.f32.mrf.mxu0
      %v2556 = vpop.f32.mrf.mxu0
      %v2557 = vadd.f32 0.0, %v2556
      %v2558 = vpop.f32.mrf.mxu0
      %2559 = vmatprep.mubr.bf16.mxu0 0
      %2560 = vmatmul.mubr.bf16.gmra.mxu0 %v1136
      %v2561 = vpop.f32.mrf.mxu0
      %v2562 = vadd.f32 0.0, %v2561
      %v2563 = vpop.f32.mrf.mxu0
      %v2564 = vpop.f32.mrf.mxu0
      %v2565 = vadd.f32 0.0, %v2564
      %v2566 = vpop.f32.mrf.mxu0
      %2567 = vmatprep.mubr.bf16.mxu0 0
      %2568 = vmatmul.mubr.bf16.gmra.mxu0 %v1139
      %v2569 = vpop.f32.mrf.mxu0
      %v2570 = vadd.f32 0.0, %v2569
      %v2571 = vpop.f32.mrf.mxu0
      %v2572 = vpop.f32.mrf.mxu0
      %v2573 = vadd.f32 0.0, %v2572
      %v2574 = vpop.f32.mrf.mxu0
      %2575 = vmatprep.mubr.bf16.mxu0 0
      %2576 = vmatmul.mubr.bf16.gmra.mxu0 %v1142
      %v2577 = vpop.f32.mrf.mxu0
      %v2578 = vadd.f32 0.0, %v2577
      %v2579 = vpop.f32.mrf.mxu0
      %v2580 = vpop.f32.mrf.mxu0
      %v2581 = vadd.f32 0.0, %v2580
      %v2582 = vpop.f32.mrf.mxu0
      %2583 = vmatprep.mubr.bf16.mxu0 0
      %2584 = vmatmul.mubr.bf16.gmra.mxu0 %v1145
      %v2585 = vpop.f32.mrf.mxu0
      %v2586 = vadd.f32 0.0, %v2585
      %v2587 = vpop.f32.mrf.mxu0
      %v2588 = vpop.f32.mrf.mxu0
      %v2589 = vadd.f32 0.0, %v2588
      %v2590 = vpop.f32.mrf.mxu0
      %2591 = vmatprep.mubr.bf16.mxu0 0
      %2592 = vmatmul.mubr.bf16.gmra.mxu0 %v1148
      %v2593 = vpop.f32.mrf.mxu0
      %v2594 = vadd.f32 0.0, %v2593
      %v2595 = vpop.f32.mrf.mxu0
      %v2596 = vpop.f32.mrf.mxu0
      %v2597 = vadd.f32 0.0, %v2596
      %v2598 = vpop.f32.mrf.mxu0
      %2599 = vmatprep.mubr.bf16.mxu0 0
      %2600 = vmatmul.mubr.bf16.gmra.mxu0 %v1771
      %v2601 = vpop.f32.mrf.mxu0
      %v2602 = vadd.f32 0.0, %v2601
      %v2603 = vpop.f32.mrf.mxu0
      %v2604 = vpop.f32.mrf.mxu0
      %v2605 = vadd.f32 0.0, %v2604
      %v2606 = vpop.f32.mrf.mxu0
      %2607 = vmatprep.mubr.bf16.mxu0 0
      %2608 = vmatmul.mubr.bf16.gmra.mxu0 %v2453
      %v2609 = vpop.f32.mrf.mxu0
      %v2610 = vadd.f32 0.0, %v2609
      %v2611 = vpop.f32.mrf.mxu0
      %v2612 = vpop.f32.mrf.mxu0
      %v2613 = vadd.f32 0.0, %v2612
      %v2614 = vpop.f32.mrf.mxu0
      %2615 = vdwg.mxu0
      %v2616 = vadd.f32 %v2398, %v2490
      %v2617 = vadd.f32 %v2399, %v2493
      %v2618 = vadd.f32 %v2400, %v2498
      %v2619 = vadd.f32 %v2401, %v2501
      %v2620 = vadd.f32 %v2402, %v2506
      %v2621 = vadd.f32 %v2403, %v2509
      %v2622 = vadd.f32 %v2404, %v2514
      %v2623 = vadd.f32 %v2405, %v2517
      %v2624 = vadd.f32 %v2406, %v2522
      %v2625 = vadd.f32 %v2407, %v2525
      %v2626 = vadd.f32 %v2408, %v2530
      %v2627 = vadd.f32 %v2409, %v2533
      %v2628 = vadd.f32 %v2410, %v2538
      %v2629 = vadd.f32 %v2411, %v2541
      %v2630 = vadd.f32 %v2412, %v2546
      %v2631 = vadd.f32 %v2413, %v2549
      %v2632 = vadd.f32 %v2414, %v2554
      %v2633 = vadd.f32 %v2415, %v2557
      %v2634 = vadd.f32 %v2416, %v2562
      %v2635 = vadd.f32 %v2417, %v2565
      %v2636 = vadd.f32 %v2418, %v2570
      %v2637 = vadd.f32 %v2419, %v2573
      %v2638 = vadd.f32 %v2420, %v2578
      %v2639 = vadd.f32 %v2421, %v2581
      %v2640 = vadd.f32 %v2422, %v2586
      %v2641 = vadd.f32 %v2423, %v2589
      %v2642 = vadd.f32 %v2424, %v2594
      %v2643 = vadd.f32 %v2425, %v2597
      %v2644 = vadd.f32 %v2426, %v2602
      %v2645 = vadd.f32 %v2427, %v2605
      %v2646 = vadd.f32 %v2428, %v2610
      %v2647 = vadd.f32 %v2429, %v2613
      %v2649 = vshrl.u32 %v341, 16
      %v2651 = vrot.slane %v2649, 4
      %v2652 = vshll.u32 %v341, 16
      %v2654 = vrot.slane %v2652, 5
      %v2655 = vor.u32 %v2651, %v2654
      %v2656 = vrot.slane %v2655, 4
      %v2658 = vshll.u32 %v342, 16
      %v2660 = vrot.slane %v2658, 5
      %v2661 = vsel %vm350, %v2656, %v2660
      %v2662 = vshrl.u32 %v342, 16
      %v2664 = vrot.slane %v2662, 4
      %v2665 = vor.u32 %v2664, %v2660
      %v2666 = vrot.slane %v2665, 4
      %v2668 = vshll.u32 %v343, 16
      %v2670 = vrot.slane %v2668, 5
      %v2671 = vsel %vm350, %v2666, %v2670
      %s2672 = scalar_lea.vmem %s268, 112
      %v2673 = vld [vmem:[%s2672] sm:$0xf]
      %v2674 = vld [vmem:[%s2672 + $0x4] sm:$0xf]
      %v2675 = vld [vmem:[%s2672 + $0x8] sm:$0xf]
      %v2676 = vld [vmem:[%s2672 + $0xc] sm:$0xf]
      %v2677 = vunpack.c.l.b16 %v2661
      %v2678 = vunpack.c.l.b16 %v2671
      %v2679 = vpack.c.b16 %v2678, %v2677
      %v2684 = vunpack.c.l.b16 %v2673
      %v2685 = vunpack.c.l.b16 %v2674
      %v2686 = vunpack.c.l.b16 %v2675
      %v2687 = vunpack.c.l.b16 %v2676
      %v2688 = vpack.c.b16 %v2685, %v2684
      %v2689 = vpack.c.b16 %v2687, %v2686
      %v2693 = vsel %vm800, %v2679, 0
      %2695 = vmatprep.subr.bf16.mxu0 0
      %2696 = vmatpush1.bf16.msra.mxu0 0
      %2697 = vmatprep.subr.bf16.mxu0 0
      %2698 = vmatpush1.bf16.msra.mxu0 0
      %2699 = vmatprep.subr.bf16.mxu0 0
      %2700 = vmatpush1.bf16.msra.mxu0 0
      %2701 = vmatprep.subr.bf16.mxu0 0
      %2702 = vmatpush1.bf16.msra.mxu0 0
      %2703 = vmatprep.subr.bf16.mxu0 0
      %2704 = vmatpush1.bf16.msra.mxu0 0
      %2705 = vmatprep.subr.bf16.mxu0 0
      %2706 = vmatpush1.bf16.msra.mxu0 0
      %2707 = vmatprep.subr.bf16.mxu0 0
      %2708 = vmatpush1.bf16.msra.mxu0 %v2689
      %2709 = vmatprep.subr.bf16.mxu0 0
      %2710 = vmatpush1.bf16.msra.mxu0 %v2688
      %2711 = vmatprep.subr.bf16.mxu0 0
      %2712 = vmatpush2.bf16.msra.mxu0 0
      %2713 = vmatprep.subr.bf16.mxu0 0
      %2714 = vmatpush2.bf16.msra.mxu0 0
      %2715 = vmatprep.subr.bf16.mxu0 0
      %2716 = vmatpush2.bf16.msra.mxu0 0
      %2717 = vmatprep.subr.bf16.mxu0 0
      %2718 = vmatpush2.bf16.msra.mxu0 0
      %2719 = vmatprep.subr.bf16.mxu0 0
      %2720 = vmatpush2.bf16.msra.mxu0 0
      %2721 = vmatprep.subr.bf16.mxu0 0
      %2722 = vmatpush2.bf16.msra.mxu0 0
      %2723 = vmatprep.subr.bf16.mxu0 0
      %2724 = vmatpush2.bf16.msra.mxu0 0
      %2725 = vmatprep.subr.bf16.mxu0 0
      %2726 = vmatpush2.bf16.msra.mxu0 0
      %2727 = vmatprep.mubr.bf16.mxu0 0
      %2728 = vmatmul.mubr.bf16.gmra.mxu0 %v808
      %v2729 = vpop.f32.mrf.mxu0
      %v2730 = vadd.f32 0.0, %v2729
      %v2731 = vpop.f32.mrf.mxu0
      %v2732 = vpop.f32.mrf.mxu0
      %v2733 = vadd.f32 0.0, %v2732
      %v2734 = vpop.f32.mrf.mxu0
      %2735 = vmatprep.mubr.bf16.mxu0 0
      %2736 = vmatmul.mubr.bf16.gmra.mxu0 %v811
      %v2737 = vpop.f32.mrf.mxu0
      %v2738 = vadd.f32 0.0, %v2737
      %v2739 = vpop.f32.mrf.mxu0
      %v2740 = vpop.f32.mrf.mxu0
      %v2741 = vadd.f32 0.0, %v2740
      %v2742 = vpop.f32.mrf.mxu0
      %2743 = vmatprep.mubr.bf16.mxu0 0
      %2744 = vmatmul.mubr.bf16.gmra.mxu0 %v814
      %v2745 = vpop.f32.mrf.mxu0
      %v2746 = vadd.f32 0.0, %v2745
      %v2747 = vpop.f32.mrf.mxu0
      %v2748 = vpop.f32.mrf.mxu0
      %v2749 = vadd.f32 0.0, %v2748
      %v2750 = vpop.f32.mrf.mxu0
      %2751 = vmatprep.mubr.bf16.mxu0 0
      %2752 = vmatmul.mubr.bf16.gmra.mxu0 %v817
      %v2753 = vpop.f32.mrf.mxu0
      %v2754 = vadd.f32 0.0, %v2753
      %v2755 = vpop.f32.mrf.mxu0
      %v2756 = vpop.f32.mrf.mxu0
      %v2757 = vadd.f32 0.0, %v2756
      %v2758 = vpop.f32.mrf.mxu0
      %2759 = vmatprep.mubr.bf16.mxu0 0
      %2760 = vmatmul.mubr.bf16.gmra.mxu0 %v820
      %v2761 = vpop.f32.mrf.mxu0
      %v2762 = vadd.f32 0.0, %v2761
      %v2763 = vpop.f32.mrf.mxu0
      %v2764 = vpop.f32.mrf.mxu0
      %v2765 = vadd.f32 0.0, %v2764
      %v2766 = vpop.f32.mrf.mxu0
      %2767 = vmatprep.mubr.bf16.mxu0 0
      %2768 = vmatmul.mubr.bf16.gmra.mxu0 %v823
      %v2769 = vpop.f32.mrf.mxu0
      %v2770 = vadd.f32 0.0, %v2769
      %v2771 = vpop.f32.mrf.mxu0
      %v2772 = vpop.f32.mrf.mxu0
      %v2773 = vadd.f32 0.0, %v2772
      %v2774 = vpop.f32.mrf.mxu0
      %2775 = vmatprep.mubr.bf16.mxu0 0
      %2776 = vmatmul.mubr.bf16.gmra.mxu0 %v826
      %v2777 = vpop.f32.mrf.mxu0
      %v2778 = vadd.f32 0.0, %v2777
      %v2779 = vpop.f32.mrf.mxu0
      %v2780 = vpop.f32.mrf.mxu0
      %v2781 = vadd.f32 0.0, %v2780
      %v2782 = vpop.f32.mrf.mxu0
      %2783 = vmatprep.mubr.bf16.mxu0 0
      %2784 = vmatmul.mubr.bf16.gmra.mxu0 %v829
      %v2785 = vpop.f32.mrf.mxu0
      %v2786 = vadd.f32 0.0, %v2785
      %v2787 = vpop.f32.mrf.mxu0
      %v2788 = vpop.f32.mrf.mxu0
      %v2789 = vadd.f32 0.0, %v2788
      %v2790 = vpop.f32.mrf.mxu0
      %2791 = vmatprep.mubr.bf16.mxu0 0
      %2792 = vmatmul.mubr.bf16.gmra.mxu0 %v832
      %v2793 = vpop.f32.mrf.mxu0
      %v2794 = vadd.f32 0.0, %v2793
      %v2795 = vpop.f32.mrf.mxu0
      %v2796 = vpop.f32.mrf.mxu0
      %v2797 = vadd.f32 0.0, %v2796
      %v2798 = vpop.f32.mrf.mxu0
      %2799 = vmatprep.mubr.bf16.mxu0 0
      %2800 = vmatmul.mubr.bf16.gmra.mxu0 %v835
      %v2801 = vpop.f32.mrf.mxu0
      %v2802 = vadd.f32 0.0, %v2801
      %v2803 = vpop.f32.mrf.mxu0
      %v2804 = vpop.f32.mrf.mxu0
      %v2805 = vadd.f32 0.0, %v2804
      %v2806 = vpop.f32.mrf.mxu0
      %2807 = vmatprep.mubr.bf16.mxu0 0
      %2808 = vmatmul.mubr.bf16.gmra.mxu0 %v838
      %v2809 = vpop.f32.mrf.mxu0
      %v2810 = vadd.f32 0.0, %v2809
      %v2811 = vpop.f32.mrf.mxu0
      %v2812 = vpop.f32.mrf.mxu0
      %v2813 = vadd.f32 0.0, %v2812
      %v2814 = vpop.f32.mrf.mxu0
      %2815 = vmatprep.mubr.bf16.mxu0 0
      %2816 = vmatmul.mubr.bf16.gmra.mxu0 %v841
      %v2817 = vpop.f32.mrf.mxu0
      %v2818 = vadd.f32 0.0, %v2817
      %v2819 = vpop.f32.mrf.mxu0
      %v2820 = vpop.f32.mrf.mxu0
      %v2821 = vadd.f32 0.0, %v2820
      %v2822 = vpop.f32.mrf.mxu0
      %2823 = vmatprep.mubr.bf16.mxu0 0
      %2824 = vmatmul.mubr.bf16.gmra.mxu0 %v844
      %v2825 = vpop.f32.mrf.mxu0
      %v2826 = vadd.f32 0.0, %v2825
      %v2827 = vpop.f32.mrf.mxu0
      %v2828 = vpop.f32.mrf.mxu0
      %v2829 = vadd.f32 0.0, %v2828
      %v2830 = vpop.f32.mrf.mxu0
      %2831 = vmatprep.mubr.bf16.mxu0 0
      %2832 = vmatmul.mubr.bf16.gmra.mxu0 %v847
      %v2833 = vpop.f32.mrf.mxu0
      %v2834 = vadd.f32 0.0, %v2833
      %v2835 = vpop.f32.mrf.mxu0
      %v2836 = vpop.f32.mrf.mxu0
      %v2837 = vadd.f32 0.0, %v2836
      %v2838 = vpop.f32.mrf.mxu0
      %2839 = vmatprep.mubr.bf16.mxu0 0
      %2840 = vmatmul.mubr.bf16.gmra.mxu0 %v2011
      %v2841 = vpop.f32.mrf.mxu0
      %v2842 = vadd.f32 0.0, %v2841
      %v2843 = vpop.f32.mrf.mxu0
      %v2844 = vpop.f32.mrf.mxu0
      %v2845 = vadd.f32 0.0, %v2844
      %v2846 = vpop.f32.mrf.mxu0
      %2847 = vmatprep.mubr.bf16.mxu0 0
      %2848 = vmatmul.mubr.bf16.gmra.mxu0 %v2693
      %v2849 = vpop.f32.mrf.mxu0
      %v2850 = vadd.f32 0.0, %v2849
      %v2851 = vpop.f32.mrf.mxu0
      %v2852 = vpop.f32.mrf.mxu0
      %v2853 = vadd.f32 0.0, %v2852
      %v2854 = vpop.f32.mrf.mxu0
      %2855 = vdwg.mxu0
      %v2856 = vadd.f32 %v2616, %v2730
      %v2857 = vadd.f32 %v2617, %v2733
      %v2858 = vadd.f32 %v2618, %v2738
      %v2859 = vadd.f32 %v2619, %v2741
      %v2860 = vadd.f32 %v2620, %v2746
      %v2861 = vadd.f32 %v2621, %v2749
      %v2862 = vadd.f32 %v2622, %v2754
      %v2863 = vadd.f32 %v2623, %v2757
      %v2864 = vadd.f32 %v2624, %v2762
      %v2865 = vadd.f32 %v2625, %v2765
      %v2866 = vadd.f32 %v2626, %v2770
      %v2867 = vadd.f32 %v2627, %v2773
      %v2868 = vadd.f32 %v2628, %v2778
      %v2869 = vadd.f32 %v2629, %v2781
      %v2870 = vadd.f32 %v2630, %v2786
      %v2871 = vadd.f32 %v2631, %v2789
      %v2872 = vadd.f32 %v2632, %v2794
      %v2873 = vadd.f32 %v2633, %v2797
      %v2874 = vadd.f32 %v2634, %v2802
      %v2875 = vadd.f32 %v2635, %v2805
      %v2876 = vadd.f32 %v2636, %v2810
      %v2877 = vadd.f32 %v2637, %v2813
      %v2878 = vadd.f32 %v2638, %v2818
      %v2879 = vadd.f32 %v2639, %v2821
      %v2880 = vadd.f32 %v2640, %v2826
      %v2881 = vadd.f32 %v2641, %v2829
      %v2882 = vadd.f32 %v2642, %v2834
      %v2883 = vadd.f32 %v2643, %v2837
      %v2884 = vadd.f32 %v2644, %v2842
      %v2885 = vadd.f32 %v2645, %v2845
      %v2886 = vadd.f32 %v2646, %v2850
      %v2887 = vadd.f32 %v2647, %v2853
      %v2889 = vrot.slane %v341, 5
      %v2890 = vrot.slane %v2889, 4
      %v2891 = vrot.slane %v342, 5
      %v2892 = vsel %vm1329, %v2890, %v2891
      %v2893 = vrot.slane %v2891, 4
      %v2894 = vrot.slane %v343, 5
      %v2895 = vsel %vm1329, %v2893, %v2894
      %s2896 = scalar_lea.vmem %s268, 128
      %v2897 = vld [vmem:[%s2896] sm:$0xf]
      %v2898 = vld [vmem:[%s2896 + $0x4] sm:$0xf]
      %v2899 = vld [vmem:[%s2896 + $0x8] sm:$0xf]
      %v2900 = vld [vmem:[%s2896 + $0xc] sm:$0xf]
      %v2901 = vunpack.c.l.b16 %v2892
      %v2902 = vunpack.c.l.b16 %v2895
      %v2903 = vpack.c.b16 %v2902, %v2901
      %v2908 = vunpack.c.l.b16 %v2897
      %v2909 = vunpack.c.l.b16 %v2898
      %v2910 = vunpack.c.l.b16 %v2899
      %v2911 = vunpack.c.l.b16 %v2900
      %v2912 = vpack.c.b16 %v2909, %v2908
      %v2913 = vpack.c.b16 %v2911, %v2910
      %v2917 = vsel %vm800, %v2903, 0
      %2919 = vmatprep.subr.bf16.mxu0 0
      %2920 = vmatpush1.bf16.msra.mxu0 0
      %2921 = vmatprep.subr.bf16.mxu0 0
      %2922 = vmatpush1.bf16.msra.mxu0 0
      %2923 = vmatprep.subr.bf16.mxu0 0
      %2924 = vmatpush1.bf16.msra.mxu0 0
      %2925 = vmatprep.subr.bf16.mxu0 0
      %2926 = vmatpush1.bf16.msra.mxu0 0
      %2927 = vmatprep.subr.bf16.mxu0 0
      %2928 = vmatpush1.bf16.msra.mxu0 0
      %2929 = vmatprep.subr.bf16.mxu0 0
      %2930 = vmatpush1.bf16.msra.mxu0 0
      %2931 = vmatprep.subr.bf16.mxu0 0
      %2932 = vmatpush1.bf16.msra.mxu0 %v2913
      %2933 = vmatprep.subr.bf16.mxu0 0
      %2934 = vmatpush1.bf16.msra.mxu0 %v2912
      %2935 = vmatprep.subr.bf16.mxu0 0
      %2936 = vmatpush2.bf16.msra.mxu0 0
      %2937 = vmatprep.subr.bf16.mxu0 0
      %2938 = vmatpush2.bf16.msra.mxu0 0
      %2939 = vmatprep.subr.bf16.mxu0 0
      %2940 = vmatpush2.bf16.msra.mxu0 0
      %2941 = vmatprep.subr.bf16.mxu0 0
      %2942 = vmatpush2.bf16.msra.mxu0 0
      %2943 = vmatprep.subr.bf16.mxu0 0
      %2944 = vmatpush2.bf16.msra.mxu0 0
      %2945 = vmatprep.subr.bf16.mxu0 0
      %2946 = vmatpush2.bf16.msra.mxu0 0
      %2947 = vmatprep.subr.bf16.mxu0 0
      %2948 = vmatpush2.bf16.msra.mxu0 0
      %2949 = vmatprep.subr.bf16.mxu0 0
      %2950 = vmatpush2.bf16.msra.mxu0 0
      %2951 = vmatprep.mubr.bf16.mxu0 0
      %2952 = vmatmul.mubr.bf16.gmra.mxu0 %v1514
      %v2953 = vpop.f32.mrf.mxu0
      %v2954 = vadd.f32 0.0, %v2953
      %v2955 = vpop.f32.mrf.mxu0
      %v2956 = vpop.f32.mrf.mxu0
      %v2957 = vadd.f32 0.0, %v2956
      %v2958 = vpop.f32.mrf.mxu0
      %2959 = vmatprep.mubr.bf16.mxu0 0
      %2960 = vmatmul.mubr.bf16.gmra.mxu0 %v1517
      %v2961 = vpop.f32.mrf.mxu0
      %v2962 = vadd.f32 0.0, %v2961
      %v2963 = vpop.f32.mrf.mxu0
      %v2964 = vpop.f32.mrf.mxu0
      %v2965 = vadd.f32 0.0, %v2964
      %v2966 = vpop.f32.mrf.mxu0
      %2967 = vmatprep.mubr.bf16.mxu0 0
      %2968 = vmatmul.mubr.bf16.gmra.mxu0 %v1520
      %v2969 = vpop.f32.mrf.mxu0
      %v2970 = vadd.f32 0.0, %v2969
      %v2971 = vpop.f32.mrf.mxu0
      %v2972 = vpop.f32.mrf.mxu0
      %v2973 = vadd.f32 0.0, %v2972
      %v2974 = vpop.f32.mrf.mxu0
      %2975 = vmatprep.mubr.bf16.mxu0 0
      %2976 = vmatmul.mubr.bf16.gmra.mxu0 %v1523
      %v2977 = vpop.f32.mrf.mxu0
      %v2978 = vadd.f32 0.0, %v2977
      %v2979 = vpop.f32.mrf.mxu0
      %v2980 = vpop.f32.mrf.mxu0
      %v2981 = vadd.f32 0.0, %v2980
      %v2982 = vpop.f32.mrf.mxu0
      %2983 = vmatprep.mubr.bf16.mxu0 0
      %2984 = vmatmul.mubr.bf16.gmra.mxu0 %v1526
      %v2985 = vpop.f32.mrf.mxu0
      %v2986 = vadd.f32 0.0, %v2985
      %v2987 = vpop.f32.mrf.mxu0
      %v2988 = vpop.f32.mrf.mxu0
      %v2989 = vadd.f32 0.0, %v2988
      %v2990 = vpop.f32.mrf.mxu0
      %2991 = vmatprep.mubr.bf16.mxu0 0
      %2992 = vmatmul.mubr.bf16.gmra.mxu0 %v1529
      %v2993 = vpop.f32.mrf.mxu0
      %v2994 = vadd.f32 0.0, %v2993
      %v2995 = vpop.f32.mrf.mxu0
      %v2996 = vpop.f32.mrf.mxu0
      %v2997 = vadd.f32 0.0, %v2996
      %v2998 = vpop.f32.mrf.mxu0
      %2999 = vmatprep.mubr.bf16.mxu0 0
      %3000 = vmatmul.mubr.bf16.gmra.mxu0 %v1532
      %v3001 = vpop.f32.mrf.mxu0
      %v3002 = vadd.f32 0.0, %v3001
      %v3003 = vpop.f32.mrf.mxu0
      %v3004 = vpop.f32.mrf.mxu0
      %v3005 = vadd.f32 0.0, %v3004
      %v3006 = vpop.f32.mrf.mxu0
      %3007 = vmatprep.mubr.bf16.mxu0 0
      %3008 = vmatmul.mubr.bf16.gmra.mxu0 %v1535
      %v3009 = vpop.f32.mrf.mxu0
      %v3010 = vadd.f32 0.0, %v3009
      %v3011 = vpop.f32.mrf.mxu0
      %v3012 = vpop.f32.mrf.mxu0
      %v3013 = vadd.f32 0.0, %v3012
      %v3014 = vpop.f32.mrf.mxu0
      %3015 = vmatprep.mubr.bf16.mxu0 0
      %3016 = vmatmul.mubr.bf16.gmra.mxu0 %v1538
      %v3017 = vpop.f32.mrf.mxu0
      %v3018 = vadd.f32 0.0, %v3017
      %v3019 = vpop.f32.mrf.mxu0
      %v3020 = vpop.f32.mrf.mxu0
      %v3021 = vadd.f32 0.0, %v3020
      %v3022 = vpop.f32.mrf.mxu0
      %3023 = vmatprep.mubr.bf16.mxu0 0
      %3024 = vmatmul.mubr.bf16.gmra.mxu0 %v1541
      %v3025 = vpop.f32.mrf.mxu0
      %v3026 = vadd.f32 0.0, %v3025
      %v3027 = vpop.f32.mrf.mxu0
      %v3028 = vpop.f32.mrf.mxu0
      %v3029 = vadd.f32 0.0, %v3028
      %v3030 = vpop.f32.mrf.mxu0
      %3031 = vmatprep.mubr.bf16.mxu0 0
      %3032 = vmatmul.mubr.bf16.gmra.mxu0 %v1544
      %v3033 = vpop.f32.mrf.mxu0
      %v3034 = vadd.f32 0.0, %v3033
      %v3035 = vpop.f32.mrf.mxu0
      %v3036 = vpop.f32.mrf.mxu0
      %v3037 = vadd.f32 0.0, %v3036
      %v3038 = vpop.f32.mrf.mxu0
      %3039 = vmatprep.mubr.bf16.mxu0 0
      %3040 = vmatmul.mubr.bf16.gmra.mxu0 %v1547
      %v3041 = vpop.f32.mrf.mxu0
      %v3042 = vadd.f32 0.0, %v3041
      %v3043 = vpop.f32.mrf.mxu0
      %v3044 = vpop.f32.mrf.mxu0
      %v3045 = vadd.f32 0.0, %v3044
      %v3046 = vpop.f32.mrf.mxu0
      %3047 = vmatprep.mubr.bf16.mxu0 0
      %3048 = vmatmul.mubr.bf16.gmra.mxu0 %v1550
      %v3049 = vpop.f32.mrf.mxu0
      %v3050 = vadd.f32 0.0, %v3049
      %v3051 = vpop.f32.mrf.mxu0
      %v3052 = vpop.f32.mrf.mxu0
      %v3053 = vadd.f32 0.0, %v3052
      %v3054 = vpop.f32.mrf.mxu0
      %3055 = vmatprep.mubr.bf16.mxu0 0
      %3056 = vmatmul.mubr.bf16.gmra.mxu0 %v1553
      %v3057 = vpop.f32.mrf.mxu0
      %v3058 = vadd.f32 0.0, %v3057
      %v3059 = vpop.f32.mrf.mxu0
      %v3060 = vpop.f32.mrf.mxu0
      %v3061 = vadd.f32 0.0, %v3060
      %v3062 = vpop.f32.mrf.mxu0
      %3063 = vmatprep.mubr.bf16.mxu0 0
      %3064 = vmatmul.mubr.bf16.gmra.mxu0 %v2235
      %v3065 = vpop.f32.mrf.mxu0
      %v3066 = vadd.f32 0.0, %v3065
      %v3067 = vpop.f32.mrf.mxu0
      %v3068 = vpop.f32.mrf.mxu0
      %v3069 = vadd.f32 0.0, %v3068
      %v3070 = vpop.f32.mrf.mxu0
      %3071 = vmatprep.mubr.bf16.mxu0 0
      %3072 = vmatmul.mubr.bf16.gmra.mxu0 %v2917
      %v3073 = vpop.f32.mrf.mxu0
      %v3074 = vadd.f32 0.0, %v3073
      %v3075 = vpop.f32.mrf.mxu0
      %v3076 = vpop.f32.mrf.mxu0
      %v3077 = vadd.f32 0.0, %v3076
      %v3078 = vpop.f32.mrf.mxu0
      %3079 = vdwg.mxu0
      %v3080 = vadd.f32 %v2856, %v2954
      %v3081 = vadd.f32 %v2857, %v2957
      %v3082 = vadd.f32 %v2858, %v2962
      %v3083 = vadd.f32 %v2859, %v2965
      %v3084 = vadd.f32 %v2860, %v2970
      %v3085 = vadd.f32 %v2861, %v2973
      %v3086 = vadd.f32 %v2862, %v2978
      %v3087 = vadd.f32 %v2863, %v2981
      %v3088 = vadd.f32 %v2864, %v2986
      %v3089 = vadd.f32 %v2865, %v2989
      %v3090 = vadd.f32 %v2866, %v2994
      %v3091 = vadd.f32 %v2867, %v2997
      %v3092 = vadd.f32 %v2868, %v3002
      %v3093 = vadd.f32 %v2869, %v3005
      %v3094 = vadd.f32 %v2870, %v3010
      %v3095 = vadd.f32 %v2871, %v3013
      %v3096 = vadd.f32 %v2872, %v3018
      %v3097 = vadd.f32 %v2873, %v3021
      %v3098 = vadd.f32 %v2874, %v3026
      %v3099 = vadd.f32 %v2875, %v3029
      %v3100 = vadd.f32 %v2876, %v3034
      %v3101 = vadd.f32 %v2877, %v3037
      %v3102 = vadd.f32 %v2878, %v3042
      %v3103 = vadd.f32 %v2879, %v3045
      %v3104 = vadd.f32 %v2880, %v3050
      %v3105 = vadd.f32 %v2881, %v3053
      %v3106 = vadd.f32 %v2882, %v3058
      %v3107 = vadd.f32 %v2883, %v3061
      %v3108 = vadd.f32 %v2884, %v3066
      %v3109 = vadd.f32 %v2885, %v3069
      %v3110 = vadd.f32 %v2886, %v3074
      %v3111 = vadd.f32 %v2887, %v3077
      %v3112 = vld [vmem:[%s271] sm:$0x1]
      %v3114 = vlaneseq
      %v3115 = vshrl.u32 %v3114, 7
      %v3116 = vsub.s32 0, %v3115
      %v3117 = vrot.slane %v3112, %v3116
      %v3119 = vadd.f32 %v3080, %v3117
      %v3120 = vadd.f32 %v3081, %v3117
      %v3121 = vadd.f32 %v3082, %v3117
      %v3122 = vadd.f32 %v3083, %v3117
      %v3123 = vadd.f32 %v3084, %v3117
      %v3124 = vadd.f32 %v3085, %v3117
      %v3125 = vadd.f32 %v3086, %v3117
      %v3126 = vadd.f32 %v3087, %v3117
      %v3127 = vadd.f32 %v3088, %v3117
      %v3128 = vadd.f32 %v3089, %v3117
      %v3129 = vadd.f32 %v3090, %v3117
      %v3130 = vadd.f32 %v3091, %v3117
      %v3131 = vadd.f32 %v3092, %v3117
      %v3132 = vadd.f32 %v3093, %v3117
      %v3133 = vadd.f32 %v3094, %v3117
      %v3134 = vadd.f32 %v3095, %v3117
      %v3135 = vadd.f32 %v3096, %v3117
      %v3136 = vadd.f32 %v3097, %v3117
      %v3137 = vadd.f32 %v3098, %v3117
      %v3138 = vadd.f32 %v3099, %v3117
      %v3139 = vadd.f32 %v3100, %v3117
      %v3140 = vadd.f32 %v3101, %v3117
      %v3141 = vadd.f32 %v3102, %v3117
      %v3142 = vadd.f32 %v3103, %v3117
      %v3143 = vadd.f32 %v3104, %v3117
      %v3144 = vadd.f32 %v3105, %v3117
      %v3145 = vadd.f32 %v3106, %v3117
      %v3146 = vadd.f32 %v3107, %v3117
      %v3147 = vadd.f32 %v3108, %v3117
      %v3148 = vadd.f32 %v3109, %v3117
      %v3149 = vadd.f32 %v3110, %v3117
      %v3150 = vadd.f32 %v3111, %v3117
      %v3151 = vpack.c.bf16 %v3120, %v3119
      %v3152 = vpack.c.bf16 %v3122, %v3121
      %v3153 = vpack.c.bf16 %v3124, %v3123
      %v3154 = vpack.c.bf16 %v3126, %v3125
      %v3155 = vpack.c.bf16 %v3128, %v3127
      %v3156 = vpack.c.bf16 %v3130, %v3129
      %v3157 = vpack.c.bf16 %v3132, %v3131
      %v3158 = vpack.c.bf16 %v3134, %v3133
      %v3159 = vpack.c.bf16 %v3136, %v3135
      %v3160 = vpack.c.bf16 %v3138, %v3137
      %v3161 = vpack.c.bf16 %v3140, %v3139
      %v3162 = vpack.c.bf16 %v3142, %v3141
      %v3163 = vpack.c.bf16 %v3144, %v3143
      %v3164 = vpack.c.bf16 %v3146, %v3145
      %v3165 = vpack.c.bf16 %v3148, %v3147
      %v3166 = vpack.c.bf16 %v3150, %v3149
      %v3183 = vunpack.c.l.b16 %v3151
      %v3184 = vunpack.c.h.b16 %v3151
      %v3185 = vunpack.c.l.b16 %v3152
      %v3186 = vunpack.c.h.b16 %v3152
      %v3187 = vunpack.c.l.b16 %v3153
      %v3188 = vunpack.c.h.b16 %v3153
      %v3189 = vunpack.c.l.b16 %v3154
      %v3190 = vunpack.c.h.b16 %v3154
      %v3191 = vunpack.c.l.b16 %v3155
      %v3192 = vunpack.c.h.b16 %v3155
      %v3193 = vunpack.c.l.b16 %v3156
      %v3194 = vunpack.c.h.b16 %v3156
      %v3195 = vunpack.c.l.b16 %v3157
      %v3196 = vunpack.c.h.b16 %v3157
      %v3197 = vunpack.c.l.b16 %v3158
      %v3198 = vunpack.c.h.b16 %v3158
      %v3199 = vunpack.c.l.b16 %v3159
      %v3200 = vunpack.c.h.b16 %v3159
      %v3201 = vunpack.c.l.b16 %v3160
      %v3202 = vunpack.c.h.b16 %v3160
      %v3203 = vunpack.c.l.b16 %v3161
      %v3204 = vunpack.c.h.b16 %v3161
      %v3205 = vunpack.c.l.b16 %v3162
      %v3206 = vunpack.c.h.b16 %v3162
      %v3207 = vunpack.c.l.b16 %v3163
      %v3208 = vunpack.c.h.b16 %v3163
      %v3209 = vunpack.c.l.b16 %v3164
      %v3210 = vunpack.c.h.b16 %v3164
      %v3211 = vunpack.c.l.b16 %v3165
      %v3212 = vunpack.c.h.b16 %v3165
      %v3213 = vunpack.c.l.b16 %v3166
      %v3214 = vunpack.c.h.b16 %v3166
      %v3215 = vpack.c.b16 %v3183, %v3183
      %v3216 = vpack.c.b16 %v3184, %v3184
      %v3217 = vpack.c.b16 %v3185, %v3185
      %v3218 = vpack.c.b16 %v3186, %v3186
      %v3219 = vpack.c.b16 %v3187, %v3187
      %v3220 = vpack.c.b16 %v3188, %v3188
      %v3221 = vpack.c.b16 %v3189, %v3189
      %v3222 = vpack.c.b16 %v3190, %v3190
      %v3223 = vpack.c.b16 %v3191, %v3191
      %v3224 = vpack.c.b16 %v3192, %v3192
      %v3225 = vpack.c.b16 %v3193, %v3193
      %v3226 = vpack.c.b16 %v3194, %v3194
      %v3227 = vpack.c.b16 %v3195, %v3195
      %v3228 = vpack.c.b16 %v3196, %v3196
      %v3229 = vpack.c.b16 %v3197, %v3197
      %v3230 = vpack.c.b16 %v3198, %v3198
      %v3231 = vpack.c.b16 %v3199, %v3199
      %v3232 = vpack.c.b16 %v3200, %v3200
      %v3233 = vpack.c.b16 %v3201, %v3201
      %v3234 = vpack.c.b16 %v3202, %v3202
      %v3235 = vpack.c.b16 %v3203, %v3203
      %v3236 = vpack.c.b16 %v3204, %v3204
      %v3237 = vpack.c.b16 %v3205, %v3205
      %v3238 = vpack.c.b16 %v3206, %v3206
      %v3239 = vpack.c.b16 %v3207, %v3207
      %v3240 = vpack.c.b16 %v3208, %v3208
      %v3241 = vpack.c.b16 %v3209, %v3209
      %v3242 = vpack.c.b16 %v3210, %v3210
      %v3243 = vpack.c.b16 %v3211, %v3211
      %v3244 = vpack.c.b16 %v3212, %v3212
      %v3245 = vpack.c.b16 %v3213, %v3213
      %v3246 = vpack.c.b16 %v3214, %v3214
      %vm3279 = vcmask 257024
      %3280 = vst.msk [vmem:[%s280] sm:$0xf] %vm3279, %v3215
      %3281 = vst.msk [vmem:[%s280 + $0x4] sm:$0xf] %vm3279, %v3216
      %3282 = vst.msk [vmem:[%s280 + $0x8] sm:$0xf] %vm3279, %v3217
      %3283 = vst.msk [vmem:[%s280 + $0xc] sm:$0xf] %vm3279, %v3218
      %3284 = vst.msk [vmem:[%s280 + $0x10] sm:$0xf] %vm3279, %v3219
      %3285 = vst.msk [vmem:[%s280 + $0x14] sm:$0xf] %vm3279, %v3220
      %3286 = vst.msk [vmem:[%s280 + $0x18] sm:$0xf] %vm3279, %v3221
      %3287 = vst.msk [vmem:[%s280 + $0x1c] sm:$0xf] %vm3279, %v3222
      %3288 = vst.msk [vmem:[%s280 + $0x20] sm:$0xf] %vm3279, %v3223
      %3289 = vst.msk [vmem:[%s280 + $0x24] sm:$0xf] %vm3279, %v3224
      %3290 = vst.msk [vmem:[%s280 + $0x28] sm:$0xf] %vm3279, %v3225
      %3291 = vst.msk [vmem:[%s280 + $0x2c] sm:$0xf] %vm3279, %v3226
      %3292 = vst.msk [vmem:[%s280 + $0x30] sm:$0xf] %vm3279, %v3227
      %3293 = vst.msk [vmem:[%s280 + $0x34] sm:$0xf] %vm3279, %v3228
      %3294 = vst.msk [vmem:[%s280 + $0x38] sm:$0xf] %vm3279, %v3229
      %3295 = vst.msk [vmem:[%s280 + $0x3c] sm:$0xf] %vm3279, %v3230
      %3296 = vst.msk [vmem:[%s280 + $0x40] sm:$0xf] %vm3279, %v3231
      %3297 = vst.msk [vmem:[%s280 + $0x44] sm:$0xf] %vm3279, %v3232
      %3298 = vst.msk [vmem:[%s280 + $0x48] sm:$0xf] %vm3279, %v3233
      %3299 = vst.msk [vmem:[%s280 + $0x4c] sm:$0xf] %vm3279, %v3234
      %3300 = vst.msk [vmem:[%s280 + $0x50] sm:$0xf] %vm3279, %v3235
      %3301 = vst.msk [vmem:[%s280 + $0x54] sm:$0xf] %vm3279, %v3236
      %3302 = vst.msk [vmem:[%s280 + $0x58] sm:$0xf] %vm3279, %v3237
      %3303 = vst.msk [vmem:[%s280 + $0x5c] sm:$0xf] %vm3279, %v3238
      %3304 = vst.msk [vmem:[%s280 + $0x60] sm:$0xf] %vm3279, %v3239
      %3305 = vst.msk [vmem:[%s280 + $0x64] sm:$0xf] %vm3279, %v3240
      %3306 = vst.msk [vmem:[%s280 + $0x68] sm:$0xf] %vm3279, %v3241
      %3307 = vst.msk [vmem:[%s280 + $0x6c] sm:$0xf] %vm3279, %v3242
      %3308 = vst.msk [vmem:[%s280 + $0x70] sm:$0xf] %vm3279, %v3243
      %3309 = vst.msk [vmem:[%s280 + $0x74] sm:$0xf] %vm3279, %v3244
      %3310 = vst.msk [vmem:[%s280 + $0x78] sm:$0xf] %vm3279, %v3245
      %3311 = vst.msk [vmem:[%s280 + $0x7c] sm:$0xf] %vm3279, %v3246
      %v3312 = vsel %vm800, %v3119, 0.0
      %v3313 = vsel %vm800, %v3120, 0.0
      %v3314 = vadd.f32 %v3312, %v3313
      %v3315 = vsel %vm800, %v3121, 0.0
      %v3316 = vadd.f32 %v3314, %v3315
      %v3317 = vsel %vm800, %v3122, 0.0
      %v3318 = vadd.f32 %v3316, %v3317
      %v3319 = vsel %vm800, %v3123, 0.0
      %v3320 = vadd.f32 %v3318, %v3319
      %v3321 = vsel %vm800, %v3124, 0.0
      %v3322 = vadd.f32 %v3320, %v3321
      %v3323 = vsel %vm800, %v3125, 0.0
      %v3324 = vadd.f32 %v3322, %v3323
      %v3325 = vsel %vm800, %v3126, 0.0
      %v3326 = vadd.f32 %v3324, %v3325
      %v3327 = vsel %vm800, %v3127, 0.0
      %v3328 = vadd.f32 %v3326, %v3327
      %v3329 = vsel %vm800, %v3128, 0.0
      %v3330 = vadd.f32 %v3328, %v3329
      %v3331 = vsel %vm800, %v3129, 0.0
      %v3332 = vadd.f32 %v3330, %v3331
      %v3333 = vsel %vm800, %v3130, 0.0
      %v3334 = vadd.f32 %v3332, %v3333
      %v3335 = vsel %vm800, %v3131, 0.0
      %v3336 = vadd.f32 %v3334, %v3335
      %v3337 = vsel %vm800, %v3132, 0.0
      %v3338 = vadd.f32 %v3336, %v3337
      %v3339 = vsel %vm800, %v3133, 0.0
      %v3340 = vadd.f32 %v3338, %v3339
      %v3341 = vsel %vm800, %v3134, 0.0
      %v3342 = vadd.f32 %v3340, %v3341
      %v3343 = vsel %vm800, %v3135, 0.0
      %v3344 = vadd.f32 %v3342, %v3343
      %v3345 = vsel %vm800, %v3136, 0.0
      %v3346 = vadd.f32 %v3344, %v3345
      %v3347 = vsel %vm800, %v3137, 0.0
      %v3348 = vadd.f32 %v3346, %v3347
      %v3349 = vsel %vm800, %v3138, 0.0
      %v3350 = vadd.f32 %v3348, %v3349
      %v3351 = vsel %vm800, %v3139, 0.0
      %v3352 = vadd.f32 %v3350, %v3351
      %v3353 = vsel %vm800, %v3140, 0.0
      %v3354 = vadd.f32 %v3352, %v3353
      %v3355 = vsel %vm800, %v3141, 0.0
      %v3356 = vadd.f32 %v3354, %v3355
      %v3357 = vsel %vm800, %v3142, 0.0
      %v3358 = vadd.f32 %v3356, %v3357
      %v3359 = vsel %vm800, %v3143, 0.0
      %v3360 = vadd.f32 %v3358, %v3359
      %v3361 = vsel %vm800, %v3144, 0.0
      %v3362 = vadd.f32 %v3360, %v3361
      %v3363 = vsel %vm800, %v3145, 0.0
      %v3364 = vadd.f32 %v3362, %v3363
      %v3365 = vsel %vm800, %v3146, 0.0
      %v3366 = vadd.f32 %v3364, %v3365
      %v3367 = vsel %vm800, %v3147, 0.0
      %v3368 = vadd.f32 %v3366, %v3367
      %v3369 = vsel %vm800, %v3148, 0.0
      %v3370 = vadd.f32 %v3368, %v3369
      %v3371 = vsel %vm800, %v3149, 0.0
      %v3372 = vadd.f32 %v3370, %v3371
      %v3373 = vsel %vm800, %v3150, 0.0
      %v3374 = vadd.f32 %v3372, %v3373
      %v3375 = vrot.slane %v3374, 4
      %v3376 = vadd.f32 %v3374, %v3375
      %v3377 = vrot.slane %v3376, 2
      %v3378 = vadd.f32 %v3376, %v3377
      %v3379 = vrot.slane %v3378, 1
      %v3380 = vadd.f32 %v3378, %v3379
      %v3381 = vmul.f32 %v3119, %v3119
      %v3382 = vmul.f32 %v3120, %v3120
      %v3383 = vmul.f32 %v3121, %v3121
      %v3384 = vmul.f32 %v3122, %v3122
      %v3385 = vmul.f32 %v3123, %v3123
      %v3386 = vmul.f32 %v3124, %v3124
      %v3387 = vmul.f32 %v3125, %v3125
      %v3388 = vmul.f32 %v3126, %v3126
      %v3389 = vmul.f32 %v3127, %v3127
      %v3390 = vmul.f32 %v3128, %v3128
      %v3391 = vmul.f32 %v3129, %v3129
      %v3392 = vmul.f32 %v3130, %v3130
      %v3393 = vmul.f32 %v3131, %v3131
      %v3394 = vmul.f32 %v3132, %v3132
      %v3395 = vmul.f32 %v3133, %v3133
      %v3396 = vmul.f32 %v3134, %v3134
      %v3397 = vmul.f32 %v3135, %v3135
      %v3398 = vmul.f32 %v3136, %v3136
      %v3399 = vmul.f32 %v3137, %v3137
      %v3400 = vmul.f32 %v3138, %v3138
      %v3401 = vmul.f32 %v3139, %v3139
      %v3402 = vmul.f32 %v3140, %v3140
      %v3403 = vmul.f32 %v3141, %v3141
      %v3404 = vmul.f32 %v3142, %v3142
      %v3405 = vmul.f32 %v3143, %v3143
      %v3406 = vmul.f32 %v3144, %v3144
      %v3407 = vmul.f32 %v3145, %v3145
      %v3408 = vmul.f32 %v3146, %v3146
      %v3409 = vmul.f32 %v3147, %v3147
      %v3410 = vmul.f32 %v3148, %v3148
      %v3411 = vmul.f32 %v3149, %v3149
      %v3412 = vmul.f32 %v3150, %v3150
      %v3413 = vsel %vm800, %v3381, 0.0
      %v3414 = vsel %vm800, %v3382, 0.0
      %v3415 = vadd.f32 %v3413, %v3414
      %v3416 = vsel %vm800, %v3383, 0.0
      %v3417 = vadd.f32 %v3415, %v3416
      %v3418 = vsel %vm800, %v3384, 0.0
      %v3419 = vadd.f32 %v3417, %v3418
      %v3420 = vsel %vm800, %v3385, 0.0
      %v3421 = vadd.f32 %v3419, %v3420
      %v3422 = vsel %vm800, %v3386, 0.0
      %v3423 = vadd.f32 %v3421, %v3422
      %v3424 = vsel %vm800, %v3387, 0.0
      %v3425 = vadd.f32 %v3423, %v3424
      %v3426 = vsel %vm800, %v3388, 0.0
      %v3427 = vadd.f32 %v3425, %v3426
      %v3428 = vsel %vm800, %v3389, 0.0
      %v3429 = vadd.f32 %v3427, %v3428
      %v3430 = vsel %vm800, %v3390, 0.0
      %v3431 = vadd.f32 %v3429, %v3430
      %v3432 = vsel %vm800, %v3391, 0.0
      %v3433 = vadd.f32 %v3431, %v3432
      %v3434 = vsel %vm800, %v3392, 0.0
      %v3435 = vadd.f32 %v3433, %v3434
      %v3436 = vsel %vm800, %v3393, 0.0
      %v3437 = vadd.f32 %v3435, %v3436
      %v3438 = vsel %vm800, %v3394, 0.0
      %v3439 = vadd.f32 %v3437, %v3438
      %v3440 = vsel %vm800, %v3395, 0.0
      %v3441 = vadd.f32 %v3439, %v3440
      %v3442 = vsel %vm800, %v3396, 0.0
      %v3443 = vadd.f32 %v3441, %v3442
      %v3444 = vsel %vm800, %v3397, 0.0
      %v3445 = vadd.f32 %v3443, %v3444
      %v3446 = vsel %vm800, %v3398, 0.0
      %v3447 = vadd.f32 %v3445, %v3446
      %v3448 = vsel %vm800, %v3399, 0.0
      %v3449 = vadd.f32 %v3447, %v3448
      %v3450 = vsel %vm800, %v3400, 0.0
      %v3451 = vadd.f32 %v3449, %v3450
      %v3452 = vsel %vm800, %v3401, 0.0
      %v3453 = vadd.f32 %v3451, %v3452
      %v3454 = vsel %vm800, %v3402, 0.0
      %v3455 = vadd.f32 %v3453, %v3454
      %v3456 = vsel %vm800, %v3403, 0.0
      %v3457 = vadd.f32 %v3455, %v3456
      %v3458 = vsel %vm800, %v3404, 0.0
      %v3459 = vadd.f32 %v3457, %v3458
      %v3460 = vsel %vm800, %v3405, 0.0
      %v3461 = vadd.f32 %v3459, %v3460
      %v3462 = vsel %vm800, %v3406, 0.0
      %v3463 = vadd.f32 %v3461, %v3462
      %v3464 = vsel %vm800, %v3407, 0.0
      %v3465 = vadd.f32 %v3463, %v3464
      %v3466 = vsel %vm800, %v3408, 0.0
      %v3467 = vadd.f32 %v3465, %v3466
      %v3468 = vsel %vm800, %v3409, 0.0
      %v3469 = vadd.f32 %v3467, %v3468
      %v3470 = vsel %vm800, %v3410, 0.0
      %v3471 = vadd.f32 %v3469, %v3470
      %v3472 = vsel %vm800, %v3411, 0.0
      %v3473 = vadd.f32 %v3471, %v3472
      %v3474 = vsel %vm800, %v3412, 0.0
      %v3475 = vadd.f32 %v3473, %v3474
      %v3476 = vrot.slane %v3475, 4
      %v3477 = vadd.f32 %v3475, %v3476
      %v3478 = vrot.slane %v3477, 2
      %v3479 = vadd.f32 %v3477, %v3478
      %v3480 = vrot.slane %v3479, 1
      %v3481 = vadd.f32 %v3479, %v3480
      %vm3482 = vcmask 1040384
      %v3483 = vsel %vm3482, %v3380, %v3481
      %vm3484 = vcmask 1041408
      %v3485 = vsel %vm3484, %v3483, 0.0
      %3486 = vst.msk [vmem:[%s288] sm:$0xff] %vm800, %v3485
      %p3487 = scmp.lt.s32.totalorder %s20, 1
      %s3488 = scalar_select %p3487, %s20, 1
      %p3489 = scmp.lt.s32.totalorder %s21, 1
      %s3490 = scalar_select %p3489, %s21, 1
      %s3491 = smul.addr %s3490, 32
      %s3492 = smul.addr %s3488, 64
      %s3493 = sadd.s32 %s3491, %s3492
      %s3494 = smul.addr %s3493, 4
      %s3495 = scalar_lea.vmem %s3, %s3494
      %p3496 = scmp.lt.s32.totalorder %s20, 1
      %s3497 = scalar_select %p3496, %s20, 1
      %p3498 = scmp.lt.s32.totalorder %s21, 1
      %s3499 = scalar_select %p3498, %s21, 1
      %s3500 = smul.addr %s3497, 2
      %s3501 = sadd.s32 %s3499, %s3500
      %s3502 = smul.addr %s3501, 8
      %s3503 = scalar_lea.vmem %s4, %s3502
      // Predicated region
      $region33: #{mfm0_forward.5} parent=31 // pred_check
        %p3504 = pneg %p128
      $region34: #{mfm0_forward.5} parent=31 // pred_check_branch
        %3506 = sbr.rel (%p3504) target = $region36
      $region35: #{mfm0_forward.5} parent=31 // pred_region
        _
      $region36: #{mfm0_forward.5} parent=31 // pred_fallthru
        _
      // Predicated region
      $region37: #{mfm0_forward.5} parent=31 // pred_check
        %p3507 = pneg %p156
      $region38: #{mfm0_forward.5} parent=31 // pred_check_branch
        %3509 = sbr.rel (%p3507) target = $region40
      $region39: #{mfm0_forward.5} parent=31 // pred_region
        _
      $region40: #{mfm0_forward.5} parent=31 // pred_fallthru
        _
    $region32: #{mfm0_forward.5} parent=5 // pred_fallthru
      _
    %p3510 = scmp.le.s32.totalorder 2, %s11
    // Predicated region
    $region41: #{mfm0_forward.5} parent=5 // pred_check
      %p3511 = pneg %p3510
    $region42: #{mfm0_forward.5} parent=5 // pred_check_branch
      %3513 = sbr.rel (%p3511) target = $region44
    $region43: #{mfm0_forward.5} parent=5 // pred_region
      %s3514 = ssub.s32 %s11, 2
      // Predicated region
      $region45: #{mfm0_forward.5} parent=43 // pred_check
        %p3515 = pneg %p134
      $region46: #{mfm0_forward.5} parent=43 // pred_check_branch
        %3517 = sbr.rel (%p3515) target = $region48
      $region47: #{mfm0_forward.5} parent=43 // pred_region
        %p3518 = scmp.lt.s32.totalorder %s22, 1
        %s3519 = scalar_select %p3518, %s22, 1
        %p3520 = scmp.lt.s32.totalorder %s23, 1
        %s3521 = scalar_select %p3520, %s23, 1
        %s3522 = smul.addr %s3521, 32
        %s3523 = smul.addr %s3519, 64
        %s3524 = sadd.s32 %s3522, %s3523
        %s3525 = smul.addr %s3524, 4
        %s3526 = scalar_lea.vmem %s3, %s3525
      $region48: #{mfm0_forward.5} parent=43 // pred_fallthru
        _
      // Predicated region
      $region49: #{mfm0_forward.5} parent=43 // pred_check
        %p3527 = pneg %p162
      $region50: #{mfm0_forward.5} parent=43 // pred_check_branch
        %3529 = sbr.rel (%p3527) target = $region52
      $region51: #{mfm0_forward.5} parent=43 // pred_region
        %p3530 = scmp.lt.s32.totalorder %s22, 1
        %s3531 = scalar_select %p3530, %s22, 1
        %p3532 = scmp.lt.s32.totalorder %s23, 1
        %s3533 = scalar_select %p3532, %s23, 1
        %s3534 = smul.addr %s3531, 2
        %s3535 = sadd.s32 %s3533, %s3534
        %s3536 = smul.addr %s3535, 8
        %s3537 = scalar_lea.vmem %s4, %s3536
      $region52: #{mfm0_forward.5} parent=43 // pred_fallthru
        _
    $region44: #{mfm0_forward.5} parent=5 // pred_fallthru
      _
  $region6: #{mfm0_forward.5} parent=0 // loop_footer
    %s15 = sadd.s32 1, %s11
  $region7: #{mfm0_forward.5} parent=0 // loop_footer_branch
    %10 = sbr.rel target = $region3
  $region8: #{mfm0_forward.5} parent=0 // loop_exit
    _

// kernel: mfm0_forward.7
$region0: #{mfm0_forward.7}
  #allocation0 [shape = 'u32[]', space=smem, size = 0x4, offset = 0x4, fixed_abs, tag = 'smem constant byte address 0x4 - core index']
  #allocation1 [shape = 'u32[144,128]{1,0:T(1,128)}', space=vmem, size = 0x12000, scoped, tag = 'internal scratch']
  %s0 = inlined_call_operand.vmem [shape: bf16[1,2,18,18,64], index: 0, kind: input, shape index: {}]
  %s1 = inlined_call_operand.vmem [shape: bf16[1,9,64,32], index: 1, kind: input, shape index: {}]
  %s2 = inlined_call_operand.vmem [shape: f32[1,1,32], index: 2, kind: input, shape index: {}]
  %s3 = inlined_call_operand.vmem [shape: bf16[1,2,256,32], index: 3, kind: output, shape index: {0}]
  %s4 = inlined_call_operand.vmem [shape: f32[1,2,8,32], index: 4, kind: output, shape index: {1}]
  %5 = xla_tuple %s3, %s4
  %s6 = sld [smem:[#allocation0]]
  $region53: #{mfm0_forward.7} parent=0
    _
  %s8 = ssub.s32 1, %s6
  %s9 = scalar_select 0, %s8, %s6
  loop: start=0, step=1, limit=4
  $region2: #{mfm0_forward.7} parent=0 // loop_pre_header
    _
  $region3: #{mfm0_forward.7} parent=0 // loop_header
    %s11 = sphi 0, %s15
    %p12 = scmp.ge.s32.totalorder %s11, 4
    %s18 = sphi 0, %s30
    %s19 = sphi 0, %s26
    %s20 = sphi 0, %s18
    %s21 = sphi 0, %s19
    %s22 = sphi 0, %s20
    %s23 = sphi 0, %s21
    %s35 = sphi 0, %s37
    %s38 = sphi 0, %s35
    %s39 = sphi 0, %s38
    %s55 = sphi 0, %s39
    %s61 = sphi 0, %s63
    %s64 = sphi 0, %s61
    %s65 = sphi 0, %s64
    %s81 = sphi 0, %s65
    %s87 = sphi 0, %s89
    %s90 = sphi 0, %s87
    %s91 = sphi 0, %s90
    %s107 = sphi 0, %s91
    %s115 = sphi 0, %s117
    %s118 = sphi 0, %s115
    %s119 = sphi 0, %s118
    %s135 = sphi 0, %s119
    %s143 = sphi 0, %s145
    %s146 = sphi 0, %s143
    %s147 = sphi 0, %s146
    %s163 = sphi 0, %s147
  $region4: #{mfm0_forward.7} parent=0 // loop_header_branch
    %14 = sbr.rel (%p12) target = $region8
  $region5: #{mfm0_forward.7} parent=0 // loop_body
    %s16 = ssub.s32 %s11, 1
    %s17 = ssub.s32 %s11, 2
    %s24 = sadd.s32 1, %s19
    %p25 = scmp.ge.s32.totalorder %s24, 2
    %s26 = scalar_select %p25, 0, %s24
    %s27 = sadd.s32 1, %s18
    %s28 = scalar_select %p25, %s27, %s18
    %p29 = scmp.ge.s32.totalorder %s28, 1
    %s30 = scalar_select %p29, 0, %s28
    %s31 = ssub.s32 %s18, %s30
    %s32 = ssub.s32 %s19, %s26
    %s33 = sor.u32 %s31, %s32
    %p34 = scmp.eq.s32.totalorder %s33, 0
    %s36 = sadd.s32 %s35, 1
    %s37 = scalar_select %p34, %s35, %s36
    %p40 = pneg %p34
    %p41 = scmp.eq.s32.totalorder %s11, 1
    %p42 = por %p40, %p41
    %p43 = scmp.ne.s32.totalorder %s35, %s38
    %p44 = scmp.eq.s32.totalorder %s11, 0
    %p45 = por %p43, %p44
    %p46 = scmp.ne.s32.totalorder %s35, %s38
    %p47 = scmp.eq.s32.totalorder %s16, 1
    %p48 = por %p46, %p47
    %p49 = scmp.ne.s32.totalorder %s38, %s39
    %p50 = scmp.eq.s32.totalorder %s16, 0
    %p51 = por %p49, %p50
    %p52 = scmp.ne.s32.totalorder %s38, %s39
    %p53 = scmp.eq.s32.totalorder %s17, 1
    %p54 = por %p52, %p53
    %p56 = scmp.ne.s32.totalorder %s39, %s55
    %p57 = scmp.eq.s32.totalorder %s17, 0
    %p58 = por %p56, %p57
    %s59 = ssub.s32 %s18, %s30
    %p60 = scmp.eq.s32.totalorder %s59, 0
    %s62 = sadd.s32 %s61, 1
    %s63 = scalar_select %p60, %s61, %s62
    %p66 = pneg %p60
    %p67 = scmp.eq.s32.totalorder %s11, 1
    %p68 = por %p66, %p67
    %p69 = scmp.ne.s32.totalorder %s61, %s64
    %p70 = scmp.eq.s32.totalorder %s11, 0
    %p71 = por %p69, %p70
    %p72 = scmp.ne.s32.totalorder %s61, %s64
    %p73 = scmp.eq.s32.totalorder %s16, 1
    %p74 = por %p72, %p73
    %p75 = scmp.ne.s32.totalorder %s64, %s65
    %p76 = scmp.eq.s32.totalorder %s16, 0
    %p77 = por %p75, %p76
    %p78 = scmp.ne.s32.totalorder %s64, %s65
    %p79 = scmp.eq.s32.totalorder %s17, 1
    %p80 = por %p78, %p79
    %p82 = scmp.ne.s32.totalorder %s65, %s81
    %p83 = scmp.eq.s32.totalorder %s17, 0
    %p84 = por %p82, %p83
    %s85 = ssub.s32 %s18, %s30
    %p86 = scmp.eq.s32.totalorder %s85, 0
    %s88 = sadd.s32 %s87, 1
    %s89 = scalar_select %p86, %s87, %s88
    %p92 = pneg %p86
    %p93 = scmp.eq.s32.totalorder %s11, 1
    %p94 = por %p92, %p93
    %p95 = scmp.ne.s32.totalorder %s87, %s90
    %p96 = scmp.eq.s32.totalorder %s11, 0
    %p97 = por %p95, %p96
    %p98 = scmp.ne.s32.totalorder %s87, %s90
    %p99 = scmp.eq.s32.totalorder %s16, 1
    %p100 = por %p98, %p99
    %p101 = scmp.ne.s32.totalorder %s90, %s91
    %p102 = scmp.eq.s32.totalorder %s16, 0
    %p103 = por %p101, %p102
    %p104 = scmp.ne.s32.totalorder %s90, %s91
    %p105 = scmp.eq.s32.totalorder %s17, 1
    %p106 = por %p104, %p105
    %p108 = scmp.ne.s32.totalorder %s91, %s107
    %p109 = scmp.eq.s32.totalorder %s17, 0
    %p110 = por %p108, %p109
    %s111 = ssub.s32 %s18, %s30
    %s112 = ssub.s32 %s19, %s26
    %s113 = sor.u32 %s111, %s112
    %p114 = scmp.eq.s32.totalorder %s113, 0
    %s116 = sadd.s32 %s115, 1
    %s117 = scalar_select %p114, %s115, %s116
    %p120 = pneg %p114
    %p121 = scmp.eq.s32.totalorder %s11, 1
    %p122 = por %p120, %p121
    %p123 = scmp.ne.s32.totalorder %s115, %s118
    %p124 = scmp.eq.s32.totalorder %s11, 0
    %p125 = por %p123, %p124
    %p126 = scmp.ne.s32.totalorder %s115, %s118
    %p127 = scmp.eq.s32.totalorder %s16, 1
    %p128 = por %p126, %p127
    %p129 = scmp.ne.s32.totalorder %s118, %s119
    %p130 = scmp.eq.s32.totalorder %s16, 0
    %p131 = por %p129, %p130
    %p132 = scmp.ne.s32.totalorder %s118, %s119
    %p133 = scmp.eq.s32.totalorder %s17, 1
    %p134 = por %p132, %p133
    %p136 = scmp.ne.s32.totalorder %s119, %s135
    %p137 = scmp.eq.s32.totalorder %s17, 0
    %p138 = por %p136, %p137
    %s139 = ssub.s32 %s18, %s30
    %s140 = ssub.s32 %s19, %s26
    %s141 = sor.u32 %s139, %s140
    %p142 = scmp.eq.s32.totalorder %s141, 0
    %s144 = sadd.s32 %s143, 1
    %s145 = scalar_select %p142, %s143, %s144
    %p148 = pneg %p142
    %p149 = scmp.eq.s32.totalorder %s11, 1
    %p150 = por %p148, %p149
    %p151 = scmp.ne.s32.totalorder %s143, %s146
    %p152 = scmp.eq.s32.totalorder %s11, 0
    %p153 = por %p151, %p152
    %p154 = scmp.ne.s32.totalorder %s143, %s146
    %p155 = scmp.eq.s32.totalorder %s16, 1
    %p156 = por %p154, %p155
    %p157 = scmp.ne.s32.totalorder %s146, %s147
    %p158 = scmp.eq.s32.totalorder %s16, 0
    %p159 = por %p157, %p158
    %p160 = scmp.ne.s32.totalorder %s146, %s147
    %p161 = scmp.eq.s32.totalorder %s17, 1
    %p162 = por %p160, %p161
    %p164 = scmp.ne.s32.totalorder %s147, %s163
    %p165 = scmp.eq.s32.totalorder %s17, 0
    %p166 = por %p164, %p165
    %p167 = scmp.le.s32.totalorder 1, %s11
    %p168 = scmp.lt.s32.totalorder %s11, 3
    %p169 = pnand %p167, %p168
    %p170 = pneg %p169
    // Predicated region
    $region9: #{mfm0_forward.7} parent=5 // pred_check
      _
    $region10: #{mfm0_forward.7} parent=5 // pred_check_branch
      %172 = sbr.rel (%p169) target = $region12
    $region11: #{mfm0_forward.7} parent=5 // pred_region
      %s173 = ssub.s32 %s11, 1
      // Predicated region
      $region13: #{mfm0_forward.7} parent=11 // pred_check
        %p174 = pneg %p77
      $region14: #{mfm0_forward.7} parent=11 // pred_check_branch
        %176 = sbr.rel (%p174) target = $region16
      $region15: #{mfm0_forward.7} parent=11 // pred_region
        %p177 = scmp.lt.s32.totalorder %s20, 0
        %s178 = scalar_select %p177, %s20, 0
        %s179 = smul.addr %s178, 72
        %s180 = smul.addr %s179, 4
        %s181 = scalar_lea.vmem %s1, %s180
      $region16: #{mfm0_forward.7} parent=11 // pred_fallthru
        _
      // Predicated region
      $region17: #{mfm0_forward.7} parent=11 // pred_check
        %p182 = pneg %p103
      $region18: #{mfm0_forward.7} parent=11 // pred_check_branch
        %184 = sbr.rel (%p182) target = $region20
      $region19: #{mfm0_forward.7} parent=11 // pred_region
        %p185 = scmp.lt.s32.totalorder %s20, 0
        %s186 = scalar_select %p185, %s20, 0
        %s187 = scalar_lea.vmem %s2, %s186
      $region20: #{mfm0_forward.7} parent=11 // pred_fallthru
        _
    $region12: #{mfm0_forward.7} parent=5 // pred_fallthru
      _
    %p188 = scmp.lt.s32.totalorder %s11, 2
    // Predicated region
    $region21: #{mfm0_forward.7} parent=5 // pred_check
      %p189 = pneg %p188
    $region22: #{mfm0_forward.7} parent=5 // pred_check_branch
      %191 = sbr.rel (%p189) target = $region24
    $region23: #{mfm0_forward.7} parent=5 // pred_region
      // Predicated region
      $region25: #{mfm0_forward.7} parent=23 // pred_check
        %p192 = pneg %p45
      $region26: #{mfm0_forward.7} parent=23 // pred_check_branch
        %194 = sbr.rel (%p192) target = $region28
      $region27: #{mfm0_forward.7} parent=23 // pred_region
        %p195 = scmp.lt.s32.totalorder %s18, 0
        %s196 = scalar_select %p195, %s18, 0
        %p197 = scmp.lt.s32.totalorder %s19, 1
        %s198 = scalar_select %p197, %s19, 1
        %s199 = smul.addr %s198, 54
        %s200 = smul.addr %s196, 108
        %s201 = sadd.s32 %s199, %s200
        %s202 = smul.addr %s201, 4
        %s203 = scalar_lea.vmem %s0, %s202
      $region28: #{mfm0_forward.7} parent=23 // pred_fallthru
        _
    $region24: #{mfm0_forward.7} parent=5 // pred_fallthru
      _
    %p204 = scmp.le.s32.totalorder 1, %s11
    %p205 = scmp.lt.s32.totalorder %s11, 3
    %p206 = pnand %p204, %p205
    %p207 = pneg %p206
    // Predicated region
    $region29: #{mfm0_forward.7} parent=5 // pred_check
      _
    $region30: #{mfm0_forward.7} parent=5 // pred_check_branch
      %209 = sbr.rel (%p206) target = $region32
    $region31: #{mfm0_forward.7} parent=5 // pred_region
      %s210 = ssub.s32 %s11, 1
      %p211 = scmp.lt.s32.totalorder %s20, 0
      %s212 = scalar_select %p211, %s20, 0
      %p213 = scmp.lt.s32.totalorder %s21, 1
      %s214 = scalar_select %p213, %s21, 1
      %s215 = smul.addr %s214, 54
      %s216 = smul.addr %s212, 108
      %s217 = sadd.s32 %s215, %s216
      %s218 = smul.addr %s217, 4
      %s219 = scalar_lea.vmem %s0, %s218
      %p220 = pneg %p51
      %p221 = pneg %p48
      %p222 = scmp.lt.s32.totalorder %s20, 0
      %s223 = scalar_select %p222, %s20, 0
      %s224 = smul.addr %s223, 72
      %s225 = smul.addr %s224, 4
      %s226 = scalar_lea.vmem %s1, %s225
      %p227 = pneg %p77
      %p228 = pneg %p74
      %p229 = scmp.lt.s32.totalorder %s20, 0
      %s230 = scalar_select %p229, %s20, 0
      %s231 = scalar_lea.vmem %s2, %s230
      %p232 = pneg %p103
      %p233 = pneg %p100
      %p234 = pneg %p131
      %p235 = pneg %p128
      %p236 = scmp.lt.s32.totalorder %s20, 0
      %s237 = scalar_select %p236, %s20, 0
      %p238 = scmp.lt.s32.totalorder %s21, 1
      %s239 = scalar_select %p238, %s21, 1
      %s240 = smul.addr %s239, 32
      %s241 = smul.addr %s237, 64
      %s242 = sadd.s32 %s240, %s241
      %s243 = smul.addr %s242, 4
      %s244 = scalar_lea.vmem %s3, %s243
      %p245 = pneg %p159
      %p246 = pneg %p156
      %p247 = scmp.lt.s32.totalorder %s20, 0
      %s248 = scalar_select %p247, %s20, 0
      %p249 = scmp.lt.s32.totalorder %s21, 1
      %s250 = scalar_select %p249, %s21, 1
      %s251 = smul.addr %s248, 2
      %s252 = sadd.s32 %s250, %s251
      %s253 = smul.addr %s252, 8
      %s254 = scalar_lea.vmem %s4, %s253
      %p255 = scmp.lt.s32.totalorder %s20, 0
      %s256 = scalar_select %p255, %s20, 0
      %p257 = scmp.lt.s32.totalorder %s21, 1
      %s258 = scalar_select %p257, %s21, 1
      %s259 = smul.addr %s258, 54
      %s260 = smul.addr %s256, 108
      %s261 = sadd.s32 %s259, %s260
      %s262 = smul.addr %s261, 4
      %s263 = scalar_lea.vmem %s0, %s262
      %p264 = scmp.lt.s32.totalorder %s20, 0
      %s265 = scalar_select %p264, %s20, 0
      %s266 = smul.addr %s265, 72
      %s267 = smul.addr %s266, 4
      %s268 = scalar_lea.vmem %s1, %s267
      %p269 = scmp.lt.s32.totalorder %s20, 0
      %s270 = scalar_select %p269, %s20, 0
      %s271 = scalar_lea.vmem %s2, %s270
      %p272 = scmp.lt.s32.totalorder %s20, 0
      %s273 = scalar_select %p272, %s20, 0
      %p274 = scmp.lt.s32.totalorder %s21, 1
      %s275 = scalar_select %p274, %s21, 1
      %s276 = smul.addr %s275, 32
      %s277 = smul.addr %s273, 64
      %s278 = sadd.s32 %s276, %s277
      %s279 = smul.addr %s278, 4
      %s280 = scalar_lea.vmem %s3, %s279
      %p281 = scmp.lt.s32.totalorder %s20, 0
      %s282 = scalar_select %p281, %s20, 0
      %p283 = scmp.lt.s32.totalorder %s21, 1
      %s284 = scalar_select %p283, %s21, 1
      %s285 = smul.addr %s282, 2
      %s286 = sadd.s32 %s284, %s285
      %s287 = smul.addr %s286, 8
      %s288 = scalar_lea.vmem %s4, %s287
      %v290 = vld [vmem:[%s263] sm:$0xf]
      %v291 = vld [vmem:[%s263 + $0x4] sm:$0xf]
      %v292 = vld [vmem:[%s263 + $0x8] sm:$0x1]
      %v293 = vld [vmem:[%s263 + $0xc] sm:$0xf]
      %v294 = vld [vmem:[%s263 + $0x10] sm:$0xf]
      %v295 = vld [vmem:[%s263 + $0x14] sm:$0x1]
      %v296 = vld [vmem:[%s263 + $0x18] sm:$0xf]
      %v297 = vld [vmem:[%s263 + $0x1c] sm:$0xf]
      %v298 = vld [vmem:[%s263 + $0x20] sm:$0x1]
      %v299 = vld [vmem:[%s263 + $0x24] sm:$0xf]
      %v300 = vld [vmem:[%s263 + $0x28] sm:$0xf]
      %v301 = vld [vmem:[%s263 + $0x2c] sm:$0x1]
      %v302 = vld [vmem:[%s263 + $0x30] sm:$0xf]
      %v303 = vld [vmem:[%s263 + $0x34] sm:$0xf]
      %v304 = vld [vmem:[%s263 + $0x38] sm:$0x1]
      %v305 = vld [vmem:[%s263 + $0x3c] sm:$0xf]
      %v306 = vld [vmem:[%s263 + $0x40] sm:$0xf]
      %v307 = vld [vmem:[%s263 + $0x44] sm:$0x1]
      %v308 = vld [vmem:[%s263 + $0x48] sm:$0xf]
      %v309 = vld [vmem:[%s263 + $0x4c] sm:$0xf]
      %v310 = vld [vmem:[%s263 + $0x50] sm:$0x1]
      %v311 = vld [vmem:[%s263 + $0x54] sm:$0xf]
      %v312 = vld [vmem:[%s263 + $0x58] sm:$0xf]
      %v313 = vld [vmem:[%s263 + $0x5c] sm:$0x1]
      %v314 = vld [vmem:[%s263 + $0x60] sm:$0xf]
      %v315 = vld [vmem:[%s263 + $0x64] sm:$0xf]
      %v316 = vld [vmem:[%s263 + $0x68] sm:$0x1]
      %v317 = vld [vmem:[%s263 + $0x6c] sm:$0xf]
      %v318 = vld [vmem:[%s263 + $0x70] sm:$0xf]
      %v319 = vld [vmem:[%s263 + $0x74] sm:$0x1]
      %v320 = vld [vmem:[%s263 + $0x78] sm:$0xf]
      %v321 = vld [vmem:[%s263 + $0x7c] sm:$0xf]
      %v322 = vld [vmem:[%s263 + $0x80] sm:$0x1]
      %v323 = vld [vmem:[%s263 + $0x84] sm:$0xf]
      %v324 = vld [vmem:[%s263 + $0x88] sm:$0xf]
      %v325 = vld [vmem:[%s263 + $0x8c] sm:$0x1]
      %v326 = vld [vmem:[%s263 + $0x90] sm:$0xf]
      %v327 = vld [vmem:[%s263 + $0x94] sm:$0xf]
      %v328 = vld [vmem:[%s263 + $0x98] sm:$0x1]
      %v329 = vld [vmem:[%s263 + $0x9c] sm:$0xf]
      %v330 = vld [vmem:[%s263 + $0xa0] sm:$0xf]
      %v331 = vld [vmem:[%s263 + $0xa4] sm:$0x1]
      %v332 = vld [vmem:[%s263 + $0xa8] sm:$0xf]
      %v333 = vld [vmem:[%s263 + $0xac] sm:$0xf]
      %v334 = vld [vmem:[%s263 + $0xb0] sm:$0x1]
      %v335 = vld [vmem:[%s263 + $0xb4] sm:$0xf]
      %v336 = vld [vmem:[%s263 + $0xb8] sm:$0xf]
      %v337 = vld [vmem:[%s263 + $0xbc] sm:$0x1]
      %v338 = vld [vmem:[%s263 + $0xc0] sm:$0xf]
      %v339 = vld [vmem:[%s263 + $0xc4] sm:$0xf]
      %v340 = vld [vmem:[%s263 + $0xc8] sm:$0x1]
      %v341 = vld [vmem:[%s263 + $0xcc] sm:$0xf]
      %v342 = vld [vmem:[%s263 + $0xd0] sm:$0xf]
      %v343 = vld [vmem:[%s263 + $0xd4] sm:$0x1]
      %v344 = vld [vmem:[%s268] sm:$0xf]
      %v345 = vld [vmem:[%s268 + $0x4] sm:$0xf]
      %v346 = vld [vmem:[%s268 + $0x8] sm:$0xf]
      %v347 = vld [vmem:[%s268 + $0xc] sm:$0xf]
      %v348 = vld [vmem:[%s268 + $0x10] sm:$0xf]
      %v349 = vld [vmem:[%s268 + $0x14] sm:$0xf]
      %v350 = vld [vmem:[%s268 + $0x18] sm:$0xf]
      %v351 = vld [vmem:[%s268 + $0x1c] sm:$0xf]
      %vm352 = vsmask.f32 3328
      %vm353 = vsmask.f32 7440
      %vm354 = vmor %vm352, %vm353
      %v356 = vshrl.u32 %v290, 16
      %v358 = vrot.slane %v356, 4
      %v359 = vshll.u32 %v290, 16
      %v361 = vrot.slane %v359, 5
      %v362 = vor.u32 %v358, %v361
      %v363 = vrot.slane %v362, 4
      %v365 = vshll.u32 %v291, 16
      %v367 = vrot.slane %v365, 5
      %v368 = vsel %vm354, %v363, %v367
      %v369 = vshrl.u32 %v291, 16
      %v371 = vrot.slane %v369, 4
      %v372 = vor.u32 %v371, %v367
      %v373 = vrot.slane %v372, 4
      %v375 = vshll.u32 %v292, 16
      %v377 = vrot.slane %v375, 5
      %v378 = vsel %vm354, %v373, %v377
      %v380 = vshrl.u32 %v293, 16
      %v382 = vrot.slane %v380, 4
      %v383 = vshll.u32 %v293, 16
      %v385 = vrot.slane %v383, 5
      %v386 = vor.u32 %v382, %v385
      %v387 = vrot.slane %v386, 4
      %v389 = vshll.u32 %v294, 16
      %v391 = vrot.slane %v389, 5
      %v392 = vsel %vm354, %v387, %v391
      %v393 = vshrl.u32 %v294, 16
      %v395 = vrot.slane %v393, 4
      %v396 = vor.u32 %v395, %v391
      %v397 = vrot.slane %v396, 4
      %v399 = vshll.u32 %v295, 16
      %v401 = vrot.slane %v399, 5
      %v402 = vsel %vm354, %v397, %v401
      %v404 = vshrl.u32 %v296, 16
      %v406 = vrot.slane %v404, 4
      %v407 = vshll.u32 %v296, 16
      %v409 = vrot.slane %v407, 5
      %v410 = vor.u32 %v406, %v409
      %v411 = vrot.slane %v410, 4
      %v413 = vshll.u32 %v297, 16
      %v415 = vrot.slane %v413, 5
      %v416 = vsel %vm354, %v411, %v415
      %v417 = vshrl.u32 %v297, 16
      %v419 = vrot.slane %v417, 4
      %v420 = vor.u32 %v419, %v415
      %v421 = vrot.slane %v420, 4
      %v423 = vshll.u32 %v298, 16
      %v425 = vrot.slane %v423, 5
      %v426 = vsel %vm354, %v421, %v425
      %v428 = vshrl.u32 %v299, 16
      %v430 = vrot.slane %v428, 4
      %v431 = vshll.u32 %v299, 16
      %v433 = vrot.slane %v431, 5
      %v434 = vor.u32 %v430, %v433
      %v435 = vrot.slane %v434, 4
      %v437 = vshll.u32 %v300, 16
      %v439 = vrot.slane %v437, 5
      %v440 = vsel %vm354, %v435, %v439
      %v441 = vshrl.u32 %v300, 16
      %v443 = vrot.slane %v441, 4
      %v444 = vor.u32 %v443, %v439
      %v445 = vrot.slane %v444, 4
      %v447 = vshll.u32 %v301, 16
      %v449 = vrot.slane %v447, 5
      %v450 = vsel %vm354, %v445, %v449
      %v452 = vshrl.u32 %v302, 16
      %v454 = vrot.slane %v452, 4
      %v455 = vshll.u32 %v302, 16
      %v457 = vrot.slane %v455, 5
      %v458 = vor.u32 %v454, %v457
      %v459 = vrot.slane %v458, 4
      %v461 = vshll.u32 %v303, 16
      %v463 = vrot.slane %v461, 5
      %v464 = vsel %vm354, %v459, %v463
      %v465 = vshrl.u32 %v303, 16
      %v467 = vrot.slane %v465, 4
      %v468 = vor.u32 %v467, %v463
      %v469 = vrot.slane %v468, 4
      %v471 = vshll.u32 %v304, 16
      %v473 = vrot.slane %v471, 5
      %v474 = vsel %vm354, %v469, %v473
      %v476 = vshrl.u32 %v305, 16
      %v478 = vrot.slane %v476, 4
      %v479 = vshll.u32 %v305, 16
      %v481 = vrot.slane %v479, 5
      %v482 = vor.u32 %v478, %v481
      %v483 = vrot.slane %v482, 4
      %v485 = vshll.u32 %v306, 16
      %v487 = vrot.slane %v485, 5
      %v488 = vsel %vm354, %v483, %v487
      %v489 = vshrl.u32 %v306, 16
      %v491 = vrot.slane %v489, 4
      %v492 = vor.u32 %v491, %v487
      %v493 = vrot.slane %v492, 4
      %v495 = vshll.u32 %v307, 16
      %v497 = vrot.slane %v495, 5
      %v498 = vsel %vm354, %v493, %v497
      %v500 = vshrl.u32 %v308, 16
      %v502 = vrot.slane %v500, 4
      %v503 = vshll.u32 %v308, 16
      %v505 = vrot.slane %v503, 5
      %v506 = vor.u32 %v502, %v505
      %v507 = vrot.slane %v506, 4
      %v509 = vshll.u32 %v309, 16
      %v511 = vrot.slane %v509, 5
      %v512 = vsel %vm354, %v507, %v511
      %v513 = vshrl.u32 %v309, 16
      %v515 = vrot.slane %v513, 4
      %v516 = vor.u32 %v515, %v511
      %v517 = vrot.slane %v516, 4
      %v519 = vshll.u32 %v310, 16
      %v521 = vrot.slane %v519, 5
      %v522 = vsel %vm354, %v517, %v521
      %v524 = vshrl.u32 %v311, 16
      %v526 = vrot.slane %v524, 4
      %v527 = vshll.u32 %v311, 16
      %v529 = vrot.slane %v527, 5
      %v530 = vor.u32 %v526, %v529
      %v531 = vrot.slane %v530, 4
      %v533 = vshll.u32 %v312, 16
      %v535 = vrot.slane %v533, 5
      %v536 = vsel %vm354, %v531, %v535
      %v537 = vshrl.u32 %v312, 16
      %v539 = vrot.slane %v537, 4
      %v540 = vor.u32 %v539, %v535
      %v541 = vrot.slane %v540, 4
      %v543 = vshll.u32 %v313, 16
      %v545 = vrot.slane %v543, 5
      %v546 = vsel %vm354, %v541, %v545
      %v548 = vshrl.u32 %v314, 16
      %v550 = vrot.slane %v548, 4
      %v551 = vshll.u32 %v314, 16
      %v553 = vrot.slane %v551, 5
      %v554 = vor.u32 %v550, %v553
      %v555 = vrot.slane %v554, 4
      %v557 = vshll.u32 %v315, 16
      %v559 = vrot.slane %v557, 5
      %v560 = vsel %vm354, %v555, %v559
      %v561 = vshrl.u32 %v315, 16
      %v563 = vrot.slane %v561, 4
      %v564 = vor.u32 %v563, %v559
      %v565 = vrot.slane %v564, 4
      %v567 = vshll.u32 %v316, 16
      %v569 = vrot.slane %v567, 5
      %v570 = vsel %vm354, %v565, %v569
      %v572 = vshrl.u32 %v317, 16
      %v574 = vrot.slane %v572, 4
      %v575 = vshll.u32 %v317, 16
      %v577 = vrot.slane %v575, 5
      %v578 = vor.u32 %v574, %v577
      %v579 = vrot.slane %v578, 4
      %v581 = vshll.u32 %v318, 16
      %v583 = vrot.slane %v581, 5
      %v584 = vsel %vm354, %v579, %v583
      %v585 = vshrl.u32 %v318, 16
      %v587 = vrot.slane %v585, 4
      %v588 = vor.u32 %v587, %v583
      %v589 = vrot.slane %v588, 4
      %v591 = vshll.u32 %v319, 16
      %v593 = vrot.slane %v591, 5
      %v594 = vsel %vm354, %v589, %v593
      %v596 = vshrl.u32 %v320, 16
      %v598 = vrot.slane %v596, 4
      %v599 = vshll.u32 %v320, 16
      %v601 = vrot.slane %v599, 5
      %v602 = vor.u32 %v598, %v601
      %v603 = vrot.slane %v602, 4
      %v605 = vshll.u32 %v321, 16
      %v607 = vrot.slane %v605, 5
      %v608 = vsel %vm354, %v603, %v607
      %v609 = vshrl.u32 %v321, 16
      %v611 = vrot.slane %v609, 4
      %v612 = vor.u32 %v611, %v607
      %v613 = vrot.slane %v612, 4
      %v615 = vshll.u32 %v322, 16
      %v617 = vrot.slane %v615, 5
      %v618 = vsel %vm354, %v613, %v617
      %v620 = vshrl.u32 %v323, 16
      %v622 = vrot.slane %v620, 4
      %v623 = vshll.u32 %v323, 16
      %v625 = vrot.slane %v623, 5
      %v626 = vor.u32 %v622, %v625
      %v627 = vrot.slane %v626, 4
      %v629 = vshll.u32 %v324, 16
      %v631 = vrot.slane %v629, 5
      %v632 = vsel %vm354, %v627, %v631
      %v633 = vshrl.u32 %v324, 16
      %v635 = vrot.slane %v633, 4
      %v636 = vor.u32 %v635, %v631
      %v637 = vrot.slane %v636, 4
      %v639 = vshll.u32 %v325, 16
      %v641 = vrot.slane %v639, 5
      %v642 = vsel %vm354, %v637, %v641
      %v644 = vshrl.u32 %v326, 16
      %v646 = vrot.slane %v644, 4
      %v647 = vshll.u32 %v326, 16
      %v649 = vrot.slane %v647, 5
      %v650 = vor.u32 %v646, %v649
      %v651 = vrot.slane %v650, 4
      %v653 = vshll.u32 %v327, 16
      %v655 = vrot.slane %v653, 5
      %v656 = vsel %vm354, %v651, %v655
      %v657 = vshrl.u32 %v327, 16
      %v659 = vrot.slane %v657, 4
      %v660 = vor.u32 %v659, %v655
      %v661 = vrot.slane %v660, 4
      %v663 = vshll.u32 %v328, 16
      %v665 = vrot.slane %v663, 5
      %v666 = vsel %vm354, %v661, %v665
      %v668 = vshrl.u32 %v329, 16
      %v670 = vrot.slane %v668, 4
      %v671 = vshll.u32 %v329, 16
      %v673 = vrot.slane %v671, 5
      %v674 = vor.u32 %v670, %v673
      %v675 = vrot.slane %v674, 4
      %v677 = vshll.u32 %v330, 16
      %v679 = vrot.slane %v677, 5
      %v680 = vsel %vm354, %v675, %v679
      %v681 = vshrl.u32 %v330, 16
      %v683 = vrot.slane %v681, 4
      %v684 = vor.u32 %v683, %v679
      %v685 = vrot.slane %v684, 4
      %v687 = vshll.u32 %v331, 16
      %v689 = vrot.slane %v687, 5
      %v690 = vsel %vm354, %v685, %v689
      %v692 = vshrl.u32 %v332, 16
      %v694 = vrot.slane %v692, 4
      %v695 = vshll.u32 %v332, 16
      %v697 = vrot.slane %v695, 5
      %v698 = vor.u32 %v694, %v697
      %v699 = vrot.slane %v698, 4
      %v701 = vshll.u32 %v333, 16
      %v703 = vrot.slane %v701, 5
      %v704 = vsel %vm354, %v699, %v703
      %v705 = vshrl.u32 %v333, 16
      %v707 = vrot.slane %v705, 4
      %v708 = vor.u32 %v707, %v703
      %v709 = vrot.slane %v708, 4
      %v711 = vshll.u32 %v334, 16
      %v713 = vrot.slane %v711, 5
      %v714 = vsel %vm354, %v709, %v713
      %v716 = vshrl.u32 %v335, 16
      %v718 = vrot.slane %v716, 4
      %v719 = vshll.u32 %v335, 16
      %v721 = vrot.slane %v719, 5
      %v722 = vor.u32 %v718, %v721
      %v723 = vrot.slane %v722, 4
      %v725 = vshll.u32 %v336, 16
      %v727 = vrot.slane %v725, 5
      %v728 = vsel %vm354, %v723, %v727
      %v729 = vshrl.u32 %v336, 16
      %v731 = vrot.slane %v729, 4
      %v732 = vor.u32 %v731, %v727
      %v733 = vrot.slane %v732, 4
      %v735 = vshll.u32 %v337, 16
      %v737 = vrot.slane %v735, 5
      %v738 = vsel %vm354, %v733, %v737
      %s739 = scalar_lea.vmem %s268, 32
      %v740 = vld [vmem:[%s739] sm:$0xf]
      %v741 = vld [vmem:[%s739 + $0x4] sm:$0xf]
      %v742 = vld [vmem:[%s739 + $0x8] sm:$0xf]
      %v743 = vld [vmem:[%s739 + $0xc] sm:$0xf]
      %v744 = vld [vmem:[%s739 + $0x10] sm:$0xf]
      %v745 = vld [vmem:[%s739 + $0x14] sm:$0xf]
      %v746 = vld [vmem:[%s739 + $0x18] sm:$0xf]
      %v747 = vld [vmem:[%s739 + $0x1c] sm:$0xf]
      %v748 = vunpack.c.l.b16 %v368
      %v749 = vunpack.c.l.b16 %v378
      %v750 = vunpack.c.l.b16 %v392
      %v751 = vunpack.c.l.b16 %v402
      %v752 = vunpack.c.l.b16 %v416
      %v753 = vunpack.c.l.b16 %v426
      %v754 = vunpack.c.l.b16 %v440
      %v755 = vunpack.c.l.b16 %v450
      %v756 = vunpack.c.l.b16 %v464
      %v757 = vunpack.c.l.b16 %v474
      %v758 = vunpack.c.l.b16 %v488
      %v759 = vunpack.c.l.b16 %v498
      %v760 = vunpack.c.l.b16 %v512
      %v761 = vunpack.c.l.b16 %v522
      %v762 = vunpack.c.l.b16 %v536
      %v763 = vunpack.c.l.b16 %v546
      %v764 = vunpack.c.l.b16 %v560
      %v765 = vunpack.c.l.b16 %v570
      %v766 = vunpack.c.l.b16 %v584
      %v767 = vunpack.c.l.b16 %v594
      %v768 = vunpack.c.l.b16 %v608
      %v769 = vunpack.c.l.b16 %v618
      %v770 = vunpack.c.l.b16 %v632
      %v771 = vunpack.c.l.b16 %v642
      %v772 = vunpack.c.l.b16 %v656
      %v773 = vunpack.c.l.b16 %v666
      %v774 = vunpack.c.l.b16 %v680
      %v775 = vunpack.c.l.b16 %v690
      %v776 = vunpack.c.l.b16 %v704
      %v777 = vunpack.c.l.b16 %v714
      %v778 = vunpack.c.l.b16 %v728
      %v779 = vunpack.c.l.b16 %v738
      %v780 = vpack.c.b16 %v749, %v748
      %v781 = vpack.c.b16 %v751, %v750
      %v782 = vpack.c.b16 %v753, %v752
      %v783 = vpack.c.b16 %v755, %v754
      %v784 = vpack.c.b16 %v757, %v756
      %v785 = vpack.c.b16 %v759, %v758
      %v786 = vpack.c.b16 %v761, %v760
      %v787 = vpack.c.b16 %v763, %v762
      %v788 = vpack.c.b16 %v765, %v764
      %v789 = vpack.c.b16 %v767, %v766
      %v790 = vpack.c.b16 %v769, %v768
      %v791 = vpack.c.b16 %v771, %v770
      %v792 = vpack.c.b16 %v773, %v772
      %v793 = vpack.c.b16 %v775, %v774
      %v794 = vpack.c.b16 %v777, %v776
      %v795 = vpack.c.b16 %v779, %v778
      %v804 = vunpack.c.l.b16 %v740
      %v805 = vunpack.c.l.b16 %v741
      %v806 = vunpack.c.l.b16 %v742
      %v807 = vunpack.c.l.b16 %v743
      %v808 = vunpack.c.l.b16 %v744
      %v809 = vunpack.c.l.b16 %v745
      %v810 = vunpack.c.l.b16 %v746
      %v811 = vunpack.c.l.b16 %v747
      %v812 = vpack.c.b16 %v805, %v804
      %v813 = vpack.c.b16 %v807, %v806
      %v814 = vpack.c.b16 %v809, %v808
      %v815 = vpack.c.b16 %v811, %v810
      %vm820 = vcmask 523264
      %v822 = vsel %vm820, %v780, 0
      %v825 = vsel %vm820, %v781, 0
      %v828 = vsel %vm820, %v782, 0
      %v831 = vsel %vm820, %v783, 0
      %v834 = vsel %vm820, %v784, 0
      %v837 = vsel %vm820, %v785, 0
      %v840 = vsel %vm820, %v786, 0
      %v843 = vsel %vm820, %v787, 0
      %v846 = vsel %vm820, %v788, 0
      %v849 = vsel %vm820, %v789, 0
      %v852 = vsel %vm820, %v790, 0
      %v855 = vsel %vm820, %v791, 0
      %v858 = vsel %vm820, %v792, 0
      %v861 = vsel %vm820, %v793, 0
      %v864 = vsel %vm820, %v794, 0
      %v867 = vsel %vm820, %v795, 0
      %869 = vmatprep.subr.bf16.mxu0 0
      %870 = vmatpush1.bf16.msra.mxu0 0
      %871 = vmatprep.subr.bf16.mxu0 0
      %872 = vmatpush1.bf16.msra.mxu0 0
      %873 = vmatprep.subr.bf16.mxu0 0
      %874 = vmatpush1.bf16.msra.mxu0 0
      %875 = vmatprep.subr.bf16.mxu0 0
      %876 = vmatpush1.bf16.msra.mxu0 0
      %877 = vmatprep.subr.bf16.mxu0 0
      %878 = vmatpush1.bf16.msra.mxu0 %v815
      %879 = vmatprep.subr.bf16.mxu0 0
      %880 = vmatpush1.bf16.msra.mxu0 %v814
      %881 = vmatprep.subr.bf16.mxu0 0
      %882 = vmatpush1.bf16.msra.mxu0 %v813
      %883 = vmatprep.subr.bf16.mxu0 0
      %884 = vmatpush1.bf16.msra.mxu0 %v812
      %885 = vmatprep.subr.bf16.mxu0 0
      %886 = vmatpush2.bf16.msra.mxu0 0
      %887 = vmatprep.subr.bf16.mxu0 0
      %888 = vmatpush2.bf16.msra.mxu0 0
      %889 = vmatprep.subr.bf16.mxu0 0
      %890 = vmatpush2.bf16.msra.mxu0 0
      %891 = vmatprep.subr.bf16.mxu0 0
      %892 = vmatpush2.bf16.msra.mxu0 0
      %893 = vmatprep.subr.bf16.mxu0 0
      %894 = vmatpush2.bf16.msra.mxu0 0
      %895 = vmatprep.subr.bf16.mxu0 0
      %896 = vmatpush2.bf16.msra.mxu0 0
      %897 = vmatprep.subr.bf16.mxu0 0
      %898 = vmatpush2.bf16.msra.mxu0 0
      %899 = vmatprep.subr.bf16.mxu0 0
      %900 = vmatpush2.bf16.msra.mxu0 0
      %901 = vmatprep.mubr.bf16.mxu0 0
      %902 = vmatmul.mubr.bf16.gmra.mxu0 %v822
      %v903 = vpop.f32.mrf.mxu0
      %v904 = vadd.f32 0.0, %v903
      %v905 = vpop.f32.mrf.mxu0
      %v906 = vpop.f32.mrf.mxu0
      %v907 = vadd.f32 0.0, %v906
      %v908 = vpop.f32.mrf.mxu0
      %909 = vmatprep.mubr.bf16.mxu0 0
      %910 = vmatmul.mubr.bf16.gmra.mxu0 %v825
      %v911 = vpop.f32.mrf.mxu0
      %v912 = vadd.f32 0.0, %v911
      %v913 = vpop.f32.mrf.mxu0
      %v914 = vpop.f32.mrf.mxu0
      %v915 = vadd.f32 0.0, %v914
      %v916 = vpop.f32.mrf.mxu0
      %917 = vmatprep.mubr.bf16.mxu0 0
      %918 = vmatmul.mubr.bf16.gmra.mxu0 %v828
      %v919 = vpop.f32.mrf.mxu0
      %v920 = vadd.f32 0.0, %v919
      %v921 = vpop.f32.mrf.mxu0
      %v922 = vpop.f32.mrf.mxu0
      %v923 = vadd.f32 0.0, %v922
      %v924 = vpop.f32.mrf.mxu0
      %925 = vmatprep.mubr.bf16.mxu0 0
      %926 = vmatmul.mubr.bf16.gmra.mxu0 %v831
      %v927 = vpop.f32.mrf.mxu0
      %v928 = vadd.f32 0.0, %v927
      %v929 = vpop.f32.mrf.mxu0
      %v930 = vpop.f32.mrf.mxu0
      %v931 = vadd.f32 0.0, %v930
      %v932 = vpop.f32.mrf.mxu0
      %933 = vmatprep.mubr.bf16.mxu0 0
      %934 = vmatmul.mubr.bf16.gmra.mxu0 %v834
      %v935 = vpop.f32.mrf.mxu0
      %v936 = vadd.f32 0.0, %v935
      %v937 = vpop.f32.mrf.mxu0
      %v938 = vpop.f32.mrf.mxu0
      %v939 = vadd.f32 0.0, %v938
      %v940 = vpop.f32.mrf.mxu0
      %941 = vmatprep.mubr.bf16.mxu0 0
      %942 = vmatmul.mubr.bf16.gmra.mxu0 %v837
      %v943 = vpop.f32.mrf.mxu0
      %v944 = vadd.f32 0.0, %v943
      %v945 = vpop.f32.mrf.mxu0
      %v946 = vpop.f32.mrf.mxu0
      %v947 = vadd.f32 0.0, %v946
      %v948 = vpop.f32.mrf.mxu0
      %949 = vmatprep.mubr.bf16.mxu0 0
      %950 = vmatmul.mubr.bf16.gmra.mxu0 %v840
      %v951 = vpop.f32.mrf.mxu0
      %v952 = vadd.f32 0.0, %v951
      %v953 = vpop.f32.mrf.mxu0
      %v954 = vpop.f32.mrf.mxu0
      %v955 = vadd.f32 0.0, %v954
      %v956 = vpop.f32.mrf.mxu0
      %957 = vmatprep.mubr.bf16.mxu0 0
      %958 = vmatmul.mubr.bf16.gmra.mxu0 %v843
      %v959 = vpop.f32.mrf.mxu0
      %v960 = vadd.f32 0.0, %v959
      %v961 = vpop.f32.mrf.mxu0
      %v962 = vpop.f32.mrf.mxu0
      %v963 = vadd.f32 0.0, %v962
      %v964 = vpop.f32.mrf.mxu0
      %965 = vmatprep.mubr.bf16.mxu0 0
      %966 = vmatmul.mubr.bf16.gmra.mxu0 %v846
      %v967 = vpop.f32.mrf.mxu0
      %v968 = vadd.f32 0.0, %v967
      %v969 = vpop.f32.mrf.mxu0
      %v970 = vpop.f32.mrf.mxu0
      %v971 = vadd.f32 0.0, %v970
      %v972 = vpop.f32.mrf.mxu0
      %973 = vmatprep.mubr.bf16.mxu0 0
      %974 = vmatmul.mubr.bf16.gmra.mxu0 %v849
      %v975 = vpop.f32.mrf.mxu0
      %v976 = vadd.f32 0.0, %v975
      %v977 = vpop.f32.mrf.mxu0
      %v978 = vpop.f32.mrf.mxu0
      %v979 = vadd.f32 0.0, %v978
      %v980 = vpop.f32.mrf.mxu0
      %981 = vmatprep.mubr.bf16.mxu0 0
      %982 = vmatmul.mubr.bf16.gmra.mxu0 %v852
      %v983 = vpop.f32.mrf.mxu0
      %v984 = vadd.f32 0.0, %v983
      %v985 = vpop.f32.mrf.mxu0
      %v986 = vpop.f32.mrf.mxu0
      %v987 = vadd.f32 0.0, %v986
      %v988 = vpop.f32.mrf.mxu0
      %989 = vmatprep.mubr.bf16.mxu0 0
      %990 = vmatmul.mubr.bf16.gmra.mxu0 %v855
      %v991 = vpop.f32.mrf.mxu0
      %v992 = vadd.f32 0.0, %v991
      %v993 = vpop.f32.mrf.mxu0
      %v994 = vpop.f32.mrf.mxu0
      %v995 = vadd.f32 0.0, %v994
      %v996 = vpop.f32.mrf.mxu0
      %997 = vmatprep.mubr.bf16.mxu0 0
      %998 = vmatmul.mubr.bf16.gmra.mxu0 %v858
      %v999 = vpop.f32.mrf.mxu0
      %v1000 = vadd.f32 0.0, %v999
      %v1001 = vpop.f32.mrf.mxu0
      %v1002 = vpop.f32.mrf.mxu0
      %v1003 = vadd.f32 0.0, %v1002
      %v1004 = vpop.f32.mrf.mxu0
      %1005 = vmatprep.mubr.bf16.mxu0 0
      %1006 = vmatmul.mubr.bf16.gmra.mxu0 %v861
      %v1007 = vpop.f32.mrf.mxu0
      %v1008 = vadd.f32 0.0, %v1007
      %v1009 = vpop.f32.mrf.mxu0
      %v1010 = vpop.f32.mrf.mxu0
      %v1011 = vadd.f32 0.0, %v1010
      %v1012 = vpop.f32.mrf.mxu0
      %1013 = vmatprep.mubr.bf16.mxu0 0
      %1014 = vmatmul.mubr.bf16.gmra.mxu0 %v864
      %v1015 = vpop.f32.mrf.mxu0
      %v1016 = vadd.f32 0.0, %v1015
      %v1017 = vpop.f32.mrf.mxu0
      %v1018 = vpop.f32.mrf.mxu0
      %v1019 = vadd.f32 0.0, %v1018
      %v1020 = vpop.f32.mrf.mxu0
      %1021 = vmatprep.mubr.bf16.mxu0 0
      %1022 = vmatmul.mubr.bf16.gmra.mxu0 %v867
      %v1023 = vpop.f32.mrf.mxu0
      %v1024 = vadd.f32 0.0, %v1023
      %v1025 = vpop.f32.mrf.mxu0
      %v1026 = vpop.f32.mrf.mxu0
      %v1027 = vadd.f32 0.0, %v1026
      %v1028 = vpop.f32.mrf.mxu0
      %1029 = vdwg.mxu0
      %v1062 = vunpack.c.l.b16 %v290
      %v1063 = vunpack.c.l.b16 %v291
      %v1064 = vunpack.c.l.b16 %v293
      %v1065 = vunpack.c.l.b16 %v294
      %v1066 = vunpack.c.l.b16 %v296
      %v1067 = vunpack.c.l.b16 %v297
      %v1068 = vunpack.c.l.b16 %v299
      %v1069 = vunpack.c.l.b16 %v300
      %v1070 = vunpack.c.l.b16 %v302
      %v1071 = vunpack.c.l.b16 %v303
      %v1072 = vunpack.c.l.b16 %v305
      %v1073 = vunpack.c.l.b16 %v306
      %v1074 = vunpack.c.l.b16 %v308
      %v1075 = vunpack.c.l.b16 %v309
      %v1076 = vunpack.c.l.b16 %v311
      %v1077 = vunpack.c.l.b16 %v312
      %v1078 = vunpack.c.l.b16 %v314
      %v1079 = vunpack.c.l.b16 %v315
      %v1080 = vunpack.c.l.b16 %v317
      %v1081 = vunpack.c.l.b16 %v318
      %v1082 = vunpack.c.l.b16 %v320
      %v1083 = vunpack.c.l.b16 %v321
      %v1084 = vunpack.c.l.b16 %v323
      %v1085 = vunpack.c.l.b16 %v324
      %v1086 = vunpack.c.l.b16 %v326
      %v1087 = vunpack.c.l.b16 %v327
      %v1088 = vunpack.c.l.b16 %v329
      %v1089 = vunpack.c.l.b16 %v330
      %v1090 = vunpack.c.l.b16 %v332
      %v1091 = vunpack.c.l.b16 %v333
      %v1092 = vunpack.c.l.b16 %v335
      %v1093 = vunpack.c.l.b16 %v336
      %v1094 = vpack.c.b16 %v1063, %v1062
      %v1095 = vpack.c.b16 %v1065, %v1064
      %v1096 = vpack.c.b16 %v1067, %v1066
      %v1097 = vpack.c.b16 %v1069, %v1068
      %v1098 = vpack.c.b16 %v1071, %v1070
      %v1099 = vpack.c.b16 %v1073, %v1072
      %v1100 = vpack.c.b16 %v1075, %v1074
      %v1101 = vpack.c.b16 %v1077, %v1076
      %v1102 = vpack.c.b16 %v1079, %v1078
      %v1103 = vpack.c.b16 %v1081, %v1080
      %v1104 = vpack.c.b16 %v1083, %v1082
      %v1105 = vpack.c.b16 %v1085, %v1084
      %v1106 = vpack.c.b16 %v1087, %v1086
      %v1107 = vpack.c.b16 %v1089, %v1088
      %v1108 = vpack.c.b16 %v1091, %v1090
      %v1109 = vpack.c.b16 %v1093, %v1092
      %v1118 = vunpack.c.l.b16 %v344
      %v1119 = vunpack.c.l.b16 %v345
      %v1120 = vunpack.c.l.b16 %v346
      %v1121 = vunpack.c.l.b16 %v347
      %v1122 = vunpack.c.l.b16 %v348
      %v1123 = vunpack.c.l.b16 %v349
      %v1124 = vunpack.c.l.b16 %v350
      %v1125 = vunpack.c.l.b16 %v351
      %v1126 = vpack.c.b16 %v1119, %v1118
      %v1127 = vpack.c.b16 %v1121, %v1120
      %v1128 = vpack.c.b16 %v1123, %v1122
      %v1129 = vpack.c.b16 %v1125, %v1124
      %v1135 = vsel %vm820, %v1094, 0
      %v1138 = vsel %vm820, %v1095, 0
      %v1141 = vsel %vm820, %v1096, 0
      %v1144 = vsel %vm820, %v1097, 0
      %v1147 = vsel %vm820, %v1098, 0
      %v1150 = vsel %vm820, %v1099, 0
      %v1153 = vsel %vm820, %v1100, 0
      %v1156 = vsel %vm820, %v1101, 0
      %v1159 = vsel %vm820, %v1102, 0
      %v1162 = vsel %vm820, %v1103, 0
      %v1165 = vsel %vm820, %v1104, 0
      %v1168 = vsel %vm820, %v1105, 0
      %v1171 = vsel %vm820, %v1106, 0
      %v1174 = vsel %vm820, %v1107, 0
      %v1177 = vsel %vm820, %v1108, 0
      %v1180 = vsel %vm820, %v1109, 0
      %1182 = vmatprep.subr.bf16.mxu0 0
      %1183 = vmatpush1.bf16.msra.mxu0 0
      %1184 = vmatprep.subr.bf16.mxu0 0
      %1185 = vmatpush1.bf16.msra.mxu0 0
      %1186 = vmatprep.subr.bf16.mxu0 0
      %1187 = vmatpush1.bf16.msra.mxu0 0
      %1188 = vmatprep.subr.bf16.mxu0 0
      %1189 = vmatpush1.bf16.msra.mxu0 0
      %1190 = vmatprep.subr.bf16.mxu0 0
      %1191 = vmatpush1.bf16.msra.mxu0 %v1129
      %1192 = vmatprep.subr.bf16.mxu0 0
      %1193 = vmatpush1.bf16.msra.mxu0 %v1128
      %1194 = vmatprep.subr.bf16.mxu0 0
      %1195 = vmatpush1.bf16.msra.mxu0 %v1127
      %1196 = vmatprep.subr.bf16.mxu0 0
      %1197 = vmatpush1.bf16.msra.mxu0 %v1126
      %1198 = vmatprep.subr.bf16.mxu0 0
      %1199 = vmatpush2.bf16.msra.mxu0 0
      %1200 = vmatprep.subr.bf16.mxu0 0
      %1201 = vmatpush2.bf16.msra.mxu0 0
      %1202 = vmatprep.subr.bf16.mxu0 0
      %1203 = vmatpush2.bf16.msra.mxu0 0
      %1204 = vmatprep.subr.bf16.mxu0 0
      %1205 = vmatpush2.bf16.msra.mxu0 0
      %1206 = vmatprep.subr.bf16.mxu0 0
      %1207 = vmatpush2.bf16.msra.mxu0 0
      %1208 = vmatprep.subr.bf16.mxu0 0
      %1209 = vmatpush2.bf16.msra.mxu0 0
      %1210 = vmatprep.subr.bf16.mxu0 0
      %1211 = vmatpush2.bf16.msra.mxu0 0
      %1212 = vmatprep.subr.bf16.mxu0 0
      %1213 = vmatpush2.bf16.msra.mxu0 0
      %1214 = vmatprep.mubr.bf16.mxu0 0
      %1215 = vmatmul.mubr.bf16.gmra.mxu0 %v1135
      %v1216 = vpop.f32.mrf.mxu0
      %v1217 = vadd.f32 %v904, %v1216
      %v1218 = vpop.f32.mrf.mxu0
      %v1219 = vpop.f32.mrf.mxu0
      %v1220 = vadd.f32 %v907, %v1219
      %v1221 = vpop.f32.mrf.mxu0
      %1222 = vmatprep.mubr.bf16.mxu0 0
      %1223 = vmatmul.mubr.bf16.gmra.mxu0 %v1138
      %v1224 = vpop.f32.mrf.mxu0
      %v1225 = vadd.f32 %v912, %v1224
      %v1226 = vpop.f32.mrf.mxu0
      %v1227 = vpop.f32.mrf.mxu0
      %v1228 = vadd.f32 %v915, %v1227
      %v1229 = vpop.f32.mrf.mxu0
      %1230 = vmatprep.mubr.bf16.mxu0 0
      %1231 = vmatmul.mubr.bf16.gmra.mxu0 %v1141
      %v1232 = vpop.f32.mrf.mxu0
      %v1233 = vadd.f32 %v920, %v1232
      %v1234 = vpop.f32.mrf.mxu0
      %v1235 = vpop.f32.mrf.mxu0
      %v1236 = vadd.f32 %v923, %v1235
      %v1237 = vpop.f32.mrf.mxu0
      %1238 = vmatprep.mubr.bf16.mxu0 0
      %1239 = vmatmul.mubr.bf16.gmra.mxu0 %v1144
      %v1240 = vpop.f32.mrf.mxu0
      %v1241 = vadd.f32 %v928, %v1240
      %v1242 = vpop.f32.mrf.mxu0
      %v1243 = vpop.f32.mrf.mxu0
      %v1244 = vadd.f32 %v931, %v1243
      %v1245 = vpop.f32.mrf.mxu0
      %1246 = vmatprep.mubr.bf16.mxu0 0
      %1247 = vmatmul.mubr.bf16.gmra.mxu0 %v1147
      %v1248 = vpop.f32.mrf.mxu0
      %v1249 = vadd.f32 %v936, %v1248
      %v1250 = vpop.f32.mrf.mxu0
      %v1251 = vpop.f32.mrf.mxu0
      %v1252 = vadd.f32 %v939, %v1251
      %v1253 = vpop.f32.mrf.mxu0
      %1254 = vmatprep.mubr.bf16.mxu0 0
      %1255 = vmatmul.mubr.bf16.gmra.mxu0 %v1150
      %v1256 = vpop.f32.mrf.mxu0
      %v1257 = vadd.f32 %v944, %v1256
      %v1258 = vpop.f32.mrf.mxu0
      %v1259 = vpop.f32.mrf.mxu0
      %v1260 = vadd.f32 %v947, %v1259
      %v1261 = vpop.f32.mrf.mxu0
      %1262 = vmatprep.mubr.bf16.mxu0 0
      %1263 = vmatmul.mubr.bf16.gmra.mxu0 %v1153
      %v1264 = vpop.f32.mrf.mxu0
      %v1265 = vadd.f32 %v952, %v1264
      %v1266 = vpop.f32.mrf.mxu0
      %v1267 = vpop.f32.mrf.mxu0
      %v1268 = vadd.f32 %v955, %v1267
      %v1269 = vpop.f32.mrf.mxu0
      %1270 = vmatprep.mubr.bf16.mxu0 0
      %1271 = vmatmul.mubr.bf16.gmra.mxu0 %v1156
      %v1272 = vpop.f32.mrf.mxu0
      %v1273 = vadd.f32 %v960, %v1272
      %v1274 = vpop.f32.mrf.mxu0
      %v1275 = vpop.f32.mrf.mxu0
      %v1276 = vadd.f32 %v963, %v1275
      %v1277 = vpop.f32.mrf.mxu0
      %1278 = vmatprep.mubr.bf16.mxu0 0
      %1279 = vmatmul.mubr.bf16.gmra.mxu0 %v1159
      %v1280 = vpop.f32.mrf.mxu0
      %v1281 = vadd.f32 %v968, %v1280
      %v1282 = vpop.f32.mrf.mxu0
      %v1283 = vpop.f32.mrf.mxu0
      %v1284 = vadd.f32 %v971, %v1283
      %v1285 = vpop.f32.mrf.mxu0
      %1286 = vmatprep.mubr.bf16.mxu0 0
      %1287 = vmatmul.mubr.bf16.gmra.mxu0 %v1162
      %v1288 = vpop.f32.mrf.mxu0
      %v1289 = vadd.f32 %v976, %v1288
      %v1290 = vpop.f32.mrf.mxu0
      %v1291 = vpop.f32.mrf.mxu0
      %v1292 = vadd.f32 %v979, %v1291
      %v1293 = vpop.f32.mrf.mxu0
      %1294 = vmatprep.mubr.bf16.mxu0 0
      %1295 = vmatmul.mubr.bf16.gmra.mxu0 %v1165
      %v1296 = vpop.f32.mrf.mxu0
      %v1297 = vadd.f32 %v984, %v1296
      %v1298 = vpop.f32.mrf.mxu0
      %v1299 = vpop.f32.mrf.mxu0
      %v1300 = vadd.f32 %v987, %v1299
      %v1301 = vpop.f32.mrf.mxu0
      %1302 = vmatprep.mubr.bf16.mxu0 0
      %1303 = vmatmul.mubr.bf16.gmra.mxu0 %v1168
      %v1304 = vpop.f32.mrf.mxu0
      %v1305 = vadd.f32 %v992, %v1304
      %v1306 = vpop.f32.mrf.mxu0
      %v1307 = vpop.f32.mrf.mxu0
      %v1308 = vadd.f32 %v995, %v1307
      %v1309 = vpop.f32.mrf.mxu0
      %1310 = vmatprep.mubr.bf16.mxu0 0
      %1311 = vmatmul.mubr.bf16.gmra.mxu0 %v1171
      %v1312 = vpop.f32.mrf.mxu0
      %v1313 = vadd.f32 %v1000, %v1312
      %v1314 = vpop.f32.mrf.mxu0
      %v1315 = vpop.f32.mrf.mxu0
      %v1316 = vadd.f32 %v1003, %v1315
      %v1317 = vpop.f32.mrf.mxu0
      %1318 = vmatprep.mubr.bf16.mxu0 0
      %1319 = vmatmul.mubr.bf16.gmra.mxu0 %v1174
      %v1320 = vpop.f32.mrf.mxu0
      %v1321 = vadd.f32 %v1008, %v1320
      %v1322 = vpop.f32.mrf.mxu0
      %v1323 = vpop.f32.mrf.mxu0
      %v1324 = vadd.f32 %v1011, %v1323
      %v1325 = vpop.f32.mrf.mxu0
      %1326 = vmatprep.mubr.bf16.mxu0 0
      %1327 = vmatmul.mubr.bf16.gmra.mxu0 %v1177
      %v1328 = vpop.f32.mrf.mxu0
      %v1329 = vadd.f32 %v1016, %v1328
      %v1330 = vpop.f32.mrf.mxu0
      %v1331 = vpop.f32.mrf.mxu0
      %v1332 = vadd.f32 %v1019, %v1331
      %v1333 = vpop.f32.mrf.mxu0
      %1334 = vmatprep.mubr.bf16.mxu0 0
      %1335 = vmatmul.mubr.bf16.gmra.mxu0 %v1180
      %v1336 = vpop.f32.mrf.mxu0
      %v1337 = vadd.f32 %v1024, %v1336
      %v1338 = vpop.f32.mrf.mxu0
      %v1339 = vpop.f32.mrf.mxu0
      %v1340 = vadd.f32 %v1027, %v1339
      %v1341 = vpop.f32.mrf.mxu0
      %1342 = vdwg.mxu0
      %vm1359 = vcmask 1042432
      %vm1360 = vcmask 1046532
      %vm1361 = vmor %vm1359, %vm1360
      %v1362 = vrot.slane %v290, 5
      %v1363 = vrot.slane %v1362, 4
      %v1364 = vrot.slane %v291, 5
      %v1365 = vsel %vm1361, %v1363, %v1364
      %v1366 = vrot.slane %v1364, 4
      %v1367 = vrot.slane %v292, 5
      %v1368 = vsel %vm1361, %v1366, %v1367
      %v1369 = vrot.slane %v293, 5
      %v1370 = vrot.slane %v1369, 4
      %v1371 = vrot.slane %v294, 5
      %v1372 = vsel %vm1361, %v1370, %v1371
      %v1373 = vrot.slane %v1371, 4
      %v1374 = vrot.slane %v295, 5
      %v1375 = vsel %vm1361, %v1373, %v1374
      %v1376 = vrot.slane %v296, 5
      %v1377 = vrot.slane %v1376, 4
      %v1378 = vrot.slane %v297, 5
      %v1379 = vsel %vm1361, %v1377, %v1378
      %v1380 = vrot.slane %v1378, 4
      %v1381 = vrot.slane %v298, 5
      %v1382 = vsel %vm1361, %v1380, %v1381
      %v1383 = vrot.slane %v299, 5
      %v1384 = vrot.slane %v1383, 4
      %v1385 = vrot.slane %v300, 5
      %v1386 = vsel %vm1361, %v1384, %v1385
      %v1387 = vrot.slane %v1385, 4
      %v1388 = vrot.slane %v301, 5
      %v1389 = vsel %vm1361, %v1387, %v1388
      %v1390 = vrot.slane %v302, 5
      %v1391 = vrot.slane %v1390, 4
      %v1392 = vrot.slane %v303, 5
      %v1393 = vsel %vm1361, %v1391, %v1392
      %v1394 = vrot.slane %v1392, 4
      %v1395 = vrot.slane %v304, 5
      %v1396 = vsel %vm1361, %v1394, %v1395
      %v1397 = vrot.slane %v305, 5
      %v1398 = vrot.slane %v1397, 4
      %v1399 = vrot.slane %v306, 5
      %v1400 = vsel %vm1361, %v1398, %v1399
      %v1401 = vrot.slane %v1399, 4
      %v1402 = vrot.slane %v307, 5
      %v1403 = vsel %vm1361, %v1401, %v1402
      %v1404 = vrot.slane %v308, 5
      %v1405 = vrot.slane %v1404, 4
      %v1406 = vrot.slane %v309, 5
      %v1407 = vsel %vm1361, %v1405, %v1406
      %v1408 = vrot.slane %v1406, 4
      %v1409 = vrot.slane %v310, 5
      %v1410 = vsel %vm1361, %v1408, %v1409
      %v1411 = vrot.slane %v311, 5
      %v1412 = vrot.slane %v1411, 4
      %v1413 = vrot.slane %v312, 5
      %v1414 = vsel %vm1361, %v1412, %v1413
      %v1415 = vrot.slane %v1413, 4
      %v1416 = vrot.slane %v313, 5
      %v1417 = vsel %vm1361, %v1415, %v1416
      %v1418 = vrot.slane %v314, 5
      %v1419 = vrot.slane %v1418, 4
      %v1420 = vrot.slane %v315, 5
      %v1421 = vsel %vm1361, %v1419, %v1420
      %v1422 = vrot.slane %v1420, 4
      %v1423 = vrot.slane %v316, 5
      %v1424 = vsel %vm1361, %v1422, %v1423
      %v1425 = vrot.slane %v317, 5
      %v1426 = vrot.slane %v1425, 4
      %v1427 = vrot.slane %v318, 5
      %v1428 = vsel %vm1361, %v1426, %v1427
      %v1429 = vrot.slane %v1427, 4
      %v1430 = vrot.slane %v319, 5
      %v1431 = vsel %vm1361, %v1429, %v1430
      %v1432 = vrot.slane %v320, 5
      %v1433 = vrot.slane %v1432, 4
      %v1434 = vrot.slane %v321, 5
      %v1435 = vsel %vm1361, %v1433, %v1434
      %v1436 = vrot.slane %v1434, 4
      %v1437 = vrot.slane %v322, 5
      %v1438 = vsel %vm1361, %v1436, %v1437
      %v1439 = vrot.slane %v323, 5
      %v1440 = vrot.slane %v1439, 4
      %v1441 = vrot.slane %v324, 5
      %v1442 = vsel %vm1361, %v1440, %v1441
      %v1443 = vrot.slane %v1441, 4
      %v1444 = vrot.slane %v325, 5
      %v1445 = vsel %vm1361, %v1443, %v1444
      %v1446 = vrot.slane %v326, 5
      %v1447 = vrot.slane %v1446, 4
      %v1448 = vrot.slane %v327, 5
      %v1449 = vsel %vm1361, %v1447, %v1448
      %v1450 = vrot.slane %v1448, 4
      %v1451 = vrot.slane %v328, 5
      %v1452 = vsel %vm1361, %v1450, %v1451
      %v1453 = vrot.slane %v329, 5
      %v1454 = vrot.slane %v1453, 4
      %v1455 = vrot.slane %v330, 5
      %v1456 = vsel %vm1361, %v1454, %v1455
      %v1457 = vrot.slane %v1455, 4
      %v1458 = vrot.slane %v331, 5
      %v1459 = vsel %vm1361, %v1457, %v1458
      %v1460 = vrot.slane %v332, 5
      %v1461 = vrot.slane %v1460, 4
      %v1462 = vrot.slane %v333, 5
      %v1463 = vsel %vm1361, %v1461, %v1462
      %v1464 = vrot.slane %v1462, 4
      %v1465 = vrot.slane %v334, 5
      %v1466 = vsel %vm1361, %v1464, %v1465
      %v1467 = vrot.slane %v335, 5
      %v1468 = vrot.slane %v1467, 4
      %v1469 = vrot.slane %v336, 5
      %v1470 = vsel %vm1361, %v1468, %v1469
      %v1471 = vrot.slane %v1469, 4
      %v1472 = vrot.slane %v337, 5
      %v1473 = vsel %vm1361, %v1471, %v1472
      %s1474 = scalar_lea.vmem %s268, 64
      %v1475 = vld [vmem:[%s1474] sm:$0xf]
      %v1476 = vld [vmem:[%s1474 + $0x4] sm:$0xf]
      %v1477 = vld [vmem:[%s1474 + $0x8] sm:$0xf]
      %v1478 = vld [vmem:[%s1474 + $0xc] sm:$0xf]
      %v1479 = vld [vmem:[%s1474 + $0x10] sm:$0xf]
      %v1480 = vld [vmem:[%s1474 + $0x14] sm:$0xf]
      %v1481 = vld [vmem:[%s1474 + $0x18] sm:$0xf]
      %v1482 = vld [vmem:[%s1474 + $0x1c] sm:$0xf]
      %v1483 = vunpack.c.l.b16 %v1365
      %v1484 = vunpack.c.l.b16 %v1368
      %v1485 = vunpack.c.l.b16 %v1372
      %v1486 = vunpack.c.l.b16 %v1375
      %v1487 = vunpack.c.l.b16 %v1379
      %v1488 = vunpack.c.l.b16 %v1382
      %v1489 = vunpack.c.l.b16 %v1386
      %v1490 = vunpack.c.l.b16 %v1389
      %v1491 = vunpack.c.l.b16 %v1393
      %v1492 = vunpack.c.l.b16 %v1396
      %v1493 = vunpack.c.l.b16 %v1400
      %v1494 = vunpack.c.l.b16 %v1403
      %v1495 = vunpack.c.l.b16 %v1407
      %v1496 = vunpack.c.l.b16 %v1410
      %v1497 = vunpack.c.l.b16 %v1414
      %v1498 = vunpack.c.l.b16 %v1417
      %v1499 = vunpack.c.l.b16 %v1421
      %v1500 = vunpack.c.l.b16 %v1424
      %v1501 = vunpack.c.l.b16 %v1428
      %v1502 = vunpack.c.l.b16 %v1431
      %v1503 = vunpack.c.l.b16 %v1435
      %v1504 = vunpack.c.l.b16 %v1438
      %v1505 = vunpack.c.l.b16 %v1442
      %v1506 = vunpack.c.l.b16 %v1445
      %v1507 = vunpack.c.l.b16 %v1449
      %v1508 = vunpack.c.l.b16 %v1452
      %v1509 = vunpack.c.l.b16 %v1456
      %v1510 = vunpack.c.l.b16 %v1459
      %v1511 = vunpack.c.l.b16 %v1463
      %v1512 = vunpack.c.l.b16 %v1466
      %v1513 = vunpack.c.l.b16 %v1470
      %v1514 = vunpack.c.l.b16 %v1473
      %v1515 = vpack.c.b16 %v1484, %v1483
      %v1516 = vpack.c.b16 %v1486, %v1485
      %v1517 = vpack.c.b16 %v1488, %v1487
      %v1518 = vpack.c.b16 %v1490, %v1489
      %v1519 = vpack.c.b16 %v1492, %v1491
      %v1520 = vpack.c.b16 %v1494, %v1493
      %v1521 = vpack.c.b16 %v1496, %v1495
      %v1522 = vpack.c.b16 %v1498, %v1497
      %v1523 = vpack.c.b16 %v1500, %v1499
      %v1524 = vpack.c.b16 %v1502, %v1501
      %v1525 = vpack.c.b16 %v1504, %v1503
      %v1526 = vpack.c.b16 %v1506, %v1505
      %v1527 = vpack.c.b16 %v1508, %v1507
      %v1528 = vpack.c.b16 %v1510, %v1509
      %v1529 = vpack.c.b16 %v1512, %v1511
      %v1530 = vpack.c.b16 %v1514, %v1513
      %v1539 = vunpack.c.l.b16 %v1475
      %v1540 = vunpack.c.l.b16 %v1476
      %v1541 = vunpack.c.l.b16 %v1477
      %v1542 = vunpack.c.l.b16 %v1478
      %v1543 = vunpack.c.l.b16 %v1479
      %v1544 = vunpack.c.l.b16 %v1480
      %v1545 = vunpack.c.l.b16 %v1481
      %v1546 = vunpack.c.l.b16 %v1482
      %v1547 = vpack.c.b16 %v1540, %v1539
      %v1548 = vpack.c.b16 %v1542, %v1541
      %v1549 = vpack.c.b16 %v1544, %v1543
      %v1550 = vpack.c.b16 %v1546, %v1545
      %v1556 = vsel %vm820, %v1515, 0
      %v1559 = vsel %vm820, %v1516, 0
      %v1562 = vsel %vm820, %v1517, 0
      %v1565 = vsel %vm820, %v1518, 0
      %v1568 = vsel %vm820, %v1519, 0
      %v1571 = vsel %vm820, %v1520, 0
      %v1574 = vsel %vm820, %v1521, 0
      %v1577 = vsel %vm820, %v1522, 0
      %v1580 = vsel %vm820, %v1523, 0
      %v1583 = vsel %vm820, %v1524, 0
      %v1586 = vsel %vm820, %v1525, 0
      %v1589 = vsel %vm820, %v1526, 0
      %v1592 = vsel %vm820, %v1527, 0
      %v1595 = vsel %vm820, %v1528, 0
      %v1598 = vsel %vm820, %v1529, 0
      %v1601 = vsel %vm820, %v1530, 0
      %1603 = vmatprep.subr.bf16.mxu0 0
      %1604 = vmatpush1.bf16.msra.mxu0 0
      %1605 = vmatprep.subr.bf16.mxu0 0
      %1606 = vmatpush1.bf16.msra.mxu0 0
      %1607 = vmatprep.subr.bf16.mxu0 0
      %1608 = vmatpush1.bf16.msra.mxu0 0
      %1609 = vmatprep.subr.bf16.mxu0 0
      %1610 = vmatpush1.bf16.msra.mxu0 0
      %1611 = vmatprep.subr.bf16.mxu0 0
      %1612 = vmatpush1.bf16.msra.mxu0 %v1550
      %1613 = vmatprep.subr.bf16.mxu0 0
      %1614 = vmatpush1.bf16.msra.mxu0 %v1549
      %1615 = vmatprep.subr.bf16.mxu0 0
      %1616 = vmatpush1.bf16.msra.mxu0 %v1548
      %1617 = vmatprep.subr.bf16.mxu0 0
      %1618 = vmatpush1.bf16.msra.mxu0 %v1547
      %1619 = vmatprep.subr.bf16.mxu0 0
      %1620 = vmatpush2.bf16.msra.mxu0 0
      %1621 = vmatprep.subr.bf16.mxu0 0
      %1622 = vmatpush2.bf16.msra.mxu0 0
      %1623 = vmatprep.subr.bf16.mxu0 0
      %1624 = vmatpush2.bf16.msra.mxu0 0
      %1625 = vmatprep.subr.bf16.mxu0 0
      %1626 = vmatpush2.bf16.msra.mxu0 0
      %1627 = vmatprep.subr.bf16.mxu0 0
      %1628 = vmatpush2.bf16.msra.mxu0 0
      %1629 = vmatprep.subr.bf16.mxu0 0
      %1630 = vmatpush2.bf16.msra.mxu0 0
      %1631 = vmatprep.subr.bf16.mxu0 0
      %1632 = vmatpush2.bf16.msra.mxu0 0
      %1633 = vmatprep.subr.bf16.mxu0 0
      %1634 = vmatpush2.bf16.msra.mxu0 0
      %1635 = vmatprep.mubr.bf16.mxu0 0
      %1636 = vmatmul.mubr.bf16.gmra.mxu0 %v1556
      %v1637 = vpop.f32.mrf.mxu0
      %v1638 = vadd.f32 0.0, %v1637
      %v1639 = vpop.f32.mrf.mxu0
      %v1640 = vpop.f32.mrf.mxu0
      %v1641 = vadd.f32 0.0, %v1640
      %v1642 = vpop.f32.mrf.mxu0
      %1643 = vmatprep.mubr.bf16.mxu0 0
      %1644 = vmatmul.mubr.bf16.gmra.mxu0 %v1559
      %v1645 = vpop.f32.mrf.mxu0
      %v1646 = vadd.f32 0.0, %v1645
      %v1647 = vpop.f32.mrf.mxu0
      %v1648 = vpop.f32.mrf.mxu0
      %v1649 = vadd.f32 0.0, %v1648
      %v1650 = vpop.f32.mrf.mxu0
      %1651 = vmatprep.mubr.bf16.mxu0 0
      %1652 = vmatmul.mubr.bf16.gmra.mxu0 %v1562
      %v1653 = vpop.f32.mrf.mxu0
      %v1654 = vadd.f32 0.0, %v1653
      %v1655 = vpop.f32.mrf.mxu0
      %v1656 = vpop.f32.mrf.mxu0
      %v1657 = vadd.f32 0.0, %v1656
      %v1658 = vpop.f32.mrf.mxu0
      %1659 = vmatprep.mubr.bf16.mxu0 0
      %1660 = vmatmul.mubr.bf16.gmra.mxu0 %v1565
      %v1661 = vpop.f32.mrf.mxu0
      %v1662 = vadd.f32 0.0, %v1661
      %v1663 = vpop.f32.mrf.mxu0
      %v1664 = vpop.f32.mrf.mxu0
      %v1665 = vadd.f32 0.0, %v1664
      %v1666 = vpop.f32.mrf.mxu0
      %1667 = vmatprep.mubr.bf16.mxu0 0
      %1668 = vmatmul.mubr.bf16.gmra.mxu0 %v1568
      %v1669 = vpop.f32.mrf.mxu0
      %v1670 = vadd.f32 0.0, %v1669
      %v1671 = vpop.f32.mrf.mxu0
      %v1672 = vpop.f32.mrf.mxu0
      %v1673 = vadd.f32 0.0, %v1672
      %v1674 = vpop.f32.mrf.mxu0
      %1675 = vmatprep.mubr.bf16.mxu0 0
      %1676 = vmatmul.mubr.bf16.gmra.mxu0 %v1571
      %v1677 = vpop.f32.mrf.mxu0
      %v1678 = vadd.f32 0.0, %v1677
      %v1679 = vpop.f32.mrf.mxu0
      %v1680 = vpop.f32.mrf.mxu0
      %v1681 = vadd.f32 0.0, %v1680
      %v1682 = vpop.f32.mrf.mxu0
      %1683 = vmatprep.mubr.bf16.mxu0 0
      %1684 = vmatmul.mubr.bf16.gmra.mxu0 %v1574
      %v1685 = vpop.f32.mrf.mxu0
      %v1686 = vadd.f32 0.0, %v1685
      %v1687 = vpop.f32.mrf.mxu0
      %v1688 = vpop.f32.mrf.mxu0
      %v1689 = vadd.f32 0.0, %v1688
      %v1690 = vpop.f32.mrf.mxu0
      %1691 = vmatprep.mubr.bf16.mxu0 0
      %1692 = vmatmul.mubr.bf16.gmra.mxu0 %v1577
      %v1693 = vpop.f32.mrf.mxu0
      %v1694 = vadd.f32 0.0, %v1693
      %v1695 = vpop.f32.mrf.mxu0
      %v1696 = vpop.f32.mrf.mxu0
      %v1697 = vadd.f32 0.0, %v1696
      %v1698 = vpop.f32.mrf.mxu0
      %1699 = vmatprep.mubr.bf16.mxu0 0
      %1700 = vmatmul.mubr.bf16.gmra.mxu0 %v1580
      %v1701 = vpop.f32.mrf.mxu0
      %v1702 = vadd.f32 0.0, %v1701
      %v1703 = vpop.f32.mrf.mxu0
      %v1704 = vpop.f32.mrf.mxu0
      %v1705 = vadd.f32 0.0, %v1704
      %v1706 = vpop.f32.mrf.mxu0
      %1707 = vmatprep.mubr.bf16.mxu0 0
      %1708 = vmatmul.mubr.bf16.gmra.mxu0 %v1583
      %v1709 = vpop.f32.mrf.mxu0
      %v1710 = vadd.f32 0.0, %v1709
      %v1711 = vpop.f32.mrf.mxu0
      %v1712 = vpop.f32.mrf.mxu0
      %v1713 = vadd.f32 0.0, %v1712
      %v1714 = vpop.f32.mrf.mxu0
      %1715 = vmatprep.mubr.bf16.mxu0 0
      %1716 = vmatmul.mubr.bf16.gmra.mxu0 %v1586
      %v1717 = vpop.f32.mrf.mxu0
      %v1718 = vadd.f32 0.0, %v1717
      %v1719 = vpop.f32.mrf.mxu0
      %v1720 = vpop.f32.mrf.mxu0
      %v1721 = vadd.f32 0.0, %v1720
      %v1722 = vpop.f32.mrf.mxu0
      %1723 = vmatprep.mubr.bf16.mxu0 0
      %1724 = vmatmul.mubr.bf16.gmra.mxu0 %v1589
      %v1725 = vpop.f32.mrf.mxu0
      %v1726 = vadd.f32 0.0, %v1725
      %v1727 = vpop.f32.mrf.mxu0
      %v1728 = vpop.f32.mrf.mxu0
      %v1729 = vadd.f32 0.0, %v1728
      %v1730 = vpop.f32.mrf.mxu0
      %1731 = vmatprep.mubr.bf16.mxu0 0
      %1732 = vmatmul.mubr.bf16.gmra.mxu0 %v1592
      %v1733 = vpop.f32.mrf.mxu0
      %v1734 = vadd.f32 0.0, %v1733
      %v1735 = vpop.f32.mrf.mxu0
      %v1736 = vpop.f32.mrf.mxu0
      %v1737 = vadd.f32 0.0, %v1736
      %v1738 = vpop.f32.mrf.mxu0
      %1739 = vmatprep.mubr.bf16.mxu0 0
      %1740 = vmatmul.mubr.bf16.gmra.mxu0 %v1595
      %v1741 = vpop.f32.mrf.mxu0
      %v1742 = vadd.f32 0.0, %v1741
      %v1743 = vpop.f32.mrf.mxu0
      %v1744 = vpop.f32.mrf.mxu0
      %v1745 = vadd.f32 0.0, %v1744
      %v1746 = vpop.f32.mrf.mxu0
      %1747 = vmatprep.mubr.bf16.mxu0 0
      %1748 = vmatmul.mubr.bf16.gmra.mxu0 %v1598
      %v1749 = vpop.f32.mrf.mxu0
      %v1750 = vadd.f32 0.0, %v1749
      %v1751 = vpop.f32.mrf.mxu0
      %v1752 = vpop.f32.mrf.mxu0
      %v1753 = vadd.f32 0.0, %v1752
      %v1754 = vpop.f32.mrf.mxu0
      %1755 = vmatprep.mubr.bf16.mxu0 0
      %1756 = vmatmul.mubr.bf16.gmra.mxu0 %v1601
      %v1757 = vpop.f32.mrf.mxu0
      %v1758 = vadd.f32 0.0, %v1757
      %v1759 = vpop.f32.mrf.mxu0
      %v1760 = vpop.f32.mrf.mxu0
      %v1761 = vadd.f32 0.0, %v1760
      %v1762 = vpop.f32.mrf.mxu0
      %1763 = vdwg.mxu0
      %v1764 = vadd.f32 %v1217, %v1638
      %v1765 = vadd.f32 %v1220, %v1641
      %v1766 = vadd.f32 %v1225, %v1646
      %v1767 = vadd.f32 %v1228, %v1649
      %v1768 = vadd.f32 %v1233, %v1654
      %v1769 = vadd.f32 %v1236, %v1657
      %v1770 = vadd.f32 %v1241, %v1662
      %v1771 = vadd.f32 %v1244, %v1665
      %v1772 = vadd.f32 %v1249, %v1670
      %v1773 = vadd.f32 %v1252, %v1673
      %v1774 = vadd.f32 %v1257, %v1678
      %v1775 = vadd.f32 %v1260, %v1681
      %v1776 = vadd.f32 %v1265, %v1686
      %v1777 = vadd.f32 %v1268, %v1689
      %v1778 = vadd.f32 %v1273, %v1694
      %v1779 = vadd.f32 %v1276, %v1697
      %v1780 = vadd.f32 %v1281, %v1702
      %v1781 = vadd.f32 %v1284, %v1705
      %v1782 = vadd.f32 %v1289, %v1710
      %v1783 = vadd.f32 %v1292, %v1713
      %v1784 = vadd.f32 %v1297, %v1718
      %v1785 = vadd.f32 %v1300, %v1721
      %v1786 = vadd.f32 %v1305, %v1726
      %v1787 = vadd.f32 %v1308, %v1729
      %v1788 = vadd.f32 %v1313, %v1734
      %v1789 = vadd.f32 %v1316, %v1737
      %v1790 = vadd.f32 %v1321, %v1742
      %v1791 = vadd.f32 %v1324, %v1745
      %v1792 = vadd.f32 %v1329, %v1750
      %v1793 = vadd.f32 %v1332, %v1753
      %v1794 = vadd.f32 %v1337, %v1758
      %v1795 = vadd.f32 %v1340, %v1761
      %s1796 = scalar_lea.vmem %s268, 96
      %v1797 = vld [vmem:[%s1796] sm:$0xf]
      %v1798 = vld [vmem:[%s1796 + $0x4] sm:$0xf]
      %v1799 = vld [vmem:[%s1796 + $0x8] sm:$0xf]
      %v1800 = vld [vmem:[%s1796 + $0xc] sm:$0xf]
      %v1801 = vld [vmem:[%s1796 + $0x10] sm:$0xf]
      %v1802 = vld [vmem:[%s1796 + $0x14] sm:$0xf]
      %v1803 = vld [vmem:[%s1796 + $0x18] sm:$0xf]
      %v1804 = vld [vmem:[%s1796 + $0x1c] sm:$0xf]
      %v1807 = vunpack.c.l.b16 %v338
      %v1808 = vunpack.c.l.b16 %v339
      %v1809 = vpack.c.b16 %v1808, %v1807
      %v1818 = vunpack.c.l.b16 %v1797
      %v1819 = vunpack.c.l.b16 %v1798
      %v1820 = vunpack.c.l.b16 %v1799
      %v1821 = vunpack.c.l.b16 %v1800
      %v1822 = vunpack.c.l.b16 %v1801
      %v1823 = vunpack.c.l.b16 %v1802
      %v1824 = vunpack.c.l.b16 %v1803
      %v1825 = vunpack.c.l.b16 %v1804
      %v1826 = vpack.c.b16 %v1819, %v1818
      %v1827 = vpack.c.b16 %v1821, %v1820
      %v1828 = vpack.c.b16 %v1823, %v1822
      %v1829 = vpack.c.b16 %v1825, %v1824
      %v1835 = vsel %vm820, %v1809, 0
      %1837 = vmatprep.subr.bf16.mxu0 0
      %1838 = vmatpush1.bf16.msra.mxu0 0
      %1839 = vmatprep.subr.bf16.mxu0 0
      %1840 = vmatpush1.bf16.msra.mxu0 0
      %1841 = vmatprep.subr.bf16.mxu0 0
      %1842 = vmatpush1.bf16.msra.mxu0 0
      %1843 = vmatprep.subr.bf16.mxu0 0
      %1844 = vmatpush1.bf16.msra.mxu0 0
      %1845 = vmatprep.subr.bf16.mxu0 0
      %1846 = vmatpush1.bf16.msra.mxu0 %v1829
      %1847 = vmatprep.subr.bf16.mxu0 0
      %1848 = vmatpush1.bf16.msra.mxu0 %v1828
      %1849 = vmatprep.subr.bf16.mxu0 0
      %1850 = vmatpush1.bf16.msra.mxu0 %v1827
      %1851 = vmatprep.subr.bf16.mxu0 0
      %1852 = vmatpush1.bf16.msra.mxu0 %v1826
      %1853 = vmatprep.subr.bf16.mxu0 0
      %1854 = vmatpush2.bf16.msra.mxu0 0
      %1855 = vmatprep.subr.bf16.mxu0 0
      %1856 = vmatpush2.bf16.msra.mxu0 0
      %1857 = vmatprep.subr.bf16.mxu0 0
      %1858 = vmatpush2.bf16.msra.mxu0 0
      %1859 = vmatprep.subr.bf16.mxu0 0
      %1860 = vmatpush2.bf16.msra.mxu0 0
      %1861 = vmatprep.subr.bf16.mxu0 0
      %1862 = vmatpush2.bf16.msra.mxu0 0
      %1863 = vmatprep.subr.bf16.mxu0 0
      %1864 = vmatpush2.bf16.msra.mxu0 0
      %1865 = vmatprep.subr.bf16.mxu0 0
      %1866 = vmatpush2.bf16.msra.mxu0 0
      %1867 = vmatprep.subr.bf16.mxu0 0
      %1868 = vmatpush2.bf16.msra.mxu0 0
      %1869 = vmatprep.mubr.bf16.mxu0 0
      %1870 = vmatmul.mubr.bf16.gmra.mxu0 %v1138
      %v1871 = vpop.f32.mrf.mxu0
      %v1872 = vadd.f32 0.0, %v1871
      %v1873 = vpop.f32.mrf.mxu0
      %v1874 = vpop.f32.mrf.mxu0
      %v1875 = vadd.f32 0.0, %v1874
      %v1876 = vpop.f32.mrf.mxu0
      %1877 = vmatprep.mubr.bf16.mxu0 0
      %1878 = vmatmul.mubr.bf16.gmra.mxu0 %v1141
      %v1879 = vpop.f32.mrf.mxu0
      %v1880 = vadd.f32 0.0, %v1879
      %v1881 = vpop.f32.mrf.mxu0
      %v1882 = vpop.f32.mrf.mxu0
      %v1883 = vadd.f32 0.0, %v1882
      %v1884 = vpop.f32.mrf.mxu0
      %1885 = vmatprep.mubr.bf16.mxu0 0
      %1886 = vmatmul.mubr.bf16.gmra.mxu0 %v1144
      %v1887 = vpop.f32.mrf.mxu0
      %v1888 = vadd.f32 0.0, %v1887
      %v1889 = vpop.f32.mrf.mxu0
      %v1890 = vpop.f32.mrf.mxu0
      %v1891 = vadd.f32 0.0, %v1890
      %v1892 = vpop.f32.mrf.mxu0
      %1893 = vmatprep.mubr.bf16.mxu0 0
      %1894 = vmatmul.mubr.bf16.gmra.mxu0 %v1147
      %v1895 = vpop.f32.mrf.mxu0
      %v1896 = vadd.f32 0.0, %v1895
      %v1897 = vpop.f32.mrf.mxu0
      %v1898 = vpop.f32.mrf.mxu0
      %v1899 = vadd.f32 0.0, %v1898
      %v1900 = vpop.f32.mrf.mxu0
      %1901 = vmatprep.mubr.bf16.mxu0 0
      %1902 = vmatmul.mubr.bf16.gmra.mxu0 %v1150
      %v1903 = vpop.f32.mrf.mxu0
      %v1904 = vadd.f32 0.0, %v1903
      %v1905 = vpop.f32.mrf.mxu0
      %v1906 = vpop.f32.mrf.mxu0
      %v1907 = vadd.f32 0.0, %v1906
      %v1908 = vpop.f32.mrf.mxu0
      %1909 = vmatprep.mubr.bf16.mxu0 0
      %1910 = vmatmul.mubr.bf16.gmra.mxu0 %v1153
      %v1911 = vpop.f32.mrf.mxu0
      %v1912 = vadd.f32 0.0, %v1911
      %v1913 = vpop.f32.mrf.mxu0
      %v1914 = vpop.f32.mrf.mxu0
      %v1915 = vadd.f32 0.0, %v1914
      %v1916 = vpop.f32.mrf.mxu0
      %1917 = vmatprep.mubr.bf16.mxu0 0
      %1918 = vmatmul.mubr.bf16.gmra.mxu0 %v1156
      %v1919 = vpop.f32.mrf.mxu0
      %v1920 = vadd.f32 0.0, %v1919
      %v1921 = vpop.f32.mrf.mxu0
      %v1922 = vpop.f32.mrf.mxu0
      %v1923 = vadd.f32 0.0, %v1922
      %v1924 = vpop.f32.mrf.mxu0
      %1925 = vmatprep.mubr.bf16.mxu0 0
      %1926 = vmatmul.mubr.bf16.gmra.mxu0 %v1159
      %v1927 = vpop.f32.mrf.mxu0
      %v1928 = vadd.f32 0.0, %v1927
      %v1929 = vpop.f32.mrf.mxu0
      %v1930 = vpop.f32.mrf.mxu0
      %v1931 = vadd.f32 0.0, %v1930
      %v1932 = vpop.f32.mrf.mxu0
      %1933 = vmatprep.mubr.bf16.mxu0 0
      %1934 = vmatmul.mubr.bf16.gmra.mxu0 %v1162
      %v1935 = vpop.f32.mrf.mxu0
      %v1936 = vadd.f32 0.0, %v1935
      %v1937 = vpop.f32.mrf.mxu0
      %v1938 = vpop.f32.mrf.mxu0
      %v1939 = vadd.f32 0.0, %v1938
      %v1940 = vpop.f32.mrf.mxu0
      %1941 = vmatprep.mubr.bf16.mxu0 0
      %1942 = vmatmul.mubr.bf16.gmra.mxu0 %v1165
      %v1943 = vpop.f32.mrf.mxu0
      %v1944 = vadd.f32 0.0, %v1943
      %v1945 = vpop.f32.mrf.mxu0
      %v1946 = vpop.f32.mrf.mxu0
      %v1947 = vadd.f32 0.0, %v1946
      %v1948 = vpop.f32.mrf.mxu0
      %1949 = vmatprep.mubr.bf16.mxu0 0
      %1950 = vmatmul.mubr.bf16.gmra.mxu0 %v1168
      %v1951 = vpop.f32.mrf.mxu0
      %v1952 = vadd.f32 0.0, %v1951
      %v1953 = vpop.f32.mrf.mxu0
      %v1954 = vpop.f32.mrf.mxu0
      %v1955 = vadd.f32 0.0, %v1954
      %v1956 = vpop.f32.mrf.mxu0
      %1957 = vmatprep.mubr.bf16.mxu0 0
      %1958 = vmatmul.mubr.bf16.gmra.mxu0 %v1171
      %v1959 = vpop.f32.mrf.mxu0
      %v1960 = vadd.f32 0.0, %v1959
      %v1961 = vpop.f32.mrf.mxu0
      %v1962 = vpop.f32.mrf.mxu0
      %v1963 = vadd.f32 0.0, %v1962
      %v1964 = vpop.f32.mrf.mxu0
      %1965 = vmatprep.mubr.bf16.mxu0 0
      %1966 = vmatmul.mubr.bf16.gmra.mxu0 %v1174
      %v1967 = vpop.f32.mrf.mxu0
      %v1968 = vadd.f32 0.0, %v1967
      %v1969 = vpop.f32.mrf.mxu0
      %v1970 = vpop.f32.mrf.mxu0
      %v1971 = vadd.f32 0.0, %v1970
      %v1972 = vpop.f32.mrf.mxu0
      %1973 = vmatprep.mubr.bf16.mxu0 0
      %1974 = vmatmul.mubr.bf16.gmra.mxu0 %v1177
      %v1975 = vpop.f32.mrf.mxu0
      %v1976 = vadd.f32 0.0, %v1975
      %v1977 = vpop.f32.mrf.mxu0
      %v1978 = vpop.f32.mrf.mxu0
      %v1979 = vadd.f32 0.0, %v1978
      %v1980 = vpop.f32.mrf.mxu0
      %1981 = vmatprep.mubr.bf16.mxu0 0
      %1982 = vmatmul.mubr.bf16.gmra.mxu0 %v1180
      %v1983 = vpop.f32.mrf.mxu0
      %v1984 = vadd.f32 0.0, %v1983
      %v1985 = vpop.f32.mrf.mxu0
      %v1986 = vpop.f32.mrf.mxu0
      %v1987 = vadd.f32 0.0, %v1986
      %v1988 = vpop.f32.mrf.mxu0
      %1989 = vmatprep.mubr.bf16.mxu0 0
      %1990 = vmatmul.mubr.bf16.gmra.mxu0 %v1835
      %v1991 = vpop.f32.mrf.mxu0
      %v1992 = vadd.f32 0.0, %v1991
      %v1993 = vpop.f32.mrf.mxu0
      %v1994 = vpop.f32.mrf.mxu0
      %v1995 = vadd.f32 0.0, %v1994
      %v1996 = vpop.f32.mrf.mxu0
      %1997 = vdwg.mxu0
      %v1998 = vadd.f32 %v1764, %v1872
      %v1999 = vadd.f32 %v1765, %v1875
      %v2000 = vadd.f32 %v1766, %v1880
      %v2001 = vadd.f32 %v1767, %v1883
      %v2002 = vadd.f32 %v1768, %v1888
      %v2003 = vadd.f32 %v1769, %v1891
      %v2004 = vadd.f32 %v1770, %v1896
      %v2005 = vadd.f32 %v1771, %v1899
      %v2006 = vadd.f32 %v1772, %v1904
      %v2007 = vadd.f32 %v1773, %v1907
      %v2008 = vadd.f32 %v1774, %v1912
      %v2009 = vadd.f32 %v1775, %v1915
      %v2010 = vadd.f32 %v1776, %v1920
      %v2011 = vadd.f32 %v1777, %v1923
      %v2012 = vadd.f32 %v1778, %v1928
      %v2013 = vadd.f32 %v1779, %v1931
      %v2014 = vadd.f32 %v1780, %v1936
      %v2015 = vadd.f32 %v1781, %v1939
      %v2016 = vadd.f32 %v1782, %v1944
      %v2017 = vadd.f32 %v1783, %v1947
      %v2018 = vadd.f32 %v1784, %v1952
      %v2019 = vadd.f32 %v1785, %v1955
      %v2020 = vadd.f32 %v1786, %v1960
      %v2021 = vadd.f32 %v1787, %v1963
      %v2022 = vadd.f32 %v1788, %v1968
      %v2023 = vadd.f32 %v1789, %v1971
      %v2024 = vadd.f32 %v1790, %v1976
      %v2025 = vadd.f32 %v1791, %v1979
      %v2026 = vadd.f32 %v1792, %v1984
      %v2027 = vadd.f32 %v1793, %v1987
      %v2028 = vadd.f32 %v1794, %v1992
      %v2029 = vadd.f32 %v1795, %v1995
      %v2031 = vshrl.u32 %v338, 16
      %v2033 = vrot.slane %v2031, 4
      %v2034 = vshll.u32 %v338, 16
      %v2036 = vrot.slane %v2034, 5
      %v2037 = vor.u32 %v2033, %v2036
      %v2038 = vrot.slane %v2037, 4
      %v2040 = vshll.u32 %v339, 16
      %v2042 = vrot.slane %v2040, 5
      %v2043 = vsel %vm354, %v2038, %v2042
      %v2044 = vshrl.u32 %v339, 16
      %v2046 = vrot.slane %v2044, 4
      %v2047 = vor.u32 %v2046, %v2042
      %v2048 = vrot.slane %v2047, 4
      %v2050 = vshll.u32 %v340, 16
      %v2052 = vrot.slane %v2050, 5
      %v2053 = vsel %vm354, %v2048, %v2052
      %s2054 = scalar_lea.vmem %s268, 128
      %v2055 = vld [vmem:[%s2054] sm:$0xf]
      %v2056 = vld [vmem:[%s2054 + $0x4] sm:$0xf]
      %v2057 = vld [vmem:[%s2054 + $0x8] sm:$0xf]
      %v2058 = vld [vmem:[%s2054 + $0xc] sm:$0xf]
      %v2059 = vld [vmem:[%s2054 + $0x10] sm:$0xf]
      %v2060 = vld [vmem:[%s2054 + $0x14] sm:$0xf]
      %v2061 = vld [vmem:[%s2054 + $0x18] sm:$0xf]
      %v2062 = vld [vmem:[%s2054 + $0x1c] sm:$0xf]
      %v2063 = vunpack.c.l.b16 %v2043
      %v2064 = vunpack.c.l.b16 %v2053
      %v2065 = vpack.c.b16 %v2064, %v2063
      %v2074 = vunpack.c.l.b16 %v2055
      %v2075 = vunpack.c.l.b16 %v2056
      %v2076 = vunpack.c.l.b16 %v2057
      %v2077 = vunpack.c.l.b16 %v2058
      %v2078 = vunpack.c.l.b16 %v2059
      %v2079 = vunpack.c.l.b16 %v2060
      %v2080 = vunpack.c.l.b16 %v2061
      %v2081 = vunpack.c.l.b16 %v2062
      %v2082 = vpack.c.b16 %v2075, %v2074
      %v2083 = vpack.c.b16 %v2077, %v2076
      %v2084 = vpack.c.b16 %v2079, %v2078
      %v2085 = vpack.c.b16 %v2081, %v2080
      %v2091 = vsel %vm820, %v2065, 0
      %2093 = vmatprep.subr.bf16.mxu0 0
      %2094 = vmatpush1.bf16.msra.mxu0 0
      %2095 = vmatprep.subr.bf16.mxu0 0
      %2096 = vmatpush1.bf16.msra.mxu0 0
      %2097 = vmatprep.subr.bf16.mxu0 0
      %2098 = vmatpush1.bf16.msra.mxu0 0
      %2099 = vmatprep.subr.bf16.mxu0 0
      %2100 = vmatpush1.bf16.msra.mxu0 0
      %2101 = vmatprep.subr.bf16.mxu0 0
      %2102 = vmatpush1.bf16.msra.mxu0 %v2085
      %2103 = vmatprep.subr.bf16.mxu0 0
      %2104 = vmatpush1.bf16.msra.mxu0 %v2084
      %2105 = vmatprep.subr.bf16.mxu0 0
      %2106 = vmatpush1.bf16.msra.mxu0 %v2083
      %2107 = vmatprep.subr.bf16.mxu0 0
      %2108 = vmatpush1.bf16.msra.mxu0 %v2082
      %2109 = vmatprep.subr.bf16.mxu0 0
      %2110 = vmatpush2.bf16.msra.mxu0 0
      %2111 = vmatprep.subr.bf16.mxu0 0
      %2112 = vmatpush2.bf16.msra.mxu0 0
      %2113 = vmatprep.subr.bf16.mxu0 0
      %2114 = vmatpush2.bf16.msra.mxu0 0
      %2115 = vmatprep.subr.bf16.mxu0 0
      %2116 = vmatpush2.bf16.msra.mxu0 0
      %2117 = vmatprep.subr.bf16.mxu0 0
      %2118 = vmatpush2.bf16.msra.mxu0 0
      %2119 = vmatprep.subr.bf16.mxu0 0
      %2120 = vmatpush2.bf16.msra.mxu0 0
      %2121 = vmatprep.subr.bf16.mxu0 0
      %2122 = vmatpush2.bf16.msra.mxu0 0
      %2123 = vmatprep.subr.bf16.mxu0 0
      %2124 = vmatpush2.bf16.msra.mxu0 0
      %2125 = vmatprep.mubr.bf16.mxu0 0
      %2126 = vmatmul.mubr.bf16.gmra.mxu0 %v825
      %v2127 = vpop.f32.mrf.mxu0
      %v2128 = vadd.f32 0.0, %v2127
      %v2129 = vpop.f32.mrf.mxu0
      %v2130 = vpop.f32.mrf.mxu0
      %v2131 = vadd.f32 0.0, %v2130
      %v2132 = vpop.f32.mrf.mxu0
      %2133 = vmatprep.mubr.bf16.mxu0 0
      %2134 = vmatmul.mubr.bf16.gmra.mxu0 %v828
      %v2135 = vpop.f32.mrf.mxu0
      %v2136 = vadd.f32 0.0, %v2135
      %v2137 = vpop.f32.mrf.mxu0
      %v2138 = vpop.f32.mrf.mxu0
      %v2139 = vadd.f32 0.0, %v2138
      %v2140 = vpop.f32.mrf.mxu0
      %2141 = vmatprep.mubr.bf16.mxu0 0
      %2142 = vmatmul.mubr.bf16.gmra.mxu0 %v831
      %v2143 = vpop.f32.mrf.mxu0
      %v2144 = vadd.f32 0.0, %v2143
      %v2145 = vpop.f32.mrf.mxu0
      %v2146 = vpop.f32.mrf.mxu0
      %v2147 = vadd.f32 0.0, %v2146
      %v2148 = vpop.f32.mrf.mxu0
      %2149 = vmatprep.mubr.bf16.mxu0 0
      %2150 = vmatmul.mubr.bf16.gmra.mxu0 %v834
      %v2151 = vpop.f32.mrf.mxu0
      %v2152 = vadd.f32 0.0, %v2151
      %v2153 = vpop.f32.mrf.mxu0
      %v2154 = vpop.f32.mrf.mxu0
      %v2155 = vadd.f32 0.0, %v2154
      %v2156 = vpop.f32.mrf.mxu0
      %2157 = vmatprep.mubr.bf16.mxu0 0
      %2158 = vmatmul.mubr.bf16.gmra.mxu0 %v837
      %v2159 = vpop.f32.mrf.mxu0
      %v2160 = vadd.f32 0.0, %v2159
      %v2161 = vpop.f32.mrf.mxu0
      %v2162 = vpop.f32.mrf.mxu0
      %v2163 = vadd.f32 0.0, %v2162
      %v2164 = vpop.f32.mrf.mxu0
      %2165 = vmatprep.mubr.bf16.mxu0 0
      %2166 = vmatmul.mubr.bf16.gmra.mxu0 %v840
      %v2167 = vpop.f32.mrf.mxu0
      %v2168 = vadd.f32 0.0, %v2167
      %v2169 = vpop.f32.mrf.mxu0
      %v2170 = vpop.f32.mrf.mxu0
      %v2171 = vadd.f32 0.0, %v2170
      %v2172 = vpop.f32.mrf.mxu0
      %2173 = vmatprep.mubr.bf16.mxu0 0
      %2174 = vmatmul.mubr.bf16.gmra.mxu0 %v843
      %v2175 = vpop.f32.mrf.mxu0
      %v2176 = vadd.f32 0.0, %v2175
      %v2177 = vpop.f32.mrf.mxu0
      %v2178 = vpop.f32.mrf.mxu0
      %v2179 = vadd.f32 0.0, %v2178
      %v2180 = vpop.f32.mrf.mxu0
      %2181 = vmatprep.mubr.bf16.mxu0 0
      %2182 = vmatmul.mubr.bf16.gmra.mxu0 %v846
      %v2183 = vpop.f32.mrf.mxu0
      %v2184 = vadd.f32 0.0, %v2183
      %v2185 = vpop.f32.mrf.mxu0
      %v2186 = vpop.f32.mrf.mxu0
      %v2187 = vadd.f32 0.0, %v2186
      %v2188 = vpop.f32.mrf.mxu0
      %2189 = vmatprep.mubr.bf16.mxu0 0
      %2190 = vmatmul.mubr.bf16.gmra.mxu0 %v849
      %v2191 = vpop.f32.mrf.mxu0
      %v2192 = vadd.f32 0.0, %v2191
      %v2193 = vpop.f32.mrf.mxu0
      %v2194 = vpop.f32.mrf.mxu0
      %v2195 = vadd.f32 0.0, %v2194
      %v2196 = vpop.f32.mrf.mxu0
      %2197 = vmatprep.mubr.bf16.mxu0 0
      %2198 = vmatmul.mubr.bf16.gmra.mxu0 %v852
      %v2199 = vpop.f32.mrf.mxu0
      %v2200 = vadd.f32 0.0, %v2199
      %v2201 = vpop.f32.mrf.mxu0
      %v2202 = vpop.f32.mrf.mxu0
      %v2203 = vadd.f32 0.0, %v2202
      %v2204 = vpop.f32.mrf.mxu0
      %2205 = vmatprep.mubr.bf16.mxu0 0
      %2206 = vmatmul.mubr.bf16.gmra.mxu0 %v855
      %v2207 = vpop.f32.mrf.mxu0
      %v2208 = vadd.f32 0.0, %v2207
      %v2209 = vpop.f32.mrf.mxu0
      %v2210 = vpop.f32.mrf.mxu0
      %v2211 = vadd.f32 0.0, %v2210
      %v2212 = vpop.f32.mrf.mxu0
      %2213 = vmatprep.mubr.bf16.mxu0 0
      %2214 = vmatmul.mubr.bf16.gmra.mxu0 %v858
      %v2215 = vpop.f32.mrf.mxu0
      %v2216 = vadd.f32 0.0, %v2215
      %v2217 = vpop.f32.mrf.mxu0
      %v2218 = vpop.f32.mrf.mxu0
      %v2219 = vadd.f32 0.0, %v2218
      %v2220 = vpop.f32.mrf.mxu0
      %2221 = vmatprep.mubr.bf16.mxu0 0
      %2222 = vmatmul.mubr.bf16.gmra.mxu0 %v861
      %v2223 = vpop.f32.mrf.mxu0
      %v2224 = vadd.f32 0.0, %v2223
      %v2225 = vpop.f32.mrf.mxu0
      %v2226 = vpop.f32.mrf.mxu0
      %v2227 = vadd.f32 0.0, %v2226
      %v2228 = vpop.f32.mrf.mxu0
      %2229 = vmatprep.mubr.bf16.mxu0 0
      %2230 = vmatmul.mubr.bf16.gmra.mxu0 %v864
      %v2231 = vpop.f32.mrf.mxu0
      %v2232 = vadd.f32 0.0, %v2231
      %v2233 = vpop.f32.mrf.mxu0
      %v2234 = vpop.f32.mrf.mxu0
      %v2235 = vadd.f32 0.0, %v2234
      %v2236 = vpop.f32.mrf.mxu0
      %2237 = vmatprep.mubr.bf16.mxu0 0
      %2238 = vmatmul.mubr.bf16.gmra.mxu0 %v867
      %v2239 = vpop.f32.mrf.mxu0
      %v2240 = vadd.f32 0.0, %v2239
      %v2241 = vpop.f32.mrf.mxu0
      %v2242 = vpop.f32.mrf.mxu0
      %v2243 = vadd.f32 0.0, %v2242
      %v2244 = vpop.f32.mrf.mxu0
      %2245 = vmatprep.mubr.bf16.mxu0 0
      %2246 = vmatmul.mubr.bf16.gmra.mxu0 %v2091
      %v2247 = vpop.f32.mrf.mxu0
      %v2248 = vadd.f32 0.0, %v2247
      %v2249 = vpop.f32.mrf.mxu0
      %v2250 = vpop.f32.mrf.mxu0
      %v2251 = vadd.f32 0.0, %v2250
      %v2252 = vpop.f32.mrf.mxu0
      %2253 = vdwg.mxu0
      %v2254 = vadd.f32 %v1998, %v2128
      %v2255 = vadd.f32 %v1999, %v2131
      %v2256 = vadd.f32 %v2000, %v2136
      %v2257 = vadd.f32 %v2001, %v2139
      %v2258 = vadd.f32 %v2002, %v2144
      %v2259 = vadd.f32 %v2003, %v2147
      %v2260 = vadd.f32 %v2004, %v2152
      %v2261 = vadd.f32 %v2005, %v2155
      %v2262 = vadd.f32 %v2006, %v2160
      %v2263 = vadd.f32 %v2007, %v2163
      %v2264 = vadd.f32 %v2008, %v2168
      %v2265 = vadd.f32 %v2009, %v2171
      %v2266 = vadd.f32 %v2010, %v2176
      %v2267 = vadd.f32 %v2011, %v2179
      %v2268 = vadd.f32 %v2012, %v2184
      %v2269 = vadd.f32 %v2013, %v2187
      %v2270 = vadd.f32 %v2014, %v2192
      %v2271 = vadd.f32 %v2015, %v2195
      %v2272 = vadd.f32 %v2016, %v2200
      %v2273 = vadd.f32 %v2017, %v2203
      %v2274 = vadd.f32 %v2018, %v2208
      %v2275 = vadd.f32 %v2019, %v2211
      %v2276 = vadd.f32 %v2020, %v2216
      %v2277 = vadd.f32 %v2021, %v2219
      %v2278 = vadd.f32 %v2022, %v2224
      %v2279 = vadd.f32 %v2023, %v2227
      %v2280 = vadd.f32 %v2024, %v2232
      %v2281 = vadd.f32 %v2025, %v2235
      %v2282 = vadd.f32 %v2026, %v2240
      %v2283 = vadd.f32 %v2027, %v2243
      %v2284 = vadd.f32 %v2028, %v2248
      %v2285 = vadd.f32 %v2029, %v2251
      %v2287 = vrot.slane %v338, 5
      %v2288 = vrot.slane %v2287, 4
      %v2289 = vrot.slane %v339, 5
      %v2290 = vsel %vm1361, %v2288, %v2289
      %v2291 = vrot.slane %v2289, 4
      %v2292 = vrot.slane %v340, 5
      %v2293 = vsel %vm1361, %v2291, %v2292
      %s2294 = scalar_lea.vmem %s268, 160
      %v2295 = vld [vmem:[%s2294] sm:$0xf]
      %v2296 = vld [vmem:[%s2294 + $0x4] sm:$0xf]
      %v2297 = vld [vmem:[%s2294 + $0x8] sm:$0xf]
      %v2298 = vld [vmem:[%s2294 + $0xc] sm:$0xf]
      %v2299 = vld [vmem:[%s2294 + $0x10] sm:$0xf]
      %v2300 = vld [vmem:[%s2294 + $0x14] sm:$0xf]
      %v2301 = vld [vmem:[%s2294 + $0x18] sm:$0xf]
      %v2302 = vld [vmem:[%s2294 + $0x1c] sm:$0xf]
      %v2303 = vunpack.c.l.b16 %v2290
      %v2304 = vunpack.c.l.b16 %v2293
      %v2305 = vpack.c.b16 %v2304, %v2303
      %v2314 = vunpack.c.l.b16 %v2295
      %v2315 = vunpack.c.l.b16 %v2296
      %v2316 = vunpack.c.l.b16 %v2297
      %v2317 = vunpack.c.l.b16 %v2298
      %v2318 = vunpack.c.l.b16 %v2299
      %v2319 = vunpack.c.l.b16 %v2300
      %v2320 = vunpack.c.l.b16 %v2301
      %v2321 = vunpack.c.l.b16 %v2302
      %v2322 = vpack.c.b16 %v2315, %v2314
      %v2323 = vpack.c.b16 %v2317, %v2316
      %v2324 = vpack.c.b16 %v2319, %v2318
      %v2325 = vpack.c.b16 %v2321, %v2320
      %v2331 = vsel %vm820, %v2305, 0
      %2333 = vmatprep.subr.bf16.mxu0 0
      %2334 = vmatpush1.bf16.msra.mxu0 0
      %2335 = vmatprep.subr.bf16.mxu0 0
      %2336 = vmatpush1.bf16.msra.mxu0 0
      %2337 = vmatprep.subr.bf16.mxu0 0
      %2338 = vmatpush1.bf16.msra.mxu0 0
      %2339 = vmatprep.subr.bf16.mxu0 0
      %2340 = vmatpush1.bf16.msra.mxu0 0
      %2341 = vmatprep.subr.bf16.mxu0 0
      %2342 = vmatpush1.bf16.msra.mxu0 %v2325
      %2343 = vmatprep.subr.bf16.mxu0 0
      %2344 = vmatpush1.bf16.msra.mxu0 %v2324
      %2345 = vmatprep.subr.bf16.mxu0 0
      %2346 = vmatpush1.bf16.msra.mxu0 %v2323
      %2347 = vmatprep.subr.bf16.mxu0 0
      %2348 = vmatpush1.bf16.msra.mxu0 %v2322
      %2349 = vmatprep.subr.bf16.mxu0 0
      %2350 = vmatpush2.bf16.msra.mxu0 0
      %2351 = vmatprep.subr.bf16.mxu0 0
      %2352 = vmatpush2.bf16.msra.mxu0 0
      %2353 = vmatprep.subr.bf16.mxu0 0
      %2354 = vmatpush2.bf16.msra.mxu0 0
      %2355 = vmatprep.subr.bf16.mxu0 0
      %2356 = vmatpush2.bf16.msra.mxu0 0
      %2357 = vmatprep.subr.bf16.mxu0 0
      %2358 = vmatpush2.bf16.msra.mxu0 0
      %2359 = vmatprep.subr.bf16.mxu0 0
      %2360 = vmatpush2.bf16.msra.mxu0 0
      %2361 = vmatprep.subr.bf16.mxu0 0
      %2362 = vmatpush2.bf16.msra.mxu0 0
      %2363 = vmatprep.subr.bf16.mxu0 0
      %2364 = vmatpush2.bf16.msra.mxu0 0
      %2365 = vmatprep.mubr.bf16.mxu0 0
      %2366 = vmatmul.mubr.bf16.gmra.mxu0 %v1559
      %v2367 = vpop.f32.mrf.mxu0
      %v2368 = vadd.f32 0.0, %v2367
      %v2369 = vpop.f32.mrf.mxu0
      %v2370 = vpop.f32.mrf.mxu0
      %v2371 = vadd.f32 0.0, %v2370
      %v2372 = vpop.f32.mrf.mxu0
      %2373 = vmatprep.mubr.bf16.mxu0 0
      %2374 = vmatmul.mubr.bf16.gmra.mxu0 %v1562
      %v2375 = vpop.f32.mrf.mxu0
      %v2376 = vadd.f32 0.0, %v2375
      %v2377 = vpop.f32.mrf.mxu0
      %v2378 = vpop.f32.mrf.mxu0
      %v2379 = vadd.f32 0.0, %v2378
      %v2380 = vpop.f32.mrf.mxu0
      %2381 = vmatprep.mubr.bf16.mxu0 0
      %2382 = vmatmul.mubr.bf16.gmra.mxu0 %v1565
      %v2383 = vpop.f32.mrf.mxu0
      %v2384 = vadd.f32 0.0, %v2383
      %v2385 = vpop.f32.mrf.mxu0
      %v2386 = vpop.f32.mrf.mxu0
      %v2387 = vadd.f32 0.0, %v2386
      %v2388 = vpop.f32.mrf.mxu0
      %2389 = vmatprep.mubr.bf16.mxu0 0
      %2390 = vmatmul.mubr.bf16.gmra.mxu0 %v1568
      %v2391 = vpop.f32.mrf.mxu0
      %v2392 = vadd.f32 0.0, %v2391
      %v2393 = vpop.f32.mrf.mxu0
      %v2394 = vpop.f32.mrf.mxu0
      %v2395 = vadd.f32 0.0, %v2394
      %v2396 = vpop.f32.mrf.mxu0
      %2397 = vmatprep.mubr.bf16.mxu0 0
      %2398 = vmatmul.mubr.bf16.gmra.mxu0 %v1571
      %v2399 = vpop.f32.mrf.mxu0
      %v2400 = vadd.f32 0.0, %v2399
      %v2401 = vpop.f32.mrf.mxu0
      %v2402 = vpop.f32.mrf.mxu0
      %v2403 = vadd.f32 0.0, %v2402
      %v2404 = vpop.f32.mrf.mxu0
      %2405 = vmatprep.mubr.bf16.mxu0 0
      %2406 = vmatmul.mubr.bf16.gmra.mxu0 %v1574
      %v2407 = vpop.f32.mrf.mxu0
      %v2408 = vadd.f32 0.0, %v2407
      %v2409 = vpop.f32.mrf.mxu0
      %v2410 = vpop.f32.mrf.mxu0
      %v2411 = vadd.f32 0.0, %v2410
      %v2412 = vpop.f32.mrf.mxu0
      %2413 = vmatprep.mubr.bf16.mxu0 0
      %2414 = vmatmul.mubr.bf16.gmra.mxu0 %v1577
      %v2415 = vpop.f32.mrf.mxu0
      %v2416 = vadd.f32 0.0, %v2415
      %v2417 = vpop.f32.mrf.mxu0
      %v2418 = vpop.f32.mrf.mxu0
      %v2419 = vadd.f32 0.0, %v2418
      %v2420 = vpop.f32.mrf.mxu0
      %2421 = vmatprep.mubr.bf16.mxu0 0
      %2422 = vmatmul.mubr.bf16.gmra.mxu0 %v1580
      %v2423 = vpop.f32.mrf.mxu0
      %v2424 = vadd.f32 0.0, %v2423
      %v2425 = vpop.f32.mrf.mxu0
      %v2426 = vpop.f32.mrf.mxu0
      %v2427 = vadd.f32 0.0, %v2426
      %v2428 = vpop.f32.mrf.mxu0
      %2429 = vmatprep.mubr.bf16.mxu0 0
      %2430 = vmatmul.mubr.bf16.gmra.mxu0 %v1583
      %v2431 = vpop.f32.mrf.mxu0
      %v2432 = vadd.f32 0.0, %v2431
      %v2433 = vpop.f32.mrf.mxu0
      %v2434 = vpop.f32.mrf.mxu0
      %v2435 = vadd.f32 0.0, %v2434
      %v2436 = vpop.f32.mrf.mxu0
      %2437 = vmatprep.mubr.bf16.mxu0 0
      %2438 = vmatmul.mubr.bf16.gmra.mxu0 %v1586
      %v2439 = vpop.f32.mrf.mxu0
      %v2440 = vadd.f32 0.0, %v2439
      %v2441 = vpop.f32.mrf.mxu0
      %v2442 = vpop.f32.mrf.mxu0
      %v2443 = vadd.f32 0.0, %v2442
      %v2444 = vpop.f32.mrf.mxu0
      %2445 = vmatprep.mubr.bf16.mxu0 0
      %2446 = vmatmul.mubr.bf16.gmra.mxu0 %v1589
      %v2447 = vpop.f32.mrf.mxu0
      %v2448 = vadd.f32 0.0, %v2447
      %v2449 = vpop.f32.mrf.mxu0
      %v2450 = vpop.f32.mrf.mxu0
      %v2451 = vadd.f32 0.0, %v2450
      %v2452 = vpop.f32.mrf.mxu0
      %2453 = vmatprep.mubr.bf16.mxu0 0
      %2454 = vmatmul.mubr.bf16.gmra.mxu0 %v1592
      %v2455 = vpop.f32.mrf.mxu0
      %v2456 = vadd.f32 0.0, %v2455
      %v2457 = vpop.f32.mrf.mxu0
      %v2458 = vpop.f32.mrf.mxu0
      %v2459 = vadd.f32 0.0, %v2458
      %v2460 = vpop.f32.mrf.mxu0
      %2461 = vmatprep.mubr.bf16.mxu0 0
      %2462 = vmatmul.mubr.bf16.gmra.mxu0 %v1595
      %v2463 = vpop.f32.mrf.mxu0
      %v2464 = vadd.f32 0.0, %v2463
      %v2465 = vpop.f32.mrf.mxu0
      %v2466 = vpop.f32.mrf.mxu0
      %v2467 = vadd.f32 0.0, %v2466
      %v2468 = vpop.f32.mrf.mxu0
      %2469 = vmatprep.mubr.bf16.mxu0 0
      %2470 = vmatmul.mubr.bf16.gmra.mxu0 %v1598
      %v2471 = vpop.f32.mrf.mxu0
      %v2472 = vadd.f32 0.0, %v2471
      %v2473 = vpop.f32.mrf.mxu0
      %v2474 = vpop.f32.mrf.mxu0
      %v2475 = vadd.f32 0.0, %v2474
      %v2476 = vpop.f32.mrf.mxu0
      %2477 = vmatprep.mubr.bf16.mxu0 0
      %2478 = vmatmul.mubr.bf16.gmra.mxu0 %v1601
      %v2479 = vpop.f32.mrf.mxu0
      %v2480 = vadd.f32 0.0, %v2479
      %v2481 = vpop.f32.mrf.mxu0
      %v2482 = vpop.f32.mrf.mxu0
      %v2483 = vadd.f32 0.0, %v2482
      %v2484 = vpop.f32.mrf.mxu0
      %2485 = vmatprep.mubr.bf16.mxu0 0
      %2486 = vmatmul.mubr.bf16.gmra.mxu0 %v2331
      %v2487 = vpop.f32.mrf.mxu0
      %v2488 = vadd.f32 0.0, %v2487
      %v2489 = vpop.f32.mrf.mxu0
      %v2490 = vpop.f32.mrf.mxu0
      %v2491 = vadd.f32 0.0, %v2490
      %v2492 = vpop.f32.mrf.mxu0
      %2493 = vdwg.mxu0
      %v2494 = vadd.f32 %v2254, %v2368
      %v2495 = vadd.f32 %v2255, %v2371
      %v2496 = vadd.f32 %v2256, %v2376
      %v2497 = vadd.f32 %v2257, %v2379
      %v2498 = vadd.f32 %v2258, %v2384
      %v2499 = vadd.f32 %v2259, %v2387
      %v2500 = vadd.f32 %v2260, %v2392
      %v2501 = vadd.f32 %v2261, %v2395
      %v2502 = vadd.f32 %v2262, %v2400
      %v2503 = vadd.f32 %v2263, %v2403
      %v2504 = vadd.f32 %v2264, %v2408
      %v2505 = vadd.f32 %v2265, %v2411
      %v2506 = vadd.f32 %v2266, %v2416
      %v2507 = vadd.f32 %v2267, %v2419
      %v2508 = vadd.f32 %v2268, %v2424
      %v2509 = vadd.f32 %v2269, %v2427
      %v2510 = vadd.f32 %v2270, %v2432
      %v2511 = vadd.f32 %v2271, %v2435
      %v2512 = vadd.f32 %v2272, %v2440
      %v2513 = vadd.f32 %v2273, %v2443
      %v2514 = vadd.f32 %v2274, %v2448
      %v2515 = vadd.f32 %v2275, %v2451
      %v2516 = vadd.f32 %v2276, %v2456
      %v2517 = vadd.f32 %v2277, %v2459
      %v2518 = vadd.f32 %v2278, %v2464
      %v2519 = vadd.f32 %v2279, %v2467
      %v2520 = vadd.f32 %v2280, %v2472
      %v2521 = vadd.f32 %v2281, %v2475
      %v2522 = vadd.f32 %v2282, %v2480
      %v2523 = vadd.f32 %v2283, %v2483
      %v2524 = vadd.f32 %v2284, %v2488
      %v2525 = vadd.f32 %v2285, %v2491
      %s2526 = scalar_lea.vmem %s268, 192
      %v2527 = vld [vmem:[%s2526] sm:$0xf]
      %v2528 = vld [vmem:[%s2526 + $0x4] sm:$0xf]
      %v2529 = vld [vmem:[%s2526 + $0x8] sm:$0xf]
      %v2530 = vld [vmem:[%s2526 + $0xc] sm:$0xf]
      %v2531 = vld [vmem:[%s2526 + $0x10] sm:$0xf]
      %v2532 = vld [vmem:[%s2526 + $0x14] sm:$0xf]
      %v2533 = vld [vmem:[%s2526 + $0x18] sm:$0xf]
      %v2534 = vld [vmem:[%s2526 + $0x1c] sm:$0xf]
      %v2537 = vunpack.c.l.b16 %v341
      %v2538 = vunpack.c.l.b16 %v342
      %v2539 = vpack.c.b16 %v2538, %v2537
      %v2548 = vunpack.c.l.b16 %v2527
      %v2549 = vunpack.c.l.b16 %v2528
      %v2550 = vunpack.c.l.b16 %v2529
      %v2551 = vunpack.c.l.b16 %v2530
      %v2552 = vunpack.c.l.b16 %v2531
      %v2553 = vunpack.c.l.b16 %v2532
      %v2554 = vunpack.c.l.b16 %v2533
      %v2555 = vunpack.c.l.b16 %v2534
      %v2556 = vpack.c.b16 %v2549, %v2548
      %v2557 = vpack.c.b16 %v2551, %v2550
      %v2558 = vpack.c.b16 %v2553, %v2552
      %v2559 = vpack.c.b16 %v2555, %v2554
      %v2565 = vsel %vm820, %v2539, 0
      %2567 = vmatprep.subr.bf16.mxu0 0
      %2568 = vmatpush1.bf16.msra.mxu0 0
      %2569 = vmatprep.subr.bf16.mxu0 0
      %2570 = vmatpush1.bf16.msra.mxu0 0
      %2571 = vmatprep.subr.bf16.mxu0 0
      %2572 = vmatpush1.bf16.msra.mxu0 0
      %2573 = vmatprep.subr.bf16.mxu0 0
      %2574 = vmatpush1.bf16.msra.mxu0 0
      %2575 = vmatprep.subr.bf16.mxu0 0
      %2576 = vmatpush1.bf16.msra.mxu0 %v2559
      %2577 = vmatprep.subr.bf16.mxu0 0
      %2578 = vmatpush1.bf16.msra.mxu0 %v2558
      %2579 = vmatprep.subr.bf16.mxu0 0
      %2580 = vmatpush1.bf16.msra.mxu0 %v2557
      %2581 = vmatprep.subr.bf16.mxu0 0
      %2582 = vmatpush1.bf16.msra.mxu0 %v2556
      %2583 = vmatprep.subr.bf16.mxu0 0
      %2584 = vmatpush2.bf16.msra.mxu0 0
      %2585 = vmatprep.subr.bf16.mxu0 0
      %2586 = vmatpush2.bf16.msra.mxu0 0
      %2587 = vmatprep.subr.bf16.mxu0 0
      %2588 = vmatpush2.bf16.msra.mxu0 0
      %2589 = vmatprep.subr.bf16.mxu0 0
      %2590 = vmatpush2.bf16.msra.mxu0 0
      %2591 = vmatprep.subr.bf16.mxu0 0
      %2592 = vmatpush2.bf16.msra.mxu0 0
      %2593 = vmatprep.subr.bf16.mxu0 0
      %2594 = vmatpush2.bf16.msra.mxu0 0
      %2595 = vmatprep.subr.bf16.mxu0 0
      %2596 = vmatpush2.bf16.msra.mxu0 0
      %2597 = vmatprep.subr.bf16.mxu0 0
      %2598 = vmatpush2.bf16.msra.mxu0 0
      %2599 = vmatprep.mubr.bf16.mxu0 0
      %2600 = vmatmul.mubr.bf16.gmra.mxu0 %v1141
      %v2601 = vpop.f32.mrf.mxu0
      %v2602 = vadd.f32 0.0, %v2601
      %v2603 = vpop.f32.mrf.mxu0
      %v2604 = vpop.f32.mrf.mxu0
      %v2605 = vadd.f32 0.0, %v2604
      %v2606 = vpop.f32.mrf.mxu0
      %2607 = vmatprep.mubr.bf16.mxu0 0
      %2608 = vmatmul.mubr.bf16.gmra.mxu0 %v1144
      %v2609 = vpop.f32.mrf.mxu0
      %v2610 = vadd.f32 0.0, %v2609
      %v2611 = vpop.f32.mrf.mxu0
      %v2612 = vpop.f32.mrf.mxu0
      %v2613 = vadd.f32 0.0, %v2612
      %v2614 = vpop.f32.mrf.mxu0
      %2615 = vmatprep.mubr.bf16.mxu0 0
      %2616 = vmatmul.mubr.bf16.gmra.mxu0 %v1147
      %v2617 = vpop.f32.mrf.mxu0
      %v2618 = vadd.f32 0.0, %v2617
      %v2619 = vpop.f32.mrf.mxu0
      %v2620 = vpop.f32.mrf.mxu0
      %v2621 = vadd.f32 0.0, %v2620
      %v2622 = vpop.f32.mrf.mxu0
      %2623 = vmatprep.mubr.bf16.mxu0 0
      %2624 = vmatmul.mubr.bf16.gmra.mxu0 %v1150
      %v2625 = vpop.f32.mrf.mxu0
      %v2626 = vadd.f32 0.0, %v2625
      %v2627 = vpop.f32.mrf.mxu0
      %v2628 = vpop.f32.mrf.mxu0
      %v2629 = vadd.f32 0.0, %v2628
      %v2630 = vpop.f32.mrf.mxu0
      %2631 = vmatprep.mubr.bf16.mxu0 0
      %2632 = vmatmul.mubr.bf16.gmra.mxu0 %v1153
      %v2633 = vpop.f32.mrf.mxu0
      %v2634 = vadd.f32 0.0, %v2633
      %v2635 = vpop.f32.mrf.mxu0
      %v2636 = vpop.f32.mrf.mxu0
      %v2637 = vadd.f32 0.0, %v2636
      %v2638 = vpop.f32.mrf.mxu0
      %2639 = vmatprep.mubr.bf16.mxu0 0
      %2640 = vmatmul.mubr.bf16.gmra.mxu0 %v1156
      %v2641 = vpop.f32.mrf.mxu0
      %v2642 = vadd.f32 0.0, %v2641
      %v2643 = vpop.f32.mrf.mxu0
      %v2644 = vpop.f32.mrf.mxu0
      %v2645 = vadd.f32 0.0, %v2644
      %v2646 = vpop.f32.mrf.mxu0
      %2647 = vmatprep.mubr.bf16.mxu0 0
      %2648 = vmatmul.mubr.bf16.gmra.mxu0 %v1159
      %v2649 = vpop.f32.mrf.mxu0
      %v2650 = vadd.f32 0.0, %v2649
      %v2651 = vpop.f32.mrf.mxu0
      %v2652 = vpop.f32.mrf.mxu0
      %v2653 = vadd.f32 0.0, %v2652
      %v2654 = vpop.f32.mrf.mxu0
      %2655 = vmatprep.mubr.bf16.mxu0 0
      %2656 = vmatmul.mubr.bf16.gmra.mxu0 %v1162
      %v2657 = vpop.f32.mrf.mxu0
      %v2658 = vadd.f32 0.0, %v2657
      %v2659 = vpop.f32.mrf.mxu0
      %v2660 = vpop.f32.mrf.mxu0
      %v2661 = vadd.f32 0.0, %v2660
      %v2662 = vpop.f32.mrf.mxu0
      %2663 = vmatprep.mubr.bf16.mxu0 0
      %2664 = vmatmul.mubr.bf16.gmra.mxu0 %v1165
      %v2665 = vpop.f32.mrf.mxu0
      %v2666 = vadd.f32 0.0, %v2665
      %v2667 = vpop.f32.mrf.mxu0
      %v2668 = vpop.f32.mrf.mxu0
      %v2669 = vadd.f32 0.0, %v2668
      %v2670 = vpop.f32.mrf.mxu0
      %2671 = vmatprep.mubr.bf16.mxu0 0
      %2672 = vmatmul.mubr.bf16.gmra.mxu0 %v1168
      %v2673 = vpop.f32.mrf.mxu0
      %v2674 = vadd.f32 0.0, %v2673
      %v2675 = vpop.f32.mrf.mxu0
      %v2676 = vpop.f32.mrf.mxu0
      %v2677 = vadd.f32 0.0, %v2676
      %v2678 = vpop.f32.mrf.mxu0
      %2679 = vmatprep.mubr.bf16.mxu0 0
      %2680 = vmatmul.mubr.bf16.gmra.mxu0 %v1171
      %v2681 = vpop.f32.mrf.mxu0
      %v2682 = vadd.f32 0.0, %v2681
      %v2683 = vpop.f32.mrf.mxu0
      %v2684 = vpop.f32.mrf.mxu0
      %v2685 = vadd.f32 0.0, %v2684
      %v2686 = vpop.f32.mrf.mxu0
      %2687 = vmatprep.mubr.bf16.mxu0 0
      %2688 = vmatmul.mubr.bf16.gmra.mxu0 %v1174
      %v2689 = vpop.f32.mrf.mxu0
      %v2690 = vadd.f32 0.0, %v2689
      %v2691 = vpop.f32.mrf.mxu0
      %v2692 = vpop.f32.mrf.mxu0
      %v2693 = vadd.f32 0.0, %v2692
      %v2694 = vpop.f32.mrf.mxu0
      %2695 = vmatprep.mubr.bf16.mxu0 0
      %2696 = vmatmul.mubr.bf16.gmra.mxu0 %v1177
      %v2697 = vpop.f32.mrf.mxu0
      %v2698 = vadd.f32 0.0, %v2697
      %v2699 = vpop.f32.mrf.mxu0
      %v2700 = vpop.f32.mrf.mxu0
      %v2701 = vadd.f32 0.0, %v2700
      %v2702 = vpop.f32.mrf.mxu0
      %2703 = vmatprep.mubr.bf16.mxu0 0
      %2704 = vmatmul.mubr.bf16.gmra.mxu0 %v1180
      %v2705 = vpop.f32.mrf.mxu0
      %v2706 = vadd.f32 0.0, %v2705
      %v2707 = vpop.f32.mrf.mxu0
      %v2708 = vpop.f32.mrf.mxu0
      %v2709 = vadd.f32 0.0, %v2708
      %v2710 = vpop.f32.mrf.mxu0
      %2711 = vmatprep.mubr.bf16.mxu0 0
      %2712 = vmatmul.mubr.bf16.gmra.mxu0 %v1835
      %v2713 = vpop.f32.mrf.mxu0
      %v2714 = vadd.f32 0.0, %v2713
      %v2715 = vpop.f32.mrf.mxu0
      %v2716 = vpop.f32.mrf.mxu0
      %v2717 = vadd.f32 0.0, %v2716
      %v2718 = vpop.f32.mrf.mxu0
      %2719 = vmatprep.mubr.bf16.mxu0 0
      %2720 = vmatmul.mubr.bf16.gmra.mxu0 %v2565
      %v2721 = vpop.f32.mrf.mxu0
      %v2722 = vadd.f32 0.0, %v2721
      %v2723 = vpop.f32.mrf.mxu0
      %v2724 = vpop.f32.mrf.mxu0
      %v2725 = vadd.f32 0.0, %v2724
      %v2726 = vpop.f32.mrf.mxu0
      %2727 = vdwg.mxu0
      %v2728 = vadd.f32 %v2494, %v2602
      %v2729 = vadd.f32 %v2495, %v2605
      %v2730 = vadd.f32 %v2496, %v2610
      %v2731 = vadd.f32 %v2497, %v2613
      %v2732 = vadd.f32 %v2498, %v2618
      %v2733 = vadd.f32 %v2499, %v2621
      %v2734 = vadd.f32 %v2500, %v2626
      %v2735 = vadd.f32 %v2501, %v2629
      %v2736 = vadd.f32 %v2502, %v2634
      %v2737 = vadd.f32 %v2503, %v2637
      %v2738 = vadd.f32 %v2504, %v2642
      %v2739 = vadd.f32 %v2505, %v2645
      %v2740 = vadd.f32 %v2506, %v2650
      %v2741 = vadd.f32 %v2507, %v2653
      %v2742 = vadd.f32 %v2508, %v2658
      %v2743 = vadd.f32 %v2509, %v2661
      %v2744 = vadd.f32 %v2510, %v2666
      %v2745 = vadd.f32 %v2511, %v2669
      %v2746 = vadd.f32 %v2512, %v2674
      %v2747 = vadd.f32 %v2513, %v2677
      %v2748 = vadd.f32 %v2514, %v2682
      %v2749 = vadd.f32 %v2515, %v2685
      %v2750 = vadd.f32 %v2516, %v2690
      %v2751 = vadd.f32 %v2517, %v2693
      %v2752 = vadd.f32 %v2518, %v2698
      %v2753 = vadd.f32 %v2519, %v2701
      %v2754 = vadd.f32 %v2520, %v2706
      %v2755 = vadd.f32 %v2521, %v2709
      %v2756 = vadd.f32 %v2522, %v2714
      %v2757 = vadd.f32 %v2523, %v2717
      %v2758 = vadd.f32 %v2524, %v2722
      %v2759 = vadd.f32 %v2525, %v2725
      %v2761 = vshrl.u32 %v341, 16
      %v2763 = vrot.slane %v2761, 4
      %v2764 = vshll.u32 %v341, 16
      %v2766 = vrot.slane %v2764, 5
      %v2767 = vor.u32 %v2763, %v2766
      %v2768 = vrot.slane %v2767, 4
      %v2770 = vshll.u32 %v342, 16
      %v2772 = vrot.slane %v2770, 5
      %v2773 = vsel %vm354, %v2768, %v2772
      %v2774 = vshrl.u32 %v342, 16
      %v2776 = vrot.slane %v2774, 4
      %v2777 = vor.u32 %v2776, %v2772
      %v2778 = vrot.slane %v2777, 4
      %v2780 = vshll.u32 %v343, 16
      %v2782 = vrot.slane %v2780, 5
      %v2783 = vsel %vm354, %v2778, %v2782
      %s2784 = scalar_lea.vmem %s268, 224
      %v2785 = vld [vmem:[%s2784] sm:$0xf]
      %v2786 = vld [vmem:[%s2784 + $0x4] sm:$0xf]
      %v2787 = vld [vmem:[%s2784 + $0x8] sm:$0xf]
      %v2788 = vld [vmem:[%s2784 + $0xc] sm:$0xf]
      %v2789 = vld [vmem:[%s2784 + $0x10] sm:$0xf]
      %v2790 = vld [vmem:[%s2784 + $0x14] sm:$0xf]
      %v2791 = vld [vmem:[%s2784 + $0x18] sm:$0xf]
      %v2792 = vld [vmem:[%s2784 + $0x1c] sm:$0xf]
      %v2793 = vunpack.c.l.b16 %v2773
      %v2794 = vunpack.c.l.b16 %v2783
      %v2795 = vpack.c.b16 %v2794, %v2793
      %v2804 = vunpack.c.l.b16 %v2785
      %v2805 = vunpack.c.l.b16 %v2786
      %v2806 = vunpack.c.l.b16 %v2787
      %v2807 = vunpack.c.l.b16 %v2788
      %v2808 = vunpack.c.l.b16 %v2789
      %v2809 = vunpack.c.l.b16 %v2790
      %v2810 = vunpack.c.l.b16 %v2791
      %v2811 = vunpack.c.l.b16 %v2792
      %v2812 = vpack.c.b16 %v2805, %v2804
      %v2813 = vpack.c.b16 %v2807, %v2806
      %v2814 = vpack.c.b16 %v2809, %v2808
      %v2815 = vpack.c.b16 %v2811, %v2810
      %v2821 = vsel %vm820, %v2795, 0
      %2823 = vmatprep.subr.bf16.mxu0 0
      %2824 = vmatpush1.bf16.msra.mxu0 0
      %2825 = vmatprep.subr.bf16.mxu0 0
      %2826 = vmatpush1.bf16.msra.mxu0 0
      %2827 = vmatprep.subr.bf16.mxu0 0
      %2828 = vmatpush1.bf16.msra.mxu0 0
      %2829 = vmatprep.subr.bf16.mxu0 0
      %2830 = vmatpush1.bf16.msra.mxu0 0
      %2831 = vmatprep.subr.bf16.mxu0 0
      %2832 = vmatpush1.bf16.msra.mxu0 %v2815
      %2833 = vmatprep.subr.bf16.mxu0 0
      %2834 = vmatpush1.bf16.msra.mxu0 %v2814
      %2835 = vmatprep.subr.bf16.mxu0 0
      %2836 = vmatpush1.bf16.msra.mxu0 %v2813
      %2837 = vmatprep.subr.bf16.mxu0 0
      %2838 = vmatpush1.bf16.msra.mxu0 %v2812
      %2839 = vmatprep.subr.bf16.mxu0 0
      %2840 = vmatpush2.bf16.msra.mxu0 0
      %2841 = vmatprep.subr.bf16.mxu0 0
      %2842 = vmatpush2.bf16.msra.mxu0 0
      %2843 = vmatprep.subr.bf16.mxu0 0
      %2844 = vmatpush2.bf16.msra.mxu0 0
      %2845 = vmatprep.subr.bf16.mxu0 0
      %2846 = vmatpush2.bf16.msra.mxu0 0
      %2847 = vmatprep.subr.bf16.mxu0 0
      %2848 = vmatpush2.bf16.msra.mxu0 0
      %2849 = vmatprep.subr.bf16.mxu0 0
      %2850 = vmatpush2.bf16.msra.mxu0 0
      %2851 = vmatprep.subr.bf16.mxu0 0
      %2852 = vmatpush2.bf16.msra.mxu0 0
      %2853 = vmatprep.subr.bf16.mxu0 0
      %2854 = vmatpush2.bf16.msra.mxu0 0
      %2855 = vmatprep.mubr.bf16.mxu0 0
      %2856 = vmatmul.mubr.bf16.gmra.mxu0 %v828
      %v2857 = vpop.f32.mrf.mxu0
      %v2858 = vadd.f32 0.0, %v2857
      %v2859 = vpop.f32.mrf.mxu0
      %v2860 = vpop.f32.mrf.mxu0
      %v2861 = vadd.f32 0.0, %v2860
      %v2862 = vpop.f32.mrf.mxu0
      %2863 = vmatprep.mubr.bf16.mxu0 0
      %2864 = vmatmul.mubr.bf16.gmra.mxu0 %v831
      %v2865 = vpop.f32.mrf.mxu0
      %v2866 = vadd.f32 0.0, %v2865
      %v2867 = vpop.f32.mrf.mxu0
      %v2868 = vpop.f32.mrf.mxu0
      %v2869 = vadd.f32 0.0, %v2868
      %v2870 = vpop.f32.mrf.mxu0
      %2871 = vmatprep.mubr.bf16.mxu0 0
      %2872 = vmatmul.mubr.bf16.gmra.mxu0 %v834
      %v2873 = vpop.f32.mrf.mxu0
      %v2874 = vadd.f32 0.0, %v2873
      %v2875 = vpop.f32.mrf.mxu0
      %v2876 = vpop.f32.mrf.mxu0
      %v2877 = vadd.f32 0.0, %v2876
      %v2878 = vpop.f32.mrf.mxu0
      %2879 = vmatprep.mubr.bf16.mxu0 0
      %2880 = vmatmul.mubr.bf16.gmra.mxu0 %v837
      %v2881 = vpop.f32.mrf.mxu0
      %v2882 = vadd.f32 0.0, %v2881
      %v2883 = vpop.f32.mrf.mxu0
      %v2884 = vpop.f32.mrf.mxu0
      %v2885 = vadd.f32 0.0, %v2884
      %v2886 = vpop.f32.mrf.mxu0
      %2887 = vmatprep.mubr.bf16.mxu0 0
      %2888 = vmatmul.mubr.bf16.gmra.mxu0 %v840
      %v2889 = vpop.f32.mrf.mxu0
      %v2890 = vadd.f32 0.0, %v2889
      %v2891 = vpop.f32.mrf.mxu0
      %v2892 = vpop.f32.mrf.mxu0
      %v2893 = vadd.f32 0.0, %v2892
      %v2894 = vpop.f32.mrf.mxu0
      %2895 = vmatprep.mubr.bf16.mxu0 0
      %2896 = vmatmul.mubr.bf16.gmra.mxu0 %v843
      %v2897 = vpop.f32.mrf.mxu0
      %v2898 = vadd.f32 0.0, %v2897
      %v2899 = vpop.f32.mrf.mxu0
      %v2900 = vpop.f32.mrf.mxu0
      %v2901 = vadd.f32 0.0, %v2900
      %v2902 = vpop.f32.mrf.mxu0
      %2903 = vmatprep.mubr.bf16.mxu0 0
      %2904 = vmatmul.mubr.bf16.gmra.mxu0 %v846
      %v2905 = vpop.f32.mrf.mxu0
      %v2906 = vadd.f32 0.0, %v2905
      %v2907 = vpop.f32.mrf.mxu0
      %v2908 = vpop.f32.mrf.mxu0
      %v2909 = vadd.f32 0.0, %v2908
      %v2910 = vpop.f32.mrf.mxu0
      %2911 = vmatprep.mubr.bf16.mxu0 0
      %2912 = vmatmul.mubr.bf16.gmra.mxu0 %v849
      %v2913 = vpop.f32.mrf.mxu0
      %v2914 = vadd.f32 0.0, %v2913
      %v2915 = vpop.f32.mrf.mxu0
      %v2916 = vpop.f32.mrf.mxu0
      %v2917 = vadd.f32 0.0, %v2916
      %v2918 = vpop.f32.mrf.mxu0
      %2919 = vmatprep.mubr.bf16.mxu0 0
      %2920 = vmatmul.mubr.bf16.gmra.mxu0 %v852
      %v2921 = vpop.f32.mrf.mxu0
      %v2922 = vadd.f32 0.0, %v2921
      %v2923 = vpop.f32.mrf.mxu0
      %v2924 = vpop.f32.mrf.mxu0
      %v2925 = vadd.f32 0.0, %v2924
      %v2926 = vpop.f32.mrf.mxu0
      %2927 = vmatprep.mubr.bf16.mxu0 0
      %2928 = vmatmul.mubr.bf16.gmra.mxu0 %v855
      %v2929 = vpop.f32.mrf.mxu0
      %v2930 = vadd.f32 0.0, %v2929
      %v2931 = vpop.f32.mrf.mxu0
      %v2932 = vpop.f32.mrf.mxu0
      %v2933 = vadd.f32 0.0, %v2932
      %v2934 = vpop.f32.mrf.mxu0
      %2935 = vmatprep.mubr.bf16.mxu0 0
      %2936 = vmatmul.mubr.bf16.gmra.mxu0 %v858
      %v2937 = vpop.f32.mrf.mxu0
      %v2938 = vadd.f32 0.0, %v2937
      %v2939 = vpop.f32.mrf.mxu0
      %v2940 = vpop.f32.mrf.mxu0
      %v2941 = vadd.f32 0.0, %v2940
      %v2942 = vpop.f32.mrf.mxu0
      %2943 = vmatprep.mubr.bf16.mxu0 0
      %2944 = vmatmul.mubr.bf16.gmra.mxu0 %v861
      %v2945 = vpop.f32.mrf.mxu0
      %v2946 = vadd.f32 0.0, %v2945
      %v2947 = vpop.f32.mrf.mxu0
      %v2948 = vpop.f32.mrf.mxu0
      %v2949 = vadd.f32 0.0, %v2948
      %v2950 = vpop.f32.mrf.mxu0
      %2951 = vmatprep.mubr.bf16.mxu0 0
      %2952 = vmatmul.mubr.bf16.gmra.mxu0 %v864
      %v2953 = vpop.f32.mrf.mxu0
      %v2954 = vadd.f32 0.0, %v2953
      %v2955 = vpop.f32.mrf.mxu0
      %v2956 = vpop.f32.mrf.mxu0
      %v2957 = vadd.f32 0.0, %v2956
      %v2958 = vpop.f32.mrf.mxu0
      %2959 = vmatprep.mubr.bf16.mxu0 0
      %2960 = vmatmul.mubr.bf16.gmra.mxu0 %v867
      %v2961 = vpop.f32.mrf.mxu0
      %v2962 = vadd.f32 0.0, %v2961
      %v2963 = vpop.f32.mrf.mxu0
      %v2964 = vpop.f32.mrf.mxu0
      %v2965 = vadd.f32 0.0, %v2964
      %v2966 = vpop.f32.mrf.mxu0
      %2967 = vmatprep.mubr.bf16.mxu0 0
      %2968 = vmatmul.mubr.bf16.gmra.mxu0 %v2091
      %v2969 = vpop.f32.mrf.mxu0
      %v2970 = vadd.f32 0.0, %v2969
      %v2971 = vpop.f32.mrf.mxu0
      %v2972 = vpop.f32.mrf.mxu0
      %v2973 = vadd.f32 0.0, %v2972
      %v2974 = vpop.f32.mrf.mxu0
      %2975 = vmatprep.mubr.bf16.mxu0 0
      %2976 = vmatmul.mubr.bf16.gmra.mxu0 %v2821
      %v2977 = vpop.f32.mrf.mxu0
      %v2978 = vadd.f32 0.0, %v2977
      %v2979 = vpop.f32.mrf.mxu0
      %v2980 = vpop.f32.mrf.mxu0
      %v2981 = vadd.f32 0.0, %v2980
      %v2982 = vpop.f32.mrf.mxu0
      %2983 = vdwg.mxu0
      %v2984 = vadd.f32 %v2728, %v2858
      %v2985 = vadd.f32 %v2729, %v2861
      %v2986 = vadd.f32 %v2730, %v2866
      %v2987 = vadd.f32 %v2731, %v2869
      %v2988 = vadd.f32 %v2732, %v2874
      %v2989 = vadd.f32 %v2733, %v2877
      %v2990 = vadd.f32 %v2734, %v2882
      %v2991 = vadd.f32 %v2735, %v2885
      %v2992 = vadd.f32 %v2736, %v2890
      %v2993 = vadd.f32 %v2737, %v2893
      %v2994 = vadd.f32 %v2738, %v2898
      %v2995 = vadd.f32 %v2739, %v2901
      %v2996 = vadd.f32 %v2740, %v2906
      %v2997 = vadd.f32 %v2741, %v2909
      %v2998 = vadd.f32 %v2742, %v2914
      %v2999 = vadd.f32 %v2743, %v2917
      %v3000 = vadd.f32 %v2744, %v2922
      %v3001 = vadd.f32 %v2745, %v2925
      %v3002 = vadd.f32 %v2746, %v2930
      %v3003 = vadd.f32 %v2747, %v2933
      %v3004 = vadd.f32 %v2748, %v2938
      %v3005 = vadd.f32 %v2749, %v2941
      %v3006 = vadd.f32 %v2750, %v2946
      %v3007 = vadd.f32 %v2751, %v2949
      %v3008 = vadd.f32 %v2752, %v2954
      %v3009 = vadd.f32 %v2753, %v2957
      %v3010 = vadd.f32 %v2754, %v2962
      %v3011 = vadd.f32 %v2755, %v2965
      %v3012 = vadd.f32 %v2756, %v2970
      %v3013 = vadd.f32 %v2757, %v2973
      %v3014 = vadd.f32 %v2758, %v2978
      %v3015 = vadd.f32 %v2759, %v2981
      %v3017 = vrot.slane %v341, 5
      %v3018 = vrot.slane %v3017, 4
      %v3019 = vrot.slane %v342, 5
      %v3020 = vsel %vm1361, %v3018, %v3019
      %v3021 = vrot.slane %v3019, 4
      %v3022 = vrot.slane %v343, 5
      %v3023 = vsel %vm1361, %v3021, %v3022
      %s3024 = scalar_lea.vmem %s268, 256
      %v3025 = vld [vmem:[%s3024] sm:$0xf]
      %v3026 = vld [vmem:[%s3024 + $0x4] sm:$0xf]
      %v3027 = vld [vmem:[%s3024 + $0x8] sm:$0xf]
      %v3028 = vld [vmem:[%s3024 + $0xc] sm:$0xf]
      %v3029 = vld [vmem:[%s3024 + $0x10] sm:$0xf]
      %v3030 = vld [vmem:[%s3024 + $0x14] sm:$0xf]
      %v3031 = vld [vmem:[%s3024 + $0x18] sm:$0xf]
      %v3032 = vld [vmem:[%s3024 + $0x1c] sm:$0xf]
      %v3033 = vunpack.c.l.b16 %v3020
      %v3034 = vunpack.c.l.b16 %v3023
      %v3035 = vpack.c.b16 %v3034, %v3033
      %v3044 = vunpack.c.l.b16 %v3025
      %v3045 = vunpack.c.l.b16 %v3026
      %v3046 = vunpack.c.l.b16 %v3027
      %v3047 = vunpack.c.l.b16 %v3028
      %v3048 = vunpack.c.l.b16 %v3029
      %v3049 = vunpack.c.l.b16 %v3030
      %v3050 = vunpack.c.l.b16 %v3031
      %v3051 = vunpack.c.l.b16 %v3032
      %v3052 = vpack.c.b16 %v3045, %v3044
      %v3053 = vpack.c.b16 %v3047, %v3046
      %v3054 = vpack.c.b16 %v3049, %v3048
      %v3055 = vpack.c.b16 %v3051, %v3050
      %v3061 = vsel %vm820, %v3035, 0
      %3063 = vmatprep.subr.bf16.mxu0 0
      %3064 = vmatpush1.bf16.msra.mxu0 0
      %3065 = vmatprep.subr.bf16.mxu0 0
      %3066 = vmatpush1.bf16.msra.mxu0 0
      %3067 = vmatprep.subr.bf16.mxu0 0
      %3068 = vmatpush1.bf16.msra.mxu0 0
      %3069 = vmatprep.subr.bf16.mxu0 0
      %3070 = vmatpush1.bf16.msra.mxu0 0
      %3071 = vmatprep.subr.bf16.mxu0 0
      %3072 = vmatpush1.bf16.msra.mxu0 %v3055
      %3073 = vmatprep.subr.bf16.mxu0 0
      %3074 = vmatpush1.bf16.msra.mxu0 %v3054
      %3075 = vmatprep.subr.bf16.mxu0 0
      %3076 = vmatpush1.bf16.msra.mxu0 %v3053
      %3077 = vmatprep.subr.bf16.mxu0 0
      %3078 = vmatpush1.bf16.msra.mxu0 %v3052
      %3079 = vmatprep.subr.bf16.mxu0 0
      %3080 = vmatpush2.bf16.msra.mxu0 0
      %3081 = vmatprep.subr.bf16.mxu0 0
      %3082 = vmatpush2.bf16.msra.mxu0 0
      %3083 = vmatprep.subr.bf16.mxu0 0
      %3084 = vmatpush2.bf16.msra.mxu0 0
      %3085 = vmatprep.subr.bf16.mxu0 0
      %3086 = vmatpush2.bf16.msra.mxu0 0
      %3087 = vmatprep.subr.bf16.mxu0 0
      %3088 = vmatpush2.bf16.msra.mxu0 0
      %3089 = vmatprep.subr.bf16.mxu0 0
      %3090 = vmatpush2.bf16.msra.mxu0 0
      %3091 = vmatprep.subr.bf16.mxu0 0
      %3092 = vmatpush2.bf16.msra.mxu0 0
      %3093 = vmatprep.subr.bf16.mxu0 0
      %3094 = vmatpush2.bf16.msra.mxu0 0
      %3095 = vmatprep.mubr.bf16.mxu0 0
      %3096 = vmatmul.mubr.bf16.gmra.mxu0 %v1562
      %v3097 = vpop.f32.mrf.mxu0
      %v3098 = vadd.f32 0.0, %v3097
      %v3099 = vpop.f32.mrf.mxu0
      %v3100 = vpop.f32.mrf.mxu0
      %v3101 = vadd.f32 0.0, %v3100
      %v3102 = vpop.f32.mrf.mxu0
      %3103 = vmatprep.mubr.bf16.mxu0 0
      %3104 = vmatmul.mubr.bf16.gmra.mxu0 %v1565
      %v3105 = vpop.f32.mrf.mxu0
      %v3106 = vadd.f32 0.0, %v3105
      %v3107 = vpop.f32.mrf.mxu0
      %v3108 = vpop.f32.mrf.mxu0
      %v3109 = vadd.f32 0.0, %v3108
      %v3110 = vpop.f32.mrf.mxu0
      %3111 = vmatprep.mubr.bf16.mxu0 0
      %3112 = vmatmul.mubr.bf16.gmra.mxu0 %v1568
      %v3113 = vpop.f32.mrf.mxu0
      %v3114 = vadd.f32 0.0, %v3113
      %v3115 = vpop.f32.mrf.mxu0
      %v3116 = vpop.f32.mrf.mxu0
      %v3117 = vadd.f32 0.0, %v3116
      %v3118 = vpop.f32.mrf.mxu0
      %3119 = vmatprep.mubr.bf16.mxu0 0
      %3120 = vmatmul.mubr.bf16.gmra.mxu0 %v1571
      %v3121 = vpop.f32.mrf.mxu0
      %v3122 = vadd.f32 0.0, %v3121
      %v3123 = vpop.f32.mrf.mxu0
      %v3124 = vpop.f32.mrf.mxu0
      %v3125 = vadd.f32 0.0, %v3124
      %v3126 = vpop.f32.mrf.mxu0
      %3127 = vmatprep.mubr.bf16.mxu0 0
      %3128 = vmatmul.mubr.bf16.gmra.mxu0 %v1574
      %v3129 = vpop.f32.mrf.mxu0
      %v3130 = vadd.f32 0.0, %v3129
      %v3131 = vpop.f32.mrf.mxu0
      %v3132 = vpop.f32.mrf.mxu0
      %v3133 = vadd.f32 0.0, %v3132
      %v3134 = vpop.f32.mrf.mxu0
      %3135 = vmatprep.mubr.bf16.mxu0 0
      %3136 = vmatmul.mubr.bf16.gmra.mxu0 %v1577
      %v3137 = vpop.f32.mrf.mxu0
      %v3138 = vadd.f32 0.0, %v3137
      %v3139 = vpop.f32.mrf.mxu0
      %v3140 = vpop.f32.mrf.mxu0
      %v3141 = vadd.f32 0.0, %v3140
      %v3142 = vpop.f32.mrf.mxu0
      %3143 = vmatprep.mubr.bf16.mxu0 0
      %3144 = vmatmul.mubr.bf16.gmra.mxu0 %v1580
      %v3145 = vpop.f32.mrf.mxu0
      %v3146 = vadd.f32 0.0, %v3145
      %v3147 = vpop.f32.mrf.mxu0
      %v3148 = vpop.f32.mrf.mxu0
      %v3149 = vadd.f32 0.0, %v3148
      %v3150 = vpop.f32.mrf.mxu0
      %3151 = vmatprep.mubr.bf16.mxu0 0
      %3152 = vmatmul.mubr.bf16.gmra.mxu0 %v1583
      %v3153 = vpop.f32.mrf.mxu0
      %v3154 = vadd.f32 0.0, %v3153
      %v3155 = vpop.f32.mrf.mxu0
      %v3156 = vpop.f32.mrf.mxu0
      %v3157 = vadd.f32 0.0, %v3156
      %v3158 = vpop.f32.mrf.mxu0
      %3159 = vmatprep.mubr.bf16.mxu0 0
      %3160 = vmatmul.mubr.bf16.gmra.mxu0 %v1586
      %v3161 = vpop.f32.mrf.mxu0
      %v3162 = vadd.f32 0.0, %v3161
      %v3163 = vpop.f32.mrf.mxu0
      %v3164 = vpop.f32.mrf.mxu0
      %v3165 = vadd.f32 0.0, %v3164
      %v3166 = vpop.f32.mrf.mxu0
      %3167 = vmatprep.mubr.bf16.mxu0 0
      %3168 = vmatmul.mubr.bf16.gmra.mxu0 %v1589
      %v3169 = vpop.f32.mrf.mxu0
      %v3170 = vadd.f32 0.0, %v3169
      %v3171 = vpop.f32.mrf.mxu0
      %v3172 = vpop.f32.mrf.mxu0
      %v3173 = vadd.f32 0.0, %v3172
      %v3174 = vpop.f32.mrf.mxu0
      %3175 = vmatprep.mubr.bf16.mxu0 0
      %3176 = vmatmul.mubr.bf16.gmra.mxu0 %v1592
      %v3177 = vpop.f32.mrf.mxu0
      %v3178 = vadd.f32 0.0, %v3177
      %v3179 = vpop.f32.mrf.mxu0
      %v3180 = vpop.f32.mrf.mxu0
      %v3181 = vadd.f32 0.0, %v3180
      %v3182 = vpop.f32.mrf.mxu0
      %3183 = vmatprep.mubr.bf16.mxu0 0
      %3184 = vmatmul.mubr.bf16.gmra.mxu0 %v1595
      %v3185 = vpop.f32.mrf.mxu0
      %v3186 = vadd.f32 0.0, %v3185
      %v3187 = vpop.f32.mrf.mxu0
      %v3188 = vpop.f32.mrf.mxu0
      %v3189 = vadd.f32 0.0, %v3188
      %v3190 = vpop.f32.mrf.mxu0
      %3191 = vmatprep.mubr.bf16.mxu0 0
      %3192 = vmatmul.mubr.bf16.gmra.mxu0 %v1598
      %v3193 = vpop.f32.mrf.mxu0
      %v3194 = vadd.f32 0.0, %v3193
      %v3195 = vpop.f32.mrf.mxu0
      %v3196 = vpop.f32.mrf.mxu0
      %v3197 = vadd.f32 0.0, %v3196
      %v3198 = vpop.f32.mrf.mxu0
      %3199 = vmatprep.mubr.bf16.mxu0 0
      %3200 = vmatmul.mubr.bf16.gmra.mxu0 %v1601
      %v3201 = vpop.f32.mrf.mxu0
      %v3202 = vadd.f32 0.0, %v3201
      %v3203 = vpop.f32.mrf.mxu0
      %v3204 = vpop.f32.mrf.mxu0
      %v3205 = vadd.f32 0.0, %v3204
      %v3206 = vpop.f32.mrf.mxu0
      %3207 = vmatprep.mubr.bf16.mxu0 0
      %3208 = vmatmul.mubr.bf16.gmra.mxu0 %v2331
      %v3209 = vpop.f32.mrf.mxu0
      %v3210 = vadd.f32 0.0, %v3209
      %v3211 = vpop.f32.mrf.mxu0
      %v3212 = vpop.f32.mrf.mxu0
      %v3213 = vadd.f32 0.0, %v3212
      %v3214 = vpop.f32.mrf.mxu0
      %3215 = vmatprep.mubr.bf16.mxu0 0
      %3216 = vmatmul.mubr.bf16.gmra.mxu0 %v3061
      %v3217 = vpop.f32.mrf.mxu0
      %v3218 = vadd.f32 0.0, %v3217
      %v3219 = vpop.f32.mrf.mxu0
      %v3220 = vpop.f32.mrf.mxu0
      %v3221 = vadd.f32 0.0, %v3220
      %v3222 = vpop.f32.mrf.mxu0
      %3223 = vdwg.mxu0
      %v3224 = vadd.f32 %v2984, %v3098
      %v3225 = vadd.f32 %v2985, %v3101
      %v3226 = vadd.f32 %v2986, %v3106
      %v3227 = vadd.f32 %v2987, %v3109
      %v3228 = vadd.f32 %v2988, %v3114
      %v3229 = vadd.f32 %v2989, %v3117
      %v3230 = vadd.f32 %v2990, %v3122
      %v3231 = vadd.f32 %v2991, %v3125
      %v3232 = vadd.f32 %v2992, %v3130
      %v3233 = vadd.f32 %v2993, %v3133
      %v3234 = vadd.f32 %v2994, %v3138
      %v3235 = vadd.f32 %v2995, %v3141
      %v3236 = vadd.f32 %v2996, %v3146
      %v3237 = vadd.f32 %v2997, %v3149
      %v3238 = vadd.f32 %v2998, %v3154
      %v3239 = vadd.f32 %v2999, %v3157
      %v3240 = vadd.f32 %v3000, %v3162
      %v3241 = vadd.f32 %v3001, %v3165
      %v3242 = vadd.f32 %v3002, %v3170
      %v3243 = vadd.f32 %v3003, %v3173
      %v3244 = vadd.f32 %v3004, %v3178
      %v3245 = vadd.f32 %v3005, %v3181
      %v3246 = vadd.f32 %v3006, %v3186
      %v3247 = vadd.f32 %v3007, %v3189
      %v3248 = vadd.f32 %v3008, %v3194
      %v3249 = vadd.f32 %v3009, %v3197
      %v3250 = vadd.f32 %v3010, %v3202
      %v3251 = vadd.f32 %v3011, %v3205
      %v3252 = vadd.f32 %v3012, %v3210
      %v3253 = vadd.f32 %v3013, %v3213
      %v3254 = vadd.f32 %v3014, %v3218
      %v3255 = vadd.f32 %v3015, %v3221
      %v3256 = vld [vmem:[%s271] sm:$0x1]
      %v3258 = vlaneseq
      %v3259 = vshrl.u32 %v3258, 7
      %v3260 = vsub.s32 0, %v3259
      %v3261 = vrot.slane %v3256, %v3260
      %v3263 = vadd.f32 %v3224, %v3261
      %v3264 = vadd.f32 %v3225, %v3261
      %v3265 = vadd.f32 %v3226, %v3261
      %v3266 = vadd.f32 %v3227, %v3261
      %v3267 = vadd.f32 %v3228, %v3261
      %v3268 = vadd.f32 %v3229, %v3261
      %v3269 = vadd.f32 %v3230, %v3261
      %v3270 = vadd.f32 %v3231, %v3261
      %v3271 = vadd.f32 %v3232, %v3261
      %v3272 = vadd.f32 %v3233, %v3261
      %v3273 = vadd.f32 %v3234, %v3261
      %v3274 = vadd.f32 %v3235, %v3261
      %v3275 = vadd.f32 %v3236, %v3261
      %v3276 = vadd.f32 %v3237, %v3261
      %v3277 = vadd.f32 %v3238, %v3261
      %v3278 = vadd.f32 %v3239, %v3261
      %v3279 = vadd.f32 %v3240, %v3261
      %v3280 = vadd.f32 %v3241, %v3261
      %v3281 = vadd.f32 %v3242, %v3261
      %v3282 = vadd.f32 %v3243, %v3261
      %v3283 = vadd.f32 %v3244, %v3261
      %v3284 = vadd.f32 %v3245, %v3261
      %v3285 = vadd.f32 %v3246, %v3261
      %v3286 = vadd.f32 %v3247, %v3261
      %v3287 = vadd.f32 %v3248, %v3261
      %v3288 = vadd.f32 %v3249, %v3261
      %v3289 = vadd.f32 %v3250, %v3261
      %v3290 = vadd.f32 %v3251, %v3261
      %v3291 = vadd.f32 %v3252, %v3261
      %v3292 = vadd.f32 %v3253, %v3261
      %v3293 = vadd.f32 %v3254, %v3261
      %v3294 = vadd.f32 %v3255, %v3261
      %v3295 = vpack.c.bf16 %v3264, %v3263
      %v3296 = vpack.c.bf16 %v3266, %v3265
      %v3297 = vpack.c.bf16 %v3268, %v3267
      %v3298 = vpack.c.bf16 %v3270, %v3269
      %v3299 = vpack.c.bf16 %v3272, %v3271
      %v3300 = vpack.c.bf16 %v3274, %v3273
      %v3301 = vpack.c.bf16 %v3276, %v3275
      %v3302 = vpack.c.bf16 %v3278, %v3277
      %v3303 = vpack.c.bf16 %v3280, %v3279
      %v3304 = vpack.c.bf16 %v3282, %v3281
      %v3305 = vpack.c.bf16 %v3284, %v3283
      %v3306 = vpack.c.bf16 %v3286, %v3285
      %v3307 = vpack.c.bf16 %v3288, %v3287
      %v3308 = vpack.c.bf16 %v3290, %v3289
      %v3309 = vpack.c.bf16 %v3292, %v3291
      %v3310 = vpack.c.bf16 %v3294, %v3293
      %v3327 = vunpack.c.l.b16 %v3295
      %v3328 = vunpack.c.h.b16 %v3295
      %v3329 = vunpack.c.l.b16 %v3296
      %v3330 = vunpack.c.h.b16 %v3296
      %v3331 = vunpack.c.l.b16 %v3297
      %v3332 = vunpack.c.h.b16 %v3297
      %v3333 = vunpack.c.l.b16 %v3298
      %v3334 = vunpack.c.h.b16 %v3298
      %v3335 = vunpack.c.l.b16 %v3299
      %v3336 = vunpack.c.h.b16 %v3299
      %v3337 = vunpack.c.l.b16 %v3300
      %v3338 = vunpack.c.h.b16 %v3300
      %v3339 = vunpack.c.l.b16 %v3301
      %v3340 = vunpack.c.h.b16 %v3301
      %v3341 = vunpack.c.l.b16 %v3302
      %v3342 = vunpack.c.h.b16 %v3302
      %v3343 = vunpack.c.l.b16 %v3303
      %v3344 = vunpack.c.h.b16 %v3303
      %v3345 = vunpack.c.l.b16 %v3304
      %v3346 = vunpack.c.h.b16 %v3304
      %v3347 = vunpack.c.l.b16 %v3305
      %v3348 = vunpack.c.h.b16 %v3305
      %v3349 = vunpack.c.l.b16 %v3306
      %v3350 = vunpack.c.h.b16 %v3306
      %v3351 = vunpack.c.l.b16 %v3307
      %v3352 = vunpack.c.h.b16 %v3307
      %v3353 = vunpack.c.l.b16 %v3308
      %v3354 = vunpack.c.h.b16 %v3308
      %v3355 = vunpack.c.l.b16 %v3309
      %v3356 = vunpack.c.h.b16 %v3309
      %v3357 = vunpack.c.l.b16 %v3310
      %v3358 = vunpack.c.h.b16 %v3310
      %v3359 = vpack.c.b16 %v3327, %v3327
      %v3360 = vpack.c.b16 %v3328, %v3328
      %v3361 = vpack.c.b16 %v3329, %v3329
      %v3362 = vpack.c.b16 %v3330, %v3330
      %v3363 = vpack.c.b16 %v3331, %v3331
      %v3364 = vpack.c.b16 %v3332, %v3332
      %v3365 = vpack.c.b16 %v3333, %v3333
      %v3366 = vpack.c.b16 %v3334, %v3334
      %v3367 = vpack.c.b16 %v3335, %v3335
      %v3368 = vpack.c.b16 %v3336, %v3336
      %v3369 = vpack.c.b16 %v3337, %v3337
      %v3370 = vpack.c.b16 %v3338, %v3338
      %v3371 = vpack.c.b16 %v3339, %v3339
      %v3372 = vpack.c.b16 %v3340, %v3340
      %v3373 = vpack.c.b16 %v3341, %v3341
      %v3374 = vpack.c.b16 %v3342, %v3342
      %v3375 = vpack.c.b16 %v3343, %v3343
      %v3376 = vpack.c.b16 %v3344, %v3344
      %v3377 = vpack.c.b16 %v3345, %v3345
      %v3378 = vpack.c.b16 %v3346, %v3346
      %v3379 = vpack.c.b16 %v3347, %v3347
      %v3380 = vpack.c.b16 %v3348, %v3348
      %v3381 = vpack.c.b16 %v3349, %v3349
      %v3382 = vpack.c.b16 %v3350, %v3350
      %v3383 = vpack.c.b16 %v3351, %v3351
      %v3384 = vpack.c.b16 %v3352, %v3352
      %v3385 = vpack.c.b16 %v3353, %v3353
      %v3386 = vpack.c.b16 %v3354, %v3354
      %v3387 = vpack.c.b16 %v3355, %v3355
      %v3388 = vpack.c.b16 %v3356, %v3356
      %v3389 = vpack.c.b16 %v3357, %v3357
      %v3390 = vpack.c.b16 %v3358, %v3358
      %vm3423 = vcmask 257024
      %3424 = vst.msk [vmem:[%s280] sm:$0xf] %vm3423, %v3359
      %3425 = vst.msk [vmem:[%s280 + $0x4] sm:$0xf] %vm3423, %v3360
      %3426 = vst.msk [vmem:[%s280 + $0x8] sm:$0xf] %vm3423, %v3361
      %3427 = vst.msk [vmem:[%s280 + $0xc] sm:$0xf] %vm3423, %v3362
      %3428 = vst.msk [vmem:[%s280 + $0x10] sm:$0xf] %vm3423, %v3363
      %3429 = vst.msk [vmem:[%s280 + $0x14] sm:$0xf] %vm3423, %v3364
      %3430 = vst.msk [vmem:[%s280 + $0x18] sm:$0xf] %vm3423, %v3365
      %3431 = vst.msk [vmem:[%s280 + $0x1c] sm:$0xf] %vm3423, %v3366
      %3432 = vst.msk [vmem:[%s280 + $0x20] sm:$0xf] %vm3423, %v3367
      %3433 = vst.msk [vmem:[%s280 + $0x24] sm:$0xf] %vm3423, %v3368
      %3434 = vst.msk [vmem:[%s280 + $0x28] sm:$0xf] %vm3423, %v3369
      %3435 = vst.msk [vmem:[%s280 + $0x2c] sm:$0xf] %vm3423, %v3370
      %3436 = vst.msk [vmem:[%s280 + $0x30] sm:$0xf] %vm3423, %v3371
      %3437 = vst.msk [vmem:[%s280 + $0x34] sm:$0xf] %vm3423, %v3372
      %3438 = vst.msk [vmem:[%s280 + $0x38] sm:$0xf] %vm3423, %v3373
      %3439 = vst.msk [vmem:[%s280 + $0x3c] sm:$0xf] %vm3423, %v3374
      %3440 = vst.msk [vmem:[%s280 + $0x40] sm:$0xf] %vm3423, %v3375
      %3441 = vst.msk [vmem:[%s280 + $0x44] sm:$0xf] %vm3423, %v3376
      %3442 = vst.msk [vmem:[%s280 + $0x48] sm:$0xf] %vm3423, %v3377
      %3443 = vst.msk [vmem:[%s280 + $0x4c] sm:$0xf] %vm3423, %v3378
      %3444 = vst.msk [vmem:[%s280 + $0x50] sm:$0xf] %vm3423, %v3379
      %3445 = vst.msk [vmem:[%s280 + $0x54] sm:$0xf] %vm3423, %v3380
      %3446 = vst.msk [vmem:[%s280 + $0x58] sm:$0xf] %vm3423, %v3381
      %3447 = vst.msk [vmem:[%s280 + $0x5c] sm:$0xf] %vm3423, %v3382
      %3448 = vst.msk [vmem:[%s280 + $0x60] sm:$0xf] %vm3423, %v3383
      %3449 = vst.msk [vmem:[%s280 + $0x64] sm:$0xf] %vm3423, %v3384
      %3450 = vst.msk [vmem:[%s280 + $0x68] sm:$0xf] %vm3423, %v3385
      %3451 = vst.msk [vmem:[%s280 + $0x6c] sm:$0xf] %vm3423, %v3386
      %3452 = vst.msk [vmem:[%s280 + $0x70] sm:$0xf] %vm3423, %v3387
      %3453 = vst.msk [vmem:[%s280 + $0x74] sm:$0xf] %vm3423, %v3388
      %3454 = vst.msk [vmem:[%s280 + $0x78] sm:$0xf] %vm3423, %v3389
      %3455 = vst.msk [vmem:[%s280 + $0x7c] sm:$0xf] %vm3423, %v3390
      %vm3456 = vcmask 261120
      %v3457 = vsel %vm3456, %v3263, 0.0
      %v3458 = vsel %vm3456, %v3264, 0.0
      %v3459 = vadd.f32 %v3457, %v3458
      %v3460 = vsel %vm3456, %v3265, 0.0
      %v3461 = vadd.f32 %v3459, %v3460
      %v3462 = vsel %vm3456, %v3266, 0.0
      %v3463 = vadd.f32 %v3461, %v3462
      %v3464 = vsel %vm3456, %v3267, 0.0
      %v3465 = vadd.f32 %v3463, %v3464
      %v3466 = vsel %vm3456, %v3268, 0.0
      %v3467 = vadd.f32 %v3465, %v3466
      %v3468 = vsel %vm3456, %v3269, 0.0
      %v3469 = vadd.f32 %v3467, %v3468
      %v3470 = vsel %vm3456, %v3270, 0.0
      %v3471 = vadd.f32 %v3469, %v3470
      %v3472 = vsel %vm3456, %v3271, 0.0
      %v3473 = vadd.f32 %v3471, %v3472
      %v3474 = vsel %vm3456, %v3272, 0.0
      %v3475 = vadd.f32 %v3473, %v3474
      %v3476 = vsel %vm3456, %v3273, 0.0
      %v3477 = vadd.f32 %v3475, %v3476
      %v3478 = vsel %vm3456, %v3274, 0.0
      %v3479 = vadd.f32 %v3477, %v3478
      %v3480 = vsel %vm3456, %v3275, 0.0
      %v3481 = vadd.f32 %v3479, %v3480
      %v3482 = vsel %vm3456, %v3276, 0.0
      %v3483 = vadd.f32 %v3481, %v3482
      %v3484 = vsel %vm3456, %v3277, 0.0
      %v3485 = vadd.f32 %v3483, %v3484
      %v3486 = vsel %vm3456, %v3278, 0.0
      %v3487 = vadd.f32 %v3485, %v3486
      %v3488 = vsel %vm3456, %v3279, 0.0
      %v3489 = vadd.f32 %v3487, %v3488
      %v3490 = vsel %vm3456, %v3280, 0.0
      %v3491 = vadd.f32 %v3489, %v3490
      %v3492 = vsel %vm3456, %v3281, 0.0
      %v3493 = vadd.f32 %v3491, %v3492
      %v3494 = vsel %vm3456, %v3282, 0.0
      %v3495 = vadd.f32 %v3493, %v3494
      %v3496 = vsel %vm3456, %v3283, 0.0
      %v3497 = vadd.f32 %v3495, %v3496
      %v3498 = vsel %vm3456, %v3284, 0.0
      %v3499 = vadd.f32 %v3497, %v3498
      %v3500 = vsel %vm3456, %v3285, 0.0
      %v3501 = vadd.f32 %v3499, %v3500
      %v3502 = vsel %vm3456, %v3286, 0.0
      %v3503 = vadd.f32 %v3501, %v3502
      %v3504 = vsel %vm3456, %v3287, 0.0
      %v3505 = vadd.f32 %v3503, %v3504
      %v3506 = vsel %vm3456, %v3288, 0.0
      %v3507 = vadd.f32 %v3505, %v3506
      %v3508 = vsel %vm3456, %v3289, 0.0
      %v3509 = vadd.f32 %v3507, %v3508
      %v3510 = vsel %vm3456, %v3290, 0.0
      %v3511 = vadd.f32 %v3509, %v3510
      %v3512 = vsel %vm3456, %v3291, 0.0
      %v3513 = vadd.f32 %v3511, %v3512
      %v3514 = vsel %vm3456, %v3292, 0.0
      %v3515 = vadd.f32 %v3513, %v3514
      %v3516 = vsel %vm3456, %v3293, 0.0
      %v3517 = vadd.f32 %v3515, %v3516
      %v3518 = vsel %vm3456, %v3294, 0.0
      %v3519 = vadd.f32 %v3517, %v3518
      %v3520 = vrot.slane %v3519, 4
      %v3521 = vadd.f32 %v3519, %v3520
      %v3522 = vrot.slane %v3521, 2
      %v3523 = vadd.f32 %v3521, %v3522
      %v3524 = vrot.slane %v3523, 1
      %v3525 = vadd.f32 %v3523, %v3524
      %v3526 = vmul.f32 %v3263, %v3263
      %v3527 = vmul.f32 %v3264, %v3264
      %v3528 = vmul.f32 %v3265, %v3265
      %v3529 = vmul.f32 %v3266, %v3266
      %v3530 = vmul.f32 %v3267, %v3267
      %v3531 = vmul.f32 %v3268, %v3268
      %v3532 = vmul.f32 %v3269, %v3269
      %v3533 = vmul.f32 %v3270, %v3270
      %v3534 = vmul.f32 %v3271, %v3271
      %v3535 = vmul.f32 %v3272, %v3272
      %v3536 = vmul.f32 %v3273, %v3273
      %v3537 = vmul.f32 %v3274, %v3274
      %v3538 = vmul.f32 %v3275, %v3275
      %v3539 = vmul.f32 %v3276, %v3276
      %v3540 = vmul.f32 %v3277, %v3277
      %v3541 = vmul.f32 %v3278, %v3278
      %v3542 = vmul.f32 %v3279, %v3279
      %v3543 = vmul.f32 %v3280, %v3280
      %v3544 = vmul.f32 %v3281, %v3281
      %v3545 = vmul.f32 %v3282, %v3282
      %v3546 = vmul.f32 %v3283, %v3283
      %v3547 = vmul.f32 %v3284, %v3284
      %v3548 = vmul.f32 %v3285, %v3285
      %v3549 = vmul.f32 %v3286, %v3286
      %v3550 = vmul.f32 %v3287, %v3287
      %v3551 = vmul.f32 %v3288, %v3288
      %v3552 = vmul.f32 %v3289, %v3289
      %v3553 = vmul.f32 %v3290, %v3290
      %v3554 = vmul.f32 %v3291, %v3291
      %v3555 = vmul.f32 %v3292, %v3292
      %v3556 = vmul.f32 %v3293, %v3293
      %v3557 = vmul.f32 %v3294, %v3294
      %v3558 = vsel %vm3456, %v3526, 0.0
      %v3559 = vsel %vm3456, %v3527, 0.0
      %v3560 = vadd.f32 %v3558, %v3559
      %v3561 = vsel %vm3456, %v3528, 0.0
      %v3562 = vadd.f32 %v3560, %v3561
      %v3563 = vsel %vm3456, %v3529, 0.0
      %v3564 = vadd.f32 %v3562, %v3563
      %v3565 = vsel %vm3456, %v3530, 0.0
      %v3566 = vadd.f32 %v3564, %v3565
      %v3567 = vsel %vm3456, %v3531, 0.0
      %v3568 = vadd.f32 %v3566, %v3567
      %v3569 = vsel %vm3456, %v3532, 0.0
      %v3570 = vadd.f32 %v3568, %v3569
      %v3571 = vsel %vm3456, %v3533, 0.0
      %v3572 = vadd.f32 %v3570, %v3571
      %v3573 = vsel %vm3456, %v3534, 0.0
      %v3574 = vadd.f32 %v3572, %v3573
      %v3575 = vsel %vm3456, %v3535, 0.0
      %v3576 = vadd.f32 %v3574, %v3575
      %v3577 = vsel %vm3456, %v3536, 0.0
      %v3578 = vadd.f32 %v3576, %v3577
      %v3579 = vsel %vm3456, %v3537, 0.0
      %v3580 = vadd.f32 %v3578, %v3579
      %v3581 = vsel %vm3456, %v3538, 0.0
      %v3582 = vadd.f32 %v3580, %v3581
      %v3583 = vsel %vm3456, %v3539, 0.0
      %v3584 = vadd.f32 %v3582, %v3583
      %v3585 = vsel %vm3456, %v3540, 0.0
      %v3586 = vadd.f32 %v3584, %v3585
      %v3587 = vsel %vm3456, %v3541, 0.0
      %v3588 = vadd.f32 %v3586, %v3587
      %v3589 = vsel %vm3456, %v3542, 0.0
      %v3590 = vadd.f32 %v3588, %v3589
      %v3591 = vsel %vm3456, %v3543, 0.0
      %v3592 = vadd.f32 %v3590, %v3591
      %v3593 = vsel %vm3456, %v3544, 0.0
      %v3594 = vadd.f32 %v3592, %v3593
      %v3595 = vsel %vm3456, %v3545, 0.0
      %v3596 = vadd.f32 %v3594, %v3595
      %v3597 = vsel %vm3456, %v3546, 0.0
      %v3598 = vadd.f32 %v3596, %v3597
      %v3599 = vsel %vm3456, %v3547, 0.0
      %v3600 = vadd.f32 %v3598, %v3599
      %v3601 = vsel %vm3456, %v3548, 0.0
      %v3602 = vadd.f32 %v3600, %v3601
      %v3603 = vsel %vm3456, %v3549, 0.0
      %v3604 = vadd.f32 %v3602, %v3603
      %v3605 = vsel %vm3456, %v3550, 0.0
      %v3606 = vadd.f32 %v3604, %v3605
      %v3607 = vsel %vm3456, %v3551, 0.0
      %v3608 = vadd.f32 %v3606, %v3607
      %v3609 = vsel %vm3456, %v3552, 0.0
      %v3610 = vadd.f32 %v3608, %v3609
      %v3611 = vsel %vm3456, %v3553, 0.0
      %v3612 = vadd.f32 %v3610, %v3611
      %v3613 = vsel %vm3456, %v3554, 0.0
      %v3614 = vadd.f32 %v3612, %v3613
      %v3615 = vsel %vm3456, %v3555, 0.0
      %v3616 = vadd.f32 %v3614, %v3615
      %v3617 = vsel %vm3456, %v3556, 0.0
      %v3618 = vadd.f32 %v3616, %v3617
      %v3619 = vsel %vm3456, %v3557, 0.0
      %v3620 = vadd.f32 %v3618, %v3619
      %v3621 = vrot.slane %v3620, 4
      %v3622 = vadd.f32 %v3620, %v3621
      %v3623 = vrot.slane %v3622, 2
      %v3624 = vadd.f32 %v3622, %v3623
      %v3625 = vrot.slane %v3624, 1
      %v3626 = vadd.f32 %v3624, %v3625
      %vm3627 = vcmask 1040384
      %v3628 = vsel %vm3627, %v3525, %v3626
      %vm3629 = vcmask 1041408
      %v3630 = vsel %vm3629, %v3628, 0.0
      %3631 = vst.msk [vmem:[%s288] sm:$0xff] %vm3456, %v3630
      %p3632 = scmp.lt.s32.totalorder %s20, 0
      %s3633 = scalar_select %p3632, %s20, 0
      %p3634 = scmp.lt.s32.totalorder %s21, 1
      %s3635 = scalar_select %p3634, %s21, 1
      %s3636 = smul.addr %s3635, 32
      %s3637 = smul.addr %s3633, 64
      %s3638 = sadd.s32 %s3636, %s3637
      %s3639 = smul.addr %s3638, 4
      %s3640 = scalar_lea.vmem %s3, %s3639
      %p3641 = scmp.lt.s32.totalorder %s20, 0
      %s3642 = scalar_select %p3641, %s20, 0
      %p3643 = scmp.lt.s32.totalorder %s21, 1
      %s3644 = scalar_select %p3643, %s21, 1
      %s3645 = smul.addr %s3642, 2
      %s3646 = sadd.s32 %s3644, %s3645
      %s3647 = smul.addr %s3646, 8
      %s3648 = scalar_lea.vmem %s4, %s3647
      // Predicated region
      $region33: #{mfm0_forward.7} parent=31 // pred_check
        %p3649 = pneg %p128
      $region34: #{mfm0_forward.7} parent=31 // pred_check_branch
        %3651 = sbr.rel (%p3649) target = $region36
      $region35: #{mfm0_forward.7} parent=31 // pred_region
        _
      $region36: #{mfm0_forward.7} parent=31 // pred_fallthru
        _
      // Predicated region
      $region37: #{mfm0_forward.7} parent=31 // pred_check
        %p3652 = pneg %p156
      $region38: #{mfm0_forward.7} parent=31 // pred_check_branch
        %3654 = sbr.rel (%p3652) target = $region40
      $region39: #{mfm0_forward.7} parent=31 // pred_region
        _
      $region40: #{mfm0_forward.7} parent=31 // pred_fallthru
        _
    $region32: #{mfm0_forward.7} parent=5 // pred_fallthru
      _
    %p3655 = scmp.le.s32.totalorder 2, %s11
    // Predicated region
    $region41: #{mfm0_forward.7} parent=5 // pred_check
      %p3656 = pneg %p3655
    $region42: #{mfm0_forward.7} parent=5 // pred_check_branch
      %3658 = sbr.rel (%p3656) target = $region44
    $region43: #{mfm0_forward.7} parent=5 // pred_region
      %s3659 = ssub.s32 %s11, 2
      // Predicated region
      $region45: #{mfm0_forward.7} parent=43 // pred_check
        %p3660 = pneg %p134
      $region46: #{mfm0_forward.7} parent=43 // pred_check_branch
        %3662 = sbr.rel (%p3660) target = $region48
      $region47: #{mfm0_forward.7} parent=43 // pred_region
        %p3663 = scmp.lt.s32.totalorder %s22, 0
        %s3664 = scalar_select %p3663, %s22, 0
        %p3665 = scmp.lt.s32.totalorder %s23, 1
        %s3666 = scalar_select %p3665, %s23, 1
        %s3667 = smul.addr %s3666, 32
        %s3668 = smul.addr %s3664, 64
        %s3669 = sadd.s32 %s3667, %s3668
        %s3670 = smul.addr %s3669, 4
        %s3671 = scalar_lea.vmem %s3, %s3670
      $region48: #{mfm0_forward.7} parent=43 // pred_fallthru
        _
      // Predicated region
      $region49: #{mfm0_forward.7} parent=43 // pred_check
        %p3672 = pneg %p162
      $region50: #{mfm0_forward.7} parent=43 // pred_check_branch
        %3674 = sbr.rel (%p3672) target = $region52
      $region51: #{mfm0_forward.7} parent=43 // pred_region
        %p3675 = scmp.lt.s32.totalorder %s22, 0
        %s3676 = scalar_select %p3675, %s22, 0
        %p3677 = scmp.lt.s32.totalorder %s23, 1
        %s3678 = scalar_select %p3677, %s23, 1
        %s3679 = smul.addr %s3676, 2
        %s3680 = sadd.s32 %s3678, %s3679
        %s3681 = smul.addr %s3680, 8
        %s3682 = scalar_lea.vmem %s4, %s3681
      $region52: #{mfm0_forward.7} parent=43 // pred_fallthru
        _
    $region44: #{mfm0_forward.7} parent=5 // pred_fallthru
      _
  $region6: #{mfm0_forward.7} parent=0 // loop_footer
    %s15 = sadd.s32 1, %s11
  $region7: #{mfm0_forward.7} parent=0 // loop_footer_branch
    %10 = sbr.rel target = $region3
  $region8: #{mfm0_forward.7} parent=0 // loop_exit
    _

</llo_original>
